<compile_context>
chip_gen: v6e
topology: v6e:2x2x1
jax: 0.10.0
libtpu: 0.0.40
codegen_flags: <defaults>
</compile_context>

<pallas_src>
import functools

import jax
import jax.numpy as jnp
from jax.experimental import pallas as pl
from jax.experimental.pallas import tpu as pltpu

F32 = jnp.float32


def _full_spec(shape):
    """Full-array block (trivially satisfies the (8,128) rule) for grid=(1,)."""
    n = len(shape)
    return pl.BlockSpec(shape, lambda i, n=n: (0,) * n)


def _mm_t(x, w):
    """x @ w.T (w stored (out, in)) without materializing a transpose."""
    return jax.lax.dot_general(
        x, w, (((1,), (1,)), ((), ())), preferred_element_type=jnp.float32)


# ---------------------------------------------------------------------------
# Single fused kernel: all post-backbone compute of Model.forward
# ---------------------------------------------------------------------------
def _fused_forward_kernel(
        # activations from the backbone stubs
        lhs_ref, pool_ref, xh_ref,
        # TextModel.trans
        ttw_ref, ttb_ref,
        # ImageModel.hidden_trans (1x1 conv + Linear(49,M)) and trans
        cw_ref, cb_ref, lw_ref, lb_ref, itw_ref, itb_ref,
        # packed QKV projections + output projections of both MHAs
        wtxt_ref, btxt_ref, wimg_ref, bimg_ref,
        woA_ref, boA_ref, woB_ref, boB_ref,
        # classifiers
        tw1_ref, tb1_ref, tw2_ref, tb2_ref,
        iw1_ref, ib1_ref, iw2_ref, ib2_ref,
        # output
        pred_ref,
        *, B, S, K, M, nhead):
    Dh = M // nhead
    scale = 1.0 / float(Dh) ** 0.5

    # ---- TextModel.trans: Dropout(id) -> Linear(Hb, M) -> ReLU --------------
    lhs = lhs_ref[...]                                           # (B*S, Hb)
    text_hidden = jnp.maximum(_mm_t(lhs, ttw_ref[...]) + ttb_ref[...], 0.0)       # (B*S, M)
    text_feature = jnp.maximum(_mm_t(pool_ref[...], ttw_ref[...]) + ttb_ref[...], 0.0)  # (B, M)

    # ---- ImageModel --------------------------------------------------------
    xh = xh_ref[...]                                             # (B, C, P)
    # hidden_trans: 1x1 conv == channel matmul per spatial position
    y = jnp.einsum('kc,bcp->bkp', cw_ref[...], xh,
                   preferred_element_type=jnp.float32) + cb_ref[...][:, :, None]
    # Linear(P -> M) over flattened spatial axis, ReLU
    img_hidden = jnp.maximum(
        jnp.einsum('bkp,mp->bkm', y, lw_ref[...],
                   preferred_element_type=jnp.float32) + lb_ref[...][None], 0.0)   # (B, K, M)
    # resnet_p (global average pool) + trans (Linear(C, M) + ReLU)
    feat_raw = jnp.mean(xh, axis=2)                              # (B, C)
    img_feature = jnp.maximum(_mm_t(feat_raw, itw_ref[...]) + itb_ref[...], 0.0)   # (B, M)

    # ---- packed QKV projections (one 192-wide matmul per stream) ------------
    img_hidden_flat = img_hidden.reshape(B * K, M)               # row = b*K + k
    # text stream packs [ K_A | V_A | Q_B ]
    txt_proj = _mm_t(text_hidden, wtxt_ref[...]) + btxt_ref[...]     # (B*S, 3M)
    # image stream packs [ Q_A | K_B | V_B ]
    img_proj = _mm_t(img_hidden_flat, wimg_ref[...]) + bimg_ref[...]  # (B*K, 3M)

    def mha_mean(q_all, kv_all, q_off, k_off, v_off, Lq, Lk):
        """mean over query positions of multi-head attention (pre out-proj)."""
        rows = []
        for b in range(B):
            heads = []
            for h in range(nhead):
                q = q_all[b * Lq:(b + 1) * Lq, q_off + h * Dh: q_off + (h + 1) * Dh]
                k = kv_all[b * Lk:(b + 1) * Lk, k_off + h * Dh: k_off + (h + 1) * Dh]
                v = kv_all[b * Lk:(b + 1) * Lk, v_off + h * Dh: v_off + (h + 1) * Dh]
                s = jax.lax.dot_general(q * scale, k, (((1,), (1,)), ((), ())),
                                        preferred_element_type=jnp.float32)  # (Lq, Lk)
                s = s - jnp.max(s, axis=-1, keepdims=True)
                p = jnp.exp(s)
                p = p * pl.reciprocal(jnp.sum(p, axis=-1, keepdims=True), approx=True)
                # mean over query rows first (commutes with P @ V)
                p_mean = jnp.mean(p, axis=0, keepdims=True)                  # (1, Lk)
                heads.append(jnp.dot(p_mean, v,
                                     preferred_element_type=jnp.float32))    # (1, Dh)
            rows.append(jnp.concatenate(heads, axis=1))                      # (1, M)
        return jnp.concatenate(rows, axis=0)                                 # (B, M)

    # MHA A = self.img_text_attention(img_hs, text_hs, text_hs)
    attnA = mha_mean(img_proj, txt_proj, q_off=0, k_off=0, v_off=M, Lq=K, Lk=S)
    # MHA B = self.text_img_attention(text_hs, img_hs, img_hs)
    attnB = mha_mean(txt_proj, img_proj, q_off=2 * M, k_off=M, v_off=2 * M, Lq=S, Lk=K)

    # output projection after the sequence-mean (linear => they commute)
    text_img_attention_out = _mm_t(attnA, woA_ref[...]) + boA_ref[...]   # (B, M)
    img_text_attention_out = _mm_t(attnB, woB_ref[...]) + boB_ref[...]   # (B, M)

    # ---- classifiers + fusion + argmax --------------------------------------
    text_cat = jnp.concatenate([text_feature, img_text_attention_out], axis=1)  # (B, 2M)
    img_cat = jnp.concatenate([img_feature, text_img_attention_out], axis=1)    # (B, 2M)

    def cls_softmax(x, w1, b1, w2, b2):
        h = jnp.maximum(_mm_t(x, w1) + b1, 0.0)
        logits = _mm_t(h, w2) + b2
        logits = logits - jnp.max(logits, axis=1, keepdims=True)
        e = jnp.exp(logits)
        return e / jnp.sum(e, axis=1, keepdims=True)   # exact division for parity

    tp = cls_softmax(text_cat, tw1_ref[...], tb1_ref[...], tw2_ref[...], tb2_ref[...])
    ip = cls_softmax(img_cat, iw1_ref[...], ib1_ref[...], iw2_ref[...], ib2_ref[...])
    z = tp + ip
    # prob_vec = softmax(z); argmax(softmax(z)) == argmax(z), so the final
    # softmax is skipped (only pred_labels is returned on this path).
    ids = jax.lax.broadcasted_iota(jnp.int32, z.shape, 1)
    maxv = jnp.max(z, axis=1, keepdims=True)
    pred_ref[...] = jnp.min(jnp.where(z == maxv, ids, z.shape[1]),
                            axis=1, keepdims=True).astype(jnp.int32)


def fused_forward(lhs_flat, pooler, xh, p, *, nhead):
    BS, Hb = lhs_flat.shape
    B = pooler.shape[0]
    S = BS // B
    C, P = xh.shape[1], xh.shape[2]
    M = p['text_trans_w'].shape[0]
    K = p['img_conv_w'].shape[0]
    Oh = p['text_cls_w1'].shape[0]
    NL = p['text_cls_w2'].shape[0]

    args = [
        lhs_flat, pooler, xh,
        p['text_trans_w'], p['text_trans_b'].reshape(1, M),
        p['img_conv_w'], p['img_conv_b'].reshape(1, K),
        p['img_lin_w'], p['img_lin_b'].reshape(1, M),
        p['img_trans_w'], p['img_trans_b'].reshape(1, M),
        p['w_txt_pack'], p['b_txt_pack'].reshape(1, 3 * M),
        p['w_img_pack'], p['b_img_pack'].reshape(1, 3 * M),
        p['mha_img_text_wo'], p['mha_img_text_bo'].reshape(1, M),
        p['mha_text_img_wo'], p['mha_text_img_bo'].reshape(1, M),
        p['text_cls_w1'], p['text_cls_b1'].reshape(1, Oh),
        p['text_cls_w2'], p['text_cls_b2'].reshape(1, NL),
        p['img_cls_w1'], p['img_cls_b1'].reshape(1, Oh),
        p['img_cls_w2'], p['img_cls_b2'].reshape(1, NL),
    ]
    in_specs = [_full_spec(a.shape) for a in args]

    pred = pl.pallas_call(
        functools.partial(_fused_forward_kernel, B=B, S=S, K=K, M=M, nhead=nhead),
        out_shape=jax.ShapeDtypeStruct((B, 1), jnp.int32),
        grid=(1,),
        in_specs=in_specs,
        out_specs=_full_spec((B, 1)),
    )(*args)
    return pred


# ---------------------------------------------------------------------------
# Full model forward (inference path: labels=None -> return pred_labels)
# ---------------------------------------------------------------------------
def model_forward(params, texts, texts_mask, imgs, *, nhead):
    B, S = texts.shape

    # ---- text backbone stub -------------------------------------------------
    # TODO(synk): pretrained BERT backbone is not translatable; deterministic
    # embedding + tanh-pooler stub produces (B,S,Hb)/(B,Hb). The attention
    # mask only feeds BERT in the reference model, so it is unused here.
    lhs = params['bert_emb'][texts]                                  # (B, S, Hb)
    pooler = jnp.tanh(lhs[:, 0, :] @ params['bert_pool_w'].T
                      + params['bert_pool_b'])                       # (B, Hb)

    # ---- image backbone stub ------------------------------------------------
    # TODO(synk): pretrained ResNet50 trunk (resnet_h) replaced by a
    # deterministic avg-pool + 1x1-projection stub producing (B, C_res, 7, 7).
    H, W = imgs.shape[2], imgs.shape[3]
    pooled = imgs.reshape(B, 3, 7, H // 7, 7, W // 7).mean(axis=(3, 5))
    hidden = jnp.maximum(jnp.einsum('ci,bihw->bchw',
                                    params['res_stub_w'], pooled), 0.0)
    xh = hidden.reshape(B, hidden.shape[1], 49)                      # (B, C_res, 49)

    lhs_flat = lhs.reshape(B * S, -1)                                # row = b*S + s

    pred = fused_forward(lhs_flat, pooler, xh, params, nhead=nhead)
    return pred[:, 0]


# ---------------------------------------------------------------------------
# Deterministic parameter init + packing of the MHA projection weights
# ---------------------------------------------------------------------------
def init_params(key, *, vocab, Hb, C_res, M, K, nhead, Oh, NL):
    ks = iter(jax.random.split(key, 64))

    def w(shape, scale=0.05):
        return scale * jax.random.normal(next(ks), shape, F32)

    def mha(E):
        return {'wq': w((E, E)), 'bq': w((E,)),
                'wk': w((E, E)), 'bk': w((E,)),
                'wv': w((E, E)), 'bv': w((E,)),
                'wo': w((E, E)), 'bo': w((E,))}

    return {
        # backbone stubs
        'bert_emb': w((vocab, Hb)),
        'bert_pool_w': w((Hb, Hb)),
        'bert_pool_b': jnp.zeros((Hb,), F32),
        'res_stub_w': w((C_res, 3)),
        # TextModel.trans
        'text_trans_w': w((M, Hb)), 'text_trans_b': w((M,)),
        # ImageModel.hidden_trans / trans
        'img_conv_w': w((K, C_res)), 'img_conv_b': w((K,)),
        'img_lin_w': w((M, 49)), 'img_lin_b': w((M,)),
        'img_trans_w': w((M, C_res)), 'img_trans_b': w((M,)),
        # cross attentions (torch in_proj / out_proj equivalents)
        'mha_img_text': mha(M),      # query = image hidden state
        'mha_text_img': mha(M),      # query = text hidden state
        # classifiers
        'text_cls_w1': w((Oh, 2 * M)), 'text_cls_b1': w((Oh,)),
        'text_cls_w2': w((NL, Oh)), 'text_cls_b2': w((NL,)),
        'img_cls_w1': w((Oh, 2 * M)), 'img_cls_b1': w((Oh,)),
        'img_cls_w2': w((NL, Oh)), 'img_cls_b2': w((NL,)),
    }


def prepare_params(params):
    """Pack the two MHAs' Q/K/V projections per input stream (done once)."""
    p = dict(params)
    A = params['mha_img_text']   # query = img_hidden, key/value = text_hidden
    Bm = params['mha_text_img']  # query = text_hidden, key/value = img_hidden
    # applied to text_hidden: [ K_A | V_A | Q_B ]
    p['w_txt_pack'] = jnp.concatenate([A['wk'], A['wv'], Bm['wq']], axis=0)
    p['b_txt_pack'] = jnp.concatenate([A['bk'], A['bv'], Bm['bq']], axis=0)
    # applied to img_hidden:  [ Q_A | K_B | V_B ]
    p['w_img_pack'] = jnp.concatenate([A['wq'], Bm['wk'], Bm['wv']], axis=0)
    p['b_img_pack'] = jnp.concatenate([A['bq'], Bm['bk'], Bm['bv']], axis=0)
    p['mha_img_text_wo'] = A['wo']
    p['mha_img_text_bo'] = A['bo']
    p['mha_text_img_wo'] = Bm['wo']
    p['mha_text_img_bo'] = Bm['bo']
    return p


if __name__ == "__main__":
    # Small config consistent with the module's forward:
    B, S, vocab, Hb = 2, 8, 100, 32          # batch, text seq, vocab, bert hidden
    C_res = 128                               # stands in for resnet fc.in_features
    M, K, nhead = 64, 8, 4                    # middle_hidden_size, img_hidden_seq, heads
    Oh, NL = 32, 3                            # out_hidden_size, num_labels

    root = jax.random.PRNGKey(0)
    k_par, k_txt, k_img = jax.random.split(root, 3)
    params = prepare_params(init_params(k_par, vocab=vocab, Hb=Hb, C_res=C_res,
                                        M=M, K=K, nhead=nhead, Oh=Oh, NL=NL))

    texts = jax.random.randint(k_txt, (B, S), 0, vocab)
    texts_mask = jnp.ones((B, S), F32)
    imgs = jax.random.normal(k_img, (B, 3, 28, 28), F32)   # NCHW

    fwd = jax.jit(functools.partial(model_forward, nhead=nhead))
    pred_labels = fwd(params, texts, texts_mask, imgs)
    jax.block_until_ready(pred_labels)
    assert pred_labels.shape == (B,)
    print("KERNEL_OK")
</pallas_src>

<mosaic_0001>
module attributes {stable_mosaic.version = 11 : i64} {
  func.func @_fused_forward_kernel(%arg0: i32, %arg1: memref<16x32xf32, #tpu.memory_space<vmem>>, %arg2: memref<2x32xf32, #tpu.memory_space<vmem>>, %arg3: memref<2x128x49xf32, #tpu.memory_space<vmem>>, %arg4: memref<64x32xf32, #tpu.memory_space<vmem>>, %arg5: memref<1x64xf32, #tpu.memory_space<vmem>>, %arg6: memref<8x128xf32, #tpu.memory_space<vmem>>, %arg7: memref<1x8xf32, #tpu.memory_space<vmem>>, %arg8: memref<64x49xf32, #tpu.memory_space<vmem>>, %arg9: memref<1x64xf32, #tpu.memory_space<vmem>>, %arg10: memref<64x128xf32, #tpu.memory_space<vmem>>, %arg11: memref<1x64xf32, #tpu.memory_space<vmem>>, %arg12: memref<192x64xf32, #tpu.memory_space<vmem>>, %arg13: memref<1x192xf32, #tpu.memory_space<vmem>>, %arg14: memref<192x64xf32, #tpu.memory_space<vmem>>, %arg15: memref<1x192xf32, #tpu.memory_space<vmem>>, %arg16: memref<64x64xf32, #tpu.memory_space<vmem>>, %arg17: memref<1x64xf32, #tpu.memory_space<vmem>>, %arg18: memref<64x64xf32, #tpu.memory_space<vmem>>, %arg19: memref<1x64xf32, #tpu.memory_space<vmem>>, %arg20: memref<32x128xf32, #tpu.memory_space<vmem>>, %arg21: memref<1x32xf32, #tpu.memory_space<vmem>>, %arg22: memref<3x32xf32, #tpu.memory_space<vmem>>, %arg23: memref<1x3xf32, #tpu.memory_space<vmem>>, %arg24: memref<32x128xf32, #tpu.memory_space<vmem>>, %arg25: memref<1x32xf32, #tpu.memory_space<vmem>>, %arg26: memref<3x32xf32, #tpu.memory_space<vmem>>, %arg27: memref<1x3xf32, #tpu.memory_space<vmem>>, %arg28: memref<2x1xi32, #tpu.memory_space<vmem>>) attributes {dimension_semantics = [#tpu.dimension_semantics<arbitrary>], iteration_bounds = array<i64: 1>, scalar_prefetch = 0 : i64, scratch_operands = 0 : i64, tpu.core_type = #tpu.core_type<tc>, window_params = [{pipeline_mode = #tpu.pipeline_mode<synchronous>, transform_indices = @transform_0, window_bounds = array<i64: 16, 32>}, {pipeline_mode = #tpu.pipeline_mode<synchronous>, transform_indices = @transform_1, window_bounds = array<i64: 2, 32>}, {pipeline_mode = #tpu.pipeline_mode<synchronous>, transform_indices = @transform_2, window_bounds = array<i64: 2, 128, 49>}, {pipeline_mode = #tpu.pipeline_mode<synchronous>, transform_indices = @transform_3, window_bounds = array<i64: 64, 32>}, {pipeline_mode = #tpu.pipeline_mode<synchronous>, transform_indices = @transform_4, window_bounds = array<i64: 1, 64>}, {pipeline_mode = #tpu.pipeline_mode<synchronous>, transform_indices = @transform_5, window_bounds = array<i64: 8, 128>}, {pipeline_mode = #tpu.pipeline_mode<synchronous>, transform_indices = @transform_6, window_bounds = array<i64: 1, 8>}, {pipeline_mode = #tpu.pipeline_mode<synchronous>, transform_indices = @transform_7, window_bounds = array<i64: 64, 49>}, {pipeline_mode = #tpu.pipeline_mode<synchronous>, transform_indices = @transform_8, window_bounds = array<i64: 1, 64>}, {pipeline_mode = #tpu.pipeline_mode<synchronous>, transform_indices = @transform_9, window_bounds = array<i64: 64, 128>}, {pipeline_mode = #tpu.pipeline_mode<synchronous>, transform_indices = @transform_10, window_bounds = array<i64: 1, 64>}, {pipeline_mode = #tpu.pipeline_mode<synchronous>, transform_indices = @transform_11, window_bounds = array<i64: 192, 64>}, {pipeline_mode = #tpu.pipeline_mode<synchronous>, transform_indices = @transform_12, window_bounds = array<i64: 1, 192>}, {pipeline_mode = #tpu.pipeline_mode<synchronous>, transform_indices = @transform_13, window_bounds = array<i64: 192, 64>}, {pipeline_mode = #tpu.pipeline_mode<synchronous>, transform_indices = @transform_14, window_bounds = array<i64: 1, 192>}, {pipeline_mode = #tpu.pipeline_mode<synchronous>, transform_indices = @transform_15, window_bounds = array<i64: 64, 64>}, {pipeline_mode = #tpu.pipeline_mode<synchronous>, transform_indices = @transform_16, window_bounds = array<i64: 1, 64>}, {pipeline_mode = #tpu.pipeline_mode<synchronous>, transform_indices = @transform_17, window_bounds = array<i64: 64, 64>}, {pipeline_mode = #tpu.pipeline_mode<synchronous>, transform_indices = @transform_18, window_bounds = array<i64: 1, 64>}, {pipeline_mode = #tpu.pipeline_mode<synchronous>, transform_indices = @transform_19, window_bounds = array<i64: 32, 128>}, {pipeline_mode = #tpu.pipeline_mode<synchronous>, transform_indices = @transform_20, window_bounds = array<i64: 1, 32>}, {pipeline_mode = #tpu.pipeline_mode<synchronous>, transform_indices = @transform_21, window_bounds = array<i64: 3, 32>}, {pipeline_mode = #tpu.pipeline_mode<synchronous>, transform_indices = @transform_22, window_bounds = array<i64: 1, 3>}, {pipeline_mode = #tpu.pipeline_mode<synchronous>, transform_indices = @transform_23, window_bounds = array<i64: 32, 128>}, {pipeline_mode = #tpu.pipeline_mode<synchronous>, transform_indices = @transform_24, window_bounds = array<i64: 1, 32>}, {pipeline_mode = #tpu.pipeline_mode<synchronous>, transform_indices = @transform_25, window_bounds = array<i64: 3, 32>}, {pipeline_mode = #tpu.pipeline_mode<synchronous>, transform_indices = @transform_26, window_bounds = array<i64: 1, 3>}, {pipeline_mode = #tpu.pipeline_mode<synchronous>, transform_indices = @transform_27, window_bounds = array<i64: 2, 1>}]} {
    %c0 = arith.constant 0 : index
    %c0_0 = arith.constant 0 : index
    %0 = vector.load %arg1[%c0, %c0_0] : memref<16x32xf32, #tpu.memory_space<vmem>>, vector<16x32xf32>
    %c0_1 = arith.constant 0 : index
    %c0_2 = arith.constant 0 : index
    %1 = vector.load %arg4[%c0_1, %c0_2] : memref<64x32xf32, #tpu.memory_space<vmem>>, vector<64x32xf32>
    %cst = arith.constant dense<0.000000e+00> : vector<16x64xf32>
    %2 = tpu.matmul %0, %1, %cst {dimension_numbers = #tpu.dot_dimension_numbers<[1], [1], [0], [0], [0, 0, 1, 0], [], []>} : vector<16x32xf32>, vector<64x32xf32>, vector<16x64xf32> -> vector<16x64xf32>
    %c0_3 = arith.constant 0 : index
    %c0_4 = arith.constant 0 : index
    %3 = vector.load %arg5[%c0_3, %c0_4] : memref<1x64xf32, #tpu.memory_space<vmem>>, vector<1x64xf32>
    %4 = vector.broadcast %3 : vector<1x64xf32> to vector<16x64xf32>
    %5 = arith.addf %2, %4 : vector<16x64xf32>
    %cst_5 = arith.constant 0.000000e+00 : f32
    %6 = vector.broadcast %cst_5 : f32 to vector<16x64xf32>
    %7 = arith.maximumf %5, %6 : vector<16x64xf32>
    %c0_6 = arith.constant 0 : index
    %c0_7 = arith.constant 0 : index
    %8 = vector.load %arg2[%c0_6, %c0_7] : memref<2x32xf32, #tpu.memory_space<vmem>>, vector<2x32xf32>
    %c0_8 = arith.constant 0 : index
    %c0_9 = arith.constant 0 : index
    %9 = vector.load %arg4[%c0_8, %c0_9] : memref<64x32xf32, #tpu.memory_space<vmem>>, vector<64x32xf32>
    %cst_10 = arith.constant dense<0.000000e+00> : vector<2x64xf32>
    %10 = tpu.matmul %8, %9, %cst_10 {dimension_numbers = #tpu.dot_dimension_numbers<[1], [1], [0], [0], [0, 0, 1, 0], [], []>} : vector<2x32xf32>, vector<64x32xf32>, vector<2x64xf32> -> vector<2x64xf32>
    %c0_11 = arith.constant 0 : index
    %c0_12 = arith.constant 0 : index
    %11 = vector.load %arg5[%c0_11, %c0_12] : memref<1x64xf32, #tpu.memory_space<vmem>>, vector<1x64xf32>
    %12 = vector.broadcast %11 : vector<1x64xf32> to vector<2x64xf32>
    %13 = arith.addf %10, %12 : vector<2x64xf32>
    %cst_13 = arith.constant 0.000000e+00 : f32
    %14 = vector.broadcast %cst_13 : f32 to vector<2x64xf32>
    %15 = arith.maximumf %13, %14 : vector<2x64xf32>
    %c0_14 = arith.constant 0 : index
    %c0_15 = arith.constant 0 : index
    %c0_16 = arith.constant 0 : index
    %16 = vector.load %arg3[%c0_14, %c0_15, %c0_16] : memref<2x128x49xf32, #tpu.memory_space<vmem>>, vector<2x128x49xf32>
    %c0_17 = arith.constant 0 : index
    %c0_18 = arith.constant 0 : index
    %17 = vector.load %arg6[%c0_17, %c0_18] : memref<8x128xf32, #tpu.memory_space<vmem>>, vector<8x128xf32>
    "tpu.trace_start"() <{level = 10 : i32, message = "kc,bcp->bkp"}> : () -> ()
    %cst_19 = arith.constant dense<0.000000e+00> : vector<2x49x8xf32>
    %18 = tpu.matmul %16, %17, %cst_19 {dimension_numbers = #tpu.dot_dimension_numbers<[1], [1], [0, 2], [0], [0, 0, 0, 2, 1, 0], [], []>} : vector<2x128x49xf32>, vector<8x128xf32>, vector<2x49x8xf32> -> vector<2x49x8xf32>
    %19 = tpu.transpose %18, [0, 2, 1] : vector<2x49x8xf32> -> vector<2x8x49xf32>
    "tpu.trace_stop"() : () -> ()
    %c0_20 = arith.constant 0 : index
    %c0_21 = arith.constant 0 : index
    %20 = vector.load %arg7[%c0_20, %c0_21] : memref<1x8xf32, #tpu.memory_space<vmem>>, vector<1x8xf32>
    %21 = vector.shape_cast %20 : vector<1x8xf32> to vector<1x8x1xf32>
    %22 = vector.broadcast %21 : vector<1x8x1xf32> to vector<2x8x49xf32>
    %23 = arith.addf %19, %22 : vector<2x8x49xf32>
    %c0_22 = arith.constant 0 : index
    %c0_23 = arith.constant 0 : index
    %24 = vector.load %arg8[%c0_22, %c0_23] : memref<64x49xf32, #tpu.memory_space<vmem>>, vector<64x49xf32>
    "tpu.trace_start"() <{level = 10 : i32, message = "bkp,mp->bkm"}> : () -> ()
    %cst_24 = arith.constant dense<0.000000e+00> : vector<2x8x64xf32>
    %25 = tpu.matmul %23, %24, %cst_24 {dimension_numbers = #tpu.dot_dimension_numbers<[2], [1], [0, 1], [0], [0, 0, 0, 1, 1, 0], [], []>} : vector<2x8x49xf32>, vector<64x49xf32>, vector<2x8x64xf32> -> vector<2x8x64xf32>
    "tpu.trace_stop"() : () -> ()
    %c0_25 = arith.constant 0 : index
    %c0_26 = arith.constant 0 : index
    %26 = vector.load %arg9[%c0_25, %c0_26] : memref<1x64xf32, #tpu.memory_space<vmem>>, vector<1x64xf32>
    %27 = vector.shape_cast %26 : vector<1x64xf32> to vector<1x1x64xf32>
    %28 = vector.broadcast %27 : vector<1x1x64xf32> to vector<2x8x64xf32>
    %29 = arith.addf %25, %28 : vector<2x8x64xf32>
    %cst_27 = arith.constant 0.000000e+00 : f32
    %30 = vector.broadcast %cst_27 : f32 to vector<2x8x64xf32>
    %31 = arith.maximumf %29, %30 : vector<2x8x64xf32>
    %cst_28 = arith.constant dense<0.000000e+00> : vector<2x128xf32>
    %32 = vector.multi_reduction <add>, %16, %cst_28 [2] : vector<2x128x49xf32> to vector<2x128xf32>
    %cst_29 = arith.constant 4.900000e+01 : f32
    %33 = vector.broadcast %cst_29 : f32 to vector<2x128xf32>
    %34 = arith.divf %32, %33 : vector<2x128xf32>
    %c0_30 = arith.constant 0 : index
    %c0_31 = arith.constant 0 : index
    %35 = vector.load %arg10[%c0_30, %c0_31] : memref<64x128xf32, #tpu.memory_space<vmem>>, vector<64x128xf32>
    %cst_32 = arith.constant dense<0.000000e+00> : vector<2x64xf32>
    %36 = tpu.matmul %34, %35, %cst_32 {dimension_numbers = #tpu.dot_dimension_numbers<[1], [1], [0], [0], [0, 0, 1, 0], [], []>} : vector<2x128xf32>, vector<64x128xf32>, vector<2x64xf32> -> vector<2x64xf32>
    %c0_33 = arith.constant 0 : index
    %c0_34 = arith.constant 0 : index
    %37 = vector.load %arg11[%c0_33, %c0_34] : memref<1x64xf32, #tpu.memory_space<vmem>>, vector<1x64xf32>
    %38 = vector.broadcast %37 : vector<1x64xf32> to vector<2x64xf32>
    %39 = arith.addf %36, %38 : vector<2x64xf32>
    %cst_35 = arith.constant 0.000000e+00 : f32
    %40 = vector.broadcast %cst_35 : f32 to vector<2x64xf32>
    %41 = arith.maximumf %39, %40 : vector<2x64xf32>
    %42 = vector.shape_cast %31 : vector<2x8x64xf32> to vector<16x64xf32>
    %c0_36 = arith.constant 0 : index
    %c0_37 = arith.constant 0 : index
    %43 = vector.load %arg12[%c0_36, %c0_37] : memref<192x64xf32, #tpu.memory_space<vmem>>, vector<192x64xf32>
    %cst_38 = arith.constant dense<0.000000e+00> : vector<16x192xf32>
    %44 = tpu.matmul %7, %43, %cst_38 {dimension_numbers = #tpu.dot_dimension_numbers<[1], [1], [0], [0], [0, 0, 1, 0], [], []>} : vector<16x64xf32>, vector<192x64xf32>, vector<16x192xf32> -> vector<16x192xf32>
    %c0_39 = arith.constant 0 : index
    %c0_40 = arith.constant 0 : index
    %45 = vector.load %arg13[%c0_39, %c0_40] : memref<1x192xf32, #tpu.memory_space<vmem>>, vector<1x192xf32>
    %46 = vector.broadcast %45 : vector<1x192xf32> to vector<16x192xf32>
    %47 = arith.addf %44, %46 : vector<16x192xf32>
    %c0_41 = arith.constant 0 : index
    %c0_42 = arith.constant 0 : index
    %48 = vector.load %arg14[%c0_41, %c0_42] : memref<192x64xf32, #tpu.memory_space<vmem>>, vector<192x64xf32>
    %cst_43 = arith.constant dense<0.000000e+00> : vector<16x192xf32>
    %49 = tpu.matmul %42, %48, %cst_43 {dimension_numbers = #tpu.dot_dimension_numbers<[1], [1], [0], [0], [0, 0, 1, 0], [], []>} : vector<16x64xf32>, vector<192x64xf32>, vector<16x192xf32> -> vector<16x192xf32>
    %c0_44 = arith.constant 0 : index
    %c0_45 = arith.constant 0 : index
    %50 = vector.load %arg15[%c0_44, %c0_45] : memref<1x192xf32, #tpu.memory_space<vmem>>, vector<1x192xf32>
    %51 = vector.broadcast %50 : vector<1x192xf32> to vector<16x192xf32>
    %52 = arith.addf %49, %51 : vector<16x192xf32>
    %53 = vector.extract_strided_slice %52 {offsets = [0, 0], sizes = [8, 16], strides = [1, 1]} : vector<16x192xf32> to vector<8x16xf32>
    %54 = vector.extract_strided_slice %47 {offsets = [0, 0], sizes = [8, 16], strides = [1, 1]} : vector<16x192xf32> to vector<8x16xf32>
    %55 = vector.extract_strided_slice %47 {offsets = [0, 64], sizes = [8, 16], strides = [1, 1]} : vector<16x192xf32> to vector<8x16xf32>
    %cst_46 = arith.constant 2.500000e-01 : f32
    %56 = vector.broadcast %cst_46 : f32 to vector<8x16xf32>
    %57 = arith.mulf %53, %56 : vector<8x16xf32>
    %cst_47 = arith.constant dense<0.000000e+00> : vector<8x8xf32>
    %58 = tpu.matmul %57, %54, %cst_47 {dimension_numbers = #tpu.dot_dimension_numbers<[1], [1], [0], [0], [0, 0, 1, 0], [], []>} : vector<8x16xf32>, vector<8x16xf32>, vector<8x8xf32> -> vector<8x8xf32>
    %cst_48 = arith.constant dense<0xFF800000> : vector<8xf32>
    %59 = vector.multi_reduction <maximumf>, %58, %cst_48 [1] : vector<8x8xf32> to vector<8xf32>
    %60 = vector.shape_cast %59 : vector<8xf32> to vector<8x1xf32>
    %61 = vector.broadcast %60 : vector<8x1xf32> to vector<8x8xf32>
    %62 = arith.subf %58, %61 : vector<8x8xf32>
    %63 = math.exp %62 : vector<8x8xf32>
    %cst_49 = arith.constant dense<0.000000e+00> : vector<8xf32>
    %64 = vector.multi_reduction <add>, %63, %cst_49 [1] : vector<8x8xf32> to vector<8xf32>
    %65 = vector.shape_cast %64 : vector<8xf32> to vector<8x1xf32>
    %66 = tpu.reciprocal %65 {approx = true} : vector<8x1xf32> -> vector<8x1xf32>
    %67 = vector.broadcast %66 : vector<8x1xf32> to vector<8x8xf32>
    %68 = arith.mulf %63, %67 : vector<8x8xf32>
    %cst_50 = arith.constant dense<0.000000e+00> : vector<8xf32>
    %69 = vector.multi_reduction <add>, %68, %cst_50 [0] : vector<8x8xf32> to vector<8xf32>
    %70 = vector.shape_cast %69 : vector<8xf32> to vector<1x8xf32>
    %cst_51 = arith.constant 8.000000e+00 : f32
    %71 = vector.broadcast %cst_51 : f32 to vector<1x8xf32>
    %72 = arith.divf %70, %71 : vector<1x8xf32>
    %cst_52 = arith.constant dense<0.000000e+00> : vector<1x16xf32>
    %73 = tpu.matmul %72, %55, %cst_52 {dimension_numbers = #tpu.dot_dimension_numbers<[1], [0], [0], [1], [0, 0, 1, 1], [], []>} : vector<1x8xf32>, vector<8x16xf32>, vector<1x16xf32> -> vector<1x16xf32>
    %74 = vector.extract_strided_slice %52 {offsets = [0, 16], sizes = [8, 16], strides = [1, 1]} : vector<16x192xf32> to vector<8x16xf32>
    %75 = vector.extract_strided_slice %47 {offsets = [0, 16], sizes = [8, 16], strides = [1, 1]} : vector<16x192xf32> to vector<8x16xf32>
    %76 = vector.extract_strided_slice %47 {offsets = [0, 80], sizes = [8, 16], strides = [1, 1]} : vector<16x192xf32> to vector<8x16xf32>
    %cst_53 = arith.constant 2.500000e-01 : f32
    %77 = vector.broadcast %cst_53 : f32 to vector<8x16xf32>
    %78 = arith.mulf %74, %77 : vector<8x16xf32>
    %cst_54 = arith.constant dense<0.000000e+00> : vector<8x8xf32>
    %79 = tpu.matmul %78, %75, %cst_54 {dimension_numbers = #tpu.dot_dimension_numbers<[1], [1], [0], [0], [0, 0, 1, 0], [], []>} : vector<8x16xf32>, vector<8x16xf32>, vector<8x8xf32> -> vector<8x8xf32>
    %cst_55 = arith.constant dense<0xFF800000> : vector<8xf32>
    %80 = vector.multi_reduction <maximumf>, %79, %cst_55 [1] : vector<8x8xf32> to vector<8xf32>
    %81 = vector.shape_cast %80 : vector<8xf32> to vector<8x1xf32>
    %82 = vector.broadcast %81 : vector<8x1xf32> to vector<8x8xf32>
    %83 = arith.subf %79, %82 : vector<8x8xf32>
    %84 = math.exp %83 : vector<8x8xf32>
    %cst_56 = arith.constant dense<0.000000e+00> : vector<8xf32>
    %85 = vector.multi_reduction <add>, %84, %cst_56 [1] : vector<8x8xf32> to vector<8xf32>
    %86 = vector.shape_cast %85 : vector<8xf32> to vector<8x1xf32>
    %87 = tpu.reciprocal %86 {approx = true} : vector<8x1xf32> -> vector<8x1xf32>
    %88 = vector.broadcast %87 : vector<8x1xf32> to vector<8x8xf32>
    %89 = arith.mulf %84, %88 : vector<8x8xf32>
    %cst_57 = arith.constant dense<0.000000e+00> : vector<8xf32>
    %90 = vector.multi_reduction <add>, %89, %cst_57 [0] : vector<8x8xf32> to vector<8xf32>
    %91 = vector.shape_cast %90 : vector<8xf32> to vector<1x8xf32>
    %cst_58 = arith.constant 8.000000e+00 : f32
    %92 = vector.broadcast %cst_58 : f32 to vector<1x8xf32>
    %93 = arith.divf %91, %92 : vector<1x8xf32>
    %cst_59 = arith.constant dense<0.000000e+00> : vector<1x16xf32>
    %94 = tpu.matmul %93, %76, %cst_59 {dimension_numbers = #tpu.dot_dimension_numbers<[1], [0], [0], [1], [0, 0, 1, 1], [], []>} : vector<1x8xf32>, vector<8x16xf32>, vector<1x16xf32> -> vector<1x16xf32>
    %95 = vector.extract_strided_slice %52 {offsets = [0, 32], sizes = [8, 16], strides = [1, 1]} : vector<16x192xf32> to vector<8x16xf32>
    %96 = vector.extract_strided_slice %47 {offsets = [0, 32], sizes = [8, 16], strides = [1, 1]} : vector<16x192xf32> to vector<8x16xf32>
    %97 = vector.extract_strided_slice %47 {offsets = [0, 96], sizes = [8, 16], strides = [1, 1]} : vector<16x192xf32> to vector<8x16xf32>
    %cst_60 = arith.constant 2.500000e-01 : f32
    %98 = vector.broadcast %cst_60 : f32 to vector<8x16xf32>
    %99 = arith.mulf %95, %98 : vector<8x16xf32>
    %cst_61 = arith.constant dense<0.000000e+00> : vector<8x8xf32>
    %100 = tpu.matmul %99, %96, %cst_61 {dimension_numbers = #tpu.dot_dimension_numbers<[1], [1], [0], [0], [0, 0, 1, 0], [], []>} : vector<8x16xf32>, vector<8x16xf32>, vector<8x8xf32> -> vector<8x8xf32>
    %cst_62 = arith.constant dense<0xFF800000> : vector<8xf32>
    %101 = vector.multi_reduction <maximumf>, %100, %cst_62 [1] : vector<8x8xf32> to vector<8xf32>
    %102 = vector.shape_cast %101 : vector<8xf32> to vector<8x1xf32>
    %103 = vector.broadcast %102 : vector<8x1xf32> to vector<8x8xf32>
    %104 = arith.subf %100, %103 : vector<8x8xf32>
    %105 = math.exp %104 : vector<8x8xf32>
    %cst_63 = arith.constant dense<0.000000e+00> : vector<8xf32>
    %106 = vector.multi_reduction <add>, %105, %cst_63 [1] : vector<8x8xf32> to vector<8xf32>
    %107 = vector.shape_cast %106 : vector<8xf32> to vector<8x1xf32>
    %108 = tpu.reciprocal %107 {approx = true} : vector<8x1xf32> -> vector<8x1xf32>
    %109 = vector.broadcast %108 : vector<8x1xf32> to vector<8x8xf32>
    %110 = arith.mulf %105, %109 : vector<8x8xf32>
    %cst_64 = arith.constant dense<0.000000e+00> : vector<8xf32>
    %111 = vector.multi_reduction <add>, %110, %cst_64 [0] : vector<8x8xf32> to vector<8xf32>
    %112 = vector.shape_cast %111 : vector<8xf32> to vector<1x8xf32>
    %cst_65 = arith.constant 8.000000e+00 : f32
    %113 = vector.broadcast %cst_65 : f32 to vector<1x8xf32>
    %114 = arith.divf %112, %113 : vector<1x8xf32>
    %cst_66 = arith.constant dense<0.000000e+00> : vector<1x16xf32>
    %115 = tpu.matmul %114, %97, %cst_66 {dimension_numbers = #tpu.dot_dimension_numbers<[1], [0], [0], [1], [0, 0, 1, 1], [], []>} : vector<1x8xf32>, vector<8x16xf32>, vector<1x16xf32> -> vector<1x16xf32>
    %116 = vector.extract_strided_slice %52 {offsets = [0, 48], sizes = [8, 16], strides = [1, 1]} : vector<16x192xf32> to vector<8x16xf32>
    %117 = vector.extract_strided_slice %47 {offsets = [0, 48], sizes = [8, 16], strides = [1, 1]} : vector<16x192xf32> to vector<8x16xf32>
    %118 = vector.extract_strided_slice %47 {offsets = [0, 112], sizes = [8, 16], strides = [1, 1]} : vector<16x192xf32> to vector<8x16xf32>
    %cst_67 = arith.constant 2.500000e-01 : f32
    %119 = vector.broadcast %cst_67 : f32 to vector<8x16xf32>
    %120 = arith.mulf %116, %119 : vector<8x16xf32>
    %cst_68 = arith.constant dense<0.000000e+00> : vector<8x8xf32>
    %121 = tpu.matmul %120, %117, %cst_68 {dimension_numbers = #tpu.dot_dimension_numbers<[1], [1], [0], [0], [0, 0, 1, 0], [], []>} : vector<8x16xf32>, vector<8x16xf32>, vector<8x8xf32> -> vector<8x8xf32>
    %cst_69 = arith.constant dense<0xFF800000> : vector<8xf32>
    %122 = vector.multi_reduction <maximumf>, %121, %cst_69 [1] : vector<8x8xf32> to vector<8xf32>
    %123 = vector.shape_cast %122 : vector<8xf32> to vector<8x1xf32>
    %124 = vector.broadcast %123 : vector<8x1xf32> to vector<8x8xf32>
    %125 = arith.subf %121, %124 : vector<8x8xf32>
    %126 = math.exp %125 : vector<8x8xf32>
    %cst_70 = arith.constant dense<0.000000e+00> : vector<8xf32>
    %127 = vector.multi_reduction <add>, %126, %cst_70 [1] : vector<8x8xf32> to vector<8xf32>
    %128 = vector.shape_cast %127 : vector<8xf32> to vector<8x1xf32>
    %129 = tpu.reciprocal %128 {approx = true} : vector<8x1xf32> -> vector<8x1xf32>
    %130 = vector.broadcast %129 : vector<8x1xf32> to vector<8x8xf32>
    %131 = arith.mulf %126, %130 : vector<8x8xf32>
    %cst_71 = arith.constant dense<0.000000e+00> : vector<8xf32>
    %132 = vector.multi_reduction <add>, %131, %cst_71 [0] : vector<8x8xf32> to vector<8xf32>
    %133 = vector.shape_cast %132 : vector<8xf32> to vector<1x8xf32>
    %cst_72 = arith.constant 8.000000e+00 : f32
    %134 = vector.broadcast %cst_72 : f32 to vector<1x8xf32>
    %135 = arith.divf %133, %134 : vector<1x8xf32>
    %cst_73 = arith.constant dense<0.000000e+00> : vector<1x16xf32>
    %136 = tpu.matmul %135, %118, %cst_73 {dimension_numbers = #tpu.dot_dimension_numbers<[1], [0], [0], [1], [0, 0, 1, 1], [], []>} : vector<1x8xf32>, vector<8x16xf32>, vector<1x16xf32> -> vector<1x16xf32>
    %137 = tpu.concatenate %73, %94, %115, %136 in 1 : vector<1x16xf32>, vector<1x16xf32>, vector<1x16xf32>, vector<1x16xf32> -> vector<1x64xf32>
    %138 = vector.extract_strided_slice %52 {offsets = [8, 0], sizes = [8, 16], strides = [1, 1]} : vector<16x192xf32> to vector<8x16xf32>
    %139 = vector.extract_strided_slice %47 {offsets = [8, 0], sizes = [8, 16], strides = [1, 1]} : vector<16x192xf32> to vector<8x16xf32>
    %140 = vector.extract_strided_slice %47 {offsets = [8, 64], sizes = [8, 16], strides = [1, 1]} : vector<16x192xf32> to vector<8x16xf32>
    %cst_74 = arith.constant 2.500000e-01 : f32
    %141 = vector.broadcast %cst_74 : f32 to vector<8x16xf32>
    %142 = arith.mulf %138, %141 : vector<8x16xf32>
    %cst_75 = arith.constant dense<0.000000e+00> : vector<8x8xf32>
    %143 = tpu.matmul %142, %139, %cst_75 {dimension_numbers = #tpu.dot_dimension_numbers<[1], [1], [0], [0], [0, 0, 1, 0], [], []>} : vector<8x16xf32>, vector<8x16xf32>, vector<8x8xf32> -> vector<8x8xf32>
    %cst_76 = arith.constant dense<0xFF800000> : vector<8xf32>
    %144 = vector.multi_reduction <maximumf>, %143, %cst_76 [1] : vector<8x8xf32> to vector<8xf32>
    %145 = vector.shape_cast %144 : vector<8xf32> to vector<8x1xf32>
    %146 = vector.broadcast %145 : vector<8x1xf32> to vector<8x8xf32>
    %147 = arith.subf %143, %146 : vector<8x8xf32>
    %148 = math.exp %147 : vector<8x8xf32>
    %cst_77 = arith.constant dense<0.000000e+00> : vector<8xf32>
    %149 = vector.multi_reduction <add>, %148, %cst_77 [1] : vector<8x8xf32> to vector<8xf32>
    %150 = vector.shape_cast %149 : vector<8xf32> to vector<8x1xf32>
    %151 = tpu.reciprocal %150 {approx = true} : vector<8x1xf32> -> vector<8x1xf32>
    %152 = vector.broadcast %151 : vector<8x1xf32> to vector<8x8xf32>
    %153 = arith.mulf %148, %152 : vector<8x8xf32>
    %cst_78 = arith.constant dense<0.000000e+00> : vector<8xf32>
    %154 = vector.multi_reduction <add>, %153, %cst_78 [0] : vector<8x8xf32> to vector<8xf32>
    %155 = vector.shape_cast %154 : vector<8xf32> to vector<1x8xf32>
    %cst_79 = arith.constant 8.000000e+00 : f32
    %156 = vector.broadcast %cst_79 : f32 to vector<1x8xf32>
    %157 = arith.divf %155, %156 : vector<1x8xf32>
    %cst_80 = arith.constant dense<0.000000e+00> : vector<1x16xf32>
    %158 = tpu.matmul %157, %140, %cst_80 {dimension_numbers = #tpu.dot_dimension_numbers<[1], [0], [0], [1], [0, 0, 1, 1], [], []>} : vector<1x8xf32>, vector<8x16xf32>, vector<1x16xf32> -> vector<1x16xf32>
    %159 = vector.extract_strided_slice %52 {offsets = [8, 16], sizes = [8, 16], strides = [1, 1]} : vector<16x192xf32> to vector<8x16xf32>
    %160 = vector.extract_strided_slice %47 {offsets = [8, 16], sizes = [8, 16], strides = [1, 1]} : vector<16x192xf32> to vector<8x16xf32>
    %161 = vector.extract_strided_slice %47 {offsets = [8, 80], sizes = [8, 16], strides = [1, 1]} : vector<16x192xf32> to vector<8x16xf32>
    %cst_81 = arith.constant 2.500000e-01 : f32
    %162 = vector.broadcast %cst_81 : f32 to vector<8x16xf32>
    %163 = arith.mulf %159, %162 : vector<8x16xf32>
    %cst_82 = arith.constant dense<0.000000e+00> : vector<8x8xf32>
    %164 = tpu.matmul %163, %160, %cst_82 {dimension_numbers = #tpu.dot_dimension_numbers<[1], [1], [0], [0], [0, 0, 1, 0], [], []>} : vector<8x16xf32>, vector<8x16xf32>, vector<8x8xf32> -> vector<8x8xf32>
    %cst_83 = arith.constant dense<0xFF800000> : vector<8xf32>
    %165 = vector.multi_reduction <maximumf>, %164, %cst_83 [1] : vector<8x8xf32> to vector<8xf32>
    %166 = vector.shape_cast %165 : vector<8xf32> to vector<8x1xf32>
    %167 = vector.broadcast %166 : vector<8x1xf32> to vector<8x8xf32>
    %168 = arith.subf %164, %167 : vector<8x8xf32>
    %169 = math.exp %168 : vector<8x8xf32>
    %cst_84 = arith.constant dense<0.000000e+00> : vector<8xf32>
    %170 = vector.multi_reduction <add>, %169, %cst_84 [1] : vector<8x8xf32> to vector<8xf32>
    %171 = vector.shape_cast %170 : vector<8xf32> to vector<8x1xf32>
    %172 = tpu.reciprocal %171 {approx = true} : vector<8x1xf32> -> vector<8x1xf32>
    %173 = vector.broadcast %172 : vector<8x1xf32> to vector<8x8xf32>
    %174 = arith.mulf %169, %173 : vector<8x8xf32>
    %cst_85 = arith.constant dense<0.000000e+00> : vector<8xf32>
    %175 = vector.multi_reduction <add>, %174, %cst_85 [0] : vector<8x8xf32> to vector<8xf32>
    %176 = vector.shape_cast %175 : vector<8xf32> to vector<1x8xf32>
    %cst_86 = arith.constant 8.000000e+00 : f32
    %177 = vector.broadcast %cst_86 : f32 to vector<1x8xf32>
    %178 = arith.divf %176, %177 : vector<1x8xf32>
    %cst_87 = arith.constant dense<0.000000e+00> : vector<1x16xf32>
    %179 = tpu.matmul %178, %161, %cst_87 {dimension_numbers = #tpu.dot_dimension_numbers<[1], [0], [0], [1], [0, 0, 1, 1], [], []>} : vector<1x8xf32>, vector<8x16xf32>, vector<1x16xf32> -> vector<1x16xf32>
    %180 = vector.extract_strided_slice %52 {offsets = [8, 32], sizes = [8, 16], strides = [1, 1]} : vector<16x192xf32> to vector<8x16xf32>
    %181 = vector.extract_strided_slice %47 {offsets = [8, 32], sizes = [8, 16], strides = [1, 1]} : vector<16x192xf32> to vector<8x16xf32>
    %182 = vector.extract_strided_slice %47 {offsets = [8, 96], sizes = [8, 16], strides = [1, 1]} : vector<16x192xf32> to vector<8x16xf32>
    %cst_88 = arith.constant 2.500000e-01 : f32
    %183 = vector.broadcast %cst_88 : f32 to vector<8x16xf32>
    %184 = arith.mulf %180, %183 : vector<8x16xf32>
    %cst_89 = arith.constant dense<0.000000e+00> : vector<8x8xf32>
    %185 = tpu.matmul %184, %181, %cst_89 {dimension_numbers = #tpu.dot_dimension_numbers<[1], [1], [0], [0], [0, 0, 1, 0], [], []>} : vector<8x16xf32>, vector<8x16xf32>, vector<8x8xf32> -> vector<8x8xf32>
    %cst_90 = arith.constant dense<0xFF800000> : vector<8xf32>
    %186 = vector.multi_reduction <maximumf>, %185, %cst_90 [1] : vector<8x8xf32> to vector<8xf32>
    %187 = vector.shape_cast %186 : vector<8xf32> to vector<8x1xf32>
    %188 = vector.broadcast %187 : vector<8x1xf32> to vector<8x8xf32>
    %189 = arith.subf %185, %188 : vector<8x8xf32>
    %190 = math.exp %189 : vector<8x8xf32>
    %cst_91 = arith.constant dense<0.000000e+00> : vector<8xf32>
    %191 = vector.multi_reduction <add>, %190, %cst_91 [1] : vector<8x8xf32> to vector<8xf32>
    %192 = vector.shape_cast %191 : vector<8xf32> to vector<8x1xf32>
    %193 = tpu.reciprocal %192 {approx = true} : vector<8x1xf32> -> vector<8x1xf32>
    %194 = vector.broadcast %193 : vector<8x1xf32> to vector<8x8xf32>
    %195 = arith.mulf %190, %194 : vector<8x8xf32>
    %cst_92 = arith.constant dense<0.000000e+00> : vector<8xf32>
    %196 = vector.multi_reduction <add>, %195, %cst_92 [0] : vector<8x8xf32> to vector<8xf32>
    %197 = vector.shape_cast %196 : vector<8xf32> to vector<1x8xf32>
    %cst_93 = arith.constant 8.000000e+00 : f32
    %198 = vector.broadcast %cst_93 : f32 to vector<1x8xf32>
    %199 = arith.divf %197, %198 : vector<1x8xf32>
    %cst_94 = arith.constant dense<0.000000e+00> : vector<1x16xf32>
    %200 = tpu.matmul %199, %182, %cst_94 {dimension_numbers = #tpu.dot_dimension_numbers<[1], [0], [0], [1], [0, 0, 1, 1], [], []>} : vector<1x8xf32>, vector<8x16xf32>, vector<1x16xf32> -> vector<1x16xf32>
    %201 = vector.extract_strided_slice %52 {offsets = [8, 48], sizes = [8, 16], strides = [1, 1]} : vector<16x192xf32> to vector<8x16xf32>
    %202 = vector.extract_strided_slice %47 {offsets = [8, 48], sizes = [8, 16], strides = [1, 1]} : vector<16x192xf32> to vector<8x16xf32>
    %203 = vector.extract_strided_slice %47 {offsets = [8, 112], sizes = [8, 16], strides = [1, 1]} : vector<16x192xf32> to vector<8x16xf32>
    %cst_95 = arith.constant 2.500000e-01 : f32
    %204 = vector.broadcast %cst_95 : f32 to vector<8x16xf32>
    %205 = arith.mulf %201, %204 : vector<8x16xf32>
    %cst_96 = arith.constant dense<0.000000e+00> : vector<8x8xf32>
    %206 = tpu.matmul %205, %202, %cst_96 {dimension_numbers = #tpu.dot_dimension_numbers<[1], [1], [0], [0], [0, 0, 1, 0], [], []>} : vector<8x16xf32>, vector<8x16xf32>, vector<8x8xf32> -> vector<8x8xf32>
    %cst_97 = arith.constant dense<0xFF800000> : vector<8xf32>
    %207 = vector.multi_reduction <maximumf>, %206, %cst_97 [1] : vector<8x8xf32> to vector<8xf32>
    %208 = vector.shape_cast %207 : vector<8xf32> to vector<8x1xf32>
    %209 = vector.broadcast %208 : vector<8x1xf32> to vector<8x8xf32>
    %210 = arith.subf %206, %209 : vector<8x8xf32>
    %211 = math.exp %210 : vector<8x8xf32>
    %cst_98 = arith.constant dense<0.000000e+00> : vector<8xf32>
    %212 = vector.multi_reduction <add>, %211, %cst_98 [1] : vector<8x8xf32> to vector<8xf32>
    %213 = vector.shape_cast %212 : vector<8xf32> to vector<8x1xf32>
    %214 = tpu.reciprocal %213 {approx = true} : vector<8x1xf32> -> vector<8x1xf32>
    %215 = vector.broadcast %214 : vector<8x1xf32> to vector<8x8xf32>
    %216 = arith.mulf %211, %215 : vector<8x8xf32>
    %cst_99 = arith.constant dense<0.000000e+00> : vector<8xf32>
    %217 = vector.multi_reduction <add>, %216, %cst_99 [0] : vector<8x8xf32> to vector<8xf32>
    %218 = vector.shape_cast %217 : vector<8xf32> to vector<1x8xf32>
    %cst_100 = arith.constant 8.000000e+00 : f32
    %219 = vector.broadcast %cst_100 : f32 to vector<1x8xf32>
    %220 = arith.divf %218, %219 : vector<1x8xf32>
    %cst_101 = arith.constant dense<0.000000e+00> : vector<1x16xf32>
    %221 = tpu.matmul %220, %203, %cst_101 {dimension_numbers = #tpu.dot_dimension_numbers<[1], [0], [0], [1], [0, 0, 1, 1], [], []>} : vector<1x8xf32>, vector<8x16xf32>, vector<1x16xf32> -> vector<1x16xf32>
    %222 = tpu.concatenate %158, %179, %200, %221 in 1 : vector<1x16xf32>, vector<1x16xf32>, vector<1x16xf32>, vector<1x16xf32> -> vector<1x64xf32>
    %223 = tpu.concatenate %137, %222 in 0 : vector<1x64xf32>, vector<1x64xf32> -> vector<2x64xf32>
    %224 = vector.extract_strided_slice %47 {offsets = [0, 128], sizes = [8, 16], strides = [1, 1]} : vector<16x192xf32> to vector<8x16xf32>
    %225 = vector.extract_strided_slice %52 {offsets = [0, 64], sizes = [8, 16], strides = [1, 1]} : vector<16x192xf32> to vector<8x16xf32>
    %226 = vector.extract_strided_slice %52 {offsets = [0, 128], sizes = [8, 16], strides = [1, 1]} : vector<16x192xf32> to vector<8x16xf32>
    %cst_102 = arith.constant 2.500000e-01 : f32
    %227 = vector.broadcast %cst_102 : f32 to vector<8x16xf32>
    %228 = arith.mulf %224, %227 : vector<8x16xf32>
    %cst_103 = arith.constant dense<0.000000e+00> : vector<8x8xf32>
    %229 = tpu.matmul %228, %225, %cst_103 {dimension_numbers = #tpu.dot_dimension_numbers<[1], [1], [0], [0], [0, 0, 1, 0], [], []>} : vector<8x16xf32>, vector<8x16xf32>, vector<8x8xf32> -> vector<8x8xf32>
    %cst_104 = arith.constant dense<0xFF800000> : vector<8xf32>
    %230 = vector.multi_reduction <maximumf>, %229, %cst_104 [1] : vector<8x8xf32> to vector<8xf32>
    %231 = vector.shape_cast %230 : vector<8xf32> to vector<8x1xf32>
    %232 = vector.broadcast %231 : vector<8x1xf32> to vector<8x8xf32>
    %233 = arith.subf %229, %232 : vector<8x8xf32>
    %234 = math.exp %233 : vector<8x8xf32>
    %cst_105 = arith.constant dense<0.000000e+00> : vector<8xf32>
    %235 = vector.multi_reduction <add>, %234, %cst_105 [1] : vector<8x8xf32> to vector<8xf32>
    %236 = vector.shape_cast %235 : vector<8xf32> to vector<8x1xf32>
    %237 = tpu.reciprocal %236 {approx = true} : vector<8x1xf32> -> vector<8x1xf32>
    %238 = vector.broadcast %237 : vector<8x1xf32> to vector<8x8xf32>
    %239 = arith.mulf %234, %238 : vector<8x8xf32>
    %cst_106 = arith.constant dense<0.000000e+00> : vector<8xf32>
    %240 = vector.multi_reduction <add>, %239, %cst_106 [0] : vector<8x8xf32> to vector<8xf32>
    %241 = vector.shape_cast %240 : vector<8xf32> to vector<1x8xf32>
    %cst_107 = arith.constant 8.000000e+00 : f32
    %242 = vector.broadcast %cst_107 : f32 to vector<1x8xf32>
    %243 = arith.divf %241, %242 : vector<1x8xf32>
    %cst_108 = arith.constant dense<0.000000e+00> : vector<1x16xf32>
    %244 = tpu.matmul %243, %226, %cst_108 {dimension_numbers = #tpu.dot_dimension_numbers<[1], [0], [0], [1], [0, 0, 1, 1], [], []>} : vector<1x8xf32>, vector<8x16xf32>, vector<1x16xf32> -> vector<1x16xf32>
    %245 = vector.extract_strided_slice %47 {offsets = [0, 144], sizes = [8, 16], strides = [1, 1]} : vector<16x192xf32> to vector<8x16xf32>
    %246 = vector.extract_strided_slice %52 {offsets = [0, 80], sizes = [8, 16], strides = [1, 1]} : vector<16x192xf32> to vector<8x16xf32>
    %247 = vector.extract_strided_slice %52 {offsets = [0, 144], sizes = [8, 16], strides = [1, 1]} : vector<16x192xf32> to vector<8x16xf32>
    %cst_109 = arith.constant 2.500000e-01 : f32
    %248 = vector.broadcast %cst_109 : f32 to vector<8x16xf32>
    %249 = arith.mulf %245, %248 : vector<8x16xf32>
    %cst_110 = arith.constant dense<0.000000e+00> : vector<8x8xf32>
    %250 = tpu.matmul %249, %246, %cst_110 {dimension_numbers = #tpu.dot_dimension_numbers<[1], [1], [0], [0], [0, 0, 1, 0], [], []>} : vector<8x16xf32>, vector<8x16xf32>, vector<8x8xf32> -> vector<8x8xf32>
    %cst_111 = arith.constant dense<0xFF800000> : vector<8xf32>
    %251 = vector.multi_reduction <maximumf>, %250, %cst_111 [1] : vector<8x8xf32> to vector<8xf32>
    %252 = vector.shape_cast %251 : vector<8xf32> to vector<8x1xf32>
    %253 = vector.broadcast %252 : vector<8x1xf32> to vector<8x8xf32>
    %254 = arith.subf %250, %253 : vector<8x8xf32>
    %255 = math.exp %254 : vector<8x8xf32>
    %cst_112 = arith.constant dense<0.000000e+00> : vector<8xf32>
    %256 = vector.multi_reduction <add>, %255, %cst_112 [1] : vector<8x8xf32> to vector<8xf32>
    %257 = vector.shape_cast %256 : vector<8xf32> to vector<8x1xf32>
    %258 = tpu.reciprocal %257 {approx = true} : vector<8x1xf32> -> vector<8x1xf32>
    %259 = vector.broadcast %258 : vector<8x1xf32> to vector<8x8xf32>
    %260 = arith.mulf %255, %259 : vector<8x8xf32>
    %cst_113 = arith.constant dense<0.000000e+00> : vector<8xf32>
    %261 = vector.multi_reduction <add>, %260, %cst_113 [0] : vector<8x8xf32> to vector<8xf32>
    %262 = vector.shape_cast %261 : vector<8xf32> to vector<1x8xf32>
    %cst_114 = arith.constant 8.000000e+00 : f32
    %263 = vector.broadcast %cst_114 : f32 to vector<1x8xf32>
    %264 = arith.divf %262, %263 : vector<1x8xf32>
    %cst_115 = arith.constant dense<0.000000e+00> : vector<1x16xf32>
    %265 = tpu.matmul %264, %247, %cst_115 {dimension_numbers = #tpu.dot_dimension_numbers<[1], [0], [0], [1], [0, 0, 1, 1], [], []>} : vector<1x8xf32>, vector<8x16xf32>, vector<1x16xf32> -> vector<1x16xf32>
    %266 = vector.extract_strided_slice %47 {offsets = [0, 160], sizes = [8, 16], strides = [1, 1]} : vector<16x192xf32> to vector<8x16xf32>
    %267 = vector.extract_strided_slice %52 {offsets = [0, 96], sizes = [8, 16], strides = [1, 1]} : vector<16x192xf32> to vector<8x16xf32>
    %268 = vector.extract_strided_slice %52 {offsets = [0, 160], sizes = [8, 16], strides = [1, 1]} : vector<16x192xf32> to vector<8x16xf32>
    %cst_116 = arith.constant 2.500000e-01 : f32
    %269 = vector.broadcast %cst_116 : f32 to vector<8x16xf32>
    %270 = arith.mulf %266, %269 : vector<8x16xf32>
    %cst_117 = arith.constant dense<0.000000e+00> : vector<8x8xf32>
    %271 = tpu.matmul %270, %267, %cst_117 {dimension_numbers = #tpu.dot_dimension_numbers<[1], [1], [0], [0], [0, 0, 1, 0], [], []>} : vector<8x16xf32>, vector<8x16xf32>, vector<8x8xf32> -> vector<8x8xf32>
    %cst_118 = arith.constant dense<0xFF800000> : vector<8xf32>
    %272 = vector.multi_reduction <maximumf>, %271, %cst_118 [1] : vector<8x8xf32> to vector<8xf32>
    %273 = vector.shape_cast %272 : vector<8xf32> to vector<8x1xf32>
    %274 = vector.broadcast %273 : vector<8x1xf32> to vector<8x8xf32>
    %275 = arith.subf %271, %274 : vector<8x8xf32>
    %276 = math.exp %275 : vector<8x8xf32>
    %cst_119 = arith.constant dense<0.000000e+00> : vector<8xf32>
    %277 = vector.multi_reduction <add>, %276, %cst_119 [1] : vector<8x8xf32> to vector<8xf32>
    %278 = vector.shape_cast %277 : vector<8xf32> to vector<8x1xf32>
    %279 = tpu.reciprocal %278 {approx = true} : vector<8x1xf32> -> vector<8x1xf32>
    %280 = vector.broadcast %279 : vector<8x1xf32> to vector<8x8xf32>
    %281 = arith.mulf %276, %280 : vector<8x8xf32>
    %cst_120 = arith.constant dense<0.000000e+00> : vector<8xf32>
    %282 = vector.multi_reduction <add>, %281, %cst_120 [0] : vector<8x8xf32> to vector<8xf32>
    %283 = vector.shape_cast %282 : vector<8xf32> to vector<1x8xf32>
    %cst_121 = arith.constant 8.000000e+00 : f32
    %284 = vector.broadcast %cst_121 : f32 to vector<1x8xf32>
    %285 = arith.divf %283, %284 : vector<1x8xf32>
    %cst_122 = arith.constant dense<0.000000e+00> : vector<1x16xf32>
    %286 = tpu.matmul %285, %268, %cst_122 {dimension_numbers = #tpu.dot_dimension_numbers<[1], [0], [0], [1], [0, 0, 1, 1], [], []>} : vector<1x8xf32>, vector<8x16xf32>, vector<1x16xf32> -> vector<1x16xf32>
    %287 = vector.extract_strided_slice %47 {offsets = [0, 176], sizes = [8, 16], strides = [1, 1]} : vector<16x192xf32> to vector<8x16xf32>
    %288 = vector.extract_strided_slice %52 {offsets = [0, 112], sizes = [8, 16], strides = [1, 1]} : vector<16x192xf32> to vector<8x16xf32>
    %289 = vector.extract_strided_slice %52 {offsets = [0, 176], sizes = [8, 16], strides = [1, 1]} : vector<16x192xf32> to vector<8x16xf32>
    %cst_123 = arith.constant 2.500000e-01 : f32
    %290 = vector.broadcast %cst_123 : f32 to vector<8x16xf32>
    %291 = arith.mulf %287, %290 : vector<8x16xf32>
    %cst_124 = arith.constant dense<0.000000e+00> : vector<8x8xf32>
    %292 = tpu.matmul %291, %288, %cst_124 {dimension_numbers = #tpu.dot_dimension_numbers<[1], [1], [0], [0], [0, 0, 1, 0], [], []>} : vector<8x16xf32>, vector<8x16xf32>, vector<8x8xf32> -> vector<8x8xf32>
    %cst_125 = arith.constant dense<0xFF800000> : vector<8xf32>
    %293 = vector.multi_reduction <maximumf>, %292, %cst_125 [1] : vector<8x8xf32> to vector<8xf32>
    %294 = vector.shape_cast %293 : vector<8xf32> to vector<8x1xf32>
    %295 = vector.broadcast %294 : vector<8x1xf32> to vector<8x8xf32>
    %296 = arith.subf %292, %295 : vector<8x8xf32>
    %297 = math.exp %296 : vector<8x8xf32>
    %cst_126 = arith.constant dense<0.000000e+00> : vector<8xf32>
    %298 = vector.multi_reduction <add>, %297, %cst_126 [1] : vector<8x8xf32> to vector<8xf32>
    %299 = vector.shape_cast %298 : vector<8xf32> to vector<8x1xf32>
    %300 = tpu.reciprocal %299 {approx = true} : vector<8x1xf32> -> vector<8x1xf32>
    %301 = vector.broadcast %300 : vector<8x1xf32> to vector<8x8xf32>
    %302 = arith.mulf %297, %301 : vector<8x8xf32>
    %cst_127 = arith.constant dense<0.000000e+00> : vector<8xf32>
    %303 = vector.multi_reduction <add>, %302, %cst_127 [0] : vector<8x8xf32> to vector<8xf32>
    %304 = vector.shape_cast %303 : vector<8xf32> to vector<1x8xf32>
    %cst_128 = arith.constant 8.000000e+00 : f32
    %305 = vector.broadcast %cst_128 : f32 to vector<1x8xf32>
    %306 = arith.divf %304, %305 : vector<1x8xf32>
    %cst_129 = arith.constant dense<0.000000e+00> : vector<1x16xf32>
    %307 = tpu.matmul %306, %289, %cst_129 {dimension_numbers = #tpu.dot_dimension_numbers<[1], [0], [0], [1], [0, 0, 1, 1], [], []>} : vector<1x8xf32>, vector<8x16xf32>, vector<1x16xf32> -> vector<1x16xf32>
    %308 = tpu.concatenate %244, %265, %286, %307 in 1 : vector<1x16xf32>, vector<1x16xf32>, vector<1x16xf32>, vector<1x16xf32> -> vector<1x64xf32>
    %309 = vector.extract_strided_slice %47 {offsets = [8, 128], sizes = [8, 16], strides = [1, 1]} : vector<16x192xf32> to vector<8x16xf32>
    %310 = vector.extract_strided_slice %52 {offsets = [8, 64], sizes = [8, 16], strides = [1, 1]} : vector<16x192xf32> to vector<8x16xf32>
    %311 = vector.extract_strided_slice %52 {offsets = [8, 128], sizes = [8, 16], strides = [1, 1]} : vector<16x192xf32> to vector<8x16xf32>
    %cst_130 = arith.constant 2.500000e-01 : f32
    %312 = vector.broadcast %cst_130 : f32 to vector<8x16xf32>
    %313 = arith.mulf %309, %312 : vector<8x16xf32>
    %cst_131 = arith.constant dense<0.000000e+00> : vector<8x8xf32>
    %314 = tpu.matmul %313, %310, %cst_131 {dimension_numbers = #tpu.dot_dimension_numbers<[1], [1], [0], [0], [0, 0, 1, 0], [], []>} : vector<8x16xf32>, vector<8x16xf32>, vector<8x8xf32> -> vector<8x8xf32>
    %cst_132 = arith.constant dense<0xFF800000> : vector<8xf32>
    %315 = vector.multi_reduction <maximumf>, %314, %cst_132 [1] : vector<8x8xf32> to vector<8xf32>
    %316 = vector.shape_cast %315 : vector<8xf32> to vector<8x1xf32>
    %317 = vector.broadcast %316 : vector<8x1xf32> to vector<8x8xf32>
    %318 = arith.subf %314, %317 : vector<8x8xf32>
    %319 = math.exp %318 : vector<8x8xf32>
    %cst_133 = arith.constant dense<0.000000e+00> : vector<8xf32>
    %320 = vector.multi_reduction <add>, %319, %cst_133 [1] : vector<8x8xf32> to vector<8xf32>
    %321 = vector.shape_cast %320 : vector<8xf32> to vector<8x1xf32>
    %322 = tpu.reciprocal %321 {approx = true} : vector<8x1xf32> -> vector<8x1xf32>
    %323 = vector.broadcast %322 : vector<8x1xf32> to vector<8x8xf32>
    %324 = arith.mulf %319, %323 : vector<8x8xf32>
    %cst_134 = arith.constant dense<0.000000e+00> : vector<8xf32>
    %325 = vector.multi_reduction <add>, %324, %cst_134 [0] : vector<8x8xf32> to vector<8xf32>
    %326 = vector.shape_cast %325 : vector<8xf32> to vector<1x8xf32>
    %cst_135 = arith.constant 8.000000e+00 : f32
    %327 = vector.broadcast %cst_135 : f32 to vector<1x8xf32>
    %328 = arith.divf %326, %327 : vector<1x8xf32>
    %cst_136 = arith.constant dense<0.000000e+00> : vector<1x16xf32>
    %329 = tpu.matmul %328, %311, %cst_136 {dimension_numbers = #tpu.dot_dimension_numbers<[1], [0], [0], [1], [0, 0, 1, 1], [], []>} : vector<1x8xf32>, vector<8x16xf32>, vector<1x16xf32> -> vector<1x16xf32>
    %330 = vector.extract_strided_slice %47 {offsets = [8, 144], sizes = [8, 16], strides = [1, 1]} : vector<16x192xf32> to vector<8x16xf32>
    %331 = vector.extract_strided_slice %52 {offsets = [8, 80], sizes = [8, 16], strides = [1, 1]} : vector<16x192xf32> to vector<8x16xf32>
    %332 = vector.extract_strided_slice %52 {offsets = [8, 144], sizes = [8, 16], strides = [1, 1]} : vector<16x192xf32> to vector<8x16xf32>
    %cst_137 = arith.constant 2.500000e-01 : f32
    %333 = vector.broadcast %cst_137 : f32 to vector<8x16xf32>
    %334 = arith.mulf %330, %333 : vector<8x16xf32>
    %cst_138 = arith.constant dense<0.000000e+00> : vector<8x8xf32>
    %335 = tpu.matmul %334, %331, %cst_138 {dimension_numbers = #tpu.dot_dimension_numbers<[1], [1], [0], [0], [0, 0, 1, 0], [], []>} : vector<8x16xf32>, vector<8x16xf32>, vector<8x8xf32> -> vector<8x8xf32>
    %cst_139 = arith.constant dense<0xFF800000> : vector<8xf32>
    %336 = vector.multi_reduction <maximumf>, %335, %cst_139 [1] : vector<8x8xf32> to vector<8xf32>
    %337 = vector.shape_cast %336 : vector<8xf32> to vector<8x1xf32>
    %338 = vector.broadcast %337 : vector<8x1xf32> to vector<8x8xf32>
    %339 = arith.subf %335, %338 : vector<8x8xf32>
    %340 = math.exp %339 : vector<8x8xf32>
    %cst_140 = arith.constant dense<0.000000e+00> : vector<8xf32>
    %341 = vector.multi_reduction <add>, %340, %cst_140 [1] : vector<8x8xf32> to vector<8xf32>
    %342 = vector.shape_cast %341 : vector<8xf32> to vector<8x1xf32>
    %343 = tpu.reciprocal %342 {approx = true} : vector<8x1xf32> -> vector<8x1xf32>
    %344 = vector.broadcast %343 : vector<8x1xf32> to vector<8x8xf32>
    %345 = arith.mulf %340, %344 : vector<8x8xf32>
    %cst_141 = arith.constant dense<0.000000e+00> : vector<8xf32>
    %346 = vector.multi_reduction <add>, %345, %cst_141 [0] : vector<8x8xf32> to vector<8xf32>
    %347 = vector.shape_cast %346 : vector<8xf32> to vector<1x8xf32>
    %cst_142 = arith.constant 8.000000e+00 : f32
    %348 = vector.broadcast %cst_142 : f32 to vector<1x8xf32>
    %349 = arith.divf %347, %348 : vector<1x8xf32>
    %cst_143 = arith.constant dense<0.000000e+00> : vector<1x16xf32>
    %350 = tpu.matmul %349, %332, %cst_143 {dimension_numbers = #tpu.dot_dimension_numbers<[1], [0], [0], [1], [0, 0, 1, 1], [], []>} : vector<1x8xf32>, vector<8x16xf32>, vector<1x16xf32> -> vector<1x16xf32>
    %351 = vector.extract_strided_slice %47 {offsets = [8, 160], sizes = [8, 16], strides = [1, 1]} : vector<16x192xf32> to vector<8x16xf32>
    %352 = vector.extract_strided_slice %52 {offsets = [8, 96], sizes = [8, 16], strides = [1, 1]} : vector<16x192xf32> to vector<8x16xf32>
    %353 = vector.extract_strided_slice %52 {offsets = [8, 160], sizes = [8, 16], strides = [1, 1]} : vector<16x192xf32> to vector<8x16xf32>
    %cst_144 = arith.constant 2.500000e-01 : f32
    %354 = vector.broadcast %cst_144 : f32 to vector<8x16xf32>
    %355 = arith.mulf %351, %354 : vector<8x16xf32>
    %cst_145 = arith.constant dense<0.000000e+00> : vector<8x8xf32>
    %356 = tpu.matmul %355, %352, %cst_145 {dimension_numbers = #tpu.dot_dimension_numbers<[1], [1], [0], [0], [0, 0, 1, 0], [], []>} : vector<8x16xf32>, vector<8x16xf32>, vector<8x8xf32> -> vector<8x8xf32>
    %cst_146 = arith.constant dense<0xFF800000> : vector<8xf32>
    %357 = vector.multi_reduction <maximumf>, %356, %cst_146 [1] : vector<8x8xf32> to vector<8xf32>
    %358 = vector.shape_cast %357 : vector<8xf32> to vector<8x1xf32>
    %359 = vector.broadcast %358 : vector<8x1xf32> to vector<8x8xf32>
    %360 = arith.subf %356, %359 : vector<8x8xf32>
    %361 = math.exp %360 : vector<8x8xf32>
    %cst_147 = arith.constant dense<0.000000e+00> : vector<8xf32>
    %362 = vector.multi_reduction <add>, %361, %cst_147 [1] : vector<8x8xf32> to vector<8xf32>
    %363 = vector.shape_cast %362 : vector<8xf32> to vector<8x1xf32>
    %364 = tpu.reciprocal %363 {approx = true} : vector<8x1xf32> -> vector<8x1xf32>
    %365 = vector.broadcast %364 : vector<8x1xf32> to vector<8x8xf32>
    %366 = arith.mulf %361, %365 : vector<8x8xf32>
    %cst_148 = arith.constant dense<0.000000e+00> : vector<8xf32>
    %367 = vector.multi_reduction <add>, %366, %cst_148 [0] : vector<8x8xf32> to vector<8xf32>
    %368 = vector.shape_cast %367 : vector<8xf32> to vector<1x8xf32>
    %cst_149 = arith.constant 8.000000e+00 : f32
    %369 = vector.broadcast %cst_149 : f32 to vector<1x8xf32>
    %370 = arith.divf %368, %369 : vector<1x8xf32>
    %cst_150 = arith.constant dense<0.000000e+00> : vector<1x16xf32>
    %371 = tpu.matmul %370, %353, %cst_150 {dimension_numbers = #tpu.dot_dimension_numbers<[1], [0], [0], [1], [0, 0, 1, 1], [], []>} : vector<1x8xf32>, vector<8x16xf32>, vector<1x16xf32> -> vector<1x16xf32>
    %372 = vector.extract_strided_slice %47 {offsets = [8, 176], sizes = [8, 16], strides = [1, 1]} : vector<16x192xf32> to vector<8x16xf32>
    %373 = vector.extract_strided_slice %52 {offsets = [8, 112], sizes = [8, 16], strides = [1, 1]} : vector<16x192xf32> to vector<8x16xf32>
    %374 = vector.extract_strided_slice %52 {offsets = [8, 176], sizes = [8, 16], strides = [1, 1]} : vector<16x192xf32> to vector<8x16xf32>
    %cst_151 = arith.constant 2.500000e-01 : f32
    %375 = vector.broadcast %cst_151 : f32 to vector<8x16xf32>
    %376 = arith.mulf %372, %375 : vector<8x16xf32>
    %cst_152 = arith.constant dense<0.000000e+00> : vector<8x8xf32>
    %377 = tpu.matmul %376, %373, %cst_152 {dimension_numbers = #tpu.dot_dimension_numbers<[1], [1], [0], [0], [0, 0, 1, 0], [], []>} : vector<8x16xf32>, vector<8x16xf32>, vector<8x8xf32> -> vector<8x8xf32>
    %cst_153 = arith.constant dense<0xFF800000> : vector<8xf32>
    %378 = vector.multi_reduction <maximumf>, %377, %cst_153 [1] : vector<8x8xf32> to vector<8xf32>
    %379 = vector.shape_cast %378 : vector<8xf32> to vector<8x1xf32>
    %380 = vector.broadcast %379 : vector<8x1xf32> to vector<8x8xf32>
    %381 = arith.subf %377, %380 : vector<8x8xf32>
    %382 = math.exp %381 : vector<8x8xf32>
    %cst_154 = arith.constant dense<0.000000e+00> : vector<8xf32>
    %383 = vector.multi_reduction <add>, %382, %cst_154 [1] : vector<8x8xf32> to vector<8xf32>
    %384 = vector.shape_cast %383 : vector<8xf32> to vector<8x1xf32>
    %385 = tpu.reciprocal %384 {approx = true} : vector<8x1xf32> -> vector<8x1xf32>
    %386 = vector.broadcast %385 : vector<8x1xf32> to vector<8x8xf32>
    %387 = arith.mulf %382, %386 : vector<8x8xf32>
    %cst_155 = arith.constant dense<0.000000e+00> : vector<8xf32>
    %388 = vector.multi_reduction <add>, %387, %cst_155 [0] : vector<8x8xf32> to vector<8xf32>
    %389 = vector.shape_cast %388 : vector<8xf32> to vector<1x8xf32>
    %cst_156 = arith.constant 8.000000e+00 : f32
    %390 = vector.broadcast %cst_156 : f32 to vector<1x8xf32>
    %391 = arith.divf %389, %390 : vector<1x8xf32>
    %cst_157 = arith.constant dense<0.000000e+00> : vector<1x16xf32>
    %392 = tpu.matmul %391, %374, %cst_157 {dimension_numbers = #tpu.dot_dimension_numbers<[1], [0], [0], [1], [0, 0, 1, 1], [], []>} : vector<1x8xf32>, vector<8x16xf32>, vector<1x16xf32> -> vector<1x16xf32>
    %393 = tpu.concatenate %329, %350, %371, %392 in 1 : vector<1x16xf32>, vector<1x16xf32>, vector<1x16xf32>, vector<1x16xf32> -> vector<1x64xf32>
    %394 = tpu.concatenate %308, %393 in 0 : vector<1x64xf32>, vector<1x64xf32> -> vector<2x64xf32>
    %c0_158 = arith.constant 0 : index
    %c0_159 = arith.constant 0 : index
    %395 = vector.load %arg16[%c0_158, %c0_159] : memref<64x64xf32, #tpu.memory_space<vmem>>, vector<64x64xf32>
    %cst_160 = arith.constant dense<0.000000e+00> : vector<2x64xf32>
    %396 = tpu.matmul %223, %395, %cst_160 {dimension_numbers = #tpu.dot_dimension_numbers<[1], [1], [0], [0], [0, 0, 1, 0], [], []>} : vector<2x64xf32>, vector<64x64xf32>, vector<2x64xf32> -> vector<2x64xf32>
    %c0_161 = arith.constant 0 : index
    %c0_162 = arith.constant 0 : index
    %397 = vector.load %arg17[%c0_161, %c0_162] : memref<1x64xf32, #tpu.memory_space<vmem>>, vector<1x64xf32>
    %398 = vector.broadcast %397 : vector<1x64xf32> to vector<2x64xf32>
    %399 = arith.addf %396, %398 : vector<2x64xf32>
    %c0_163 = arith.constant 0 : index
    %c0_164 = arith.constant 0 : index
    %400 = vector.load %arg18[%c0_163, %c0_164] : memref<64x64xf32, #tpu.memory_space<vmem>>, vector<64x64xf32>
    %cst_165 = arith.constant dense<0.000000e+00> : vector<2x64xf32>
    %401 = tpu.matmul %394, %400, %cst_165 {dimension_numbers = #tpu.dot_dimension_numbers<[1], [1], [0], [0], [0, 0, 1, 0], [], []>} : vector<2x64xf32>, vector<64x64xf32>, vector<2x64xf32> -> vector<2x64xf32>
    %c0_166 = arith.constant 0 : index
    %c0_167 = arith.constant 0 : index
    %402 = vector.load %arg19[%c0_166, %c0_167] : memref<1x64xf32, #tpu.memory_space<vmem>>, vector<1x64xf32>
    %403 = vector.broadcast %402 : vector<1x64xf32> to vector<2x64xf32>
    %404 = arith.addf %401, %403 : vector<2x64xf32>
    %405 = tpu.concatenate %15, %404 in 1 : vector<2x64xf32>, vector<2x64xf32> -> vector<2x128xf32>
    %406 = tpu.concatenate %41, %399 in 1 : vector<2x64xf32>, vector<2x64xf32> -> vector<2x128xf32>
    %c0_168 = arith.constant 0 : index
    %c0_169 = arith.constant 0 : index
    %407 = vector.load %arg20[%c0_168, %c0_169] : memref<32x128xf32, #tpu.memory_space<vmem>>, vector<32x128xf32>
    %c0_170 = arith.constant 0 : index
    %c0_171 = arith.constant 0 : index
    %408 = vector.load %arg21[%c0_170, %c0_171] : memref<1x32xf32, #tpu.memory_space<vmem>>, vector<1x32xf32>
    %c0_172 = arith.constant 0 : index
    %c0_173 = arith.constant 0 : index
    %409 = vector.load %arg22[%c0_172, %c0_173] : memref<3x32xf32, #tpu.memory_space<vmem>>, vector<3x32xf32>
    %c0_174 = arith.constant 0 : index
    %c0_175 = arith.constant 0 : index
    %410 = vector.load %arg23[%c0_174, %c0_175] : memref<1x3xf32, #tpu.memory_space<vmem>>, vector<1x3xf32>
    %cst_176 = arith.constant dense<0.000000e+00> : vector<2x32xf32>
    %411 = tpu.matmul %405, %407, %cst_176 {dimension_numbers = #tpu.dot_dimension_numbers<[1], [1], [0], [0], [0, 0, 1, 0], [], []>} : vector<2x128xf32>, vector<32x128xf32>, vector<2x32xf32> -> vector<2x32xf32>
    %412 = vector.broadcast %408 : vector<1x32xf32> to vector<2x32xf32>
    %413 = arith.addf %411, %412 : vector<2x32xf32>
    %cst_177 = arith.constant 0.000000e+00 : f32
    %414 = vector.broadcast %cst_177 : f32 to vector<2x32xf32>
    %415 = arith.maximumf %413, %414 : vector<2x32xf32>
    %cst_178 = arith.constant dense<0.000000e+00> : vector<2x3xf32>
    %416 = tpu.matmul %415, %409, %cst_178 {dimension_numbers = #tpu.dot_dimension_numbers<[1], [1], [0], [0], [0, 0, 1, 0], [], []>} : vector<2x32xf32>, vector<3x32xf32>, vector<2x3xf32> -> vector<2x3xf32>
    %417 = vector.broadcast %410 : vector<1x3xf32> to vector<2x3xf32>
    %418 = arith.addf %416, %417 : vector<2x3xf32>
    %cst_179 = arith.constant dense<0xFF800000> : vector<2xf32>
    %419 = vector.multi_reduction <maximumf>, %418, %cst_179 [1] : vector<2x3xf32> to vector<2xf32>
    %420 = vector.shape_cast %419 : vector<2xf32> to vector<2x1xf32>
    %421 = vector.broadcast %420 : vector<2x1xf32> to vector<2x3xf32>
    %422 = arith.subf %418, %421 : vector<2x3xf32>
    %423 = math.exp %422 : vector<2x3xf32>
    %cst_180 = arith.constant dense<0.000000e+00> : vector<2xf32>
    %424 = vector.multi_reduction <add>, %423, %cst_180 [1] : vector<2x3xf32> to vector<2xf32>
    %425 = vector.shape_cast %424 : vector<2xf32> to vector<2x1xf32>
    %426 = vector.broadcast %425 : vector<2x1xf32> to vector<2x3xf32>
    %427 = arith.divf %423, %426 : vector<2x3xf32>
    %c0_181 = arith.constant 0 : index
    %c0_182 = arith.constant 0 : index
    %428 = vector.load %arg24[%c0_181, %c0_182] : memref<32x128xf32, #tpu.memory_space<vmem>>, vector<32x128xf32>
    %c0_183 = arith.constant 0 : index
    %c0_184 = arith.constant 0 : index
    %429 = vector.load %arg25[%c0_183, %c0_184] : memref<1x32xf32, #tpu.memory_space<vmem>>, vector<1x32xf32>
    %c0_185 = arith.constant 0 : index
    %c0_186 = arith.constant 0 : index
    %430 = vector.load %arg26[%c0_185, %c0_186] : memref<3x32xf32, #tpu.memory_space<vmem>>, vector<3x32xf32>
    %c0_187 = arith.constant 0 : index
    %c0_188 = arith.constant 0 : index
    %431 = vector.load %arg27[%c0_187, %c0_188] : memref<1x3xf32, #tpu.memory_space<vmem>>, vector<1x3xf32>
    %cst_189 = arith.constant dense<0.000000e+00> : vector<2x32xf32>
    %432 = tpu.matmul %406, %428, %cst_189 {dimension_numbers = #tpu.dot_dimension_numbers<[1], [1], [0], [0], [0, 0, 1, 0], [], []>} : vector<2x128xf32>, vector<32x128xf32>, vector<2x32xf32> -> vector<2x32xf32>
    %433 = vector.broadcast %429 : vector<1x32xf32> to vector<2x32xf32>
    %434 = arith.addf %432, %433 : vector<2x32xf32>
    %cst_190 = arith.constant 0.000000e+00 : f32
    %435 = vector.broadcast %cst_190 : f32 to vector<2x32xf32>
    %436 = arith.maximumf %434, %435 : vector<2x32xf32>
    %cst_191 = arith.constant dense<0.000000e+00> : vector<2x3xf32>
    %437 = tpu.matmul %436, %430, %cst_191 {dimension_numbers = #tpu.dot_dimension_numbers<[1], [1], [0], [0], [0, 0, 1, 0], [], []>} : vector<2x32xf32>, vector<3x32xf32>, vector<2x3xf32> -> vector<2x3xf32>
    %438 = vector.broadcast %431 : vector<1x3xf32> to vector<2x3xf32>
    %439 = arith.addf %437, %438 : vector<2x3xf32>
    %cst_192 = arith.constant dense<0xFF800000> : vector<2xf32>
    %440 = vector.multi_reduction <maximumf>, %439, %cst_192 [1] : vector<2x3xf32> to vector<2xf32>
    %441 = vector.shape_cast %440 : vector<2xf32> to vector<2x1xf32>
    %442 = vector.broadcast %441 : vector<2x1xf32> to vector<2x3xf32>
    %443 = arith.subf %439, %442 : vector<2x3xf32>
    %444 = math.exp %443 : vector<2x3xf32>
    %cst_193 = arith.constant dense<0.000000e+00> : vector<2xf32>
    %445 = vector.multi_reduction <add>, %444, %cst_193 [1] : vector<2x3xf32> to vector<2xf32>
    %446 = vector.shape_cast %445 : vector<2xf32> to vector<2x1xf32>
    %447 = vector.broadcast %446 : vector<2x1xf32> to vector<2x3xf32>
    %448 = arith.divf %444, %447 : vector<2x3xf32>
    %449 = arith.addf %427, %448 : vector<2x3xf32>
    %450 = tpu.iota {dimensions = array<i32: 1>} : vector<2x3xi32>
    %cst_194 = arith.constant dense<0xFF800000> : vector<2xf32>
    %451 = vector.multi_reduction <maximumf>, %449, %cst_194 [1] : vector<2x3xf32> to vector<2xf32>
    %452 = vector.shape_cast %451 : vector<2xf32> to vector<2x1xf32>
    %453 = vector.broadcast %452 : vector<2x1xf32> to vector<2x3xf32>
    %454 = arith.cmpf oeq, %449, %453 : vector<2x3xf32>
    %c3_i32 = arith.constant 3 : i32
    %455 = vector.broadcast %c3_i32 : i32 to vector<2x3xi32>
    %456 = arith.select %454, %450, %455 : vector<2x3xi1>, vector<2x3xi32>
    %cst_195 = arith.constant dense<2147483647> : vector<2xi32>
    %457 = vector.multi_reduction <minsi>, %456, %cst_195 [1] : vector<2x3xi32> to vector<2xi32>
    %458 = vector.shape_cast %457 : vector<2xi32> to vector<2x1xi32>
    %c0_196 = arith.constant 0 : index
    %c0_197 = arith.constant 0 : index
    %459 = vector.load %arg28[%c0_196, %c0_197] : memref<2x1xi32, #tpu.memory_space<vmem>>, vector<2x1xi32>
    tpu.vector_store %arg28[%c0_196, %c0_197], %458 {strides = array<i32>} : memref<2x1xi32, #tpu.memory_space<vmem>>, vector<2x1xi32>,
    return
  }
  func.func @transform_0(%arg0: i32) -> (i32, i32) {
    %c0_i32 = arith.constant 0 : i32
    %c0_i32_0 = arith.constant 0 : i32
    %c0_i32_1 = arith.constant 0 : i32
    return %c0_i32, %c0_i32_0 : i32, i32
  }
  func.func @transform_1(%arg0: i32) -> (i32, i32) {
    %c0_i32 = arith.constant 0 : i32
    %c0_i32_0 = arith.constant 0 : i32
    %c0_i32_1 = arith.constant 0 : i32
    return %c0_i32, %c0_i32_0 : i32, i32
  }
  func.func @transform_2(%arg0: i32) -> (i32, i32, i32) {
    %c0_i32 = arith.constant 0 : i32
    %c0_i32_0 = arith.constant 0 : i32
    %c0_i32_1 = arith.constant 0 : i32
    %c0_i32_2 = arith.constant 0 : i32
    return %c0_i32, %c0_i32_0, %c0_i32_1 : i32, i32, i32
  }
  func.func @transform_3(%arg0: i32) -> (i32, i32) {
    %c0_i32 = arith.constant 0 : i32
    %c0_i32_0 = arith.constant 0 : i32
    %c0_i32_1 = arith.constant 0 : i32
    return %c0_i32, %c0_i32_0 : i32, i32
  }
  func.func @transform_4(%arg0: i32) -> (i32, i32) {
    %c0_i32 = arith.constant 0 : i32
    %c0_i32_0 = arith.constant 0 : i32
    %c0_i32_1 = arith.constant 0 : i32
    return %c0_i32, %c0_i32_0 : i32, i32
  }
  func.func @transform_5(%arg0: i32) -> (i32, i32) {
    %c0_i32 = arith.constant 0 : i32
    %c0_i32_0 = arith.constant 0 : i32
    %c0_i32_1 = arith.constant 0 : i32
    return %c0_i32, %c0_i32_0 : i32, i32
  }
  func.func @transform_6(%arg0: i32) -> (i32, i32) {
    %c0_i32 = arith.constant 0 : i32
    %c0_i32_0 = arith.constant 0 : i32
    %c0_i32_1 = arith.constant 0 : i32
    return %c0_i32, %c0_i32_0 : i32, i32
  }
  func.func @transform_7(%arg0: i32) -> (i32, i32) {
    %c0_i32 = arith.constant 0 : i32
    %c0_i32_0 = arith.constant 0 : i32
    %c0_i32_1 = arith.constant 0 : i32
    return %c0_i32, %c0_i32_0 : i32, i32
  }
  func.func @transform_8(%arg0: i32) -> (i32, i32) {
    %c0_i32 = arith.constant 0 : i32
    %c0_i32_0 = arith.constant 0 : i32
    %c0_i32_1 = arith.constant 0 : i32
    return %c0_i32, %c0_i32_0 : i32, i32
  }
  func.func @transform_9(%arg0: i32) -> (i32, i32) {
    %c0_i32 = arith.constant 0 : i32
    %c0_i32_0 = arith.constant 0 : i32
    %c0_i32_1 = arith.constant 0 : i32
    return %c0_i32, %c0_i32_0 : i32, i32
  }
  func.func @transform_10(%arg0: i32) -> (i32, i32) {
    %c0_i32 = arith.constant 0 : i32
    %c0_i32_0 = arith.constant 0 : i32
    %c0_i32_1 = arith.constant 0 : i32
    return %c0_i32, %c0_i32_0 : i32, i32
  }
  func.func @transform_11(%arg0: i32) -> (i32, i32) {
    %c0_i32 = arith.constant 0 : i32
    %c0_i32_0 = arith.constant 0 : i32
    %c0_i32_1 = arith.constant 0 : i32
    return %c0_i32, %c0_i32_0 : i32, i32
  }
  func.func @transform_12(%arg0: i32) -> (i32, i32) {
    %c0_i32 = arith.constant 0 : i32
    %c0_i32_0 = arith.constant 0 : i32
    %c0_i32_1 = arith.constant 0 : i32
    return %c0_i32, %c0_i32_0 : i32, i32
  }
  func.func @transform_13(%arg0: i32) -> (i32, i32) {
    %c0_i32 = arith.constant 0 : i32
    %c0_i32_0 = arith.constant 0 : i32
    %c0_i32_1 = arith.constant 0 : i32
    return %c0_i32, %c0_i32_0 : i32, i32
  }
  func.func @transform_14(%arg0: i32) -> (i32, i32) {
    %c0_i32 = arith.constant 0 : i32
    %c0_i32_0 = arith.constant 0 : i32
    %c0_i32_1 = arith.constant 0 : i32
    return %c0_i32, %c0_i32_0 : i32, i32
  }
  func.func @transform_15(%arg0: i32) -> (i32, i32) {
    %c0_i32 = arith.constant 0 : i32
    %c0_i32_0 = arith.constant 0 : i32
    %c0_i32_1 = arith.constant 0 : i32
    return %c0_i32, %c0_i32_0 : i32, i32
  }
  func.func @transform_16(%arg0: i32) -> (i32, i32) {
    %c0_i32 = arith.constant 0 : i32
    %c0_i32_0 = arith.constant 0 : i32
    %c0_i32_1 = arith.constant 0 : i32
    return %c0_i32, %c0_i32_0 : i32, i32
  }
  func.func @transform_17(%arg0: i32) -> (i32, i32) {
    %c0_i32 = arith.constant 0 : i32
    %c0_i32_0 = arith.constant 0 : i32
    %c0_i32_1 = arith.constant 0 : i32
    return %c0_i32, %c0_i32_0 : i32, i32
  }
  func.func @transform_18(%arg0: i32) -> (i32, i32) {
    %c0_i32 = arith.constant 0 : i32
    %c0_i32_0 = arith.constant 0 : i32
    %c0_i32_1 = arith.constant 0 : i32
    return %c0_i32, %c0_i32_0 : i32, i32
  }
  func.func @transform_19(%arg0: i32) -> (i32, i32) {
    %c0_i32 = arith.constant 0 : i32
    %c0_i32_0 = arith.constant 0 : i32
    %c0_i32_1 = arith.constant 0 : i32
    return %c0_i32, %c0_i32_0 : i32, i32
  }
  func.func @transform_20(%arg0: i32) -> (i32, i32) {
    %c0_i32 = arith.constant 0 : i32
    %c0_i32_0 = arith.constant 0 : i32
    %c0_i32_1 = arith.constant 0 : i32
    return %c0_i32, %c0_i32_0 : i32, i32
  }
  func.func @transform_21(%arg0: i32) -> (i32, i32) {
    %c0_i32 = arith.constant 0 : i32
    %c0_i32_0 = arith.constant 0 : i32
    %c0_i32_1 = arith.constant 0 : i32
    return %c0_i32, %c0_i32_0 : i32, i32
  }
  func.func @transform_22(%arg0: i32) -> (i32, i32) {
    %c0_i32 = arith.constant 0 : i32
    %c0_i32_0 = arith.constant 0 : i32
    %c0_i32_1 = arith.constant 0 : i32
    return %c0_i32, %c0_i32_0 : i32, i32
  }
  func.func @transform_23(%arg0: i32) -> (i32, i32) {
    %c0_i32 = arith.constant 0 : i32
    %c0_i32_0 = arith.constant 0 : i32
    %c0_i32_1 = arith.constant 0 : i32
    return %c0_i32, %c0_i32_0 : i32, i32
  }
  func.func @transform_24(%arg0: i32) -> (i32, i32) {
    %c0_i32 = arith.constant 0 : i32
    %c0_i32_0 = arith.constant 0 : i32
    %c0_i32_1 = arith.constant 0 : i32
    return %c0_i32, %c0_i32_0 : i32, i32
  }
  func.func @transform_25(%arg0: i32) -> (i32, i32) {
    %c0_i32 = arith.constant 0 : i32
    %c0_i32_0 = arith.constant 0 : i32
    %c0_i32_1 = arith.constant 0 : i32
    return %c0_i32, %c0_i32_0 : i32, i32
  }
  func.func @transform_26(%arg0: i32) -> (i32, i32) {
    %c0_i32 = arith.constant 0 : i32
    %c0_i32_0 = arith.constant 0 : i32
    %c0_i32_1 = arith.constant 0 : i32
    return %c0_i32, %c0_i32_0 : i32, i32
  }
  func.func @transform_27(%arg0: i32) -> (i32, i32) {
    %c0_i32 = arith.constant 0 : i32
    %c0_i32_0 = arith.constant 0 : i32
    %c0_i32_1 = arith.constant 0 : i32
    return %c0_i32, %c0_i32_0 : i32, i32
  }
}

</mosaic_0001>

<llo_original>
// kernel: model_forward.1
$region0: #{model_forward.1}
  #allocation0 [shape = 'u32[]', space=smem, size = 0x4, offset = 0x4, fixed_abs, tag = 'smem constant byte address 0x4 - core index']
  #allocation1 [shape = 'u32[144,128]{1,0:T(1,128)}', space=vmem, size = 0x12000, scoped, tag = 'internal scratch']
  %s0 = inlined_call_operand.vmem [shape: f32[16,32], index: 0, kind: input, shape index: {}]
  %s1 = inlined_call_operand.vmem [shape: f32[2,32], index: 1, kind: input, shape index: {}]
  %s2 = inlined_call_operand.vmem [shape: f32[2,128,49], index: 2, kind: input, shape index: {}]
  %s3 = inlined_call_operand.vmem [shape: f32[64,32], index: 3, kind: input, shape index: {}]
  %s4 = inlined_call_operand.vmem [shape: f32[1,64], index: 4, kind: input, shape index: {}]
  %s5 = inlined_call_operand.vmem [shape: f32[8,128], index: 5, kind: input, shape index: {}]
  %s6 = inlined_call_operand.vmem [shape: f32[1,8], index: 6, kind: input, shape index: {}]
  %s7 = inlined_call_operand.vmem [shape: f32[64,49], index: 7, kind: input, shape index: {}]
  %s8 = inlined_call_operand.vmem [shape: f32[1,64], index: 8, kind: input, shape index: {}]
  %s9 = inlined_call_operand.vmem [shape: f32[64,128], index: 9, kind: input, shape index: {}]
  %s10 = inlined_call_operand.vmem [shape: f32[1,64], index: 10, kind: input, shape index: {}]
  %s11 = inlined_call_operand.vmem [shape: f32[192,64], index: 11, kind: input, shape index: {}]
  %s12 = inlined_call_operand.vmem [shape: f32[1,192], index: 12, kind: input, shape index: {}]
  %s13 = inlined_call_operand.vmem [shape: f32[192,64], index: 13, kind: input, shape index: {}]
  %s14 = inlined_call_operand.vmem [shape: f32[1,192], index: 14, kind: input, shape index: {}]
  %s15 = inlined_call_operand.vmem [shape: f32[64,64], index: 15, kind: input, shape index: {}]
  %s16 = inlined_call_operand.vmem [shape: f32[1,64], index: 16, kind: input, shape index: {}]
  %s17 = inlined_call_operand.vmem [shape: f32[64,64], index: 17, kind: input, shape index: {}]
  %s18 = inlined_call_operand.vmem [shape: f32[1,64], index: 18, kind: input, shape index: {}]
  %s19 = inlined_call_operand.vmem [shape: f32[32,128], index: 19, kind: input, shape index: {}]
  %s20 = inlined_call_operand.vmem [shape: f32[1,32], index: 20, kind: input, shape index: {}]
  %s21 = inlined_call_operand.vmem [shape: f32[3,32], index: 21, kind: input, shape index: {}]
  %s22 = inlined_call_operand.vmem [shape: f32[1,3], index: 22, kind: input, shape index: {}]
  %s23 = inlined_call_operand.vmem [shape: f32[32,128], index: 23, kind: input, shape index: {}]
  %s24 = inlined_call_operand.vmem [shape: f32[1,32], index: 24, kind: input, shape index: {}]
  %s25 = inlined_call_operand.vmem [shape: f32[3,32], index: 25, kind: input, shape index: {}]
  %s26 = inlined_call_operand.vmem [shape: f32[1,3], index: 26, kind: input, shape index: {}]
  %s27 = inlined_call_operand.vmem [shape: s32[2,1], index: 27, kind: output, shape index: {}]
  %s28 = sld [smem:[#allocation0]]
  $region118: #{model_forward.1} parent=0
    _
  %s30 = ssub.s32 1, %s28
  %s31 = scalar_select 0, %s30, %s28
  // Predicated region
  $region2: #{model_forward.1} parent=0 // pred_check
    _
  $region3: #{model_forward.1} parent=0 // pred_check_branch
    %33 = sbr.rel (0) target = $region5
  $region4: #{model_forward.1} parent=0 // pred_region
    _
  $region5: #{model_forward.1} parent=0 // pred_fallthru
    _
  // Predicated region
  $region6: #{model_forward.1} parent=0 // pred_check
    _
  $region7: #{model_forward.1} parent=0 // pred_check_branch
    %35 = sbr.rel (0) target = $region9
  $region8: #{model_forward.1} parent=0 // pred_region
    _
  $region9: #{model_forward.1} parent=0 // pred_fallthru
    _
  // Predicated region
  $region10: #{model_forward.1} parent=0 // pred_check
    _
  $region11: #{model_forward.1} parent=0 // pred_check_branch
    %37 = sbr.rel (0) target = $region13
  $region12: #{model_forward.1} parent=0 // pred_region
    _
  $region13: #{model_forward.1} parent=0 // pred_fallthru
    _
  // Predicated region
  $region14: #{model_forward.1} parent=0 // pred_check
    _
  $region15: #{model_forward.1} parent=0 // pred_check_branch
    %39 = sbr.rel (0) target = $region17
  $region16: #{model_forward.1} parent=0 // pred_region
    _
  $region17: #{model_forward.1} parent=0 // pred_fallthru
    _
  // Predicated region
  $region18: #{model_forward.1} parent=0 // pred_check
    _
  $region19: #{model_forward.1} parent=0 // pred_check_branch
    %41 = sbr.rel (0) target = $region21
  $region20: #{model_forward.1} parent=0 // pred_region
    _
  $region21: #{model_forward.1} parent=0 // pred_fallthru
    _
  // Predicated region
  $region22: #{model_forward.1} parent=0 // pred_check
    _
  $region23: #{model_forward.1} parent=0 // pred_check_branch
    %43 = sbr.rel (0) target = $region25
  $region24: #{model_forward.1} parent=0 // pred_region
    _
  $region25: #{model_forward.1} parent=0 // pred_fallthru
    _
  // Predicated region
  $region26: #{model_forward.1} parent=0 // pred_check
    _
  $region27: #{model_forward.1} parent=0 // pred_check_branch
    %45 = sbr.rel (0) target = $region29
  $region28: #{model_forward.1} parent=0 // pred_region
    _
  $region29: #{model_forward.1} parent=0 // pred_fallthru
    _
  // Predicated region
  $region30: #{model_forward.1} parent=0 // pred_check
    _
  $region31: #{model_forward.1} parent=0 // pred_check_branch
    %47 = sbr.rel (0) target = $region33
  $region32: #{model_forward.1} parent=0 // pred_region
    _
  $region33: #{model_forward.1} parent=0 // pred_fallthru
    _
  // Predicated region
  $region34: #{model_forward.1} parent=0 // pred_check
    _
  $region35: #{model_forward.1} parent=0 // pred_check_branch
    %49 = sbr.rel (0) target = $region37
  $region36: #{model_forward.1} parent=0 // pred_region
    _
  $region37: #{model_forward.1} parent=0 // pred_fallthru
    _
  // Predicated region
  $region38: #{model_forward.1} parent=0 // pred_check
    _
  $region39: #{model_forward.1} parent=0 // pred_check_branch
    %51 = sbr.rel (0) target = $region41
  $region40: #{model_forward.1} parent=0 // pred_region
    _
  $region41: #{model_forward.1} parent=0 // pred_fallthru
    _
  // Predicated region
  $region42: #{model_forward.1} parent=0 // pred_check
    _
  $region43: #{model_forward.1} parent=0 // pred_check_branch
    %53 = sbr.rel (0) target = $region45
  $region44: #{model_forward.1} parent=0 // pred_region
    _
  $region45: #{model_forward.1} parent=0 // pred_fallthru
    _
  // Predicated region
  $region46: #{model_forward.1} parent=0 // pred_check
    _
  $region47: #{model_forward.1} parent=0 // pred_check_branch
    %55 = sbr.rel (0) target = $region49
  $region48: #{model_forward.1} parent=0 // pred_region
    _
  $region49: #{model_forward.1} parent=0 // pred_fallthru
    _
  // Predicated region
  $region50: #{model_forward.1} parent=0 // pred_check
    _
  $region51: #{model_forward.1} parent=0 // pred_check_branch
    %57 = sbr.rel (0) target = $region53
  $region52: #{model_forward.1} parent=0 // pred_region
    _
  $region53: #{model_forward.1} parent=0 // pred_fallthru
    _
  // Predicated region
  $region54: #{model_forward.1} parent=0 // pred_check
    _
  $region55: #{model_forward.1} parent=0 // pred_check_branch
    %59 = sbr.rel (0) target = $region57
  $region56: #{model_forward.1} parent=0 // pred_region
    _
  $region57: #{model_forward.1} parent=0 // pred_fallthru
    _
  // Predicated region
  $region58: #{model_forward.1} parent=0 // pred_check
    _
  $region59: #{model_forward.1} parent=0 // pred_check_branch
    %61 = sbr.rel (0) target = $region61
  $region60: #{model_forward.1} parent=0 // pred_region
    _
  $region61: #{model_forward.1} parent=0 // pred_fallthru
    _
  // Predicated region
  $region62: #{model_forward.1} parent=0 // pred_check
    _
  $region63: #{model_forward.1} parent=0 // pred_check_branch
    %63 = sbr.rel (0) target = $region65
  $region64: #{model_forward.1} parent=0 // pred_region
    _
  $region65: #{model_forward.1} parent=0 // pred_fallthru
    _
  // Predicated region
  $region66: #{model_forward.1} parent=0 // pred_check
    _
  $region67: #{model_forward.1} parent=0 // pred_check_branch
    %65 = sbr.rel (0) target = $region69
  $region68: #{model_forward.1} parent=0 // pred_region
    _
  $region69: #{model_forward.1} parent=0 // pred_fallthru
    _
  // Predicated region
  $region70: #{model_forward.1} parent=0 // pred_check
    _
  $region71: #{model_forward.1} parent=0 // pred_check_branch
    %67 = sbr.rel (0) target = $region73
  $region72: #{model_forward.1} parent=0 // pred_region
    _
  $region73: #{model_forward.1} parent=0 // pred_fallthru
    _
  // Predicated region
  $region74: #{model_forward.1} parent=0 // pred_check
    _
  $region75: #{model_forward.1} parent=0 // pred_check_branch
    %69 = sbr.rel (0) target = $region77
  $region76: #{model_forward.1} parent=0 // pred_region
    _
  $region77: #{model_forward.1} parent=0 // pred_fallthru
    _
  // Predicated region
  $region78: #{model_forward.1} parent=0 // pred_check
    _
  $region79: #{model_forward.1} parent=0 // pred_check_branch
    %71 = sbr.rel (0) target = $region81
  $region80: #{model_forward.1} parent=0 // pred_region
    _
  $region81: #{model_forward.1} parent=0 // pred_fallthru
    _
  // Predicated region
  $region82: #{model_forward.1} parent=0 // pred_check
    _
  $region83: #{model_forward.1} parent=0 // pred_check_branch
    %73 = sbr.rel (0) target = $region85
  $region84: #{model_forward.1} parent=0 // pred_region
    _
  $region85: #{model_forward.1} parent=0 // pred_fallthru
    _
  // Predicated region
  $region86: #{model_forward.1} parent=0 // pred_check
    _
  $region87: #{model_forward.1} parent=0 // pred_check_branch
    %75 = sbr.rel (0) target = $region89
  $region88: #{model_forward.1} parent=0 // pred_region
    _
  $region89: #{model_forward.1} parent=0 // pred_fallthru
    _
  // Predicated region
  $region90: #{model_forward.1} parent=0 // pred_check
    _
  $region91: #{model_forward.1} parent=0 // pred_check_branch
    %77 = sbr.rel (0) target = $region93
  $region92: #{model_forward.1} parent=0 // pred_region
    _
  $region93: #{model_forward.1} parent=0 // pred_fallthru
    _
  // Predicated region
  $region94: #{model_forward.1} parent=0 // pred_check
    _
  $region95: #{model_forward.1} parent=0 // pred_check_branch
    %79 = sbr.rel (0) target = $region97
  $region96: #{model_forward.1} parent=0 // pred_region
    _
  $region97: #{model_forward.1} parent=0 // pred_fallthru
    _
  // Predicated region
  $region98: #{model_forward.1} parent=0 // pred_check
    _
  $region99: #{model_forward.1} parent=0 // pred_check_branch
    %81 = sbr.rel (0) target = $region101
  $region100: #{model_forward.1} parent=0 // pred_region
    _
  $region101: #{model_forward.1} parent=0 // pred_fallthru
    _
  // Predicated region
  $region102: #{model_forward.1} parent=0 // pred_check
    _
  $region103: #{model_forward.1} parent=0 // pred_check_branch
    %83 = sbr.rel (0) target = $region105
  $region104: #{model_forward.1} parent=0 // pred_region
    _
  $region105: #{model_forward.1} parent=0 // pred_fallthru
    _
  // Predicated region
  $region106: #{model_forward.1} parent=0 // pred_check
    _
  $region107: #{model_forward.1} parent=0 // pred_check_branch
    %85 = sbr.rel (0) target = $region109
  $region108: #{model_forward.1} parent=0 // pred_region
    _
  $region109: #{model_forward.1} parent=0 // pred_fallthru
    _
  %v86 = vld [vmem:[%s0] sm:$0xff]
  %v87 = vld [vmem:[%s0 + $0x8] sm:$0xff]
  %v88 = vld [vmem:[%s3] sm:$0xff]
  %v89 = vld [vmem:[%s3 + $0x8] sm:$0xff]
  %v90 = vld [vmem:[%s3 + $0x10] sm:$0xff]
  %v91 = vld [vmem:[%s3 + $0x18] sm:$0xff]
  %v92 = vld [vmem:[%s3 + $0x20] sm:$0xff]
  %v93 = vld [vmem:[%s3 + $0x28] sm:$0xff]
  %v94 = vld [vmem:[%s3 + $0x30] sm:$0xff]
  %v95 = vld [vmem:[%s3 + $0x38] sm:$0xff]
  %v96 = vld [vmem:[%s4] sm:$0x1]
  %v98 = vlaneseq
  %v99 = vshrl.u32 %v98, 7
  %v100 = vsub.s32 0, %v99
  %v101 = vrot.slane %v96, %v100
  %vm103 = vcmask 261120
  %v105 = vsel %vm103, %v86, 0
  %v108 = vsel %vm103, %v87, 0
  %v111 = vsel %vm103, %v88, 0
  %v114 = vsel %vm103, %v89, 0
  %v117 = vsel %vm103, %v90, 0
  %v120 = vsel %vm103, %v91, 0
  %v123 = vsel %vm103, %v92, 0
  %v126 = vsel %vm103, %v93, 0
  %v129 = vsel %vm103, %v94, 0
  %v132 = vsel %vm103, %v95, 0
  %134 = vmatprep.subr.mxu0 0.0
  %135 = vmatpush1.xpose.msra.mxu0 0.0
  %136 = vmatprep.subr.mxu0 0.0
  %137 = vmatpush1.xpose.msra.mxu0 0.0
  %138 = vmatprep.subr.mxu0 0.0
  %139 = vmatpush1.xpose.msra.mxu0 0.0
  %140 = vmatprep.subr.mxu0 0.0
  %141 = vmatpush1.xpose.msra.mxu0 0.0
  %142 = vmatprep.subr.mxu0 0.0
  %143 = vmatpush1.xpose.msra.mxu0 0.0
  %144 = vmatprep.subr.mxu0 0.0
  %145 = vmatpush1.xpose.msra.mxu0 0.0
  %146 = vmatprep.subr.mxu0 0.0
  %147 = vmatpush1.xpose.msra.mxu0 0.0
  %148 = vmatprep.subr.mxu0 0.0
  %149 = vmatpush1.xpose.msra.mxu0 0.0
  %150 = vmatprep.subr.mxu0 0.0
  %151 = vmatpush1.xpose.msra.mxu0 %v132
  %152 = vmatprep.subr.mxu0 0.0
  %153 = vmatpush1.xpose.msra.mxu0 %v129
  %154 = vmatprep.subr.mxu0 0.0
  %155 = vmatpush1.xpose.msra.mxu0 %v126
  %156 = vmatprep.subr.mxu0 0.0
  %157 = vmatpush1.xpose.msra.mxu0 %v123
  %158 = vmatprep.subr.mxu0 0.0
  %159 = vmatpush1.xpose.msra.mxu0 %v120
  %160 = vmatprep.subr.mxu0 0.0
  %161 = vmatpush1.xpose.msra.mxu0 %v117
  %162 = vmatprep.subr.mxu0 0.0
  %163 = vmatpush1.xpose.msra.mxu0 %v114
  %164 = vmatprep.subr.mxu0 0.0
  %165 = vmatpush1.xpose.msra.mxu0 %v111
  %166 = vmatprep.subr.mxu0 0.0
  %167 = vmatpush2.xpose.msra.mxu0 0.0
  %168 = vmatprep.subr.mxu0 0.0
  %169 = vmatpush2.xpose.msra.mxu0 0.0
  %170 = vmatprep.subr.mxu0 0.0
  %171 = vmatpush2.xpose.msra.mxu0 0.0
  %172 = vmatprep.subr.mxu0 0.0
  %173 = vmatpush2.xpose.msra.mxu0 0.0
  %174 = vmatprep.subr.mxu0 0.0
  %175 = vmatpush2.xpose.msra.mxu0 0.0
  %176 = vmatprep.subr.mxu0 0.0
  %177 = vmatpush2.xpose.msra.mxu0 0.0
  %178 = vmatprep.subr.mxu0 0.0
  %179 = vmatpush2.xpose.msra.mxu0 0.0
  %180 = vmatprep.subr.mxu0 0.0
  %181 = vmatpush2.xpose.msra.mxu0 0.0
  %182 = vmatprep.subr.mxu0 0.0
  %183 = vmatpush2.xpose.msra.mxu0 0.0
  %184 = vmatprep.subr.mxu0 0.0
  %185 = vmatpush2.xpose.msra.mxu0 0.0
  %186 = vmatprep.subr.mxu0 0.0
  %187 = vmatpush2.xpose.msra.mxu0 0.0
  %188 = vmatprep.subr.mxu0 0.0
  %189 = vmatpush2.xpose.msra.mxu0 0.0
  %190 = vmatprep.subr.mxu0 0.0
  %191 = vmatpush2.xpose.msra.mxu0 0.0
  %192 = vmatprep.subr.mxu0 0.0
  %193 = vmatpush2.xpose.msra.mxu0 0.0
  %194 = vmatprep.subr.mxu0 0.0
  %195 = vmatpush2.xpose.msra.mxu0 0.0
  %196 = vmatprep.subr.mxu0 0.0
  %197 = vmatpush2.xpose.msra.mxu0 0.0
  %198 = vmatprep.mubr.f32.mxu0 0.0
  %199 = vmatmul.mubr.f32.gmra.mxu0 %v105
  %v200 = vpop.f32.mrf.mxu0
  %v201 = vadd.f32 %v101, %v200
  %v202 = vpop.f32.mrf.mxu0
  %203 = vmatprep.mubr.f32.mxu0 0.0
  %204 = vmatmul.mubr.f32.gmra.mxu0 %v108
  %v205 = vpop.f32.mrf.mxu0
  %v206 = vadd.f32 %v101, %v205
  %v207 = vpop.f32.mrf.mxu0
  %208 = vdwg.mxu0
  %v209 = vmax.f32 %v201, 0.0
  %v210 = vmax.f32 %v206, 0.0
  %v211 = vld [vmem:[%s1] sm:$0x3]
  %v213 = vsel %vm103, %v211, 0
  %215 = vmatprep.subr.mxu0 0.0
  %216 = vmatpush1.xpose.msra.mxu0 0.0
  %217 = vmatprep.subr.mxu0 0.0
  %218 = vmatpush1.xpose.msra.mxu0 0.0
  %219 = vmatprep.subr.mxu0 0.0
  %220 = vmatpush1.xpose.msra.mxu0 0.0
  %221 = vmatprep.subr.mxu0 0.0
  %222 = vmatpush1.xpose.msra.mxu0 0.0
  %223 = vmatprep.subr.mxu0 0.0
  %224 = vmatpush1.xpose.msra.mxu0 0.0
  %225 = vmatprep.subr.mxu0 0.0
  %226 = vmatpush1.xpose.msra.mxu0 0.0
  %227 = vmatprep.subr.mxu0 0.0
  %228 = vmatpush1.xpose.msra.mxu0 0.0
  %229 = vmatprep.subr.mxu0 0.0
  %230 = vmatpush1.xpose.msra.mxu0 0.0
  %231 = vmatprep.subr.mxu0 0.0
  %232 = vmatpush1.xpose.msra.mxu0 %v132
  %233 = vmatprep.subr.mxu0 0.0
  %234 = vmatpush1.xpose.msra.mxu0 %v129
  %235 = vmatprep.subr.mxu0 0.0
  %236 = vmatpush1.xpose.msra.mxu0 %v126
  %237 = vmatprep.subr.mxu0 0.0
  %238 = vmatpush1.xpose.msra.mxu0 %v123
  %239 = vmatprep.subr.mxu0 0.0
  %240 = vmatpush1.xpose.msra.mxu0 %v120
  %241 = vmatprep.subr.mxu0 0.0
  %242 = vmatpush1.xpose.msra.mxu0 %v117
  %243 = vmatprep.subr.mxu0 0.0
  %244 = vmatpush1.xpose.msra.mxu0 %v114
  %245 = vmatprep.subr.mxu0 0.0
  %246 = vmatpush1.xpose.msra.mxu0 %v111
  %247 = vmatprep.subr.mxu0 0.0
  %248 = vmatpush2.xpose.msra.mxu0 0.0
  %249 = vmatprep.subr.mxu0 0.0
  %250 = vmatpush2.xpose.msra.mxu0 0.0
  %251 = vmatprep.subr.mxu0 0.0
  %252 = vmatpush2.xpose.msra.mxu0 0.0
  %253 = vmatprep.subr.mxu0 0.0
  %254 = vmatpush2.xpose.msra.mxu0 0.0
  %255 = vmatprep.subr.mxu0 0.0
  %256 = vmatpush2.xpose.msra.mxu0 0.0
  %257 = vmatprep.subr.mxu0 0.0
  %258 = vmatpush2.xpose.msra.mxu0 0.0
  %259 = vmatprep.subr.mxu0 0.0
  %260 = vmatpush2.xpose.msra.mxu0 0.0
  %261 = vmatprep.subr.mxu0 0.0
  %262 = vmatpush2.xpose.msra.mxu0 0.0
  %263 = vmatprep.subr.mxu0 0.0
  %264 = vmatpush2.xpose.msra.mxu0 0.0
  %265 = vmatprep.subr.mxu0 0.0
  %266 = vmatpush2.xpose.msra.mxu0 0.0
  %267 = vmatprep.subr.mxu0 0.0
  %268 = vmatpush2.xpose.msra.mxu0 0.0
  %269 = vmatprep.subr.mxu0 0.0
  %270 = vmatpush2.xpose.msra.mxu0 0.0
  %271 = vmatprep.subr.mxu0 0.0
  %272 = vmatpush2.xpose.msra.mxu0 0.0
  %273 = vmatprep.subr.mxu0 0.0
  %274 = vmatpush2.xpose.msra.mxu0 0.0
  %275 = vmatprep.subr.mxu0 0.0
  %276 = vmatpush2.xpose.msra.mxu0 0.0
  %277 = vmatprep.subr.mxu0 0.0
  %278 = vmatpush2.xpose.msra.mxu0 0.0
  %279 = vmatprep.mubr.f32.mxu0 0.0
  %280 = vmatmul.mubr.f32.gmra.mxu0 %v213
  %v281 = vpop.f32.mrf.mxu0
  %v282 = vadd.f32 %v101, %v281
  %v283 = vpop.f32.mrf.mxu0
  %284 = vdwg.mxu0
  %v285 = vmax.f32 %v282, 0.0
  %v286 = vld [vmem:[%s2] sm:$0xff]
  %v287 = vld [vmem:[%s2 + $0x8] sm:$0xff]
  %v288 = vld [vmem:[%s2 + $0x10] sm:$0xff]
  %v289 = vld [vmem:[%s2 + $0x18] sm:$0xff]
  %v290 = vld [vmem:[%s2 + $0x20] sm:$0xff]
  %v291 = vld [vmem:[%s2 + $0x28] sm:$0xff]
  %v292 = vld [vmem:[%s2 + $0x30] sm:$0xff]
  %v293 = vld [vmem:[%s2 + $0x38] sm:$0xff]
  %v294 = vld [vmem:[%s2 + $0x40] sm:$0xff]
  %v295 = vld [vmem:[%s2 + $0x48] sm:$0xff]
  %v296 = vld [vmem:[%s2 + $0x50] sm:$0xff]
  %v297 = vld [vmem:[%s2 + $0x58] sm:$0xff]
  %v298 = vld [vmem:[%s2 + $0x60] sm:$0xff]
  %v299 = vld [vmem:[%s2 + $0x68] sm:$0xff]
  %v300 = vld [vmem:[%s2 + $0x70] sm:$0xff]
  %v301 = vld [vmem:[%s2 + $0x78] sm:$0xff]
  %v302 = vld [vmem:[%s2 + $0x80] sm:$0xff]
  %v303 = vld [vmem:[%s2 + $0x88] sm:$0xff]
  %v304 = vld [vmem:[%s2 + $0x90] sm:$0xff]
  %v305 = vld [vmem:[%s2 + $0x98] sm:$0xff]
  %v306 = vld [vmem:[%s2 + $0xa0] sm:$0xff]
  %v307 = vld [vmem:[%s2 + $0xa8] sm:$0xff]
  %v308 = vld [vmem:[%s2 + $0xb0] sm:$0xff]
  %v309 = vld [vmem:[%s2 + $0xb8] sm:$0xff]
  %v310 = vld [vmem:[%s2 + $0xc0] sm:$0xff]
  %v311 = vld [vmem:[%s2 + $0xc8] sm:$0xff]
  %v312 = vld [vmem:[%s2 + $0xd0] sm:$0xff]
  %v313 = vld [vmem:[%s2 + $0xd8] sm:$0xff]
  %v314 = vld [vmem:[%s2 + $0xe0] sm:$0xff]
  %v315 = vld [vmem:[%s2 + $0xe8] sm:$0xff]
  %v316 = vld [vmem:[%s2 + $0xf0] sm:$0xff]
  %v317 = vld [vmem:[%s2 + $0xf8] sm:$0xff]
  %v318 = vld [vmem:[%s5] sm:$0xff]
  %319 = vxpose.xlu0.b32.start [1/16] %v286, 128
  %320 = vxpose.xlu0.b32.cont [2/16] %v287, 128
  %321 = vxpose.xlu0.b32.cont [3/16] %v288, 128
  %322 = vxpose.xlu0.b32.cont [4/16] %v289, 128
  %323 = vxpose.xlu0.b32.cont [5/16] %v290, 128
  %324 = vxpose.xlu0.b32.cont [6/16] %v291, 128
  %325 = vxpose.xlu0.b32.cont [7/16] %v292, 128
  %326 = vxpose.xlu0.b32.cont [8/16] %v293, 128
  %327 = vxpose.xlu0.b32.cont [9/16] %v294, 128
  %328 = vxpose.xlu0.b32.cont [10/16] %v295, 128
  %329 = vxpose.xlu0.b32.cont [11/16] %v296, 128
  %330 = vxpose.xlu0.b32.cont [12/16] %v297, 128
  %331 = vxpose.xlu0.b32.cont [13/16] %v298, 128
  %332 = vxpose.xlu0.b32.cont [14/16] %v299, 128
  %333 = vxpose.xlu0.b32.cont [15/16] %v300, 128
  %334 = vxpose.xlu0.b32.end [16/16] %v301, 128
  %v335 = vpop.trf.xlu0
  %v336 = vpop.trf.xlu0
  %v337 = vpop.trf.xlu0
  %v338 = vpop.trf.xlu0
  %v339 = vpop.trf.xlu0
  %v340 = vpop.trf.xlu0
  %v341 = vpop.trf.xlu0
  %v342 = vpop.trf.xlu0
  %v343 = vpop.trf.xlu0
  %v344 = vpop.trf.xlu0
  %v345 = vpop.trf.xlu0
  %v346 = vpop.trf.xlu0
  %v347 = vpop.trf.xlu0
  %v348 = vpop.trf.xlu0
  %v349 = vpop.trf.xlu0
  %v350 = vpop.trf.xlu0
  %351 = vxpose.xlu0.b32.start [1/16] %v302, 128
  %352 = vxpose.xlu0.b32.cont [2/16] %v303, 128
  %353 = vxpose.xlu0.b32.cont [3/16] %v304, 128
  %354 = vxpose.xlu0.b32.cont [4/16] %v305, 128
  %355 = vxpose.xlu0.b32.cont [5/16] %v306, 128
  %356 = vxpose.xlu0.b32.cont [6/16] %v307, 128
  %357 = vxpose.xlu0.b32.cont [7/16] %v308, 128
  %358 = vxpose.xlu0.b32.cont [8/16] %v309, 128
  %359 = vxpose.xlu0.b32.cont [9/16] %v310, 128
  %360 = vxpose.xlu0.b32.cont [10/16] %v311, 128
  %361 = vxpose.xlu0.b32.cont [11/16] %v312, 128
  %362 = vxpose.xlu0.b32.cont [12/16] %v313, 128
  %363 = vxpose.xlu0.b32.cont [13/16] %v314, 128
  %364 = vxpose.xlu0.b32.cont [14/16] %v315, 128
  %365 = vxpose.xlu0.b32.cont [15/16] %v316, 128
  %366 = vxpose.xlu0.b32.end [16/16] %v317, 128
  %v367 = vpop.trf.xlu0
  %v368 = vpop.trf.xlu0
  %v369 = vpop.trf.xlu0
  %v370 = vpop.trf.xlu0
  %v371 = vpop.trf.xlu0
  %v372 = vpop.trf.xlu0
  %v373 = vpop.trf.xlu0
  %v374 = vpop.trf.xlu0
  %v375 = vpop.trf.xlu0
  %v376 = vpop.trf.xlu0
  %v377 = vpop.trf.xlu0
  %v378 = vpop.trf.xlu0
  %v379 = vpop.trf.xlu0
  %v380 = vpop.trf.xlu0
  %v381 = vpop.trf.xlu0
  %v382 = vpop.trf.xlu0
  %v397 = vcombine.high %v335, %v335
  %v399 = vunpack.c.l.s4 1966171168
  %v400 = vunpack.c.0.s8 %v399
  %v401 = vlaneseq
  %v402 = vshrl.u32 %v401, 7
  %v403 = vsub.s32 %v400, %v402
  %v404 = vrot.slane %v335, %v403
  %v406 = vunpack.c.l.s4 1966171168
  %v407 = vunpack.c.0.s8 %v406
  %v408 = vlaneseq
  %v409 = vshrl.u32 %v408, 7
  %v410 = vsub.s32 %v407, %v409
  %v411 = vrot.slane %v397, %v410
  %v412 = vcombine.high %v404, %v404
  %v413 = vcombine.high %v411, %v411
  %v415 = vunpack.c.l.s4 1966171168
  %v416 = vunpack.c.0.s8 %v415
  %v417 = vlaneseq
  %v418 = vshrl.u32 %v417, 7
  %v419 = vsub.s32 %v416, %v418
  %v420 = vrot.slane %v404, %v419
  %v422 = vunpack.c.l.s4 1966171168
  %v423 = vunpack.c.0.s8 %v422
  %v424 = vlaneseq
  %v425 = vshrl.u32 %v424, 7
  %v426 = vsub.s32 %v423, %v425
  %v427 = vrot.slane %v411, %v426
  %v429 = vunpack.c.l.s4 1966171168
  %v430 = vunpack.c.0.s8 %v429
  %v431 = vlaneseq
  %v432 = vshrl.u32 %v431, 7
  %v433 = vsub.s32 %v430, %v432
  %v434 = vrot.slane %v412, %v433
  %v436 = vunpack.c.l.s4 1966171168
  %v437 = vunpack.c.0.s8 %v436
  %v438 = vlaneseq
  %v439 = vshrl.u32 %v438, 7
  %v440 = vsub.s32 %v437, %v439
  %v441 = vrot.slane %v413, %v440
  %v442 = vcombine.high %v420, %v420
  %v443 = vcombine.high %v427, %v427
  %v444 = vcombine.high %v434, %v434
  %v445 = vcombine.high %v441, %v441
  %v446 = vcombine.high %v336, %v336
  %v448 = vunpack.c.l.s4 1966171168
  %v449 = vunpack.c.0.s8 %v448
  %v450 = vlaneseq
  %v451 = vshrl.u32 %v450, 7
  %v452 = vsub.s32 %v449, %v451
  %v453 = vrot.slane %v336, %v452
  %v455 = vunpack.c.l.s4 1966171168
  %v456 = vunpack.c.0.s8 %v455
  %v457 = vlaneseq
  %v458 = vshrl.u32 %v457, 7
  %v459 = vsub.s32 %v456, %v458
  %v460 = vrot.slane %v446, %v459
  %v461 = vcombine.high %v453, %v453
  %v462 = vcombine.high %v460, %v460
  %v464 = vunpack.c.l.s4 1966171168
  %v465 = vunpack.c.0.s8 %v464
  %v466 = vlaneseq
  %v467 = vshrl.u32 %v466, 7
  %v468 = vsub.s32 %v465, %v467
  %v469 = vrot.slane %v453, %v468
  %v471 = vunpack.c.l.s4 1966171168
  %v472 = vunpack.c.0.s8 %v471
  %v473 = vlaneseq
  %v474 = vshrl.u32 %v473, 7
  %v475 = vsub.s32 %v472, %v474
  %v476 = vrot.slane %v460, %v475
  %v478 = vunpack.c.l.s4 1966171168
  %v479 = vunpack.c.0.s8 %v478
  %v480 = vlaneseq
  %v481 = vshrl.u32 %v480, 7
  %v482 = vsub.s32 %v479, %v481
  %v483 = vrot.slane %v461, %v482
  %v485 = vunpack.c.l.s4 1966171168
  %v486 = vunpack.c.0.s8 %v485
  %v487 = vlaneseq
  %v488 = vshrl.u32 %v487, 7
  %v489 = vsub.s32 %v486, %v488
  %v490 = vrot.slane %v462, %v489
  %v491 = vcombine.high %v469, %v469
  %v492 = vcombine.high %v476, %v476
  %v493 = vcombine.high %v483, %v483
  %v494 = vcombine.high %v490, %v490
  %v495 = vcombine.high %v337, %v337
  %v497 = vunpack.c.l.s4 1966171168
  %v498 = vunpack.c.0.s8 %v497
  %v499 = vlaneseq
  %v500 = vshrl.u32 %v499, 7
  %v501 = vsub.s32 %v498, %v500
  %v502 = vrot.slane %v337, %v501
  %v504 = vunpack.c.l.s4 1966171168
  %v505 = vunpack.c.0.s8 %v504
  %v506 = vlaneseq
  %v507 = vshrl.u32 %v506, 7
  %v508 = vsub.s32 %v505, %v507
  %v509 = vrot.slane %v495, %v508
  %v510 = vcombine.high %v502, %v502
  %v511 = vcombine.high %v509, %v509
  %v513 = vunpack.c.l.s4 1966171168
  %v514 = vunpack.c.0.s8 %v513
  %v515 = vlaneseq
  %v516 = vshrl.u32 %v515, 7
  %v517 = vsub.s32 %v514, %v516
  %v518 = vrot.slane %v502, %v517
  %v520 = vunpack.c.l.s4 1966171168
  %v521 = vunpack.c.0.s8 %v520
  %v522 = vlaneseq
  %v523 = vshrl.u32 %v522, 7
  %v524 = vsub.s32 %v521, %v523
  %v525 = vrot.slane %v509, %v524
  %v527 = vunpack.c.l.s4 1966171168
  %v528 = vunpack.c.0.s8 %v527
  %v529 = vlaneseq
  %v530 = vshrl.u32 %v529, 7
  %v531 = vsub.s32 %v528, %v530
  %v532 = vrot.slane %v510, %v531
  %v534 = vunpack.c.l.s4 1966171168
  %v535 = vunpack.c.0.s8 %v534
  %v536 = vlaneseq
  %v537 = vshrl.u32 %v536, 7
  %v538 = vsub.s32 %v535, %v537
  %v539 = vrot.slane %v511, %v538
  %v540 = vcombine.high %v518, %v518
  %v541 = vcombine.high %v525, %v525
  %v542 = vcombine.high %v532, %v532
  %v543 = vcombine.high %v539, %v539
  %v544 = vcombine.high %v338, %v338
  %v546 = vunpack.c.l.s4 1966171168
  %v547 = vunpack.c.0.s8 %v546
  %v548 = vlaneseq
  %v549 = vshrl.u32 %v548, 7
  %v550 = vsub.s32 %v547, %v549
  %v551 = vrot.slane %v338, %v550
  %v553 = vunpack.c.l.s4 1966171168
  %v554 = vunpack.c.0.s8 %v553
  %v555 = vlaneseq
  %v556 = vshrl.u32 %v555, 7
  %v557 = vsub.s32 %v554, %v556
  %v558 = vrot.slane %v544, %v557
  %v559 = vcombine.high %v551, %v551
  %v560 = vcombine.high %v558, %v558
  %v562 = vunpack.c.l.s4 1966171168
  %v563 = vunpack.c.0.s8 %v562
  %v564 = vlaneseq
  %v565 = vshrl.u32 %v564, 7
  %v566 = vsub.s32 %v563, %v565
  %v567 = vrot.slane %v551, %v566
  %v569 = vunpack.c.l.s4 1966171168
  %v570 = vunpack.c.0.s8 %v569
  %v571 = vlaneseq
  %v572 = vshrl.u32 %v571, 7
  %v573 = vsub.s32 %v570, %v572
  %v574 = vrot.slane %v558, %v573
  %v576 = vunpack.c.l.s4 1966171168
  %v577 = vunpack.c.0.s8 %v576
  %v578 = vlaneseq
  %v579 = vshrl.u32 %v578, 7
  %v580 = vsub.s32 %v577, %v579
  %v581 = vrot.slane %v559, %v580
  %v583 = vunpack.c.l.s4 1966171168
  %v584 = vunpack.c.0.s8 %v583
  %v585 = vlaneseq
  %v586 = vshrl.u32 %v585, 7
  %v587 = vsub.s32 %v584, %v586
  %v588 = vrot.slane %v560, %v587
  %v589 = vcombine.high %v567, %v567
  %v590 = vcombine.high %v574, %v574
  %v591 = vcombine.high %v581, %v581
  %v592 = vcombine.high %v588, %v588
  %v593 = vcombine.high %v339, %v339
  %v595 = vunpack.c.l.s4 1966171168
  %v596 = vunpack.c.0.s8 %v595
  %v597 = vlaneseq
  %v598 = vshrl.u32 %v597, 7
  %v599 = vsub.s32 %v596, %v598
  %v600 = vrot.slane %v339, %v599
  %v602 = vunpack.c.l.s4 1966171168
  %v603 = vunpack.c.0.s8 %v602
  %v604 = vlaneseq
  %v605 = vshrl.u32 %v604, 7
  %v606 = vsub.s32 %v603, %v605
  %v607 = vrot.slane %v593, %v606
  %v608 = vcombine.high %v600, %v600
  %v609 = vcombine.high %v607, %v607
  %v611 = vunpack.c.l.s4 1966171168
  %v612 = vunpack.c.0.s8 %v611
  %v613 = vlaneseq
  %v614 = vshrl.u32 %v613, 7
  %v615 = vsub.s32 %v612, %v614
  %v616 = vrot.slane %v600, %v615
  %v618 = vunpack.c.l.s4 1966171168
  %v619 = vunpack.c.0.s8 %v618
  %v620 = vlaneseq
  %v621 = vshrl.u32 %v620, 7
  %v622 = vsub.s32 %v619, %v621
  %v623 = vrot.slane %v607, %v622
  %v625 = vunpack.c.l.s4 1966171168
  %v626 = vunpack.c.0.s8 %v625
  %v627 = vlaneseq
  %v628 = vshrl.u32 %v627, 7
  %v629 = vsub.s32 %v626, %v628
  %v630 = vrot.slane %v608, %v629
  %v632 = vunpack.c.l.s4 1966171168
  %v633 = vunpack.c.0.s8 %v632
  %v634 = vlaneseq
  %v635 = vshrl.u32 %v634, 7
  %v636 = vsub.s32 %v633, %v635
  %v637 = vrot.slane %v609, %v636
  %v638 = vcombine.high %v616, %v616
  %v639 = vcombine.high %v623, %v623
  %v640 = vcombine.high %v630, %v630
  %v641 = vcombine.high %v637, %v637
  %v642 = vcombine.high %v340, %v340
  %v644 = vunpack.c.l.s4 1966171168
  %v645 = vunpack.c.0.s8 %v644
  %v646 = vlaneseq
  %v647 = vshrl.u32 %v646, 7
  %v648 = vsub.s32 %v645, %v647
  %v649 = vrot.slane %v340, %v648
  %v651 = vunpack.c.l.s4 1966171168
  %v652 = vunpack.c.0.s8 %v651
  %v653 = vlaneseq
  %v654 = vshrl.u32 %v653, 7
  %v655 = vsub.s32 %v652, %v654
  %v656 = vrot.slane %v642, %v655
  %v657 = vcombine.high %v649, %v649
  %v658 = vcombine.high %v656, %v656
  %v660 = vunpack.c.l.s4 1966171168
  %v661 = vunpack.c.0.s8 %v660
  %v662 = vlaneseq
  %v663 = vshrl.u32 %v662, 7
  %v664 = vsub.s32 %v661, %v663
  %v665 = vrot.slane %v649, %v664
  %v667 = vunpack.c.l.s4 1966171168
  %v668 = vunpack.c.0.s8 %v667
  %v669 = vlaneseq
  %v670 = vshrl.u32 %v669, 7
  %v671 = vsub.s32 %v668, %v670
  %v672 = vrot.slane %v656, %v671
  %v674 = vunpack.c.l.s4 1966171168
  %v675 = vunpack.c.0.s8 %v674
  %v676 = vlaneseq
  %v677 = vshrl.u32 %v676, 7
  %v678 = vsub.s32 %v675, %v677
  %v679 = vrot.slane %v657, %v678
  %v681 = vunpack.c.l.s4 1966171168
  %v682 = vunpack.c.0.s8 %v681
  %v683 = vlaneseq
  %v684 = vshrl.u32 %v683, 7
  %v685 = vsub.s32 %v682, %v684
  %v686 = vrot.slane %v658, %v685
  %v687 = vcombine.high %v665, %v665
  %v688 = vcombine.high %v672, %v672
  %v689 = vcombine.high %v679, %v679
  %v690 = vcombine.high %v686, %v686
  %v692 = vunpack.c.l.s4 1966171168
  %v693 = vunpack.c.0.s8 %v692
  %v694 = vlaneseq
  %v695 = vshrl.u32 %v694, 7
  %v696 = vsub.s32 %v693, %v695
  %v697 = vrot.slane %v341, %v696
  %v699 = vunpack.c.l.s4 1966171168
  %v700 = vunpack.c.0.s8 %v699
  %v701 = vlaneseq
  %v702 = vshrl.u32 %v701, 7
  %v703 = vsub.s32 %v700, %v702
  %v704 = vrot.slane %v697, %v703
  %v705 = vcombine.high %v367, %v367
  %v707 = vunpack.c.l.s4 1966171168
  %v708 = vunpack.c.0.s8 %v707
  %v709 = vlaneseq
  %v710 = vshrl.u32 %v709, 7
  %v711 = vsub.s32 %v708, %v710
  %v712 = vrot.slane %v367, %v711
  %v714 = vunpack.c.l.s4 1966171168
  %v715 = vunpack.c.0.s8 %v714
  %v716 = vlaneseq
  %v717 = vshrl.u32 %v716, 7
  %v718 = vsub.s32 %v715, %v717
  %v719 = vrot.slane %v705, %v718
  %v720 = vcombine.high %v712, %v712
  %v721 = vcombine.high %v719, %v719
  %v723 = vunpack.c.l.s4 1966171168
  %v724 = vunpack.c.0.s8 %v723
  %v725 = vlaneseq
  %v726 = vshrl.u32 %v725, 7
  %v727 = vsub.s32 %v724, %v726
  %v728 = vrot.slane %v712, %v727
  %v730 = vunpack.c.l.s4 1966171168
  %v731 = vunpack.c.0.s8 %v730
  %v732 = vlaneseq
  %v733 = vshrl.u32 %v732, 7
  %v734 = vsub.s32 %v731, %v733
  %v735 = vrot.slane %v719, %v734
  %v737 = vunpack.c.l.s4 1966171168
  %v738 = vunpack.c.0.s8 %v737
  %v739 = vlaneseq
  %v740 = vshrl.u32 %v739, 7
  %v741 = vsub.s32 %v738, %v740
  %v742 = vrot.slane %v720, %v741
  %v744 = vunpack.c.l.s4 1966171168
  %v745 = vunpack.c.0.s8 %v744
  %v746 = vlaneseq
  %v747 = vshrl.u32 %v746, 7
  %v748 = vsub.s32 %v745, %v747
  %v749 = vrot.slane %v721, %v748
  %v750 = vcombine.high %v728, %v728
  %v751 = vcombine.high %v735, %v735
  %v752 = vcombine.high %v742, %v742
  %v753 = vcombine.high %v749, %v749
  %v754 = vcombine.high %v368, %v368
  %v756 = vunpack.c.l.s4 1966171168
  %v757 = vunpack.c.0.s8 %v756
  %v758 = vlaneseq
  %v759 = vshrl.u32 %v758, 7
  %v760 = vsub.s32 %v757, %v759
  %v761 = vrot.slane %v368, %v760
  %v763 = vunpack.c.l.s4 1966171168
  %v764 = vunpack.c.0.s8 %v763
  %v765 = vlaneseq
  %v766 = vshrl.u32 %v765, 7
  %v767 = vsub.s32 %v764, %v766
  %v768 = vrot.slane %v754, %v767
  %v769 = vcombine.high %v761, %v761
  %v770 = vcombine.high %v768, %v768
  %v772 = vunpack.c.l.s4 1966171168
  %v773 = vunpack.c.0.s8 %v772
  %v774 = vlaneseq
  %v775 = vshrl.u32 %v774, 7
  %v776 = vsub.s32 %v773, %v775
  %v777 = vrot.slane %v761, %v776
  %v779 = vunpack.c.l.s4 1966171168
  %v780 = vunpack.c.0.s8 %v779
  %v781 = vlaneseq
  %v782 = vshrl.u32 %v781, 7
  %v783 = vsub.s32 %v780, %v782
  %v784 = vrot.slane %v768, %v783
  %v786 = vunpack.c.l.s4 1966171168
  %v787 = vunpack.c.0.s8 %v786
  %v788 = vlaneseq
  %v789 = vshrl.u32 %v788, 7
  %v790 = vsub.s32 %v787, %v789
  %v791 = vrot.slane %v769, %v790
  %v793 = vunpack.c.l.s4 1966171168
  %v794 = vunpack.c.0.s8 %v793
  %v795 = vlaneseq
  %v796 = vshrl.u32 %v795, 7
  %v797 = vsub.s32 %v794, %v796
  %v798 = vrot.slane %v770, %v797
  %v799 = vcombine.high %v777, %v777
  %v800 = vcombine.high %v784, %v784
  %v801 = vcombine.high %v791, %v791
  %v802 = vcombine.high %v798, %v798
  %v803 = vcombine.high %v369, %v369
  %v805 = vunpack.c.l.s4 1966171168
  %v806 = vunpack.c.0.s8 %v805
  %v807 = vlaneseq
  %v808 = vshrl.u32 %v807, 7
  %v809 = vsub.s32 %v806, %v808
  %v810 = vrot.slane %v369, %v809
  %v812 = vunpack.c.l.s4 1966171168
  %v813 = vunpack.c.0.s8 %v812
  %v814 = vlaneseq
  %v815 = vshrl.u32 %v814, 7
  %v816 = vsub.s32 %v813, %v815
  %v817 = vrot.slane %v803, %v816
  %v818 = vcombine.high %v810, %v810
  %v819 = vcombine.high %v817, %v817
  %v821 = vunpack.c.l.s4 1966171168
  %v822 = vunpack.c.0.s8 %v821
  %v823 = vlaneseq
  %v824 = vshrl.u32 %v823, 7
  %v825 = vsub.s32 %v822, %v824
  %v826 = vrot.slane %v810, %v825
  %v828 = vunpack.c.l.s4 1966171168
  %v829 = vunpack.c.0.s8 %v828
  %v830 = vlaneseq
  %v831 = vshrl.u32 %v830, 7
  %v832 = vsub.s32 %v829, %v831
  %v833 = vrot.slane %v817, %v832
  %v835 = vunpack.c.l.s4 1966171168
  %v836 = vunpack.c.0.s8 %v835
  %v837 = vlaneseq
  %v838 = vshrl.u32 %v837, 7
  %v839 = vsub.s32 %v836, %v838
  %v840 = vrot.slane %v818, %v839
  %v842 = vunpack.c.l.s4 1966171168
  %v843 = vunpack.c.0.s8 %v842
  %v844 = vlaneseq
  %v845 = vshrl.u32 %v844, 7
  %v846 = vsub.s32 %v843, %v845
  %v847 = vrot.slane %v819, %v846
  %v848 = vcombine.high %v826, %v826
  %v849 = vcombine.high %v833, %v833
  %v850 = vcombine.high %v840, %v840
  %v851 = vcombine.high %v847, %v847
  %v852 = vcombine.high %v370, %v370
  %v854 = vunpack.c.l.s4 1966171168
  %v855 = vunpack.c.0.s8 %v854
  %v856 = vlaneseq
  %v857 = vshrl.u32 %v856, 7
  %v858 = vsub.s32 %v855, %v857
  %v859 = vrot.slane %v370, %v858
  %v861 = vunpack.c.l.s4 1966171168
  %v862 = vunpack.c.0.s8 %v861
  %v863 = vlaneseq
  %v864 = vshrl.u32 %v863, 7
  %v865 = vsub.s32 %v862, %v864
  %v866 = vrot.slane %v852, %v865
  %v867 = vcombine.high %v859, %v859
  %v868 = vcombine.high %v866, %v866
  %v870 = vunpack.c.l.s4 1966171168
  %v871 = vunpack.c.0.s8 %v870
  %v872 = vlaneseq
  %v873 = vshrl.u32 %v872, 7
  %v874 = vsub.s32 %v871, %v873
  %v875 = vrot.slane %v859, %v874
  %v877 = vunpack.c.l.s4 1966171168
  %v878 = vunpack.c.0.s8 %v877
  %v879 = vlaneseq
  %v880 = vshrl.u32 %v879, 7
  %v881 = vsub.s32 %v878, %v880
  %v882 = vrot.slane %v866, %v881
  %v884 = vunpack.c.l.s4 1966171168
  %v885 = vunpack.c.0.s8 %v884
  %v886 = vlaneseq
  %v887 = vshrl.u32 %v886, 7
  %v888 = vsub.s32 %v885, %v887
  %v889 = vrot.slane %v867, %v888
  %v891 = vunpack.c.l.s4 1966171168
  %v892 = vunpack.c.0.s8 %v891
  %v893 = vlaneseq
  %v894 = vshrl.u32 %v893, 7
  %v895 = vsub.s32 %v892, %v894
  %v896 = vrot.slane %v868, %v895
  %v897 = vcombine.high %v875, %v875
  %v898 = vcombine.high %v882, %v882
  %v899 = vcombine.high %v889, %v889
  %v900 = vcombine.high %v896, %v896
  %v901 = vcombine.high %v371, %v371
  %v903 = vunpack.c.l.s4 1966171168
  %v904 = vunpack.c.0.s8 %v903
  %v905 = vlaneseq
  %v906 = vshrl.u32 %v905, 7
  %v907 = vsub.s32 %v904, %v906
  %v908 = vrot.slane %v371, %v907
  %v910 = vunpack.c.l.s4 1966171168
  %v911 = vunpack.c.0.s8 %v910
  %v912 = vlaneseq
  %v913 = vshrl.u32 %v912, 7
  %v914 = vsub.s32 %v911, %v913
  %v915 = vrot.slane %v901, %v914
  %v916 = vcombine.high %v908, %v908
  %v917 = vcombine.high %v915, %v915
  %v919 = vunpack.c.l.s4 1966171168
  %v920 = vunpack.c.0.s8 %v919
  %v921 = vlaneseq
  %v922 = vshrl.u32 %v921, 7
  %v923 = vsub.s32 %v920, %v922
  %v924 = vrot.slane %v908, %v923
  %v926 = vunpack.c.l.s4 1966171168
  %v927 = vunpack.c.0.s8 %v926
  %v928 = vlaneseq
  %v929 = vshrl.u32 %v928, 7
  %v930 = vsub.s32 %v927, %v929
  %v931 = vrot.slane %v915, %v930
  %v933 = vunpack.c.l.s4 1966171168
  %v934 = vunpack.c.0.s8 %v933
  %v935 = vlaneseq
  %v936 = vshrl.u32 %v935, 7
  %v937 = vsub.s32 %v934, %v936
  %v938 = vrot.slane %v916, %v937
  %v940 = vunpack.c.l.s4 1966171168
  %v941 = vunpack.c.0.s8 %v940
  %v942 = vlaneseq
  %v943 = vshrl.u32 %v942, 7
  %v944 = vsub.s32 %v941, %v943
  %v945 = vrot.slane %v917, %v944
  %v946 = vcombine.high %v924, %v924
  %v947 = vcombine.high %v931, %v931
  %v948 = vcombine.high %v938, %v938
  %v949 = vcombine.high %v945, %v945
  %v950 = vcombine.high %v372, %v372
  %v952 = vunpack.c.l.s4 1966171168
  %v953 = vunpack.c.0.s8 %v952
  %v954 = vlaneseq
  %v955 = vshrl.u32 %v954, 7
  %v956 = vsub.s32 %v953, %v955
  %v957 = vrot.slane %v372, %v956
  %v959 = vunpack.c.l.s4 1966171168
  %v960 = vunpack.c.0.s8 %v959
  %v961 = vlaneseq
  %v962 = vshrl.u32 %v961, 7
  %v963 = vsub.s32 %v960, %v962
  %v964 = vrot.slane %v950, %v963
  %v965 = vcombine.high %v957, %v957
  %v966 = vcombine.high %v964, %v964
  %v968 = vunpack.c.l.s4 1966171168
  %v969 = vunpack.c.0.s8 %v968
  %v970 = vlaneseq
  %v971 = vshrl.u32 %v970, 7
  %v972 = vsub.s32 %v969, %v971
  %v973 = vrot.slane %v957, %v972
  %v975 = vunpack.c.l.s4 1966171168
  %v976 = vunpack.c.0.s8 %v975
  %v977 = vlaneseq
  %v978 = vshrl.u32 %v977, 7
  %v979 = vsub.s32 %v976, %v978
  %v980 = vrot.slane %v964, %v979
  %v982 = vunpack.c.l.s4 1966171168
  %v983 = vunpack.c.0.s8 %v982
  %v984 = vlaneseq
  %v985 = vshrl.u32 %v984, 7
  %v986 = vsub.s32 %v983, %v985
  %v987 = vrot.slane %v965, %v986
  %v989 = vunpack.c.l.s4 1966171168
  %v990 = vunpack.c.0.s8 %v989
  %v991 = vlaneseq
  %v992 = vshrl.u32 %v991, 7
  %v993 = vsub.s32 %v990, %v992
  %v994 = vrot.slane %v966, %v993
  %v995 = vcombine.high %v973, %v973
  %v996 = vcombine.high %v980, %v980
  %v997 = vcombine.high %v987, %v987
  %v998 = vcombine.high %v994, %v994
  %v1000 = vunpack.c.l.s4 1966171168
  %v1001 = vunpack.c.0.s8 %v1000
  %v1002 = vlaneseq
  %v1003 = vshrl.u32 %v1002, 7
  %v1004 = vsub.s32 %v1001, %v1003
  %v1005 = vrot.slane %v373, %v1004
  %v1007 = vunpack.c.l.s4 1966171168
  %v1008 = vunpack.c.0.s8 %v1007
  %v1009 = vlaneseq
  %v1010 = vshrl.u32 %v1009, 7
  %v1011 = vsub.s32 %v1008, %v1010
  %v1012 = vrot.slane %v1005, %v1011
  %v1013 = vcombine.low %v420, %v434
  %v1014 = vcombine.low %v442, %v444
  %v1015 = vcombine.low %v427, %v441
  %v1016 = vcombine.low %v443, %v445
  %v1018 = vunpack.c.l.s4 1966171168
  %v1019 = vunpack.c.0.s8 %v1018
  %v1020 = vlaneseq
  %v1021 = vshrl.u32 %v1020, 7
  %v1022 = vsub.s32 %v1019, %v1021
  %v1023 = vrot.slane %v1013, %v1022
  %v1025 = vunpack.c.l.s4 1966171168
  %v1026 = vunpack.c.0.s8 %v1025
  %v1027 = vlaneseq
  %v1028 = vshrl.u32 %v1027, 7
  %v1029 = vsub.s32 %v1026, %v1028
  %v1030 = vrot.slane %v1014, %v1029
  %v1032 = vunpack.c.l.s4 1966171168
  %v1033 = vunpack.c.0.s8 %v1032
  %v1034 = vlaneseq
  %v1035 = vshrl.u32 %v1034, 7
  %v1036 = vsub.s32 %v1033, %v1035
  %v1037 = vrot.slane %v1015, %v1036
  %v1039 = vunpack.c.l.s4 1966171168
  %v1040 = vunpack.c.0.s8 %v1039
  %v1041 = vlaneseq
  %v1042 = vshrl.u32 %v1041, 7
  %v1043 = vsub.s32 %v1040, %v1042
  %v1044 = vrot.slane %v1016, %v1043
  %v1045 = vcombine.low %v1023, %v1030
  %v1046 = vcombine.low %v1037, %v1044
  %v1048 = vunpack.c.l.s4 1966171168
  %v1049 = vunpack.c.0.s8 %v1048
  %v1050 = vlaneseq
  %v1051 = vshrl.u32 %v1050, 7
  %v1052 = vsub.s32 %v1049, %v1051
  %v1053 = vrot.slane %v1045, %v1052
  %v1055 = vunpack.c.l.s4 1966171168
  %v1056 = vunpack.c.0.s8 %v1055
  %v1057 = vlaneseq
  %v1058 = vshrl.u32 %v1057, 7
  %v1059 = vsub.s32 %v1056, %v1058
  %v1060 = vrot.slane %v1046, %v1059
  %v1061 = vcombine.low %v1053, %v1060
  %v1062 = vcombine.low %v469, %v483
  %v1063 = vcombine.low %v491, %v493
  %v1064 = vcombine.low %v476, %v490
  %v1065 = vcombine.low %v492, %v494
  %v1067 = vunpack.c.l.s4 1966171168
  %v1068 = vunpack.c.0.s8 %v1067
  %v1069 = vlaneseq
  %v1070 = vshrl.u32 %v1069, 7
  %v1071 = vsub.s32 %v1068, %v1070
  %v1072 = vrot.slane %v1062, %v1071
  %v1074 = vunpack.c.l.s4 1966171168
  %v1075 = vunpack.c.0.s8 %v1074
  %v1076 = vlaneseq
  %v1077 = vshrl.u32 %v1076, 7
  %v1078 = vsub.s32 %v1075, %v1077
  %v1079 = vrot.slane %v1063, %v1078
  %v1081 = vunpack.c.l.s4 1966171168
  %v1082 = vunpack.c.0.s8 %v1081
  %v1083 = vlaneseq
  %v1084 = vshrl.u32 %v1083, 7
  %v1085 = vsub.s32 %v1082, %v1084
  %v1086 = vrot.slane %v1064, %v1085
  %v1088 = vunpack.c.l.s4 1966171168
  %v1089 = vunpack.c.0.s8 %v1088
  %v1090 = vlaneseq
  %v1091 = vshrl.u32 %v1090, 7
  %v1092 = vsub.s32 %v1089, %v1091
  %v1093 = vrot.slane %v1065, %v1092
  %v1094 = vcombine.low %v1072, %v1079
  %v1095 = vcombine.low %v1086, %v1093
  %v1097 = vunpack.c.l.s4 1966171168
  %v1098 = vunpack.c.0.s8 %v1097
  %v1099 = vlaneseq
  %v1100 = vshrl.u32 %v1099, 7
  %v1101 = vsub.s32 %v1098, %v1100
  %v1102 = vrot.slane %v1094, %v1101
  %v1104 = vunpack.c.l.s4 1966171168
  %v1105 = vunpack.c.0.s8 %v1104
  %v1106 = vlaneseq
  %v1107 = vshrl.u32 %v1106, 7
  %v1108 = vsub.s32 %v1105, %v1107
  %v1109 = vrot.slane %v1095, %v1108
  %v1110 = vcombine.low %v1102, %v1109
  %v1111 = vcombine.low %v518, %v532
  %v1112 = vcombine.low %v540, %v542
  %v1113 = vcombine.low %v525, %v539
  %v1114 = vcombine.low %v541, %v543
  %v1116 = vunpack.c.l.s4 1966171168
  %v1117 = vunpack.c.0.s8 %v1116
  %v1118 = vlaneseq
  %v1119 = vshrl.u32 %v1118, 7
  %v1120 = vsub.s32 %v1117, %v1119
  %v1121 = vrot.slane %v1111, %v1120
  %v1123 = vunpack.c.l.s4 1966171168
  %v1124 = vunpack.c.0.s8 %v1123
  %v1125 = vlaneseq
  %v1126 = vshrl.u32 %v1125, 7
  %v1127 = vsub.s32 %v1124, %v1126
  %v1128 = vrot.slane %v1112, %v1127
  %v1130 = vunpack.c.l.s4 1966171168
  %v1131 = vunpack.c.0.s8 %v1130
  %v1132 = vlaneseq
  %v1133 = vshrl.u32 %v1132, 7
  %v1134 = vsub.s32 %v1131, %v1133
  %v1135 = vrot.slane %v1113, %v1134
  %v1137 = vunpack.c.l.s4 1966171168
  %v1138 = vunpack.c.0.s8 %v1137
  %v1139 = vlaneseq
  %v1140 = vshrl.u32 %v1139, 7
  %v1141 = vsub.s32 %v1138, %v1140
  %v1142 = vrot.slane %v1114, %v1141
  %v1143 = vcombine.low %v1121, %v1128
  %v1144 = vcombine.low %v1135, %v1142
  %v1146 = vunpack.c.l.s4 1966171168
  %v1147 = vunpack.c.0.s8 %v1146
  %v1148 = vlaneseq
  %v1149 = vshrl.u32 %v1148, 7
  %v1150 = vsub.s32 %v1147, %v1149
  %v1151 = vrot.slane %v1143, %v1150
  %v1153 = vunpack.c.l.s4 1966171168
  %v1154 = vunpack.c.0.s8 %v1153
  %v1155 = vlaneseq
  %v1156 = vshrl.u32 %v1155, 7
  %v1157 = vsub.s32 %v1154, %v1156
  %v1158 = vrot.slane %v1144, %v1157
  %v1159 = vcombine.low %v1151, %v1158
  %v1160 = vcombine.low %v567, %v581
  %v1161 = vcombine.low %v589, %v591
  %v1162 = vcombine.low %v574, %v588
  %v1163 = vcombine.low %v590, %v592
  %v1165 = vunpack.c.l.s4 1966171168
  %v1166 = vunpack.c.0.s8 %v1165
  %v1167 = vlaneseq
  %v1168 = vshrl.u32 %v1167, 7
  %v1169 = vsub.s32 %v1166, %v1168
  %v1170 = vrot.slane %v1160, %v1169
  %v1172 = vunpack.c.l.s4 1966171168
  %v1173 = vunpack.c.0.s8 %v1172
  %v1174 = vlaneseq
  %v1175 = vshrl.u32 %v1174, 7
  %v1176 = vsub.s32 %v1173, %v1175
  %v1177 = vrot.slane %v1161, %v1176
  %v1179 = vunpack.c.l.s4 1966171168
  %v1180 = vunpack.c.0.s8 %v1179
  %v1181 = vlaneseq
  %v1182 = vshrl.u32 %v1181, 7
  %v1183 = vsub.s32 %v1180, %v1182
  %v1184 = vrot.slane %v1162, %v1183
  %v1186 = vunpack.c.l.s4 1966171168
  %v1187 = vunpack.c.0.s8 %v1186
  %v1188 = vlaneseq
  %v1189 = vshrl.u32 %v1188, 7
  %v1190 = vsub.s32 %v1187, %v1189
  %v1191 = vrot.slane %v1163, %v1190
  %v1192 = vcombine.low %v1170, %v1177
  %v1193 = vcombine.low %v1184, %v1191
  %v1195 = vunpack.c.l.s4 1966171168
  %v1196 = vunpack.c.0.s8 %v1195
  %v1197 = vlaneseq
  %v1198 = vshrl.u32 %v1197, 7
  %v1199 = vsub.s32 %v1196, %v1198
  %v1200 = vrot.slane %v1192, %v1199
  %v1202 = vunpack.c.l.s4 1966171168
  %v1203 = vunpack.c.0.s8 %v1202
  %v1204 = vlaneseq
  %v1205 = vshrl.u32 %v1204, 7
  %v1206 = vsub.s32 %v1203, %v1205
  %v1207 = vrot.slane %v1193, %v1206
  %v1208 = vcombine.low %v1200, %v1207
  %v1209 = vcombine.low %v616, %v630
  %v1210 = vcombine.low %v638, %v640
  %v1211 = vcombine.low %v623, %v637
  %v1212 = vcombine.low %v639, %v641
  %v1214 = vunpack.c.l.s4 1966171168
  %v1215 = vunpack.c.0.s8 %v1214
  %v1216 = vlaneseq
  %v1217 = vshrl.u32 %v1216, 7
  %v1218 = vsub.s32 %v1215, %v1217
  %v1219 = vrot.slane %v1209, %v1218
  %v1221 = vunpack.c.l.s4 1966171168
  %v1222 = vunpack.c.0.s8 %v1221
  %v1223 = vlaneseq
  %v1224 = vshrl.u32 %v1223, 7
  %v1225 = vsub.s32 %v1222, %v1224
  %v1226 = vrot.slane %v1210, %v1225
  %v1228 = vunpack.c.l.s4 1966171168
  %v1229 = vunpack.c.0.s8 %v1228
  %v1230 = vlaneseq
  %v1231 = vshrl.u32 %v1230, 7
  %v1232 = vsub.s32 %v1229, %v1231
  %v1233 = vrot.slane %v1211, %v1232
  %v1235 = vunpack.c.l.s4 1966171168
  %v1236 = vunpack.c.0.s8 %v1235
  %v1237 = vlaneseq
  %v1238 = vshrl.u32 %v1237, 7
  %v1239 = vsub.s32 %v1236, %v1238
  %v1240 = vrot.slane %v1212, %v1239
  %v1241 = vcombine.low %v1219, %v1226
  %v1242 = vcombine.low %v1233, %v1240
  %v1244 = vunpack.c.l.s4 1966171168
  %v1245 = vunpack.c.0.s8 %v1244
  %v1246 = vlaneseq
  %v1247 = vshrl.u32 %v1246, 7
  %v1248 = vsub.s32 %v1245, %v1247
  %v1249 = vrot.slane %v1241, %v1248
  %v1251 = vunpack.c.l.s4 1966171168
  %v1252 = vunpack.c.0.s8 %v1251
  %v1253 = vlaneseq
  %v1254 = vshrl.u32 %v1253, 7
  %v1255 = vsub.s32 %v1252, %v1254
  %v1256 = vrot.slane %v1242, %v1255
  %v1257 = vcombine.low %v1249, %v1256
  %v1258 = vcombine.low %v665, %v679
  %v1259 = vcombine.low %v687, %v689
  %v1260 = vcombine.low %v672, %v686
  %v1261 = vcombine.low %v688, %v690
  %v1263 = vunpack.c.l.s4 1966171168
  %v1264 = vunpack.c.0.s8 %v1263
  %v1265 = vlaneseq
  %v1266 = vshrl.u32 %v1265, 7
  %v1267 = vsub.s32 %v1264, %v1266
  %v1268 = vrot.slane %v1258, %v1267
  %v1270 = vunpack.c.l.s4 1966171168
  %v1271 = vunpack.c.0.s8 %v1270
  %v1272 = vlaneseq
  %v1273 = vshrl.u32 %v1272, 7
  %v1274 = vsub.s32 %v1271, %v1273
  %v1275 = vrot.slane %v1259, %v1274
  %v1277 = vunpack.c.l.s4 1966171168
  %v1278 = vunpack.c.0.s8 %v1277
  %v1279 = vlaneseq
  %v1280 = vshrl.u32 %v1279, 7
  %v1281 = vsub.s32 %v1278, %v1280
  %v1282 = vrot.slane %v1260, %v1281
  %v1284 = vunpack.c.l.s4 1966171168
  %v1285 = vunpack.c.0.s8 %v1284
  %v1286 = vlaneseq
  %v1287 = vshrl.u32 %v1286, 7
  %v1288 = vsub.s32 %v1285, %v1287
  %v1289 = vrot.slane %v1261, %v1288
  %v1290 = vcombine.low %v1268, %v1275
  %v1291 = vcombine.low %v1282, %v1289
  %v1293 = vunpack.c.l.s4 1966171168
  %v1294 = vunpack.c.0.s8 %v1293
  %v1295 = vlaneseq
  %v1296 = vshrl.u32 %v1295, 7
  %v1297 = vsub.s32 %v1294, %v1296
  %v1298 = vrot.slane %v1290, %v1297
  %v1300 = vunpack.c.l.s4 1966171168
  %v1301 = vunpack.c.0.s8 %v1300
  %v1302 = vlaneseq
  %v1303 = vshrl.u32 %v1302, 7
  %v1304 = vsub.s32 %v1301, %v1303
  %v1305 = vrot.slane %v1291, %v1304
  %v1306 = vcombine.low %v1298, %v1305
  %v1307 = vcombine.low %v704, %v728
  %v1308 = vcombine.low %v742, %v750
  %v1309 = vcombine.low %v752, %v735
  %v1310 = vcombine.low %v749, %v751
  %v1312 = vunpack.c.l.s4 1966171168
  %v1313 = vunpack.c.0.s8 %v1312
  %v1314 = vlaneseq
  %v1315 = vshrl.u32 %v1314, 7
  %v1316 = vsub.s32 %v1313, %v1315
  %v1317 = vrot.slane %v1307, %v1316
  %v1319 = vunpack.c.l.s4 1966171168
  %v1320 = vunpack.c.0.s8 %v1319
  %v1321 = vlaneseq
  %v1322 = vshrl.u32 %v1321, 7
  %v1323 = vsub.s32 %v1320, %v1322
  %v1324 = vrot.slane %v1308, %v1323
  %v1326 = vunpack.c.l.s4 1966171168
  %v1327 = vunpack.c.0.s8 %v1326
  %v1328 = vlaneseq
  %v1329 = vshrl.u32 %v1328, 7
  %v1330 = vsub.s32 %v1327, %v1329
  %v1331 = vrot.slane %v1309, %v1330
  %v1333 = vunpack.c.l.s4 1966171168
  %v1334 = vunpack.c.0.s8 %v1333
  %v1335 = vlaneseq
  %v1336 = vshrl.u32 %v1335, 7
  %v1337 = vsub.s32 %v1334, %v1336
  %v1338 = vrot.slane %v1310, %v1337
  %v1339 = vcombine.low %v1317, %v1324
  %v1340 = vcombine.low %v1331, %v1338
  %v1342 = vunpack.c.l.s4 1966171168
  %v1343 = vunpack.c.0.s8 %v1342
  %v1344 = vlaneseq
  %v1345 = vshrl.u32 %v1344, 7
  %v1346 = vsub.s32 %v1343, %v1345
  %v1347 = vrot.slane %v1339, %v1346
  %v1349 = vunpack.c.l.s4 1966171168
  %v1350 = vunpack.c.0.s8 %v1349
  %v1351 = vlaneseq
  %v1352 = vshrl.u32 %v1351, 7
  %v1353 = vsub.s32 %v1350, %v1352
  %v1354 = vrot.slane %v1340, %v1353
  %v1355 = vcombine.low %v1347, %v1354
  %v1356 = vcombine.low %v753, %v777
  %v1357 = vcombine.low %v791, %v799
  %v1358 = vcombine.low %v801, %v784
  %v1359 = vcombine.low %v798, %v800
  %v1361 = vunpack.c.l.s4 1966171168
  %v1362 = vunpack.c.0.s8 %v1361
  %v1363 = vlaneseq
  %v1364 = vshrl.u32 %v1363, 7
  %v1365 = vsub.s32 %v1362, %v1364
  %v1366 = vrot.slane %v1356, %v1365
  %v1368 = vunpack.c.l.s4 1966171168
  %v1369 = vunpack.c.0.s8 %v1368
  %v1370 = vlaneseq
  %v1371 = vshrl.u32 %v1370, 7
  %v1372 = vsub.s32 %v1369, %v1371
  %v1373 = vrot.slane %v1357, %v1372
  %v1375 = vunpack.c.l.s4 1966171168
  %v1376 = vunpack.c.0.s8 %v1375
  %v1377 = vlaneseq
  %v1378 = vshrl.u32 %v1377, 7
  %v1379 = vsub.s32 %v1376, %v1378
  %v1380 = vrot.slane %v1358, %v1379
  %v1382 = vunpack.c.l.s4 1966171168
  %v1383 = vunpack.c.0.s8 %v1382
  %v1384 = vlaneseq
  %v1385 = vshrl.u32 %v1384, 7
  %v1386 = vsub.s32 %v1383, %v1385
  %v1387 = vrot.slane %v1359, %v1386
  %v1388 = vcombine.low %v1366, %v1373
  %v1389 = vcombine.low %v1380, %v1387
  %v1391 = vunpack.c.l.s4 1966171168
  %v1392 = vunpack.c.0.s8 %v1391
  %v1393 = vlaneseq
  %v1394 = vshrl.u32 %v1393, 7
  %v1395 = vsub.s32 %v1392, %v1394
  %v1396 = vrot.slane %v1388, %v1395
  %v1398 = vunpack.c.l.s4 1966171168
  %v1399 = vunpack.c.0.s8 %v1398
  %v1400 = vlaneseq
  %v1401 = vshrl.u32 %v1400, 7
  %v1402 = vsub.s32 %v1399, %v1401
  %v1403 = vrot.slane %v1389, %v1402
  %v1404 = vcombine.low %v1396, %v1403
  %v1405 = vcombine.low %v802, %v826
  %v1406 = vcombine.low %v840, %v848
  %v1407 = vcombine.low %v850, %v833
  %v1408 = vcombine.low %v847, %v849
  %v1410 = vunpack.c.l.s4 1966171168
  %v1411 = vunpack.c.0.s8 %v1410
  %v1412 = vlaneseq
  %v1413 = vshrl.u32 %v1412, 7
  %v1414 = vsub.s32 %v1411, %v1413
  %v1415 = vrot.slane %v1405, %v1414
  %v1417 = vunpack.c.l.s4 1966171168
  %v1418 = vunpack.c.0.s8 %v1417
  %v1419 = vlaneseq
  %v1420 = vshrl.u32 %v1419, 7
  %v1421 = vsub.s32 %v1418, %v1420
  %v1422 = vrot.slane %v1406, %v1421
  %v1424 = vunpack.c.l.s4 1966171168
  %v1425 = vunpack.c.0.s8 %v1424
  %v1426 = vlaneseq
  %v1427 = vshrl.u32 %v1426, 7
  %v1428 = vsub.s32 %v1425, %v1427
  %v1429 = vrot.slane %v1407, %v1428
  %v1431 = vunpack.c.l.s4 1966171168
  %v1432 = vunpack.c.0.s8 %v1431
  %v1433 = vlaneseq
  %v1434 = vshrl.u32 %v1433, 7
  %v1435 = vsub.s32 %v1432, %v1434
  %v1436 = vrot.slane %v1408, %v1435
  %v1437 = vcombine.low %v1415, %v1422
  %v1438 = vcombine.low %v1429, %v1436
  %v1440 = vunpack.c.l.s4 1966171168
  %v1441 = vunpack.c.0.s8 %v1440
  %v1442 = vlaneseq
  %v1443 = vshrl.u32 %v1442, 7
  %v1444 = vsub.s32 %v1441, %v1443
  %v1445 = vrot.slane %v1437, %v1444
  %v1447 = vunpack.c.l.s4 1966171168
  %v1448 = vunpack.c.0.s8 %v1447
  %v1449 = vlaneseq
  %v1450 = vshrl.u32 %v1449, 7
  %v1451 = vsub.s32 %v1448, %v1450
  %v1452 = vrot.slane %v1438, %v1451
  %v1453 = vcombine.low %v1445, %v1452
  %v1454 = vcombine.low %v851, %v875
  %v1455 = vcombine.low %v889, %v897
  %v1456 = vcombine.low %v899, %v882
  %v1457 = vcombine.low %v896, %v898
  %v1459 = vunpack.c.l.s4 1966171168
  %v1460 = vunpack.c.0.s8 %v1459
  %v1461 = vlaneseq
  %v1462 = vshrl.u32 %v1461, 7
  %v1463 = vsub.s32 %v1460, %v1462
  %v1464 = vrot.slane %v1454, %v1463
  %v1466 = vunpack.c.l.s4 1966171168
  %v1467 = vunpack.c.0.s8 %v1466
  %v1468 = vlaneseq
  %v1469 = vshrl.u32 %v1468, 7
  %v1470 = vsub.s32 %v1467, %v1469
  %v1471 = vrot.slane %v1455, %v1470
  %v1473 = vunpack.c.l.s4 1966171168
  %v1474 = vunpack.c.0.s8 %v1473
  %v1475 = vlaneseq
  %v1476 = vshrl.u32 %v1475, 7
  %v1477 = vsub.s32 %v1474, %v1476
  %v1478 = vrot.slane %v1456, %v1477
  %v1480 = vunpack.c.l.s4 1966171168
  %v1481 = vunpack.c.0.s8 %v1480
  %v1482 = vlaneseq
  %v1483 = vshrl.u32 %v1482, 7
  %v1484 = vsub.s32 %v1481, %v1483
  %v1485 = vrot.slane %v1457, %v1484
  %v1486 = vcombine.low %v1464, %v1471
  %v1487 = vcombine.low %v1478, %v1485
  %v1489 = vunpack.c.l.s4 1966171168
  %v1490 = vunpack.c.0.s8 %v1489
  %v1491 = vlaneseq
  %v1492 = vshrl.u32 %v1491, 7
  %v1493 = vsub.s32 %v1490, %v1492
  %v1494 = vrot.slane %v1486, %v1493
  %v1496 = vunpack.c.l.s4 1966171168
  %v1497 = vunpack.c.0.s8 %v1496
  %v1498 = vlaneseq
  %v1499 = vshrl.u32 %v1498, 7
  %v1500 = vsub.s32 %v1497, %v1499
  %v1501 = vrot.slane %v1487, %v1500
  %v1502 = vcombine.low %v1494, %v1501
  %v1503 = vcombine.low %v900, %v924
  %v1504 = vcombine.low %v938, %v946
  %v1505 = vcombine.low %v948, %v931
  %v1506 = vcombine.low %v945, %v947
  %v1508 = vunpack.c.l.s4 1966171168
  %v1509 = vunpack.c.0.s8 %v1508
  %v1510 = vlaneseq
  %v1511 = vshrl.u32 %v1510, 7
  %v1512 = vsub.s32 %v1509, %v1511
  %v1513 = vrot.slane %v1503, %v1512
  %v1515 = vunpack.c.l.s4 1966171168
  %v1516 = vunpack.c.0.s8 %v1515
  %v1517 = vlaneseq
  %v1518 = vshrl.u32 %v1517, 7
  %v1519 = vsub.s32 %v1516, %v1518
  %v1520 = vrot.slane %v1504, %v1519
  %v1522 = vunpack.c.l.s4 1966171168
  %v1523 = vunpack.c.0.s8 %v1522
  %v1524 = vlaneseq
  %v1525 = vshrl.u32 %v1524, 7
  %v1526 = vsub.s32 %v1523, %v1525
  %v1527 = vrot.slane %v1505, %v1526
  %v1529 = vunpack.c.l.s4 1966171168
  %v1530 = vunpack.c.0.s8 %v1529
  %v1531 = vlaneseq
  %v1532 = vshrl.u32 %v1531, 7
  %v1533 = vsub.s32 %v1530, %v1532
  %v1534 = vrot.slane %v1506, %v1533
  %v1535 = vcombine.low %v1513, %v1520
  %v1536 = vcombine.low %v1527, %v1534
  %v1538 = vunpack.c.l.s4 1966171168
  %v1539 = vunpack.c.0.s8 %v1538
  %v1540 = vlaneseq
  %v1541 = vshrl.u32 %v1540, 7
  %v1542 = vsub.s32 %v1539, %v1541
  %v1543 = vrot.slane %v1535, %v1542
  %v1545 = vunpack.c.l.s4 1966171168
  %v1546 = vunpack.c.0.s8 %v1545
  %v1547 = vlaneseq
  %v1548 = vshrl.u32 %v1547, 7
  %v1549 = vsub.s32 %v1546, %v1548
  %v1550 = vrot.slane %v1536, %v1549
  %v1551 = vcombine.low %v1543, %v1550
  %v1552 = vcombine.low %v949, %v973
  %v1553 = vcombine.low %v987, %v995
  %v1554 = vcombine.low %v997, %v980
  %v1555 = vcombine.low %v994, %v996
  %v1557 = vunpack.c.l.s4 1966171168
  %v1558 = vunpack.c.0.s8 %v1557
  %v1559 = vlaneseq
  %v1560 = vshrl.u32 %v1559, 7
  %v1561 = vsub.s32 %v1558, %v1560
  %v1562 = vrot.slane %v1552, %v1561
  %v1564 = vunpack.c.l.s4 1966171168
  %v1565 = vunpack.c.0.s8 %v1564
  %v1566 = vlaneseq
  %v1567 = vshrl.u32 %v1566, 7
  %v1568 = vsub.s32 %v1565, %v1567
  %v1569 = vrot.slane %v1553, %v1568
  %v1571 = vunpack.c.l.s4 1966171168
  %v1572 = vunpack.c.0.s8 %v1571
  %v1573 = vlaneseq
  %v1574 = vshrl.u32 %v1573, 7
  %v1575 = vsub.s32 %v1572, %v1574
  %v1576 = vrot.slane %v1554, %v1575
  %v1578 = vunpack.c.l.s4 1966171168
  %v1579 = vunpack.c.0.s8 %v1578
  %v1580 = vlaneseq
  %v1581 = vshrl.u32 %v1580, 7
  %v1582 = vsub.s32 %v1579, %v1581
  %v1583 = vrot.slane %v1555, %v1582
  %v1584 = vcombine.low %v1562, %v1569
  %v1585 = vcombine.low %v1576, %v1583
  %v1587 = vunpack.c.l.s4 1966171168
  %v1588 = vunpack.c.0.s8 %v1587
  %v1589 = vlaneseq
  %v1590 = vshrl.u32 %v1589, 7
  %v1591 = vsub.s32 %v1588, %v1590
  %v1592 = vrot.slane %v1584, %v1591
  %v1594 = vunpack.c.l.s4 1966171168
  %v1595 = vunpack.c.0.s8 %v1594
  %v1596 = vlaneseq
  %v1597 = vshrl.u32 %v1596, 7
  %v1598 = vsub.s32 %v1595, %v1597
  %v1599 = vrot.slane %v1585, %v1598
  %v1600 = vcombine.low %v1592, %v1599
  %v1601 = vcombine.low %v998, %v1012
  %v1603 = vunpack.c.l.s4 1966171168
  %v1604 = vunpack.c.0.s8 %v1603
  %v1605 = vlaneseq
  %v1606 = vshrl.u32 %v1605, 7
  %v1607 = vsub.s32 %v1604, %v1606
  %v1608 = vrot.slane %v1601, %v1607
  %v1610 = vunpack.c.l.s4 1966171168
  %v1611 = vunpack.c.0.s8 %v1610
  %v1612 = vlaneseq
  %v1613 = vshrl.u32 %v1612, 7
  %v1614 = vsub.s32 %v1611, %v1613
  %v1615 = vrot.slane %v1608, %v1614
  %1629 = vmatprep.subr.mxu0 0.0
  %1630 = vmatpush1.xpose.msra.mxu0 0.0
  %1631 = vmatprep.subr.mxu0 0.0
  %1632 = vmatpush1.xpose.msra.mxu0 0.0
  %1633 = vmatprep.subr.mxu0 0.0
  %1634 = vmatpush1.xpose.msra.mxu0 0.0
  %1635 = vmatprep.subr.mxu0 0.0
  %1636 = vmatpush1.xpose.msra.mxu0 0.0
  %1637 = vmatprep.subr.mxu0 0.0
  %1638 = vmatpush1.xpose.msra.mxu0 0.0
  %1639 = vmatprep.subr.mxu0 0.0
  %1640 = vmatpush1.xpose.msra.mxu0 0.0
  %1641 = vmatprep.subr.mxu0 0.0
  %1642 = vmatpush1.xpose.msra.mxu0 0.0
  %1643 = vmatprep.subr.mxu0 0.0
  %1644 = vmatpush1.xpose.msra.mxu0 0.0
  %1645 = vmatprep.subr.mxu0 0.0
  %1646 = vmatpush1.xpose.msra.mxu0 0.0
  %1647 = vmatprep.subr.mxu0 0.0
  %1648 = vmatpush1.xpose.msra.mxu0 0.0
  %1649 = vmatprep.subr.mxu0 0.0
  %1650 = vmatpush1.xpose.msra.mxu0 0.0
  %1651 = vmatprep.subr.mxu0 0.0
  %1652 = vmatpush1.xpose.msra.mxu0 0.0
  %1653 = vmatprep.subr.mxu0 0.0
  %1654 = vmatpush1.xpose.msra.mxu0 0.0
  %1655 = vmatprep.subr.mxu0 0.0
  %1656 = vmatpush1.xpose.msra.mxu0 0.0
  %1657 = vmatprep.subr.mxu0 0.0
  %1658 = vmatpush1.xpose.msra.mxu0 0.0
  %1659 = vmatprep.subr.mxu0 0.0
  %1660 = vmatpush1.xpose.msra.mxu0 %v318
  %1661 = vmatprep.subr.mxu0 0.0
  %1662 = vmatpush2.xpose.msra.mxu0 0.0
  %1663 = vmatprep.subr.mxu0 0.0
  %1664 = vmatpush2.xpose.msra.mxu0 0.0
  %1665 = vmatprep.subr.mxu0 0.0
  %1666 = vmatpush2.xpose.msra.mxu0 0.0
  %1667 = vmatprep.subr.mxu0 0.0
  %1668 = vmatpush2.xpose.msra.mxu0 0.0
  %1669 = vmatprep.subr.mxu0 0.0
  %1670 = vmatpush2.xpose.msra.mxu0 0.0
  %1671 = vmatprep.subr.mxu0 0.0
  %1672 = vmatpush2.xpose.msra.mxu0 0.0
  %1673 = vmatprep.subr.mxu0 0.0
  %1674 = vmatpush2.xpose.msra.mxu0 0.0
  %1675 = vmatprep.subr.mxu0 0.0
  %1676 = vmatpush2.xpose.msra.mxu0 0.0
  %1677 = vmatprep.subr.mxu0 0.0
  %1678 = vmatpush2.xpose.msra.mxu0 0.0
  %1679 = vmatprep.subr.mxu0 0.0
  %1680 = vmatpush2.xpose.msra.mxu0 0.0
  %1681 = vmatprep.subr.mxu0 0.0
  %1682 = vmatpush2.xpose.msra.mxu0 0.0
  %1683 = vmatprep.subr.mxu0 0.0
  %1684 = vmatpush2.xpose.msra.mxu0 0.0
  %1685 = vmatprep.subr.mxu0 0.0
  %1686 = vmatpush2.xpose.msra.mxu0 0.0
  %1687 = vmatprep.subr.mxu0 0.0
  %1688 = vmatpush2.xpose.msra.mxu0 0.0
  %1689 = vmatprep.subr.mxu0 0.0
  %1690 = vmatpush2.xpose.msra.mxu0 0.0
  %1691 = vmatprep.subr.mxu0 0.0
  %1692 = vmatpush2.xpose.msra.mxu0 0.0
  %1693 = vmatprep.mubr.f32.mxu0 0.0
  %1694 = vmatmul.mubr.f32.gmra.mxu0 %v1061
  %v1695 = vpop.f32.mrf.mxu0
  %v1696 = vadd.f32 0.0, %v1695
  %v1697 = vpop.f32.mrf.mxu0
  %1698 = vmatprep.mubr.f32.mxu0 0.0
  %1699 = vmatmul.mubr.f32.gmra.mxu0 %v1110
  %v1700 = vpop.f32.mrf.mxu0
  %v1701 = vadd.f32 0.0, %v1700
  %v1702 = vpop.f32.mrf.mxu0
  %1703 = vmatprep.mubr.f32.mxu0 0.0
  %1704 = vmatmul.mubr.f32.gmra.mxu0 %v1159
  %v1705 = vpop.f32.mrf.mxu0
  %v1706 = vadd.f32 0.0, %v1705
  %v1707 = vpop.f32.mrf.mxu0
  %1708 = vmatprep.mubr.f32.mxu0 0.0
  %1709 = vmatmul.mubr.f32.gmra.mxu0 %v1208
  %v1710 = vpop.f32.mrf.mxu0
  %v1711 = vadd.f32 0.0, %v1710
  %v1712 = vpop.f32.mrf.mxu0
  %1713 = vmatprep.mubr.f32.mxu0 0.0
  %1714 = vmatmul.mubr.f32.gmra.mxu0 %v1257
  %v1715 = vpop.f32.mrf.mxu0
  %v1716 = vadd.f32 0.0, %v1715
  %v1717 = vpop.f32.mrf.mxu0
  %1718 = vmatprep.mubr.f32.mxu0 0.0
  %1719 = vmatmul.mubr.f32.gmra.mxu0 %v1306
  %v1720 = vpop.f32.mrf.mxu0
  %v1721 = vadd.f32 0.0, %v1720
  %v1722 = vpop.f32.mrf.mxu0
  %1723 = vmatprep.mubr.f32.mxu0 0.0
  %1724 = vmatmul.mubr.f32.gmra.mxu0 %v1355
  %v1725 = vpop.f32.mrf.mxu0
  %v1726 = vadd.f32 0.0, %v1725
  %v1727 = vpop.f32.mrf.mxu0
  %1728 = vmatprep.mubr.f32.mxu0 0.0
  %1729 = vmatmul.mubr.f32.gmra.mxu0 %v1404
  %v1730 = vpop.f32.mrf.mxu0
  %v1731 = vadd.f32 0.0, %v1730
  %v1732 = vpop.f32.mrf.mxu0
  %1733 = vmatprep.mubr.f32.mxu0 0.0
  %1734 = vmatmul.mubr.f32.gmra.mxu0 %v1453
  %v1735 = vpop.f32.mrf.mxu0
  %v1736 = vadd.f32 0.0, %v1735
  %v1737 = vpop.f32.mrf.mxu0
  %1738 = vmatprep.mubr.f32.mxu0 0.0
  %1739 = vmatmul.mubr.f32.gmra.mxu0 %v1502
  %v1740 = vpop.f32.mrf.mxu0
  %v1741 = vadd.f32 0.0, %v1740
  %v1742 = vpop.f32.mrf.mxu0
  %1743 = vmatprep.mubr.f32.mxu0 0.0
  %1744 = vmatmul.mubr.f32.gmra.mxu0 %v1551
  %v1745 = vpop.f32.mrf.mxu0
  %v1746 = vadd.f32 0.0, %v1745
  %v1747 = vpop.f32.mrf.mxu0
  %1748 = vmatprep.mubr.f32.mxu0 0.0
  %1749 = vmatmul.mubr.f32.gmra.mxu0 %v1600
  %v1750 = vpop.f32.mrf.mxu0
  %v1751 = vadd.f32 0.0, %v1750
  %v1752 = vpop.f32.mrf.mxu0
  %1753 = vmatprep.mubr.f32.mxu0 0.0
  %1754 = vmatmul.mubr.f32.gmra.mxu0 %v1615
  %v1755 = vpop.f32.mrf.mxu0
  %v1756 = vadd.f32 0.0, %v1755
  %v1757 = vpop.f32.mrf.mxu0
  %1758 = vdwg.mxu0
  %v1772 = vcombine.high %v1696, %v1696
  %v1774 = vunpack.c.l.s4 1966171168
  %v1775 = vunpack.c.0.s8 %v1774
  %v1776 = vlaneseq
  %v1777 = vshrl.u32 %v1776, 7
  %v1778 = vsub.s32 %v1775, %v1777
  %v1779 = vrot.slane %v1696, %v1778
  %v1781 = vunpack.c.l.s4 1966171168
  %v1782 = vunpack.c.0.s8 %v1781
  %v1783 = vlaneseq
  %v1784 = vshrl.u32 %v1783, 7
  %v1785 = vsub.s32 %v1782, %v1784
  %v1786 = vrot.slane %v1772, %v1785
  %v1787 = vcombine.high %v1779, %v1779
  %v1788 = vcombine.high %v1786, %v1786
  %v1790 = vunpack.c.l.s4 1966171168
  %v1791 = vunpack.c.0.s8 %v1790
  %v1792 = vlaneseq
  %v1793 = vshrl.u32 %v1792, 7
  %v1794 = vsub.s32 %v1791, %v1793
  %v1795 = vrot.slane %v1779, %v1794
  %v1797 = vunpack.c.l.s4 1966171168
  %v1798 = vunpack.c.0.s8 %v1797
  %v1799 = vlaneseq
  %v1800 = vshrl.u32 %v1799, 7
  %v1801 = vsub.s32 %v1798, %v1800
  %v1802 = vrot.slane %v1786, %v1801
  %v1804 = vunpack.c.l.s4 1966171168
  %v1805 = vunpack.c.0.s8 %v1804
  %v1806 = vlaneseq
  %v1807 = vshrl.u32 %v1806, 7
  %v1808 = vsub.s32 %v1805, %v1807
  %v1809 = vrot.slane %v1787, %v1808
  %v1811 = vunpack.c.l.s4 1966171168
  %v1812 = vunpack.c.0.s8 %v1811
  %v1813 = vlaneseq
  %v1814 = vshrl.u32 %v1813, 7
  %v1815 = vsub.s32 %v1812, %v1814
  %v1816 = vrot.slane %v1788, %v1815
  %v1817 = vcombine.high %v1795, %v1795
  %v1818 = vcombine.high %v1802, %v1802
  %v1819 = vcombine.high %v1809, %v1809
  %v1820 = vcombine.high %v1816, %v1816
  %v1821 = vcombine.high %v1701, %v1701
  %v1823 = vunpack.c.l.s4 1966171168
  %v1824 = vunpack.c.0.s8 %v1823
  %v1825 = vlaneseq
  %v1826 = vshrl.u32 %v1825, 7
  %v1827 = vsub.s32 %v1824, %v1826
  %v1828 = vrot.slane %v1701, %v1827
  %v1830 = vunpack.c.l.s4 1966171168
  %v1831 = vunpack.c.0.s8 %v1830
  %v1832 = vlaneseq
  %v1833 = vshrl.u32 %v1832, 7
  %v1834 = vsub.s32 %v1831, %v1833
  %v1835 = vrot.slane %v1821, %v1834
  %v1836 = vcombine.high %v1828, %v1828
  %v1837 = vcombine.high %v1835, %v1835
  %v1839 = vunpack.c.l.s4 1966171168
  %v1840 = vunpack.c.0.s8 %v1839
  %v1841 = vlaneseq
  %v1842 = vshrl.u32 %v1841, 7
  %v1843 = vsub.s32 %v1840, %v1842
  %v1844 = vrot.slane %v1828, %v1843
  %v1846 = vunpack.c.l.s4 1966171168
  %v1847 = vunpack.c.0.s8 %v1846
  %v1848 = vlaneseq
  %v1849 = vshrl.u32 %v1848, 7
  %v1850 = vsub.s32 %v1847, %v1849
  %v1851 = vrot.slane %v1835, %v1850
  %v1853 = vunpack.c.l.s4 1966171168
  %v1854 = vunpack.c.0.s8 %v1853
  %v1855 = vlaneseq
  %v1856 = vshrl.u32 %v1855, 7
  %v1857 = vsub.s32 %v1854, %v1856
  %v1858 = vrot.slane %v1836, %v1857
  %v1860 = vunpack.c.l.s4 1966171168
  %v1861 = vunpack.c.0.s8 %v1860
  %v1862 = vlaneseq
  %v1863 = vshrl.u32 %v1862, 7
  %v1864 = vsub.s32 %v1861, %v1863
  %v1865 = vrot.slane %v1837, %v1864
  %v1866 = vcombine.high %v1844, %v1844
  %v1867 = vcombine.high %v1851, %v1851
  %v1868 = vcombine.high %v1858, %v1858
  %v1869 = vcombine.high %v1865, %v1865
  %v1870 = vcombine.high %v1706, %v1706
  %v1872 = vunpack.c.l.s4 1966171168
  %v1873 = vunpack.c.0.s8 %v1872
  %v1874 = vlaneseq
  %v1875 = vshrl.u32 %v1874, 7
  %v1876 = vsub.s32 %v1873, %v1875
  %v1877 = vrot.slane %v1706, %v1876
  %v1879 = vunpack.c.l.s4 1966171168
  %v1880 = vunpack.c.0.s8 %v1879
  %v1881 = vlaneseq
  %v1882 = vshrl.u32 %v1881, 7
  %v1883 = vsub.s32 %v1880, %v1882
  %v1884 = vrot.slane %v1870, %v1883
  %v1885 = vcombine.high %v1877, %v1877
  %v1886 = vcombine.high %v1884, %v1884
  %v1888 = vunpack.c.l.s4 1966171168
  %v1889 = vunpack.c.0.s8 %v1888
  %v1890 = vlaneseq
  %v1891 = vshrl.u32 %v1890, 7
  %v1892 = vsub.s32 %v1889, %v1891
  %v1893 = vrot.slane %v1877, %v1892
  %v1895 = vunpack.c.l.s4 1966171168
  %v1896 = vunpack.c.0.s8 %v1895
  %v1897 = vlaneseq
  %v1898 = vshrl.u32 %v1897, 7
  %v1899 = vsub.s32 %v1896, %v1898
  %v1900 = vrot.slane %v1884, %v1899
  %v1902 = vunpack.c.l.s4 1966171168
  %v1903 = vunpack.c.0.s8 %v1902
  %v1904 = vlaneseq
  %v1905 = vshrl.u32 %v1904, 7
  %v1906 = vsub.s32 %v1903, %v1905
  %v1907 = vrot.slane %v1885, %v1906
  %v1909 = vunpack.c.l.s4 1966171168
  %v1910 = vunpack.c.0.s8 %v1909
  %v1911 = vlaneseq
  %v1912 = vshrl.u32 %v1911, 7
  %v1913 = vsub.s32 %v1910, %v1912
  %v1914 = vrot.slane %v1886, %v1913
  %v1915 = vcombine.high %v1893, %v1893
  %v1916 = vcombine.high %v1900, %v1900
  %v1917 = vcombine.high %v1907, %v1907
  %v1918 = vcombine.high %v1914, %v1914
  %v1919 = vcombine.high %v1711, %v1711
  %v1921 = vunpack.c.l.s4 1966171168
  %v1922 = vunpack.c.0.s8 %v1921
  %v1923 = vlaneseq
  %v1924 = vshrl.u32 %v1923, 7
  %v1925 = vsub.s32 %v1922, %v1924
  %v1926 = vrot.slane %v1711, %v1925
  %v1928 = vunpack.c.l.s4 1966171168
  %v1929 = vunpack.c.0.s8 %v1928
  %v1930 = vlaneseq
  %v1931 = vshrl.u32 %v1930, 7
  %v1932 = vsub.s32 %v1929, %v1931
  %v1933 = vrot.slane %v1919, %v1932
  %v1934 = vcombine.high %v1926, %v1926
  %v1935 = vcombine.high %v1933, %v1933
  %v1937 = vunpack.c.l.s4 1966171168
  %v1938 = vunpack.c.0.s8 %v1937
  %v1939 = vlaneseq
  %v1940 = vshrl.u32 %v1939, 7
  %v1941 = vsub.s32 %v1938, %v1940
  %v1942 = vrot.slane %v1926, %v1941
  %v1944 = vunpack.c.l.s4 1966171168
  %v1945 = vunpack.c.0.s8 %v1944
  %v1946 = vlaneseq
  %v1947 = vshrl.u32 %v1946, 7
  %v1948 = vsub.s32 %v1945, %v1947
  %v1949 = vrot.slane %v1933, %v1948
  %v1951 = vunpack.c.l.s4 1966171168
  %v1952 = vunpack.c.0.s8 %v1951
  %v1953 = vlaneseq
  %v1954 = vshrl.u32 %v1953, 7
  %v1955 = vsub.s32 %v1952, %v1954
  %v1956 = vrot.slane %v1934, %v1955
  %v1958 = vunpack.c.l.s4 1966171168
  %v1959 = vunpack.c.0.s8 %v1958
  %v1960 = vlaneseq
  %v1961 = vshrl.u32 %v1960, 7
  %v1962 = vsub.s32 %v1959, %v1961
  %v1963 = vrot.slane %v1935, %v1962
  %v1964 = vcombine.high %v1942, %v1942
  %v1965 = vcombine.high %v1949, %v1949
  %v1966 = vcombine.high %v1956, %v1956
  %v1967 = vcombine.high %v1963, %v1963
  %v1968 = vcombine.high %v1716, %v1716
  %v1970 = vunpack.c.l.s4 1966171168
  %v1971 = vunpack.c.0.s8 %v1970
  %v1972 = vlaneseq
  %v1973 = vshrl.u32 %v1972, 7
  %v1974 = vsub.s32 %v1971, %v1973
  %v1975 = vrot.slane %v1716, %v1974
  %v1977 = vunpack.c.l.s4 1966171168
  %v1978 = vunpack.c.0.s8 %v1977
  %v1979 = vlaneseq
  %v1980 = vshrl.u32 %v1979, 7
  %v1981 = vsub.s32 %v1978, %v1980
  %v1982 = vrot.slane %v1968, %v1981
  %v1983 = vcombine.high %v1975, %v1975
  %v1984 = vcombine.high %v1982, %v1982
  %v1986 = vunpack.c.l.s4 1966171168
  %v1987 = vunpack.c.0.s8 %v1986
  %v1988 = vlaneseq
  %v1989 = vshrl.u32 %v1988, 7
  %v1990 = vsub.s32 %v1987, %v1989
  %v1991 = vrot.slane %v1975, %v1990
  %v1993 = vunpack.c.l.s4 1966171168
  %v1994 = vunpack.c.0.s8 %v1993
  %v1995 = vlaneseq
  %v1996 = vshrl.u32 %v1995, 7
  %v1997 = vsub.s32 %v1994, %v1996
  %v1998 = vrot.slane %v1982, %v1997
  %v2000 = vunpack.c.l.s4 1966171168
  %v2001 = vunpack.c.0.s8 %v2000
  %v2002 = vlaneseq
  %v2003 = vshrl.u32 %v2002, 7
  %v2004 = vsub.s32 %v2001, %v2003
  %v2005 = vrot.slane %v1983, %v2004
  %v2007 = vunpack.c.l.s4 1966171168
  %v2008 = vunpack.c.0.s8 %v2007
  %v2009 = vlaneseq
  %v2010 = vshrl.u32 %v2009, 7
  %v2011 = vsub.s32 %v2008, %v2010
  %v2012 = vrot.slane %v1984, %v2011
  %v2013 = vcombine.high %v1991, %v1991
  %v2014 = vcombine.high %v1998, %v1998
  %v2015 = vcombine.high %v2005, %v2005
  %v2016 = vcombine.high %v2012, %v2012
  %v2017 = vcombine.high %v1721, %v1721
  %v2019 = vunpack.c.l.s4 1966171168
  %v2020 = vunpack.c.0.s8 %v2019
  %v2021 = vlaneseq
  %v2022 = vshrl.u32 %v2021, 7
  %v2023 = vsub.s32 %v2020, %v2022
  %v2024 = vrot.slane %v1721, %v2023
  %v2026 = vunpack.c.l.s4 1966171168
  %v2027 = vunpack.c.0.s8 %v2026
  %v2028 = vlaneseq
  %v2029 = vshrl.u32 %v2028, 7
  %v2030 = vsub.s32 %v2027, %v2029
  %v2031 = vrot.slane %v2017, %v2030
  %v2032 = vcombine.high %v2024, %v2024
  %v2033 = vcombine.high %v2031, %v2031
  %v2035 = vunpack.c.l.s4 1966171168
  %v2036 = vunpack.c.0.s8 %v2035
  %v2037 = vlaneseq
  %v2038 = vshrl.u32 %v2037, 7
  %v2039 = vsub.s32 %v2036, %v2038
  %v2040 = vrot.slane %v2024, %v2039
  %v2042 = vunpack.c.l.s4 1966171168
  %v2043 = vunpack.c.0.s8 %v2042
  %v2044 = vlaneseq
  %v2045 = vshrl.u32 %v2044, 7
  %v2046 = vsub.s32 %v2043, %v2045
  %v2047 = vrot.slane %v2031, %v2046
  %v2049 = vunpack.c.l.s4 1966171168
  %v2050 = vunpack.c.0.s8 %v2049
  %v2051 = vlaneseq
  %v2052 = vshrl.u32 %v2051, 7
  %v2053 = vsub.s32 %v2050, %v2052
  %v2054 = vrot.slane %v2032, %v2053
  %v2056 = vunpack.c.l.s4 1966171168
  %v2057 = vunpack.c.0.s8 %v2056
  %v2058 = vlaneseq
  %v2059 = vshrl.u32 %v2058, 7
  %v2060 = vsub.s32 %v2057, %v2059
  %v2061 = vrot.slane %v2033, %v2060
  %v2062 = vcombine.high %v2040, %v2040
  %v2063 = vcombine.high %v2047, %v2047
  %v2064 = vcombine.high %v2054, %v2054
  %v2065 = vcombine.high %v2061, %v2061
  %v2066 = vcombine.high %v1726, %v1726
  %v2068 = vunpack.c.l.s4 1966171168
  %v2069 = vunpack.c.0.s8 %v2068
  %v2070 = vlaneseq
  %v2071 = vshrl.u32 %v2070, 7
  %v2072 = vsub.s32 %v2069, %v2071
  %v2073 = vrot.slane %v1726, %v2072
  %v2075 = vunpack.c.l.s4 1966171168
  %v2076 = vunpack.c.0.s8 %v2075
  %v2077 = vlaneseq
  %v2078 = vshrl.u32 %v2077, 7
  %v2079 = vsub.s32 %v2076, %v2078
  %v2080 = vrot.slane %v2066, %v2079
  %v2081 = vcombine.high %v2073, %v2073
  %v2082 = vcombine.high %v2080, %v2080
  %v2084 = vunpack.c.l.s4 1966171168
  %v2085 = vunpack.c.0.s8 %v2084
  %v2086 = vlaneseq
  %v2087 = vshrl.u32 %v2086, 7
  %v2088 = vsub.s32 %v2085, %v2087
  %v2089 = vrot.slane %v2073, %v2088
  %v2091 = vunpack.c.l.s4 1966171168
  %v2092 = vunpack.c.0.s8 %v2091
  %v2093 = vlaneseq
  %v2094 = vshrl.u32 %v2093, 7
  %v2095 = vsub.s32 %v2092, %v2094
  %v2096 = vrot.slane %v2080, %v2095
  %v2098 = vunpack.c.l.s4 1966171168
  %v2099 = vunpack.c.0.s8 %v2098
  %v2100 = vlaneseq
  %v2101 = vshrl.u32 %v2100, 7
  %v2102 = vsub.s32 %v2099, %v2101
  %v2103 = vrot.slane %v2081, %v2102
  %v2105 = vunpack.c.l.s4 1966171168
  %v2106 = vunpack.c.0.s8 %v2105
  %v2107 = vlaneseq
  %v2108 = vshrl.u32 %v2107, 7
  %v2109 = vsub.s32 %v2106, %v2108
  %v2110 = vrot.slane %v2082, %v2109
  %v2111 = vcombine.high %v2089, %v2089
  %v2112 = vcombine.high %v2096, %v2096
  %v2113 = vcombine.high %v2103, %v2103
  %v2114 = vcombine.high %v2110, %v2110
  %v2115 = vcombine.high %v1731, %v1731
  %v2117 = vunpack.c.l.s4 1966171168
  %v2118 = vunpack.c.0.s8 %v2117
  %v2119 = vlaneseq
  %v2120 = vshrl.u32 %v2119, 7
  %v2121 = vsub.s32 %v2118, %v2120
  %v2122 = vrot.slane %v1731, %v2121
  %v2124 = vunpack.c.l.s4 1966171168
  %v2125 = vunpack.c.0.s8 %v2124
  %v2126 = vlaneseq
  %v2127 = vshrl.u32 %v2126, 7
  %v2128 = vsub.s32 %v2125, %v2127
  %v2129 = vrot.slane %v2115, %v2128
  %v2130 = vcombine.high %v2122, %v2122
  %v2131 = vcombine.high %v2129, %v2129
  %v2133 = vunpack.c.l.s4 1966171168
  %v2134 = vunpack.c.0.s8 %v2133
  %v2135 = vlaneseq
  %v2136 = vshrl.u32 %v2135, 7
  %v2137 = vsub.s32 %v2134, %v2136
  %v2138 = vrot.slane %v2122, %v2137
  %v2140 = vunpack.c.l.s4 1966171168
  %v2141 = vunpack.c.0.s8 %v2140
  %v2142 = vlaneseq
  %v2143 = vshrl.u32 %v2142, 7
  %v2144 = vsub.s32 %v2141, %v2143
  %v2145 = vrot.slane %v2129, %v2144
  %v2147 = vunpack.c.l.s4 1966171168
  %v2148 = vunpack.c.0.s8 %v2147
  %v2149 = vlaneseq
  %v2150 = vshrl.u32 %v2149, 7
  %v2151 = vsub.s32 %v2148, %v2150
  %v2152 = vrot.slane %v2130, %v2151
  %v2154 = vunpack.c.l.s4 1966171168
  %v2155 = vunpack.c.0.s8 %v2154
  %v2156 = vlaneseq
  %v2157 = vshrl.u32 %v2156, 7
  %v2158 = vsub.s32 %v2155, %v2157
  %v2159 = vrot.slane %v2131, %v2158
  %v2160 = vcombine.high %v2138, %v2138
  %v2161 = vcombine.high %v2145, %v2145
  %v2162 = vcombine.high %v2152, %v2152
  %v2163 = vcombine.high %v2159, %v2159
  %v2164 = vcombine.high %v1736, %v1736
  %v2166 = vunpack.c.l.s4 1966171168
  %v2167 = vunpack.c.0.s8 %v2166
  %v2168 = vlaneseq
  %v2169 = vshrl.u32 %v2168, 7
  %v2170 = vsub.s32 %v2167, %v2169
  %v2171 = vrot.slane %v1736, %v2170
  %v2173 = vunpack.c.l.s4 1966171168
  %v2174 = vunpack.c.0.s8 %v2173
  %v2175 = vlaneseq
  %v2176 = vshrl.u32 %v2175, 7
  %v2177 = vsub.s32 %v2174, %v2176
  %v2178 = vrot.slane %v2164, %v2177
  %v2179 = vcombine.high %v2171, %v2171
  %v2180 = vcombine.high %v2178, %v2178
  %v2182 = vunpack.c.l.s4 1966171168
  %v2183 = vunpack.c.0.s8 %v2182
  %v2184 = vlaneseq
  %v2185 = vshrl.u32 %v2184, 7
  %v2186 = vsub.s32 %v2183, %v2185
  %v2187 = vrot.slane %v2171, %v2186
  %v2189 = vunpack.c.l.s4 1966171168
  %v2190 = vunpack.c.0.s8 %v2189
  %v2191 = vlaneseq
  %v2192 = vshrl.u32 %v2191, 7
  %v2193 = vsub.s32 %v2190, %v2192
  %v2194 = vrot.slane %v2178, %v2193
  %v2196 = vunpack.c.l.s4 1966171168
  %v2197 = vunpack.c.0.s8 %v2196
  %v2198 = vlaneseq
  %v2199 = vshrl.u32 %v2198, 7
  %v2200 = vsub.s32 %v2197, %v2199
  %v2201 = vrot.slane %v2179, %v2200
  %v2203 = vunpack.c.l.s4 1966171168
  %v2204 = vunpack.c.0.s8 %v2203
  %v2205 = vlaneseq
  %v2206 = vshrl.u32 %v2205, 7
  %v2207 = vsub.s32 %v2204, %v2206
  %v2208 = vrot.slane %v2180, %v2207
  %v2209 = vcombine.high %v2187, %v2187
  %v2210 = vcombine.high %v2194, %v2194
  %v2211 = vcombine.high %v2201, %v2201
  %v2212 = vcombine.high %v2208, %v2208
  %v2213 = vcombine.high %v1741, %v1741
  %v2215 = vunpack.c.l.s4 1966171168
  %v2216 = vunpack.c.0.s8 %v2215
  %v2217 = vlaneseq
  %v2218 = vshrl.u32 %v2217, 7
  %v2219 = vsub.s32 %v2216, %v2218
  %v2220 = vrot.slane %v1741, %v2219
  %v2222 = vunpack.c.l.s4 1966171168
  %v2223 = vunpack.c.0.s8 %v2222
  %v2224 = vlaneseq
  %v2225 = vshrl.u32 %v2224, 7
  %v2226 = vsub.s32 %v2223, %v2225
  %v2227 = vrot.slane %v2213, %v2226
  %v2228 = vcombine.high %v2220, %v2220
  %v2229 = vcombine.high %v2227, %v2227
  %v2231 = vunpack.c.l.s4 1966171168
  %v2232 = vunpack.c.0.s8 %v2231
  %v2233 = vlaneseq
  %v2234 = vshrl.u32 %v2233, 7
  %v2235 = vsub.s32 %v2232, %v2234
  %v2236 = vrot.slane %v2220, %v2235
  %v2238 = vunpack.c.l.s4 1966171168
  %v2239 = vunpack.c.0.s8 %v2238
  %v2240 = vlaneseq
  %v2241 = vshrl.u32 %v2240, 7
  %v2242 = vsub.s32 %v2239, %v2241
  %v2243 = vrot.slane %v2227, %v2242
  %v2245 = vunpack.c.l.s4 1966171168
  %v2246 = vunpack.c.0.s8 %v2245
  %v2247 = vlaneseq
  %v2248 = vshrl.u32 %v2247, 7
  %v2249 = vsub.s32 %v2246, %v2248
  %v2250 = vrot.slane %v2228, %v2249
  %v2252 = vunpack.c.l.s4 1966171168
  %v2253 = vunpack.c.0.s8 %v2252
  %v2254 = vlaneseq
  %v2255 = vshrl.u32 %v2254, 7
  %v2256 = vsub.s32 %v2253, %v2255
  %v2257 = vrot.slane %v2229, %v2256
  %v2258 = vcombine.high %v2236, %v2236
  %v2259 = vcombine.high %v2243, %v2243
  %v2260 = vcombine.high %v2250, %v2250
  %v2261 = vcombine.high %v2257, %v2257
  %v2262 = vcombine.high %v1746, %v1746
  %v2264 = vunpack.c.l.s4 1966171168
  %v2265 = vunpack.c.0.s8 %v2264
  %v2266 = vlaneseq
  %v2267 = vshrl.u32 %v2266, 7
  %v2268 = vsub.s32 %v2265, %v2267
  %v2269 = vrot.slane %v1746, %v2268
  %v2271 = vunpack.c.l.s4 1966171168
  %v2272 = vunpack.c.0.s8 %v2271
  %v2273 = vlaneseq
  %v2274 = vshrl.u32 %v2273, 7
  %v2275 = vsub.s32 %v2272, %v2274
  %v2276 = vrot.slane %v2262, %v2275
  %v2277 = vcombine.high %v2269, %v2269
  %v2278 = vcombine.high %v2276, %v2276
  %v2280 = vunpack.c.l.s4 1966171168
  %v2281 = vunpack.c.0.s8 %v2280
  %v2282 = vlaneseq
  %v2283 = vshrl.u32 %v2282, 7
  %v2284 = vsub.s32 %v2281, %v2283
  %v2285 = vrot.slane %v2269, %v2284
  %v2287 = vunpack.c.l.s4 1966171168
  %v2288 = vunpack.c.0.s8 %v2287
  %v2289 = vlaneseq
  %v2290 = vshrl.u32 %v2289, 7
  %v2291 = vsub.s32 %v2288, %v2290
  %v2292 = vrot.slane %v2276, %v2291
  %v2294 = vunpack.c.l.s4 1966171168
  %v2295 = vunpack.c.0.s8 %v2294
  %v2296 = vlaneseq
  %v2297 = vshrl.u32 %v2296, 7
  %v2298 = vsub.s32 %v2295, %v2297
  %v2299 = vrot.slane %v2277, %v2298
  %v2301 = vunpack.c.l.s4 1966171168
  %v2302 = vunpack.c.0.s8 %v2301
  %v2303 = vlaneseq
  %v2304 = vshrl.u32 %v2303, 7
  %v2305 = vsub.s32 %v2302, %v2304
  %v2306 = vrot.slane %v2278, %v2305
  %v2307 = vcombine.high %v2285, %v2285
  %v2308 = vcombine.high %v2292, %v2292
  %v2309 = vcombine.high %v2299, %v2299
  %v2310 = vcombine.high %v2306, %v2306
  %v2311 = vcombine.high %v1751, %v1751
  %v2313 = vunpack.c.l.s4 1966171168
  %v2314 = vunpack.c.0.s8 %v2313
  %v2315 = vlaneseq
  %v2316 = vshrl.u32 %v2315, 7
  %v2317 = vsub.s32 %v2314, %v2316
  %v2318 = vrot.slane %v1751, %v2317
  %v2320 = vunpack.c.l.s4 1966171168
  %v2321 = vunpack.c.0.s8 %v2320
  %v2322 = vlaneseq
  %v2323 = vshrl.u32 %v2322, 7
  %v2324 = vsub.s32 %v2321, %v2323
  %v2325 = vrot.slane %v2311, %v2324
  %v2326 = vcombine.high %v2318, %v2318
  %v2327 = vcombine.high %v2325, %v2325
  %v2329 = vunpack.c.l.s4 1966171168
  %v2330 = vunpack.c.0.s8 %v2329
  %v2331 = vlaneseq
  %v2332 = vshrl.u32 %v2331, 7
  %v2333 = vsub.s32 %v2330, %v2332
  %v2334 = vrot.slane %v2318, %v2333
  %v2336 = vunpack.c.l.s4 1966171168
  %v2337 = vunpack.c.0.s8 %v2336
  %v2338 = vlaneseq
  %v2339 = vshrl.u32 %v2338, 7
  %v2340 = vsub.s32 %v2337, %v2339
  %v2341 = vrot.slane %v2325, %v2340
  %v2343 = vunpack.c.l.s4 1966171168
  %v2344 = vunpack.c.0.s8 %v2343
  %v2345 = vlaneseq
  %v2346 = vshrl.u32 %v2345, 7
  %v2347 = vsub.s32 %v2344, %v2346
  %v2348 = vrot.slane %v2326, %v2347
  %v2350 = vunpack.c.l.s4 1966171168
  %v2351 = vunpack.c.0.s8 %v2350
  %v2352 = vlaneseq
  %v2353 = vshrl.u32 %v2352, 7
  %v2354 = vsub.s32 %v2351, %v2353
  %v2355 = vrot.slane %v2327, %v2354
  %v2356 = vcombine.high %v2334, %v2334
  %v2357 = vcombine.high %v2341, %v2341
  %v2358 = vcombine.high %v2348, %v2348
  %v2359 = vcombine.high %v2355, %v2355
  %v2361 = vunpack.c.l.s4 1966171168
  %v2362 = vunpack.c.0.s8 %v2361
  %v2363 = vlaneseq
  %v2364 = vshrl.u32 %v2363, 7
  %v2365 = vsub.s32 %v2362, %v2364
  %v2366 = vrot.slane %v1756, %v2365
  %v2367 = vcombine.high %v2366, %v2366
  %v2369 = vunpack.c.l.s4 1966171168
  %v2370 = vunpack.c.0.s8 %v2369
  %v2371 = vlaneseq
  %v2372 = vshrl.u32 %v2371, 7
  %v2373 = vsub.s32 %v2370, %v2372
  %v2374 = vrot.slane %v2366, %v2373
  %v2376 = vunpack.c.l.s4 1966171168
  %v2377 = vunpack.c.0.s8 %v2376
  %v2378 = vlaneseq
  %v2379 = vshrl.u32 %v2378, 7
  %v2380 = vsub.s32 %v2377, %v2379
  %v2381 = vrot.slane %v2367, %v2380
  %v2382 = vcombine.low %v1795, %v1809
  %v2383 = vcombine.low %v1817, %v1819
  %v2384 = vcombine.low %v1802, %v1816
  %v2385 = vcombine.low %v1818, %v1820
  %v2387 = vunpack.c.l.s4 1966171168
  %v2388 = vunpack.c.0.s8 %v2387
  %v2389 = vlaneseq
  %v2390 = vshrl.u32 %v2389, 7
  %v2391 = vsub.s32 %v2388, %v2390
  %v2392 = vrot.slane %v2382, %v2391
  %v2394 = vunpack.c.l.s4 1966171168
  %v2395 = vunpack.c.0.s8 %v2394
  %v2396 = vlaneseq
  %v2397 = vshrl.u32 %v2396, 7
  %v2398 = vsub.s32 %v2395, %v2397
  %v2399 = vrot.slane %v2383, %v2398
  %v2401 = vunpack.c.l.s4 1966171168
  %v2402 = vunpack.c.0.s8 %v2401
  %v2403 = vlaneseq
  %v2404 = vshrl.u32 %v2403, 7
  %v2405 = vsub.s32 %v2402, %v2404
  %v2406 = vrot.slane %v2384, %v2405
  %v2408 = vunpack.c.l.s4 1966171168
  %v2409 = vunpack.c.0.s8 %v2408
  %v2410 = vlaneseq
  %v2411 = vshrl.u32 %v2410, 7
  %v2412 = vsub.s32 %v2409, %v2411
  %v2413 = vrot.slane %v2385, %v2412
  %v2414 = vcombine.low %v2392, %v2399
  %v2415 = vcombine.low %v2406, %v2413
  %v2417 = vunpack.c.l.s4 1966171168
  %v2418 = vunpack.c.0.s8 %v2417
  %v2419 = vlaneseq
  %v2420 = vshrl.u32 %v2419, 7
  %v2421 = vsub.s32 %v2418, %v2420
  %v2422 = vrot.slane %v2414, %v2421
  %v2424 = vunpack.c.l.s4 1966171168
  %v2425 = vunpack.c.0.s8 %v2424
  %v2426 = vlaneseq
  %v2427 = vshrl.u32 %v2426, 7
  %v2428 = vsub.s32 %v2425, %v2427
  %v2429 = vrot.slane %v2415, %v2428
  %v2430 = vcombine.low %v2422, %v2429
  %v2431 = vcombine.low %v1844, %v1858
  %v2432 = vcombine.low %v1866, %v1868
  %v2433 = vcombine.low %v1851, %v1865
  %v2434 = vcombine.low %v1867, %v1869
  %v2436 = vunpack.c.l.s4 1966171168
  %v2437 = vunpack.c.0.s8 %v2436
  %v2438 = vlaneseq
  %v2439 = vshrl.u32 %v2438, 7
  %v2440 = vsub.s32 %v2437, %v2439
  %v2441 = vrot.slane %v2431, %v2440
  %v2443 = vunpack.c.l.s4 1966171168
  %v2444 = vunpack.c.0.s8 %v2443
  %v2445 = vlaneseq
  %v2446 = vshrl.u32 %v2445, 7
  %v2447 = vsub.s32 %v2444, %v2446
  %v2448 = vrot.slane %v2432, %v2447
  %v2450 = vunpack.c.l.s4 1966171168
  %v2451 = vunpack.c.0.s8 %v2450
  %v2452 = vlaneseq
  %v2453 = vshrl.u32 %v2452, 7
  %v2454 = vsub.s32 %v2451, %v2453
  %v2455 = vrot.slane %v2433, %v2454
  %v2457 = vunpack.c.l.s4 1966171168
  %v2458 = vunpack.c.0.s8 %v2457
  %v2459 = vlaneseq
  %v2460 = vshrl.u32 %v2459, 7
  %v2461 = vsub.s32 %v2458, %v2460
  %v2462 = vrot.slane %v2434, %v2461
  %v2463 = vcombine.low %v2441, %v2448
  %v2464 = vcombine.low %v2455, %v2462
  %v2466 = vunpack.c.l.s4 1966171168
  %v2467 = vunpack.c.0.s8 %v2466
  %v2468 = vlaneseq
  %v2469 = vshrl.u32 %v2468, 7
  %v2470 = vsub.s32 %v2467, %v2469
  %v2471 = vrot.slane %v2463, %v2470
  %v2473 = vunpack.c.l.s4 1966171168
  %v2474 = vunpack.c.0.s8 %v2473
  %v2475 = vlaneseq
  %v2476 = vshrl.u32 %v2475, 7
  %v2477 = vsub.s32 %v2474, %v2476
  %v2478 = vrot.slane %v2464, %v2477
  %v2479 = vcombine.low %v2471, %v2478
  %v2480 = vcombine.low %v1893, %v1907
  %v2481 = vcombine.low %v1915, %v1917
  %v2482 = vcombine.low %v1900, %v1914
  %v2483 = vcombine.low %v1916, %v1918
  %v2485 = vunpack.c.l.s4 1966171168
  %v2486 = vunpack.c.0.s8 %v2485
  %v2487 = vlaneseq
  %v2488 = vshrl.u32 %v2487, 7
  %v2489 = vsub.s32 %v2486, %v2488
  %v2490 = vrot.slane %v2480, %v2489
  %v2492 = vunpack.c.l.s4 1966171168
  %v2493 = vunpack.c.0.s8 %v2492
  %v2494 = vlaneseq
  %v2495 = vshrl.u32 %v2494, 7
  %v2496 = vsub.s32 %v2493, %v2495
  %v2497 = vrot.slane %v2481, %v2496
  %v2499 = vunpack.c.l.s4 1966171168
  %v2500 = vunpack.c.0.s8 %v2499
  %v2501 = vlaneseq
  %v2502 = vshrl.u32 %v2501, 7
  %v2503 = vsub.s32 %v2500, %v2502
  %v2504 = vrot.slane %v2482, %v2503
  %v2506 = vunpack.c.l.s4 1966171168
  %v2507 = vunpack.c.0.s8 %v2506
  %v2508 = vlaneseq
  %v2509 = vshrl.u32 %v2508, 7
  %v2510 = vsub.s32 %v2507, %v2509
  %v2511 = vrot.slane %v2483, %v2510
  %v2512 = vcombine.low %v2490, %v2497
  %v2513 = vcombine.low %v2504, %v2511
  %v2515 = vunpack.c.l.s4 1966171168
  %v2516 = vunpack.c.0.s8 %v2515
  %v2517 = vlaneseq
  %v2518 = vshrl.u32 %v2517, 7
  %v2519 = vsub.s32 %v2516, %v2518
  %v2520 = vrot.slane %v2512, %v2519
  %v2522 = vunpack.c.l.s4 1966171168
  %v2523 = vunpack.c.0.s8 %v2522
  %v2524 = vlaneseq
  %v2525 = vshrl.u32 %v2524, 7
  %v2526 = vsub.s32 %v2523, %v2525
  %v2527 = vrot.slane %v2513, %v2526
  %v2528 = vcombine.low %v2520, %v2527
  %v2529 = vcombine.low %v1942, %v1956
  %v2530 = vcombine.low %v1964, %v1966
  %v2531 = vcombine.low %v1949, %v1963
  %v2532 = vcombine.low %v1965, %v1967
  %v2534 = vunpack.c.l.s4 1966171168
  %v2535 = vunpack.c.0.s8 %v2534
  %v2536 = vlaneseq
  %v2537 = vshrl.u32 %v2536, 7
  %v2538 = vsub.s32 %v2535, %v2537
  %v2539 = vrot.slane %v2529, %v2538
  %v2541 = vunpack.c.l.s4 1966171168
  %v2542 = vunpack.c.0.s8 %v2541
  %v2543 = vlaneseq
  %v2544 = vshrl.u32 %v2543, 7
  %v2545 = vsub.s32 %v2542, %v2544
  %v2546 = vrot.slane %v2530, %v2545
  %v2548 = vunpack.c.l.s4 1966171168
  %v2549 = vunpack.c.0.s8 %v2548
  %v2550 = vlaneseq
  %v2551 = vshrl.u32 %v2550, 7
  %v2552 = vsub.s32 %v2549, %v2551
  %v2553 = vrot.slane %v2531, %v2552
  %v2555 = vunpack.c.l.s4 1966171168
  %v2556 = vunpack.c.0.s8 %v2555
  %v2557 = vlaneseq
  %v2558 = vshrl.u32 %v2557, 7
  %v2559 = vsub.s32 %v2556, %v2558
  %v2560 = vrot.slane %v2532, %v2559
  %v2561 = vcombine.low %v2539, %v2546
  %v2562 = vcombine.low %v2553, %v2560
  %v2564 = vunpack.c.l.s4 1966171168
  %v2565 = vunpack.c.0.s8 %v2564
  %v2566 = vlaneseq
  %v2567 = vshrl.u32 %v2566, 7
  %v2568 = vsub.s32 %v2565, %v2567
  %v2569 = vrot.slane %v2561, %v2568
  %v2571 = vunpack.c.l.s4 1966171168
  %v2572 = vunpack.c.0.s8 %v2571
  %v2573 = vlaneseq
  %v2574 = vshrl.u32 %v2573, 7
  %v2575 = vsub.s32 %v2572, %v2574
  %v2576 = vrot.slane %v2562, %v2575
  %v2577 = vcombine.low %v2569, %v2576
  %v2578 = vcombine.low %v1991, %v2005
  %v2579 = vcombine.low %v2013, %v2015
  %v2580 = vcombine.low %v1998, %v2012
  %v2581 = vcombine.low %v2014, %v2016
  %v2583 = vunpack.c.l.s4 1966171168
  %v2584 = vunpack.c.0.s8 %v2583
  %v2585 = vlaneseq
  %v2586 = vshrl.u32 %v2585, 7
  %v2587 = vsub.s32 %v2584, %v2586
  %v2588 = vrot.slane %v2578, %v2587
  %v2590 = vunpack.c.l.s4 1966171168
  %v2591 = vunpack.c.0.s8 %v2590
  %v2592 = vlaneseq
  %v2593 = vshrl.u32 %v2592, 7
  %v2594 = vsub.s32 %v2591, %v2593
  %v2595 = vrot.slane %v2579, %v2594
  %v2597 = vunpack.c.l.s4 1966171168
  %v2598 = vunpack.c.0.s8 %v2597
  %v2599 = vlaneseq
  %v2600 = vshrl.u32 %v2599, 7
  %v2601 = vsub.s32 %v2598, %v2600
  %v2602 = vrot.slane %v2580, %v2601
  %v2604 = vunpack.c.l.s4 1966171168
  %v2605 = vunpack.c.0.s8 %v2604
  %v2606 = vlaneseq
  %v2607 = vshrl.u32 %v2606, 7
  %v2608 = vsub.s32 %v2605, %v2607
  %v2609 = vrot.slane %v2581, %v2608
  %v2610 = vcombine.low %v2588, %v2595
  %v2611 = vcombine.low %v2602, %v2609
  %v2613 = vunpack.c.l.s4 1966171168
  %v2614 = vunpack.c.0.s8 %v2613
  %v2615 = vlaneseq
  %v2616 = vshrl.u32 %v2615, 7
  %v2617 = vsub.s32 %v2614, %v2616
  %v2618 = vrot.slane %v2610, %v2617
  %v2620 = vunpack.c.l.s4 1966171168
  %v2621 = vunpack.c.0.s8 %v2620
  %v2622 = vlaneseq
  %v2623 = vshrl.u32 %v2622, 7
  %v2624 = vsub.s32 %v2621, %v2623
  %v2625 = vrot.slane %v2611, %v2624
  %v2626 = vcombine.low %v2618, %v2625
  %v2627 = vcombine.low %v2040, %v2054
  %v2628 = vcombine.low %v2062, %v2064
  %v2629 = vcombine.low %v2047, %v2061
  %v2630 = vcombine.low %v2063, %v2065
  %v2632 = vunpack.c.l.s4 1966171168
  %v2633 = vunpack.c.0.s8 %v2632
  %v2634 = vlaneseq
  %v2635 = vshrl.u32 %v2634, 7
  %v2636 = vsub.s32 %v2633, %v2635
  %v2637 = vrot.slane %v2627, %v2636
  %v2639 = vunpack.c.l.s4 1966171168
  %v2640 = vunpack.c.0.s8 %v2639
  %v2641 = vlaneseq
  %v2642 = vshrl.u32 %v2641, 7
  %v2643 = vsub.s32 %v2640, %v2642
  %v2644 = vrot.slane %v2628, %v2643
  %v2646 = vunpack.c.l.s4 1966171168
  %v2647 = vunpack.c.0.s8 %v2646
  %v2648 = vlaneseq
  %v2649 = vshrl.u32 %v2648, 7
  %v2650 = vsub.s32 %v2647, %v2649
  %v2651 = vrot.slane %v2629, %v2650
  %v2653 = vunpack.c.l.s4 1966171168
  %v2654 = vunpack.c.0.s8 %v2653
  %v2655 = vlaneseq
  %v2656 = vshrl.u32 %v2655, 7
  %v2657 = vsub.s32 %v2654, %v2656
  %v2658 = vrot.slane %v2630, %v2657
  %v2659 = vcombine.low %v2637, %v2644
  %v2660 = vcombine.low %v2651, %v2658
  %v2662 = vunpack.c.l.s4 1966171168
  %v2663 = vunpack.c.0.s8 %v2662
  %v2664 = vlaneseq
  %v2665 = vshrl.u32 %v2664, 7
  %v2666 = vsub.s32 %v2663, %v2665
  %v2667 = vrot.slane %v2659, %v2666
  %v2669 = vunpack.c.l.s4 1966171168
  %v2670 = vunpack.c.0.s8 %v2669
  %v2671 = vlaneseq
  %v2672 = vshrl.u32 %v2671, 7
  %v2673 = vsub.s32 %v2670, %v2672
  %v2674 = vrot.slane %v2660, %v2673
  %v2675 = vcombine.low %v2667, %v2674
  %v2677 = vunpack.c.l.s4 1966171168
  %v2678 = vunpack.c.0.s8 %v2677
  %v2679 = vlaneseq
  %v2680 = vshrl.u32 %v2679, 7
  %v2681 = vsub.s32 %v2678, %v2680
  %v2682 = vrot.slane %v2089, %v2681
  %v2684 = vunpack.c.l.s4 1966171168
  %v2685 = vunpack.c.0.s8 %v2684
  %v2686 = vlaneseq
  %v2687 = vshrl.u32 %v2686, 7
  %v2688 = vsub.s32 %v2685, %v2687
  %v2689 = vrot.slane %v2682, %v2688
  %v2690 = vcombine.low %v2103, %v2111
  %v2691 = vcombine.low %v2113, %v2096
  %v2692 = vcombine.low %v2110, %v2112
  %v2693 = vcombine.low %v2114, %v2138
  %v2695 = vunpack.c.l.s4 1966171168
  %v2696 = vunpack.c.0.s8 %v2695
  %v2697 = vlaneseq
  %v2698 = vshrl.u32 %v2697, 7
  %v2699 = vsub.s32 %v2696, %v2698
  %v2700 = vrot.slane %v2690, %v2699
  %v2702 = vunpack.c.l.s4 1966171168
  %v2703 = vunpack.c.0.s8 %v2702
  %v2704 = vlaneseq
  %v2705 = vshrl.u32 %v2704, 7
  %v2706 = vsub.s32 %v2703, %v2705
  %v2707 = vrot.slane %v2691, %v2706
  %v2709 = vunpack.c.l.s4 1966171168
  %v2710 = vunpack.c.0.s8 %v2709
  %v2711 = vlaneseq
  %v2712 = vshrl.u32 %v2711, 7
  %v2713 = vsub.s32 %v2710, %v2712
  %v2714 = vrot.slane %v2692, %v2713
  %v2716 = vunpack.c.l.s4 1966171168
  %v2717 = vunpack.c.0.s8 %v2716
  %v2718 = vlaneseq
  %v2719 = vshrl.u32 %v2718, 7
  %v2720 = vsub.s32 %v2717, %v2719
  %v2721 = vrot.slane %v2693, %v2720
  %v2722 = vcombine.low %v2700, %v2707
  %v2723 = vcombine.low %v2714, %v2721
  %v2725 = vunpack.c.l.s4 1966171168
  %v2726 = vunpack.c.0.s8 %v2725
  %v2727 = vlaneseq
  %v2728 = vshrl.u32 %v2727, 7
  %v2729 = vsub.s32 %v2726, %v2728
  %v2730 = vrot.slane %v2722, %v2729
  %v2732 = vunpack.c.l.s4 1966171168
  %v2733 = vunpack.c.0.s8 %v2732
  %v2734 = vlaneseq
  %v2735 = vshrl.u32 %v2734, 7
  %v2736 = vsub.s32 %v2733, %v2735
  %v2737 = vrot.slane %v2723, %v2736
  %v2738 = vcombine.low %v2730, %v2737
  %v2739 = vcombine.low %v2152, %v2160
  %v2740 = vcombine.low %v2162, %v2145
  %v2741 = vcombine.low %v2159, %v2161
  %v2742 = vcombine.low %v2163, %v2187
  %v2744 = vunpack.c.l.s4 1966171168
  %v2745 = vunpack.c.0.s8 %v2744
  %v2746 = vlaneseq
  %v2747 = vshrl.u32 %v2746, 7
  %v2748 = vsub.s32 %v2745, %v2747
  %v2749 = vrot.slane %v2739, %v2748
  %v2751 = vunpack.c.l.s4 1966171168
  %v2752 = vunpack.c.0.s8 %v2751
  %v2753 = vlaneseq
  %v2754 = vshrl.u32 %v2753, 7
  %v2755 = vsub.s32 %v2752, %v2754
  %v2756 = vrot.slane %v2740, %v2755
  %v2758 = vunpack.c.l.s4 1966171168
  %v2759 = vunpack.c.0.s8 %v2758
  %v2760 = vlaneseq
  %v2761 = vshrl.u32 %v2760, 7
  %v2762 = vsub.s32 %v2759, %v2761
  %v2763 = vrot.slane %v2741, %v2762
  %v2765 = vunpack.c.l.s4 1966171168
  %v2766 = vunpack.c.0.s8 %v2765
  %v2767 = vlaneseq
  %v2768 = vshrl.u32 %v2767, 7
  %v2769 = vsub.s32 %v2766, %v2768
  %v2770 = vrot.slane %v2742, %v2769
  %v2771 = vcombine.low %v2749, %v2756
  %v2772 = vcombine.low %v2763, %v2770
  %v2774 = vunpack.c.l.s4 1966171168
  %v2775 = vunpack.c.0.s8 %v2774
  %v2776 = vlaneseq
  %v2777 = vshrl.u32 %v2776, 7
  %v2778 = vsub.s32 %v2775, %v2777
  %v2779 = vrot.slane %v2771, %v2778
  %v2781 = vunpack.c.l.s4 1966171168
  %v2782 = vunpack.c.0.s8 %v2781
  %v2783 = vlaneseq
  %v2784 = vshrl.u32 %v2783, 7
  %v2785 = vsub.s32 %v2782, %v2784
  %v2786 = vrot.slane %v2772, %v2785
  %v2787 = vcombine.low %v2779, %v2786
  %v2788 = vcombine.low %v2201, %v2209
  %v2789 = vcombine.low %v2211, %v2194
  %v2790 = vcombine.low %v2208, %v2210
  %v2791 = vcombine.low %v2212, %v2236
  %v2793 = vunpack.c.l.s4 1966171168
  %v2794 = vunpack.c.0.s8 %v2793
  %v2795 = vlaneseq
  %v2796 = vshrl.u32 %v2795, 7
  %v2797 = vsub.s32 %v2794, %v2796
  %v2798 = vrot.slane %v2788, %v2797
  %v2800 = vunpack.c.l.s4 1966171168
  %v2801 = vunpack.c.0.s8 %v2800
  %v2802 = vlaneseq
  %v2803 = vshrl.u32 %v2802, 7
  %v2804 = vsub.s32 %v2801, %v2803
  %v2805 = vrot.slane %v2789, %v2804
  %v2807 = vunpack.c.l.s4 1966171168
  %v2808 = vunpack.c.0.s8 %v2807
  %v2809 = vlaneseq
  %v2810 = vshrl.u32 %v2809, 7
  %v2811 = vsub.s32 %v2808, %v2810
  %v2812 = vrot.slane %v2790, %v2811
  %v2814 = vunpack.c.l.s4 1966171168
  %v2815 = vunpack.c.0.s8 %v2814
  %v2816 = vlaneseq
  %v2817 = vshrl.u32 %v2816, 7
  %v2818 = vsub.s32 %v2815, %v2817
  %v2819 = vrot.slane %v2791, %v2818
  %v2820 = vcombine.low %v2798, %v2805
  %v2821 = vcombine.low %v2812, %v2819
  %v2823 = vunpack.c.l.s4 1966171168
  %v2824 = vunpack.c.0.s8 %v2823
  %v2825 = vlaneseq
  %v2826 = vshrl.u32 %v2825, 7
  %v2827 = vsub.s32 %v2824, %v2826
  %v2828 = vrot.slane %v2820, %v2827
  %v2830 = vunpack.c.l.s4 1966171168
  %v2831 = vunpack.c.0.s8 %v2830
  %v2832 = vlaneseq
  %v2833 = vshrl.u32 %v2832, 7
  %v2834 = vsub.s32 %v2831, %v2833
  %v2835 = vrot.slane %v2821, %v2834
  %v2836 = vcombine.low %v2828, %v2835
  %v2837 = vcombine.low %v2250, %v2258
  %v2838 = vcombine.low %v2260, %v2243
  %v2839 = vcombine.low %v2257, %v2259
  %v2840 = vcombine.low %v2261, %v2285
  %v2842 = vunpack.c.l.s4 1966171168
  %v2843 = vunpack.c.0.s8 %v2842
  %v2844 = vlaneseq
  %v2845 = vshrl.u32 %v2844, 7
  %v2846 = vsub.s32 %v2843, %v2845
  %v2847 = vrot.slane %v2837, %v2846
  %v2849 = vunpack.c.l.s4 1966171168
  %v2850 = vunpack.c.0.s8 %v2849
  %v2851 = vlaneseq
  %v2852 = vshrl.u32 %v2851, 7
  %v2853 = vsub.s32 %v2850, %v2852
  %v2854 = vrot.slane %v2838, %v2853
  %v2856 = vunpack.c.l.s4 1966171168
  %v2857 = vunpack.c.0.s8 %v2856
  %v2858 = vlaneseq
  %v2859 = vshrl.u32 %v2858, 7
  %v2860 = vsub.s32 %v2857, %v2859
  %v2861 = vrot.slane %v2839, %v2860
  %v2863 = vunpack.c.l.s4 1966171168
  %v2864 = vunpack.c.0.s8 %v2863
  %v2865 = vlaneseq
  %v2866 = vshrl.u32 %v2865, 7
  %v2867 = vsub.s32 %v2864, %v2866
  %v2868 = vrot.slane %v2840, %v2867
  %v2869 = vcombine.low %v2847, %v2854
  %v2870 = vcombine.low %v2861, %v2868
  %v2872 = vunpack.c.l.s4 1966171168
  %v2873 = vunpack.c.0.s8 %v2872
  %v2874 = vlaneseq
  %v2875 = vshrl.u32 %v2874, 7
  %v2876 = vsub.s32 %v2873, %v2875
  %v2877 = vrot.slane %v2869, %v2876
  %v2879 = vunpack.c.l.s4 1966171168
  %v2880 = vunpack.c.0.s8 %v2879
  %v2881 = vlaneseq
  %v2882 = vshrl.u32 %v2881, 7
  %v2883 = vsub.s32 %v2880, %v2882
  %v2884 = vrot.slane %v2870, %v2883
  %v2885 = vcombine.low %v2877, %v2884
  %v2886 = vcombine.low %v2299, %v2307
  %v2887 = vcombine.low %v2309, %v2292
  %v2888 = vcombine.low %v2306, %v2308
  %v2889 = vcombine.low %v2310, %v2334
  %v2891 = vunpack.c.l.s4 1966171168
  %v2892 = vunpack.c.0.s8 %v2891
  %v2893 = vlaneseq
  %v2894 = vshrl.u32 %v2893, 7
  %v2895 = vsub.s32 %v2892, %v2894
  %v2896 = vrot.slane %v2886, %v2895
  %v2898 = vunpack.c.l.s4 1966171168
  %v2899 = vunpack.c.0.s8 %v2898
  %v2900 = vlaneseq
  %v2901 = vshrl.u32 %v2900, 7
  %v2902 = vsub.s32 %v2899, %v2901
  %v2903 = vrot.slane %v2887, %v2902
  %v2905 = vunpack.c.l.s4 1966171168
  %v2906 = vunpack.c.0.s8 %v2905
  %v2907 = vlaneseq
  %v2908 = vshrl.u32 %v2907, 7
  %v2909 = vsub.s32 %v2906, %v2908
  %v2910 = vrot.slane %v2888, %v2909
  %v2912 = vunpack.c.l.s4 1966171168
  %v2913 = vunpack.c.0.s8 %v2912
  %v2914 = vlaneseq
  %v2915 = vshrl.u32 %v2914, 7
  %v2916 = vsub.s32 %v2913, %v2915
  %v2917 = vrot.slane %v2889, %v2916
  %v2918 = vcombine.low %v2896, %v2903
  %v2919 = vcombine.low %v2910, %v2917
  %v2921 = vunpack.c.l.s4 1966171168
  %v2922 = vunpack.c.0.s8 %v2921
  %v2923 = vlaneseq
  %v2924 = vshrl.u32 %v2923, 7
  %v2925 = vsub.s32 %v2922, %v2924
  %v2926 = vrot.slane %v2918, %v2925
  %v2928 = vunpack.c.l.s4 1966171168
  %v2929 = vunpack.c.0.s8 %v2928
  %v2930 = vlaneseq
  %v2931 = vshrl.u32 %v2930, 7
  %v2932 = vsub.s32 %v2929, %v2931
  %v2933 = vrot.slane %v2919, %v2932
  %v2934 = vcombine.low %v2926, %v2933
  %v2935 = vcombine.low %v2348, %v2356
  %v2936 = vcombine.low %v2358, %v2341
  %v2937 = vcombine.low %v2355, %v2357
  %v2938 = vcombine.low %v2359, %v2374
  %v2940 = vunpack.c.l.s4 1966171168
  %v2941 = vunpack.c.0.s8 %v2940
  %v2942 = vlaneseq
  %v2943 = vshrl.u32 %v2942, 7
  %v2944 = vsub.s32 %v2941, %v2943
  %v2945 = vrot.slane %v2935, %v2944
  %v2947 = vunpack.c.l.s4 1966171168
  %v2948 = vunpack.c.0.s8 %v2947
  %v2949 = vlaneseq
  %v2950 = vshrl.u32 %v2949, 7
  %v2951 = vsub.s32 %v2948, %v2950
  %v2952 = vrot.slane %v2936, %v2951
  %v2954 = vunpack.c.l.s4 1966171168
  %v2955 = vunpack.c.0.s8 %v2954
  %v2956 = vlaneseq
  %v2957 = vshrl.u32 %v2956, 7
  %v2958 = vsub.s32 %v2955, %v2957
  %v2959 = vrot.slane %v2937, %v2958
  %v2961 = vunpack.c.l.s4 1966171168
  %v2962 = vunpack.c.0.s8 %v2961
  %v2963 = vlaneseq
  %v2964 = vshrl.u32 %v2963, 7
  %v2965 = vsub.s32 %v2962, %v2964
  %v2966 = vrot.slane %v2938, %v2965
  %v2967 = vcombine.low %v2945, %v2952
  %v2968 = vcombine.low %v2959, %v2966
  %v2970 = vunpack.c.l.s4 1966171168
  %v2971 = vunpack.c.0.s8 %v2970
  %v2972 = vlaneseq
  %v2973 = vshrl.u32 %v2972, 7
  %v2974 = vsub.s32 %v2971, %v2973
  %v2975 = vrot.slane %v2967, %v2974
  %v2977 = vunpack.c.l.s4 1966171168
  %v2978 = vunpack.c.0.s8 %v2977
  %v2979 = vlaneseq
  %v2980 = vshrl.u32 %v2979, 7
  %v2981 = vsub.s32 %v2978, %v2980
  %v2982 = vrot.slane %v2968, %v2981
  %v2983 = vcombine.low %v2975, %v2982
  %v2985 = vunpack.c.l.s4 1966171168
  %v2986 = vunpack.c.0.s8 %v2985
  %v2987 = vlaneseq
  %v2988 = vshrl.u32 %v2987, 7
  %v2989 = vsub.s32 %v2986, %v2988
  %v2990 = vrot.slane %v2381, %v2989
  %v2992 = vunpack.c.l.s4 1966171168
  %v2993 = vunpack.c.0.s8 %v2992
  %v2994 = vlaneseq
  %v2995 = vshrl.u32 %v2994, 7
  %v2996 = vsub.s32 %v2993, %v2995
  %v2997 = vrot.slane %v2990, %v2996
  %3012 = vxpose.xlu0.b32.start [1/16] %v2430, 128
  %3013 = vxpose.xlu0.b32.cont [2/16] %v2479, 128
  %3014 = vxpose.xlu0.b32.cont [3/16] %v2528, 128
  %3015 = vxpose.xlu0.b32.cont [4/16] %v2577, 128
  %3016 = vxpose.xlu0.b32.cont [5/16] %v2626, 128
  %3017 = vxpose.xlu0.b32.cont [6/16] %v2675, 128
  %3018 = vxpose.xlu0.b32.cont [7/16] %v2689, 128
  %3019 = vxpose.xlu0.b32.cont [8/16] 0.0, 128
  %3020 = vxpose.xlu0.b32.cont [9/16] 0.0, 128
  %3021 = vxpose.xlu0.b32.cont [10/16] 0.0, 128
  %3022 = vxpose.xlu0.b32.cont [11/16] 0.0, 128
  %3023 = vxpose.xlu0.b32.cont [12/16] 0.0, 128
  %3024 = vxpose.xlu0.b32.cont [13/16] 0.0, 128
  %3025 = vxpose.xlu0.b32.cont [14/16] 0.0, 128
  %3026 = vxpose.xlu0.b32.cont [15/16] 0.0, 128
  %3027 = vxpose.xlu0.b32.end [16/16] 0.0, 128
  %v3028 = vpop.trf.xlu0
  %v3029 = vpop.trf.xlu0
  %v3030 = vpop.trf.xlu0
  %v3031 = vpop.trf.xlu0
  %v3032 = vpop.trf.xlu0
  %v3033 = vpop.trf.xlu0
  %v3034 = vpop.trf.xlu0
  %v3035 = vpop.trf.xlu0
  %v3036 = vpop.trf.xlu0
  %v3037 = vpop.trf.xlu0
  %v3038 = vpop.trf.xlu0
  %v3039 = vpop.trf.xlu0
  %v3040 = vpop.trf.xlu0
  %v3041 = vpop.trf.xlu0
  %v3042 = vpop.trf.xlu0
  %v3043 = vpop.trf.xlu0
  %3044 = vxpose.xlu0.b32.start [1/16] %v2738, 128
  %3045 = vxpose.xlu0.b32.cont [2/16] %v2787, 128
  %3046 = vxpose.xlu0.b32.cont [3/16] %v2836, 128
  %3047 = vxpose.xlu0.b32.cont [4/16] %v2885, 128
  %3048 = vxpose.xlu0.b32.cont [5/16] %v2934, 128
  %3049 = vxpose.xlu0.b32.cont [6/16] %v2983, 128
  %3050 = vxpose.xlu0.b32.cont [7/16] %v2997, 128
  %3051 = vxpose.xlu0.b32.cont [8/16] 0.0, 128
  %3052 = vxpose.xlu0.b32.cont [9/16] 0.0, 128
  %3053 = vxpose.xlu0.b32.cont [10/16] 0.0, 128
  %3054 = vxpose.xlu0.b32.cont [11/16] 0.0, 128
  %3055 = vxpose.xlu0.b32.cont [12/16] 0.0, 128
  %3056 = vxpose.xlu0.b32.cont [13/16] 0.0, 128
  %3057 = vxpose.xlu0.b32.cont [14/16] 0.0, 128
  %3058 = vxpose.xlu0.b32.cont [15/16] 0.0, 128
  %3059 = vxpose.xlu0.b32.end [16/16] 0.0, 128
  %v3060 = vpop.trf.xlu0
  %v3061 = vpop.trf.xlu0
  %v3062 = vpop.trf.xlu0
  %v3063 = vpop.trf.xlu0
  %v3064 = vpop.trf.xlu0
  %v3065 = vpop.trf.xlu0
  %v3066 = vpop.trf.xlu0
  %v3067 = vpop.trf.xlu0
  %v3068 = vpop.trf.xlu0
  %v3069 = vpop.trf.xlu0
  %v3070 = vpop.trf.xlu0
  %v3071 = vpop.trf.xlu0
  %v3072 = vpop.trf.xlu0
  %v3073 = vpop.trf.xlu0
  %v3074 = vpop.trf.xlu0
  %v3075 = vpop.trf.xlu0
  %v3076 = vld [vmem:[%s6] sm:$0x1]
  %v3077 = vlaneseq
  %v3078 = vshrl.u32 %v3077, 7
  %v3079 = vsub.s32 0, %v3078
  %v3080 = vrot.slane %v3076, %v3079
  %3082 = vbcast.lane.b32.xlu0 %v3080, 256
  %v3083 = vpop.permute.xlu0 %3082
  %v3084 = vadd.f32 %v3028, %v3083
  %v3085 = vadd.f32 %v3060, %v3083
  %v3086 = vld [vmem:[%s7] sm:$0xff]
  %v3087 = vld [vmem:[%s7 + $0x8] sm:$0xff]
  %v3088 = vld [vmem:[%s7 + $0x10] sm:$0xff]
  %v3089 = vld [vmem:[%s7 + $0x18] sm:$0xff]
  %v3090 = vld [vmem:[%s7 + $0x20] sm:$0xff]
  %v3091 = vld [vmem:[%s7 + $0x28] sm:$0xff]
  %v3092 = vld [vmem:[%s7 + $0x30] sm:$0xff]
  %v3093 = vld [vmem:[%s7 + $0x38] sm:$0xff]
  %v3094 = vld [vmem:[%s8] sm:$0x1]
  %v3096 = vlaneseq
  %v3097 = vshrl.u32 %v3096, 7
  %v3098 = vsub.s32 0, %v3097
  %v3099 = vrot.slane %v3094, %v3098
  %vm3101 = vcmask 400384
  %v3103 = vsel %vm3101, %v3084, 0
  %v3106 = vsel %vm3101, %v3085, 0
  %v3109 = vsel %vm3101, %v3086, 0
  %v3112 = vsel %vm3101, %v3087, 0
  %v3115 = vsel %vm3101, %v3088, 0
  %v3118 = vsel %vm3101, %v3089, 0
  %v3121 = vsel %vm3101, %v3090, 0
  %v3124 = vsel %vm3101, %v3091, 0
  %v3127 = vsel %vm3101, %v3092, 0
  %v3130 = vsel %vm3101, %v3093, 0
  %3132 = vmatprep.subr.mxu0 0.0
  %3133 = vmatpush1.xpose.msra.mxu0 0.0
  %3134 = vmatprep.subr.mxu0 0.0
  %3135 = vmatpush1.xpose.msra.mxu0 0.0
  %3136 = vmatprep.subr.mxu0 0.0
  %3137 = vmatpush1.xpose.msra.mxu0 0.0
  %3138 = vmatprep.subr.mxu0 0.0
  %3139 = vmatpush1.xpose.msra.mxu0 0.0
  %3140 = vmatprep.subr.mxu0 0.0
  %3141 = vmatpush1.xpose.msra.mxu0 0.0
  %3142 = vmatprep.subr.mxu0 0.0
  %3143 = vmatpush1.xpose.msra.mxu0 0.0
  %3144 = vmatprep.subr.mxu0 0.0
  %3145 = vmatpush1.xpose.msra.mxu0 0.0
  %3146 = vmatprep.subr.mxu0 0.0
  %3147 = vmatpush1.xpose.msra.mxu0 0.0
  %3148 = vmatprep.subr.mxu0 0.0
  %3149 = vmatpush1.xpose.msra.mxu0 %v3130
  %3150 = vmatprep.subr.mxu0 0.0
  %3151 = vmatpush1.xpose.msra.mxu0 %v3127
  %3152 = vmatprep.subr.mxu0 0.0
  %3153 = vmatpush1.xpose.msra.mxu0 %v3124
  %3154 = vmatprep.subr.mxu0 0.0
  %3155 = vmatpush1.xpose.msra.mxu0 %v3121
  %3156 = vmatprep.subr.mxu0 0.0
  %3157 = vmatpush1.xpose.msra.mxu0 %v3118
  %3158 = vmatprep.subr.mxu0 0.0
  %3159 = vmatpush1.xpose.msra.mxu0 %v3115
  %3160 = vmatprep.subr.mxu0 0.0
  %3161 = vmatpush1.xpose.msra.mxu0 %v3112
  %3162 = vmatprep.subr.mxu0 0.0
  %3163 = vmatpush1.xpose.msra.mxu0 %v3109
  %3164 = vmatprep.subr.mxu0 0.0
  %3165 = vmatpush2.xpose.msra.mxu0 0.0
  %3166 = vmatprep.subr.mxu0 0.0
  %3167 = vmatpush2.xpose.msra.mxu0 0.0
  %3168 = vmatprep.subr.mxu0 0.0
  %3169 = vmatpush2.xpose.msra.mxu0 0.0
  %3170 = vmatprep.subr.mxu0 0.0
  %3171 = vmatpush2.xpose.msra.mxu0 0.0
  %3172 = vmatprep.subr.mxu0 0.0
  %3173 = vmatpush2.xpose.msra.mxu0 0.0
  %3174 = vmatprep.subr.mxu0 0.0
  %3175 = vmatpush2.xpose.msra.mxu0 0.0
  %3176 = vmatprep.subr.mxu0 0.0
  %3177 = vmatpush2.xpose.msra.mxu0 0.0
  %3178 = vmatprep.subr.mxu0 0.0
  %3179 = vmatpush2.xpose.msra.mxu0 0.0
  %3180 = vmatprep.subr.mxu0 0.0
  %3181 = vmatpush2.xpose.msra.mxu0 0.0
  %3182 = vmatprep.subr.mxu0 0.0
  %3183 = vmatpush2.xpose.msra.mxu0 0.0
  %3184 = vmatprep.subr.mxu0 0.0
  %3185 = vmatpush2.xpose.msra.mxu0 0.0
  %3186 = vmatprep.subr.mxu0 0.0
  %3187 = vmatpush2.xpose.msra.mxu0 0.0
  %3188 = vmatprep.subr.mxu0 0.0
  %3189 = vmatpush2.xpose.msra.mxu0 0.0
  %3190 = vmatprep.subr.mxu0 0.0
  %3191 = vmatpush2.xpose.msra.mxu0 0.0
  %3192 = vmatprep.subr.mxu0 0.0
  %3193 = vmatpush2.xpose.msra.mxu0 0.0
  %3194 = vmatprep.subr.mxu0 0.0
  %3195 = vmatpush2.xpose.msra.mxu0 0.0
  %3196 = vmatprep.mubr.f32.mxu0 0.0
  %3197 = vmatmul.mubr.f32.gmra.mxu0 %v3103
  %v3198 = vpop.f32.mrf.mxu0
  %v3199 = vadd.f32 %v3099, %v3198
  %v3200 = vpop.f32.mrf.mxu0
  %3201 = vmatprep.mubr.f32.mxu0 0.0
  %3202 = vmatmul.mubr.f32.gmra.mxu0 %v3106
  %v3203 = vpop.f32.mrf.mxu0
  %v3204 = vadd.f32 %v3099, %v3203
  %v3205 = vpop.f32.mrf.mxu0
  %3206 = vdwg.mxu0
  %v3207 = vmax.f32 %v3199, 0.0
  %v3208 = vmax.f32 %v3204, 0.0
  %v3209 = vsel %vm3101, %v286, 0.0
  %3210 = vadd.xlane.f32.xlu0 %v3209
  %v3211 = vpop.xlane.xlu0 %3210
  %v3212 = vsel %vm3101, %v287, 0.0
  %3213 = vadd.xlane.f32.xlu0 %v3212
  %v3214 = vpop.xlane.xlu0 %3213
  %v3215 = vsel %vm3101, %v288, 0.0
  %3216 = vadd.xlane.f32.xlu0 %v3215
  %v3217 = vpop.xlane.xlu0 %3216
  %v3218 = vsel %vm3101, %v289, 0.0
  %3219 = vadd.xlane.f32.xlu0 %v3218
  %v3220 = vpop.xlane.xlu0 %3219
  %v3221 = vsel %vm3101, %v290, 0.0
  %3222 = vadd.xlane.f32.xlu0 %v3221
  %v3223 = vpop.xlane.xlu0 %3222
  %v3224 = vsel %vm3101, %v291, 0.0
  %3225 = vadd.xlane.f32.xlu0 %v3224
  %v3226 = vpop.xlane.xlu0 %3225
  %v3227 = vsel %vm3101, %v292, 0.0
  %3228 = vadd.xlane.f32.xlu0 %v3227
  %v3229 = vpop.xlane.xlu0 %3228
  %v3230 = vsel %vm3101, %v293, 0.0
  %3231 = vadd.xlane.f32.xlu0 %v3230
  %v3232 = vpop.xlane.xlu0 %3231
  %v3233 = vsel %vm3101, %v294, 0.0
  %3234 = vadd.xlane.f32.xlu0 %v3233
  %v3235 = vpop.xlane.xlu0 %3234
  %v3236 = vsel %vm3101, %v295, 0.0
  %3237 = vadd.xlane.f32.xlu0 %v3236
  %v3238 = vpop.xlane.xlu0 %3237
  %v3239 = vsel %vm3101, %v296, 0.0
  %3240 = vadd.xlane.f32.xlu0 %v3239
  %v3241 = vpop.xlane.xlu0 %3240
  %v3242 = vsel %vm3101, %v297, 0.0
  %3243 = vadd.xlane.f32.xlu0 %v3242
  %v3244 = vpop.xlane.xlu0 %3243
  %v3245 = vsel %vm3101, %v298, 0.0
  %3246 = vadd.xlane.f32.xlu0 %v3245
  %v3247 = vpop.xlane.xlu0 %3246
  %v3248 = vsel %vm3101, %v299, 0.0
  %3249 = vadd.xlane.f32.xlu0 %v3248
  %v3250 = vpop.xlane.xlu0 %3249
  %v3251 = vsel %vm3101, %v300, 0.0
  %3252 = vadd.xlane.f32.xlu0 %v3251
  %v3253 = vpop.xlane.xlu0 %3252
  %v3254 = vsel %vm3101, %v301, 0.0
  %3255 = vadd.xlane.f32.xlu0 %v3254
  %v3256 = vpop.xlane.xlu0 %3255
  %v3257 = vsel %vm3101, %v302, 0.0
  %3258 = vadd.xlane.f32.xlu0 %v3257
  %v3259 = vpop.xlane.xlu0 %3258
  %v3260 = vsel %vm3101, %v303, 0.0
  %3261 = vadd.xlane.f32.xlu0 %v3260
  %v3262 = vpop.xlane.xlu0 %3261
  %v3263 = vsel %vm3101, %v304, 0.0
  %3264 = vadd.xlane.f32.xlu0 %v3263
  %v3265 = vpop.xlane.xlu0 %3264
  %v3266 = vsel %vm3101, %v305, 0.0
  %3267 = vadd.xlane.f32.xlu0 %v3266
  %v3268 = vpop.xlane.xlu0 %3267
  %v3269 = vsel %vm3101, %v306, 0.0
  %3270 = vadd.xlane.f32.xlu0 %v3269
  %v3271 = vpop.xlane.xlu0 %3270
  %v3272 = vsel %vm3101, %v307, 0.0
  %3273 = vadd.xlane.f32.xlu0 %v3272
  %v3274 = vpop.xlane.xlu0 %3273
  %v3275 = vsel %vm3101, %v308, 0.0
  %3276 = vadd.xlane.f32.xlu0 %v3275
  %v3277 = vpop.xlane.xlu0 %3276
  %v3278 = vsel %vm3101, %v309, 0.0
  %3279 = vadd.xlane.f32.xlu0 %v3278
  %v3280 = vpop.xlane.xlu0 %3279
  %v3281 = vsel %vm3101, %v310, 0.0
  %3282 = vadd.xlane.f32.xlu0 %v3281
  %v3283 = vpop.xlane.xlu0 %3282
  %v3284 = vsel %vm3101, %v311, 0.0
  %3285 = vadd.xlane.f32.xlu0 %v3284
  %v3286 = vpop.xlane.xlu0 %3285
  %v3287 = vsel %vm3101, %v312, 0.0
  %3288 = vadd.xlane.f32.xlu0 %v3287
  %v3289 = vpop.xlane.xlu0 %3288
  %v3290 = vsel %vm3101, %v313, 0.0
  %3291 = vadd.xlane.f32.xlu0 %v3290
  %v3292 = vpop.xlane.xlu0 %3291
  %v3293 = vsel %vm3101, %v314, 0.0
  %3294 = vadd.xlane.f32.xlu0 %v3293
  %v3295 = vpop.xlane.xlu0 %3294
  %v3296 = vsel %vm3101, %v315, 0.0
  %3297 = vadd.xlane.f32.xlu0 %v3296
  %v3298 = vpop.xlane.xlu0 %3297
  %v3299 = vsel %vm3101, %v316, 0.0
  %3300 = vadd.xlane.f32.xlu0 %v3299
  %v3301 = vpop.xlane.xlu0 %3300
  %v3302 = vsel %vm3101, %v317, 0.0
  %3303 = vadd.xlane.f32.xlu0 %v3302
  %v3304 = vpop.xlane.xlu0 %3303
  %v3305 = vrcp.pop 49.0
  %v3306 = vmul.f32 %v3211, %v3305
  %v3307 = vmul.f32 %v3214, %v3305
  %v3308 = vmul.f32 %v3217, %v3305
  %v3309 = vmul.f32 %v3220, %v3305
  %v3310 = vmul.f32 %v3223, %v3305
  %v3311 = vmul.f32 %v3226, %v3305
  %v3312 = vmul.f32 %v3229, %v3305
  %v3313 = vmul.f32 %v3232, %v3305
  %v3314 = vmul.f32 %v3235, %v3305
  %v3315 = vmul.f32 %v3238, %v3305
  %v3316 = vmul.f32 %v3241, %v3305
  %v3317 = vmul.f32 %v3244, %v3305
  %v3318 = vmul.f32 %v3247, %v3305
  %v3319 = vmul.f32 %v3250, %v3305
  %v3320 = vmul.f32 %v3253, %v3305
  %v3321 = vmul.f32 %v3256, %v3305
  %v3322 = vmul.f32 %v3259, %v3305
  %v3323 = vmul.f32 %v3262, %v3305
  %v3324 = vmul.f32 %v3265, %v3305
  %v3325 = vmul.f32 %v3268, %v3305
  %v3326 = vmul.f32 %v3271, %v3305
  %v3327 = vmul.f32 %v3274, %v3305
  %v3328 = vmul.f32 %v3277, %v3305
  %v3329 = vmul.f32 %v3280, %v3305
  %v3330 = vmul.f32 %v3283, %v3305
  %v3331 = vmul.f32 %v3286, %v3305
  %v3332 = vmul.f32 %v3289, %v3305
  %v3333 = vmul.f32 %v3292, %v3305
  %v3334 = vmul.f32 %v3295, %v3305
  %v3335 = vmul.f32 %v3298, %v3305
  %v3336 = vmul.f32 %v3301, %v3305
  %v3337 = vmul.f32 %v3304, %v3305
  %v3338 = vld [vmem:[%s9] sm:$0xff]
  %v3339 = vld [vmem:[%s9 + $0x8] sm:$0xff]
  %v3340 = vld [vmem:[%s9 + $0x10] sm:$0xff]
  %v3341 = vld [vmem:[%s9 + $0x18] sm:$0xff]
  %v3342 = vld [vmem:[%s9 + $0x20] sm:$0xff]
  %v3343 = vld [vmem:[%s9 + $0x28] sm:$0xff]
  %v3344 = vld [vmem:[%s9 + $0x30] sm:$0xff]
  %v3345 = vld [vmem:[%s9 + $0x38] sm:$0xff]
  %v3346 = vld [vmem:[%s10] sm:$0x1]
  %v3348 = vlaneseq
  %v3349 = vshrl.u32 %v3348, 7
  %v3350 = vsub.s32 0, %v3349
  %v3351 = vrot.slane %v3346, %v3350
  %v3385 = vlaneseq
  %v3386 = vand.u32 %v3385, 127
  %v3387 = vlaneseq
  %v3388 = vshrl.u32 %v3387, 7
  %v3389 = vsub.s32 %v3386, %v3388
  %v3390 = vrot.slane %v3306, %v3389
  %v3391 = vadd.s32 %v3386, 4294967288
  %v3392 = vlaneseq
  %v3393 = vshrl.u32 %v3392, 7
  %v3394 = vsub.s32 %v3391, %v3393
  %v3395 = vrot.slane %v3307, %v3394
  %vm3396 = vcmask 130112
  %v3397 = vsel %vm3396, %v3395, %v3390
  %v3398 = vadd.s32 %v3386, 4294967280
  %v3399 = vlaneseq
  %v3400 = vshrl.u32 %v3399, 7
  %v3401 = vsub.s32 %v3398, %v3400
  %v3402 = vrot.slane %v3308, %v3401
  %vm3403 = vcmask 195712
  %v3404 = vsel %vm3403, %v3402, %v3397
  %v3405 = vadd.s32 %v3386, 4294967272
  %v3406 = vlaneseq
  %v3407 = vshrl.u32 %v3406, 7
  %v3408 = vsub.s32 %v3405, %v3407
  %v3409 = vrot.slane %v3309, %v3408
  %vm3410 = vcmask 261312
  %v3411 = vsel %vm3410, %v3409, %v3404
  %v3412 = vadd.s32 %v3386, 4294967264
  %v3413 = vlaneseq
  %v3414 = vshrl.u32 %v3413, 7
  %v3415 = vsub.s32 %v3412, %v3414
  %v3416 = vrot.slane %v3310, %v3415
  %vm3417 = vcmask 326912
  %v3418 = vsel %vm3417, %v3416, %v3411
  %v3419 = vadd.s32 %v3386, 4294967256
  %v3420 = vlaneseq
  %v3421 = vshrl.u32 %v3420, 7
  %v3422 = vsub.s32 %v3419, %v3421
  %v3423 = vrot.slane %v3311, %v3422
  %vm3424 = vcmask 392512
  %v3425 = vsel %vm3424, %v3423, %v3418
  %v3426 = vadd.s32 %v3386, 4294967248
  %v3427 = vlaneseq
  %v3428 = vshrl.u32 %v3427, 7
  %v3429 = vsub.s32 %v3426, %v3428
  %v3430 = vrot.slane %v3312, %v3429
  %vm3431 = vcmask 458112
  %v3432 = vsel %vm3431, %v3430, %v3425
  %v3433 = vadd.s32 %v3386, 4294967240
  %v3434 = vlaneseq
  %v3435 = vshrl.u32 %v3434, 7
  %v3436 = vsub.s32 %v3433, %v3435
  %v3437 = vrot.slane %v3313, %v3436
  %vm3438 = vcmask 523712
  %v3439 = vsel %vm3438, %v3437, %v3432
  %v3440 = vadd.s32 %v3386, 4294967232
  %v3441 = vlaneseq
  %v3442 = vshrl.u32 %v3441, 7
  %v3443 = vsub.s32 %v3440, %v3442
  %v3444 = vrot.slane %v3314, %v3443
  %vm3445 = vcmask 589312
  %v3446 = vsel %vm3445, %v3444, %v3439
  %v3447 = vadd.s32 %v3386, 4294967224
  %v3448 = vlaneseq
  %v3449 = vshrl.u32 %v3448, 7
  %v3450 = vsub.s32 %v3447, %v3449
  %v3451 = vrot.slane %v3315, %v3450
  %vm3452 = vcmask 654912
  %v3453 = vsel %vm3452, %v3451, %v3446
  %v3454 = vadd.s32 %v3386, 4294967216
  %v3455 = vlaneseq
  %v3456 = vshrl.u32 %v3455, 7
  %v3457 = vsub.s32 %v3454, %v3456
  %v3458 = vrot.slane %v3316, %v3457
  %vm3459 = vcmask 720512
  %v3460 = vsel %vm3459, %v3458, %v3453
  %v3461 = vadd.s32 %v3386, 4294967208
  %v3462 = vlaneseq
  %v3463 = vshrl.u32 %v3462, 7
  %v3464 = vsub.s32 %v3461, %v3463
  %v3465 = vrot.slane %v3317, %v3464
  %vm3466 = vcmask 786112
  %v3467 = vsel %vm3466, %v3465, %v3460
  %v3468 = vadd.s32 %v3386, 4294967200
  %v3469 = vlaneseq
  %v3470 = vshrl.u32 %v3469, 7
  %v3471 = vsub.s32 %v3468, %v3470
  %v3472 = vrot.slane %v3318, %v3471
  %vm3473 = vcmask 851712
  %v3474 = vsel %vm3473, %v3472, %v3467
  %v3475 = vadd.s32 %v3386, 4294967192
  %v3476 = vlaneseq
  %v3477 = vshrl.u32 %v3476, 7
  %v3478 = vsub.s32 %v3475, %v3477
  %v3479 = vrot.slane %v3319, %v3478
  %vm3480 = vcmask 917312
  %v3481 = vsel %vm3480, %v3479, %v3474
  %v3482 = vadd.s32 %v3386, 4294967184
  %v3483 = vlaneseq
  %v3484 = vshrl.u32 %v3483, 7
  %v3485 = vsub.s32 %v3482, %v3484
  %v3486 = vrot.slane %v3320, %v3485
  %vm3487 = vcmask 982912
  %v3488 = vsel %vm3487, %v3486, %v3481
  %v3489 = vadd.s32 %v3386, 4294967176
  %v3490 = vlaneseq
  %v3491 = vshrl.u32 %v3490, 7
  %v3492 = vsub.s32 %v3489, %v3491
  %v3493 = vrot.slane %v3321, %v3492
  %vm3494 = vcmask 1048512
  %v3495 = vsel %vm3494, %v3493, %v3488
  %v3496 = vlaneseq
  %v3497 = vshrl.u32 %v3496, 7
  %v3498 = vsub.s32 %v3386, %v3497
  %v3499 = vrot.slane %v3322, %v3498
  %v3500 = vlaneseq
  %v3501 = vshrl.u32 %v3500, 7
  %v3502 = vsub.s32 %v3391, %v3501
  %v3503 = vrot.slane %v3323, %v3502
  %v3504 = vsel %vm3396, %v3503, %v3499
  %v3505 = vlaneseq
  %v3506 = vshrl.u32 %v3505, 7
  %v3507 = vsub.s32 %v3398, %v3506
  %v3508 = vrot.slane %v3324, %v3507
  %v3509 = vsel %vm3403, %v3508, %v3504
  %v3510 = vlaneseq
  %v3511 = vshrl.u32 %v3510, 7
  %v3512 = vsub.s32 %v3405, %v3511
  %v3513 = vrot.slane %v3325, %v3512
  %v3514 = vsel %vm3410, %v3513, %v3509
  %v3515 = vlaneseq
  %v3516 = vshrl.u32 %v3515, 7
  %v3517 = vsub.s32 %v3412, %v3516
  %v3518 = vrot.slane %v3326, %v3517
  %v3519 = vsel %vm3417, %v3518, %v3514
  %v3520 = vlaneseq
  %v3521 = vshrl.u32 %v3520, 7
  %v3522 = vsub.s32 %v3419, %v3521
  %v3523 = vrot.slane %v3327, %v3522
  %v3524 = vsel %vm3424, %v3523, %v3519
  %v3525 = vlaneseq
  %v3526 = vshrl.u32 %v3525, 7
  %v3527 = vsub.s32 %v3426, %v3526
  %v3528 = vrot.slane %v3328, %v3527
  %v3529 = vsel %vm3431, %v3528, %v3524
  %v3530 = vlaneseq
  %v3531 = vshrl.u32 %v3530, 7
  %v3532 = vsub.s32 %v3433, %v3531
  %v3533 = vrot.slane %v3329, %v3532
  %v3534 = vsel %vm3438, %v3533, %v3529
  %v3535 = vlaneseq
  %v3536 = vshrl.u32 %v3535, 7
  %v3537 = vsub.s32 %v3440, %v3536
  %v3538 = vrot.slane %v3330, %v3537
  %v3539 = vsel %vm3445, %v3538, %v3534
  %v3540 = vlaneseq
  %v3541 = vshrl.u32 %v3540, 7
  %v3542 = vsub.s32 %v3447, %v3541
  %v3543 = vrot.slane %v3331, %v3542
  %v3544 = vsel %vm3452, %v3543, %v3539
  %v3545 = vlaneseq
  %v3546 = vshrl.u32 %v3545, 7
  %v3547 = vsub.s32 %v3454, %v3546
  %v3548 = vrot.slane %v3332, %v3547
  %v3549 = vsel %vm3459, %v3548, %v3544
  %v3550 = vlaneseq
  %v3551 = vshrl.u32 %v3550, 7
  %v3552 = vsub.s32 %v3461, %v3551
  %v3553 = vrot.slane %v3333, %v3552
  %v3554 = vsel %vm3466, %v3553, %v3549
  %v3555 = vlaneseq
  %v3556 = vshrl.u32 %v3555, 7
  %v3557 = vsub.s32 %v3468, %v3556
  %v3558 = vrot.slane %v3334, %v3557
  %v3559 = vsel %vm3473, %v3558, %v3554
  %v3560 = vlaneseq
  %v3561 = vshrl.u32 %v3560, 7
  %v3562 = vsub.s32 %v3475, %v3561
  %v3563 = vrot.slane %v3335, %v3562
  %v3564 = vsel %vm3480, %v3563, %v3559
  %v3565 = vlaneseq
  %v3566 = vshrl.u32 %v3565, 7
  %v3567 = vsub.s32 %v3482, %v3566
  %v3568 = vrot.slane %v3336, %v3567
  %v3569 = vsel %vm3487, %v3568, %v3564
  %v3570 = vlaneseq
  %v3571 = vshrl.u32 %v3570, 7
  %v3572 = vsub.s32 %v3489, %v3571
  %v3573 = vrot.slane %v3337, %v3572
  %v3574 = vsel %vm3494, %v3573, %v3569
  %vm3575 = vcmask 1041409
  %v3576 = vsel %vm3575, %v3574, %v3495
  %3578 = vmatprep.subr.mxu0 0.0
  %3579 = vmatpush1.xpose.msra.mxu0 0.0
  %3580 = vmatprep.subr.mxu0 0.0
  %3581 = vmatpush1.xpose.msra.mxu0 0.0
  %3582 = vmatprep.subr.mxu0 0.0
  %3583 = vmatpush1.xpose.msra.mxu0 0.0
  %3584 = vmatprep.subr.mxu0 0.0
  %3585 = vmatpush1.xpose.msra.mxu0 0.0
  %3586 = vmatprep.subr.mxu0 0.0
  %3587 = vmatpush1.xpose.msra.mxu0 0.0
  %3588 = vmatprep.subr.mxu0 0.0
  %3589 = vmatpush1.xpose.msra.mxu0 0.0
  %3590 = vmatprep.subr.mxu0 0.0
  %3591 = vmatpush1.xpose.msra.mxu0 0.0
  %3592 = vmatprep.subr.mxu0 0.0
  %3593 = vmatpush1.xpose.msra.mxu0 0.0
  %3594 = vmatprep.subr.mxu0 0.0
  %3595 = vmatpush1.xpose.msra.mxu0 %v3345
  %3596 = vmatprep.subr.mxu0 0.0
  %3597 = vmatpush1.xpose.msra.mxu0 %v3344
  %3598 = vmatprep.subr.mxu0 0.0
  %3599 = vmatpush1.xpose.msra.mxu0 %v3343
  %3600 = vmatprep.subr.mxu0 0.0
  %3601 = vmatpush1.xpose.msra.mxu0 %v3342
  %3602 = vmatprep.subr.mxu0 0.0
  %3603 = vmatpush1.xpose.msra.mxu0 %v3341
  %3604 = vmatprep.subr.mxu0 0.0
  %3605 = vmatpush1.xpose.msra.mxu0 %v3340
  %3606 = vmatprep.subr.mxu0 0.0
  %3607 = vmatpush1.xpose.msra.mxu0 %v3339
  %3608 = vmatprep.subr.mxu0 0.0
  %3609 = vmatpush1.xpose.msra.mxu0 %v3338
  %3610 = vmatprep.subr.mxu0 0.0
  %3611 = vmatpush2.xpose.msra.mxu0 0.0
  %3612 = vmatprep.subr.mxu0 0.0
  %3613 = vmatpush2.xpose.msra.mxu0 0.0
  %3614 = vmatprep.subr.mxu0 0.0
  %3615 = vmatpush2.xpose.msra.mxu0 0.0
  %3616 = vmatprep.subr.mxu0 0.0
  %3617 = vmatpush2.xpose.msra.mxu0 0.0
  %3618 = vmatprep.subr.mxu0 0.0
  %3619 = vmatpush2.xpose.msra.mxu0 0.0
  %3620 = vmatprep.subr.mxu0 0.0
  %3621 = vmatpush2.xpose.msra.mxu0 0.0
  %3622 = vmatprep.subr.mxu0 0.0
  %3623 = vmatpush2.xpose.msra.mxu0 0.0
  %3624 = vmatprep.subr.mxu0 0.0
  %3625 = vmatpush2.xpose.msra.mxu0 0.0
  %3626 = vmatprep.subr.mxu0 0.0
  %3627 = vmatpush2.xpose.msra.mxu0 0.0
  %3628 = vmatprep.subr.mxu0 0.0
  %3629 = vmatpush2.xpose.msra.mxu0 0.0
  %3630 = vmatprep.subr.mxu0 0.0
  %3631 = vmatpush2.xpose.msra.mxu0 0.0
  %3632 = vmatprep.subr.mxu0 0.0
  %3633 = vmatpush2.xpose.msra.mxu0 0.0
  %3634 = vmatprep.subr.mxu0 0.0
  %3635 = vmatpush2.xpose.msra.mxu0 0.0
  %3636 = vmatprep.subr.mxu0 0.0
  %3637 = vmatpush2.xpose.msra.mxu0 0.0
  %3638 = vmatprep.subr.mxu0 0.0
  %3639 = vmatpush2.xpose.msra.mxu0 0.0
  %3640 = vmatprep.subr.mxu0 0.0
  %3641 = vmatpush2.xpose.msra.mxu0 0.0
  %3642 = vmatprep.mubr.f32.mxu0 0.0
  %3643 = vmatmul.mubr.f32.gmra.mxu0 %v3576
  %v3644 = vpop.f32.mrf.mxu0
  %v3645 = vadd.f32 %v3351, %v3644
  %v3646 = vpop.f32.mrf.mxu0
  %3647 = vdwg.mxu0
  %v3648 = vmax.f32 %v3645, 0.0
  %v3649 = vld [vmem:[%s11] sm:$0xff]
  %v3650 = vld [vmem:[%s11 + $0x8] sm:$0xff]
  %v3651 = vld [vmem:[%s11 + $0x10] sm:$0xff]
  %v3652 = vld [vmem:[%s11 + $0x18] sm:$0xff]
  %v3653 = vld [vmem:[%s11 + $0x20] sm:$0xff]
  %v3654 = vld [vmem:[%s11 + $0x28] sm:$0xff]
  %v3655 = vld [vmem:[%s11 + $0x30] sm:$0xff]
  %v3656 = vld [vmem:[%s11 + $0x38] sm:$0xff]
  %v3657 = vld [vmem:[%s11 + $0x40] sm:$0xff]
  %v3658 = vld [vmem:[%s11 + $0x48] sm:$0xff]
  %v3659 = vld [vmem:[%s11 + $0x50] sm:$0xff]
  %v3660 = vld [vmem:[%s11 + $0x58] sm:$0xff]
  %v3661 = vld [vmem:[%s11 + $0x60] sm:$0xff]
  %v3662 = vld [vmem:[%s11 + $0x68] sm:$0xff]
  %v3663 = vld [vmem:[%s11 + $0x70] sm:$0xff]
  %v3664 = vld [vmem:[%s11 + $0x78] sm:$0xff]
  %v3665 = vld [vmem:[%s11 + $0x80] sm:$0xff]
  %v3666 = vld [vmem:[%s11 + $0x88] sm:$0xff]
  %v3667 = vld [vmem:[%s11 + $0x90] sm:$0xff]
  %v3668 = vld [vmem:[%s11 + $0x98] sm:$0xff]
  %v3669 = vld [vmem:[%s11 + $0xa0] sm:$0xff]
  %v3670 = vld [vmem:[%s11 + $0xa8] sm:$0xff]
  %v3671 = vld [vmem:[%s11 + $0xb0] sm:$0xff]
  %v3672 = vld [vmem:[%s11 + $0xb8] sm:$0xff]
  %v3673 = vld [vmem:[%s12] sm:$0x3]
  %v3675 = vlaneseq
  %v3676 = vshrl.u32 %v3675, 7
  %v3677 = vsub.s32 0, %v3676
  %v3678 = vrot.slane %v3673, %v3677
  %v3679 = vlaneseq
  %v3680 = vshrl.u32 %v3679, 7
  %v3681 = vsub.s32 1, %v3680
  %v3682 = vrot.slane %v3673, %v3681
  %vm3685 = vcmask 523264
  %v3687 = vsel %vm3685, %v209, 0
  %v3690 = vsel %vm3685, %v210, 0
  %v3693 = vsel %vm3685, %v3649, 0
  %v3696 = vsel %vm3685, %v3650, 0
  %v3699 = vsel %vm3685, %v3651, 0
  %v3702 = vsel %vm3685, %v3652, 0
  %v3705 = vsel %vm3685, %v3653, 0
  %v3708 = vsel %vm3685, %v3654, 0
  %v3711 = vsel %vm3685, %v3655, 0
  %v3714 = vsel %vm3685, %v3656, 0
  %v3717 = vsel %vm3685, %v3657, 0
  %v3720 = vsel %vm3685, %v3658, 0
  %v3723 = vsel %vm3685, %v3659, 0
  %v3726 = vsel %vm3685, %v3660, 0
  %v3729 = vsel %vm3685, %v3661, 0
  %v3732 = vsel %vm3685, %v3662, 0
  %v3735 = vsel %vm3685, %v3663, 0
  %v3738 = vsel %vm3685, %v3664, 0
  %v3741 = vsel %vm3685, %v3665, 0
  %v3744 = vsel %vm3685, %v3666, 0
  %v3747 = vsel %vm3685, %v3667, 0
  %v3750 = vsel %vm3685, %v3668, 0
  %v3753 = vsel %vm3685, %v3669, 0
  %v3756 = vsel %vm3685, %v3670, 0
  %v3759 = vsel %vm3685, %v3671, 0
  %v3762 = vsel %vm3685, %v3672, 0
  %3764 = vmatprep.subr.mxu0 0.0
  %3765 = vmatpush1.xpose.msra.mxu0 %v3738
  %3766 = vmatprep.subr.mxu0 0.0
  %3767 = vmatpush1.xpose.msra.mxu0 %v3735
  %3768 = vmatprep.subr.mxu0 0.0
  %3769 = vmatpush1.xpose.msra.mxu0 %v3732
  %3770 = vmatprep.subr.mxu0 0.0
  %3771 = vmatpush1.xpose.msra.mxu0 %v3729
  %3772 = vmatprep.subr.mxu0 0.0
  %3773 = vmatpush1.xpose.msra.mxu0 %v3726
  %3774 = vmatprep.subr.mxu0 0.0
  %3775 = vmatpush1.xpose.msra.mxu0 %v3723
  %3776 = vmatprep.subr.mxu0 0.0
  %3777 = vmatpush1.xpose.msra.mxu0 %v3720
  %3778 = vmatprep.subr.mxu0 0.0
  %3779 = vmatpush1.xpose.msra.mxu0 %v3717
  %3780 = vmatprep.subr.mxu0 0.0
  %3781 = vmatpush1.xpose.msra.mxu0 %v3714
  %3782 = vmatprep.subr.mxu0 0.0
  %3783 = vmatpush1.xpose.msra.mxu0 %v3711
  %3784 = vmatprep.subr.mxu0 0.0
  %3785 = vmatpush1.xpose.msra.mxu0 %v3708
  %3786 = vmatprep.subr.mxu0 0.0
  %3787 = vmatpush1.xpose.msra.mxu0 %v3705
  %3788 = vmatprep.subr.mxu0 0.0
  %3789 = vmatpush1.xpose.msra.mxu0 %v3702
  %3790 = vmatprep.subr.mxu0 0.0
  %3791 = vmatpush1.xpose.msra.mxu0 %v3699
  %3792 = vmatprep.subr.mxu0 0.0
  %3793 = vmatpush1.xpose.msra.mxu0 %v3696
  %3794 = vmatprep.subr.mxu0 0.0
  %3795 = vmatpush1.xpose.msra.mxu0 %v3693
  %3796 = vmatprep.subr.mxu0 0.0
  %3797 = vmatpush2.xpose.msra.mxu0 0.0
  %3798 = vmatprep.subr.mxu0 0.0
  %3799 = vmatpush2.xpose.msra.mxu0 0.0
  %3800 = vmatprep.subr.mxu0 0.0
  %3801 = vmatpush2.xpose.msra.mxu0 0.0
  %3802 = vmatprep.subr.mxu0 0.0
  %3803 = vmatpush2.xpose.msra.mxu0 0.0
  %3804 = vmatprep.subr.mxu0 0.0
  %3805 = vmatpush2.xpose.msra.mxu0 0.0
  %3806 = vmatprep.subr.mxu0 0.0
  %3807 = vmatpush2.xpose.msra.mxu0 0.0
  %3808 = vmatprep.subr.mxu0 0.0
  %3809 = vmatpush2.xpose.msra.mxu0 0.0
  %3810 = vmatprep.subr.mxu0 0.0
  %3811 = vmatpush2.xpose.msra.mxu0 0.0
  %3812 = vmatprep.subr.mxu0 0.0
  %3813 = vmatpush2.xpose.msra.mxu0 %v3762
  %3814 = vmatprep.subr.mxu0 0.0
  %3815 = vmatpush2.xpose.msra.mxu0 %v3759
  %3816 = vmatprep.subr.mxu0 0.0
  %3817 = vmatpush2.xpose.msra.mxu0 %v3756
  %3818 = vmatprep.subr.mxu0 0.0
  %3819 = vmatpush2.xpose.msra.mxu0 %v3753
  %3820 = vmatprep.subr.mxu0 0.0
  %3821 = vmatpush2.xpose.msra.mxu0 %v3750
  %3822 = vmatprep.subr.mxu0 0.0
  %3823 = vmatpush2.xpose.msra.mxu0 %v3747
  %3824 = vmatprep.subr.mxu0 0.0
  %3825 = vmatpush2.xpose.msra.mxu0 %v3744
  %3826 = vmatprep.subr.mxu0 0.0
  %3827 = vmatpush2.xpose.msra.mxu0 %v3741
  %3828 = vmatprep.mubr.f32.mxu0 0.0
  %3829 = vmatmul.mubr.f32.gmra.mxu0 %v3687
  %v3830 = vpop.f32.mrf.mxu0
  %v3831 = vadd.f32 %v3678, %v3830
  %v3832 = vpop.f32.mrf.mxu0
  %v3833 = vadd.f32 %v3682, %v3832
  %3834 = vmatprep.mubr.f32.mxu0 0.0
  %3835 = vmatmul.mubr.f32.gmra.mxu0 %v3690
  %v3836 = vpop.f32.mrf.mxu0
  %v3837 = vadd.f32 %v3678, %v3836
  %v3838 = vpop.f32.mrf.mxu0
  %v3839 = vadd.f32 %v3682, %v3838
  %3840 = vdwg.mxu0
  %v3841 = vld [vmem:[%s13] sm:$0xff]
  %v3842 = vld [vmem:[%s13 + $0x8] sm:$0xff]
  %v3843 = vld [vmem:[%s13 + $0x10] sm:$0xff]
  %v3844 = vld [vmem:[%s13 + $0x18] sm:$0xff]
  %v3845 = vld [vmem:[%s13 + $0x20] sm:$0xff]
  %v3846 = vld [vmem:[%s13 + $0x28] sm:$0xff]
  %v3847 = vld [vmem:[%s13 + $0x30] sm:$0xff]
  %v3848 = vld [vmem:[%s13 + $0x38] sm:$0xff]
  %v3849 = vld [vmem:[%s13 + $0x40] sm:$0xff]
  %v3850 = vld [vmem:[%s13 + $0x48] sm:$0xff]
  %v3851 = vld [vmem:[%s13 + $0x50] sm:$0xff]
  %v3852 = vld [vmem:[%s13 + $0x58] sm:$0xff]
  %v3853 = vld [vmem:[%s13 + $0x60] sm:$0xff]
  %v3854 = vld [vmem:[%s13 + $0x68] sm:$0xff]
  %v3855 = vld [vmem:[%s13 + $0x70] sm:$0xff]
  %v3856 = vld [vmem:[%s13 + $0x78] sm:$0xff]
  %v3857 = vld [vmem:[%s13 + $0x80] sm:$0xff]
  %v3858 = vld [vmem:[%s13 + $0x88] sm:$0xff]
  %v3859 = vld [vmem:[%s13 + $0x90] sm:$0xff]
  %v3860 = vld [vmem:[%s13 + $0x98] sm:$0xff]
  %v3861 = vld [vmem:[%s13 + $0xa0] sm:$0xff]
  %v3862 = vld [vmem:[%s13 + $0xa8] sm:$0xff]
  %v3863 = vld [vmem:[%s13 + $0xb0] sm:$0xff]
  %v3864 = vld [vmem:[%s13 + $0xb8] sm:$0xff]
  %v3865 = vld [vmem:[%s14] sm:$0x3]
  %v3867 = vlaneseq
  %v3868 = vshrl.u32 %v3867, 7
  %v3869 = vsub.s32 0, %v3868
  %v3870 = vrot.slane %v3865, %v3869
  %v3871 = vlaneseq
  %v3872 = vshrl.u32 %v3871, 7
  %v3873 = vsub.s32 1, %v3872
  %v3874 = vrot.slane %v3865, %v3873
  %v3878 = vsel %vm3685, %v3207, 0
  %v3881 = vsel %vm3685, %v3208, 0
  %v3884 = vsel %vm3685, %v3841, 0
  %v3887 = vsel %vm3685, %v3842, 0
  %v3890 = vsel %vm3685, %v3843, 0
  %v3893 = vsel %vm3685, %v3844, 0
  %v3896 = vsel %vm3685, %v3845, 0
  %v3899 = vsel %vm3685, %v3846, 0
  %v3902 = vsel %vm3685, %v3847, 0
  %v3905 = vsel %vm3685, %v3848, 0
  %v3908 = vsel %vm3685, %v3849, 0
  %v3911 = vsel %vm3685, %v3850, 0
  %v3914 = vsel %vm3685, %v3851, 0
  %v3917 = vsel %vm3685, %v3852, 0
  %v3920 = vsel %vm3685, %v3853, 0
  %v3923 = vsel %vm3685, %v3854, 0
  %v3926 = vsel %vm3685, %v3855, 0
  %v3929 = vsel %vm3685, %v3856, 0
  %v3932 = vsel %vm3685, %v3857, 0
  %v3935 = vsel %vm3685, %v3858, 0
  %v3938 = vsel %vm3685, %v3859, 0
  %v3941 = vsel %vm3685, %v3860, 0
  %v3944 = vsel %vm3685, %v3861, 0
  %v3947 = vsel %vm3685, %v3862, 0
  %v3950 = vsel %vm3685, %v3863, 0
  %v3953 = vsel %vm3685, %v3864, 0
  %3955 = vmatprep.subr.mxu0 0.0
  %3956 = vmatpush1.xpose.msra.mxu0 %v3929
  %3957 = vmatprep.subr.mxu0 0.0
  %3958 = vmatpush1.xpose.msra.mxu0 %v3926
  %3959 = vmatprep.subr.mxu0 0.0
  %3960 = vmatpush1.xpose.msra.mxu0 %v3923
  %3961 = vmatprep.subr.mxu0 0.0
  %3962 = vmatpush1.xpose.msra.mxu0 %v3920
  %3963 = vmatprep.subr.mxu0 0.0
  %3964 = vmatpush1.xpose.msra.mxu0 %v3917
  %3965 = vmatprep.subr.mxu0 0.0
  %3966 = vmatpush1.xpose.msra.mxu0 %v3914
  %3967 = vmatprep.subr.mxu0 0.0
  %3968 = vmatpush1.xpose.msra.mxu0 %v3911
  %3969 = vmatprep.subr.mxu0 0.0
  %3970 = vmatpush1.xpose.msra.mxu0 %v3908
  %3971 = vmatprep.subr.mxu0 0.0
  %3972 = vmatpush1.xpose.msra.mxu0 %v3905
  %3973 = vmatprep.subr.mxu0 0.0
  %3974 = vmatpush1.xpose.msra.mxu0 %v3902
  %3975 = vmatprep.subr.mxu0 0.0
  %3976 = vmatpush1.xpose.msra.mxu0 %v3899
  %3977 = vmatprep.subr.mxu0 0.0
  %3978 = vmatpush1.xpose.msra.mxu0 %v3896
  %3979 = vmatprep.subr.mxu0 0.0
  %3980 = vmatpush1.xpose.msra.mxu0 %v3893
  %3981 = vmatprep.subr.mxu0 0.0
  %3982 = vmatpush1.xpose.msra.mxu0 %v3890
  %3983 = vmatprep.subr.mxu0 0.0
  %3984 = vmatpush1.xpose.msra.mxu0 %v3887
  %3985 = vmatprep.subr.mxu0 0.0
  %3986 = vmatpush1.xpose.msra.mxu0 %v3884
  %3987 = vmatprep.subr.mxu0 0.0
  %3988 = vmatpush2.xpose.msra.mxu0 0.0
  %3989 = vmatprep.subr.mxu0 0.0
  %3990 = vmatpush2.xpose.msra.mxu0 0.0
  %3991 = vmatprep.subr.mxu0 0.0
  %3992 = vmatpush2.xpose.msra.mxu0 0.0
  %3993 = vmatprep.subr.mxu0 0.0
  %3994 = vmatpush2.xpose.msra.mxu0 0.0
  %3995 = vmatprep.subr.mxu0 0.0
  %3996 = vmatpush2.xpose.msra.mxu0 0.0
  %3997 = vmatprep.subr.mxu0 0.0
  %3998 = vmatpush2.xpose.msra.mxu0 0.0
  %3999 = vmatprep.subr.mxu0 0.0
  %4000 = vmatpush2.xpose.msra.mxu0 0.0
  %4001 = vmatprep.subr.mxu0 0.0
  %4002 = vmatpush2.xpose.msra.mxu0 0.0
  %4003 = vmatprep.subr.mxu0 0.0
  %4004 = vmatpush2.xpose.msra.mxu0 %v3953
  %4005 = vmatprep.subr.mxu0 0.0
  %4006 = vmatpush2.xpose.msra.mxu0 %v3950
  %4007 = vmatprep.subr.mxu0 0.0
  %4008 = vmatpush2.xpose.msra.mxu0 %v3947
  %4009 = vmatprep.subr.mxu0 0.0
  %4010 = vmatpush2.xpose.msra.mxu0 %v3944
  %4011 = vmatprep.subr.mxu0 0.0
  %4012 = vmatpush2.xpose.msra.mxu0 %v3941
  %4013 = vmatprep.subr.mxu0 0.0
  %4014 = vmatpush2.xpose.msra.mxu0 %v3938
  %4015 = vmatprep.subr.mxu0 0.0
  %4016 = vmatpush2.xpose.msra.mxu0 %v3935
  %4017 = vmatprep.subr.mxu0 0.0
  %4018 = vmatpush2.xpose.msra.mxu0 %v3932
  %4019 = vmatprep.mubr.f32.mxu0 0.0
  %4020 = vmatmul.mubr.f32.gmra.mxu0 %v3878
  %v4021 = vpop.f32.mrf.mxu0
  %v4022 = vadd.f32 %v3870, %v4021
  %v4023 = vpop.f32.mrf.mxu0
  %v4024 = vadd.f32 %v3874, %v4023
  %4025 = vmatprep.mubr.f32.mxu0 0.0
  %4026 = vmatmul.mubr.f32.gmra.mxu0 %v3881
  %v4027 = vpop.f32.mrf.mxu0
  %v4028 = vadd.f32 %v3870, %v4027
  %v4029 = vpop.f32.mrf.mxu0
  %v4030 = vadd.f32 %v3874, %v4029
  %4031 = vdwg.mxu0
  %v4032 = vmul.f32 %v4022, 0.25
  %vm4033 = vcmask 130048
  %v4035 = vsel %vm4033, %v4032, 0
  %v4038 = vsel %vm4033, %v3831, 0
  %4040 = vmatprep.subr.mxu0 0.0
  %4041 = vmatpush1.xpose.msra.mxu0 0.0
  %4042 = vmatprep.subr.mxu0 0.0
  %4043 = vmatpush1.xpose.msra.mxu0 0.0
  %4044 = vmatprep.subr.mxu0 0.0
  %4045 = vmatpush1.xpose.msra.mxu0 0.0
  %4046 = vmatprep.subr.mxu0 0.0
  %4047 = vmatpush1.xpose.msra.mxu0 0.0
  %4048 = vmatprep.subr.mxu0 0.0
  %4049 = vmatpush1.xpose.msra.mxu0 0.0
  %4050 = vmatprep.subr.mxu0 0.0
  %4051 = vmatpush1.xpose.msra.mxu0 0.0
  %4052 = vmatprep.subr.mxu0 0.0
  %4053 = vmatpush1.xpose.msra.mxu0 0.0
  %4054 = vmatprep.subr.mxu0 0.0
  %4055 = vmatpush1.xpose.msra.mxu0 0.0
  %4056 = vmatprep.subr.mxu0 0.0
  %4057 = vmatpush1.xpose.msra.mxu0 0.0
  %4058 = vmatprep.subr.mxu0 0.0
  %4059 = vmatpush1.xpose.msra.mxu0 0.0
  %4060 = vmatprep.subr.mxu0 0.0
  %4061 = vmatpush1.xpose.msra.mxu0 0.0
  %4062 = vmatprep.subr.mxu0 0.0
  %4063 = vmatpush1.xpose.msra.mxu0 0.0
  %4064 = vmatprep.subr.mxu0 0.0
  %4065 = vmatpush1.xpose.msra.mxu0 0.0
  %4066 = vmatprep.subr.mxu0 0.0
  %4067 = vmatpush1.xpose.msra.mxu0 0.0
  %4068 = vmatprep.subr.mxu0 0.0
  %4069 = vmatpush1.xpose.msra.mxu0 0.0
  %4070 = vmatprep.subr.mxu0 0.0
  %4071 = vmatpush1.xpose.msra.mxu0 %v4038
  %4072 = vmatprep.subr.mxu0 0.0
  %4073 = vmatpush2.xpose.msra.mxu0 0.0
  %4074 = vmatprep.subr.mxu0 0.0
  %4075 = vmatpush2.xpose.msra.mxu0 0.0
  %4076 = vmatprep.subr.mxu0 0.0
  %4077 = vmatpush2.xpose.msra.mxu0 0.0
  %4078 = vmatprep.subr.mxu0 0.0
  %4079 = vmatpush2.xpose.msra.mxu0 0.0
  %4080 = vmatprep.subr.mxu0 0.0
  %4081 = vmatpush2.xpose.msra.mxu0 0.0
  %4082 = vmatprep.subr.mxu0 0.0
  %4083 = vmatpush2.xpose.msra.mxu0 0.0
  %4084 = vmatprep.subr.mxu0 0.0
  %4085 = vmatpush2.xpose.msra.mxu0 0.0
  %4086 = vmatprep.subr.mxu0 0.0
  %4087 = vmatpush2.xpose.msra.mxu0 0.0
  %4088 = vmatprep.subr.mxu0 0.0
  %4089 = vmatpush2.xpose.msra.mxu0 0.0
  %4090 = vmatprep.subr.mxu0 0.0
  %4091 = vmatpush2.xpose.msra.mxu0 0.0
  %4092 = vmatprep.subr.mxu0 0.0
  %4093 = vmatpush2.xpose.msra.mxu0 0.0
  %4094 = vmatprep.subr.mxu0 0.0
  %4095 = vmatpush2.xpose.msra.mxu0 0.0
  %4096 = vmatprep.subr.mxu0 0.0
  %4097 = vmatpush2.xpose.msra.mxu0 0.0
  %4098 = vmatprep.subr.mxu0 0.0
  %4099 = vmatpush2.xpose.msra.mxu0 0.0
  %4100 = vmatprep.subr.mxu0 0.0
  %4101 = vmatpush2.xpose.msra.mxu0 0.0
  %4102 = vmatprep.subr.mxu0 0.0
  %4103 = vmatpush2.xpose.msra.mxu0 0.0
  %4104 = vmatprep.mubr.f32.mxu0 0.0
  %4105 = vmatmul.mubr.f32.gmra.mxu0 %v4035
  %v4106 = vpop.f32.mrf.mxu0
  %v4107 = vadd.f32 0.0, %v4106
  %v4108 = vpop.f32.mrf.mxu0
  %4109 = vdwg.mxu0
  %vm4110 = vcmask 64512
  %v4111 = vsel %vm4110, %v4107, -inf
  %4112 = vmax.xlane.f32.xlu0 %v4111
  %v4113 = vpop.xlane.xlu0 %4112
  %v4114 = vsub.f32 %v4107, %v4113
  %v4115 = vmul.f32 %v4114, 1.442695
  %v4116 = vpow.pop %v4115
  %v4117 = vsel %vm4110, %v4116, 0.0
  %4118 = vadd.xlane.f32.xlu0 %v4117
  %v4119 = vpop.xlane.xlu0 %4118
  %v4120 = vrcp.pop %v4119
  %v4121 = vmul.f32 %v4116, %v4120
  %v4122 = vsel %vm4110, %v4121, 0.0
  %v4123 = vrot.slane %v4122, 4
  %v4124 = vadd.f32 %v4122, %v4123
  %v4125 = vrot.slane %v4124, 2
  %v4126 = vadd.f32 %v4124, %v4125
  %v4127 = vrot.slane %v4126, 1
  %v4128 = vadd.f32 %v4126, %v4127
  %v4129 = vrcp.pop 8.0
  %v4130 = vmul.f32 %v4128, %v4129
  %4131 = vrot.lane.b32.xlu0 %v3831, 64
  %v4132 = vpop.permute.xlu0 %4131
  %v4135 = vsel %vm4110, %v4130, 0
  %4137 = vmatprep.subr.mxu0 0.0
  %4138 = vmatpush1.msra.mxu0 0.0
  %4139 = vmatprep.subr.mxu0 0.0
  %4140 = vmatpush1.msra.mxu0 0.0
  %4141 = vmatprep.subr.mxu0 0.0
  %4142 = vmatpush1.msra.mxu0 0.0
  %4143 = vmatprep.subr.mxu0 0.0
  %4144 = vmatpush1.msra.mxu0 0.0
  %4145 = vmatprep.subr.mxu0 0.0
  %4146 = vmatpush1.msra.mxu0 0.0
  %4147 = vmatprep.subr.mxu0 0.0
  %4148 = vmatpush1.msra.mxu0 0.0
  %4149 = vmatprep.subr.mxu0 0.0
  %4150 = vmatpush1.msra.mxu0 0.0
  %4151 = vmatprep.subr.mxu0 0.0
  %4152 = vmatpush1.msra.mxu0 0.0
  %4153 = vmatprep.subr.mxu0 0.0
  %4154 = vmatpush1.msra.mxu0 0.0
  %4155 = vmatprep.subr.mxu0 0.0
  %4156 = vmatpush1.msra.mxu0 0.0
  %4157 = vmatprep.subr.mxu0 0.0
  %4158 = vmatpush1.msra.mxu0 0.0
  %4159 = vmatprep.subr.mxu0 0.0
  %4160 = vmatpush1.msra.mxu0 0.0
  %4161 = vmatprep.subr.mxu0 0.0
  %4162 = vmatpush1.msra.mxu0 0.0
  %4163 = vmatprep.subr.mxu0 0.0
  %4164 = vmatpush1.msra.mxu0 0.0
  %4165 = vmatprep.subr.mxu0 0.0
  %4166 = vmatpush1.msra.mxu0 0.0
  %4167 = vmatprep.subr.mxu0 0.0
  %4168 = vmatpush1.msra.mxu0 %v4132
  %4169 = vmatprep.subr.mxu0 0.0
  %4170 = vmatpush2.msra.mxu0 0.0
  %4171 = vmatprep.subr.mxu0 0.0
  %4172 = vmatpush2.msra.mxu0 0.0
  %4173 = vmatprep.subr.mxu0 0.0
  %4174 = vmatpush2.msra.mxu0 0.0
  %4175 = vmatprep.subr.mxu0 0.0
  %4176 = vmatpush2.msra.mxu0 0.0
  %4177 = vmatprep.subr.mxu0 0.0
  %4178 = vmatpush2.msra.mxu0 0.0
  %4179 = vmatprep.subr.mxu0 0.0
  %4180 = vmatpush2.msra.mxu0 0.0
  %4181 = vmatprep.subr.mxu0 0.0
  %4182 = vmatpush2.msra.mxu0 0.0
  %4183 = vmatprep.subr.mxu0 0.0
  %4184 = vmatpush2.msra.mxu0 0.0
  %4185 = vmatprep.subr.mxu0 0.0
  %4186 = vmatpush2.msra.mxu0 0.0
  %4187 = vmatprep.subr.mxu0 0.0
  %4188 = vmatpush2.msra.mxu0 0.0
  %4189 = vmatprep.subr.mxu0 0.0
  %4190 = vmatpush2.msra.mxu0 0.0
  %4191 = vmatprep.subr.mxu0 0.0
  %4192 = vmatpush2.msra.mxu0 0.0
  %4193 = vmatprep.subr.mxu0 0.0
  %4194 = vmatpush2.msra.mxu0 0.0
  %4195 = vmatprep.subr.mxu0 0.0
  %4196 = vmatpush2.msra.mxu0 0.0
  %4197 = vmatprep.subr.mxu0 0.0
  %4198 = vmatpush2.msra.mxu0 0.0
  %4199 = vmatprep.subr.mxu0 0.0
  %4200 = vmatpush2.msra.mxu0 0.0
  %4201 = vmatprep.mubr.f32.mxu0 0.0
  %4202 = vmatmul.mubr.f32.gmra.mxu0 %v4135
  %v4203 = vpop.f32.mrf.mxu0
  %v4204 = vadd.f32 0.0, %v4203
  %v4205 = vpop.f32.mrf.mxu0
  %4206 = vdwg.mxu0
  %4207 = vrot.lane.b32.xlu0 %v4032, 112
  %v4208 = vpop.permute.xlu0 %4207
  %4209 = vrot.lane.b32.xlu0 %v3831, 112
  %v4210 = vpop.permute.xlu0 %4209
  %v4211 = vsel %vm4033, %v4208, 0
  %v4213 = vsel %vm4033, %v4210, 0
  %4215 = vmatprep.subr.mxu0 0.0
  %4216 = vmatpush1.xpose.msra.mxu0 0.0
  %4217 = vmatprep.subr.mxu0 0.0
  %4218 = vmatpush1.xpose.msra.mxu0 0.0
  %4219 = vmatprep.subr.mxu0 0.0
  %4220 = vmatpush1.xpose.msra.mxu0 0.0
  %4221 = vmatprep.subr.mxu0 0.0
  %4222 = vmatpush1.xpose.msra.mxu0 0.0
  %4223 = vmatprep.subr.mxu0 0.0
  %4224 = vmatpush1.xpose.msra.mxu0 0.0
  %4225 = vmatprep.subr.mxu0 0.0
  %4226 = vmatpush1.xpose.msra.mxu0 0.0
  %4227 = vmatprep.subr.mxu0 0.0
  %4228 = vmatpush1.xpose.msra.mxu0 0.0
  %4229 = vmatprep.subr.mxu0 0.0
  %4230 = vmatpush1.xpose.msra.mxu0 0.0
  %4231 = vmatprep.subr.mxu0 0.0
  %4232 = vmatpush1.xpose.msra.mxu0 0.0
  %4233 = vmatprep.subr.mxu0 0.0
  %4234 = vmatpush1.xpose.msra.mxu0 0.0
  %4235 = vmatprep.subr.mxu0 0.0
  %4236 = vmatpush1.xpose.msra.mxu0 0.0
  %4237 = vmatprep.subr.mxu0 0.0
  %4238 = vmatpush1.xpose.msra.mxu0 0.0
  %4239 = vmatprep.subr.mxu0 0.0
  %4240 = vmatpush1.xpose.msra.mxu0 0.0
  %4241 = vmatprep.subr.mxu0 0.0
  %4242 = vmatpush1.xpose.msra.mxu0 0.0
  %4243 = vmatprep.subr.mxu0 0.0
  %4244 = vmatpush1.xpose.msra.mxu0 0.0
  %4245 = vmatprep.subr.mxu0 0.0
  %4246 = vmatpush1.xpose.msra.mxu0 %v4213
  %4247 = vmatprep.subr.mxu0 0.0
  %4248 = vmatpush2.xpose.msra.mxu0 0.0
  %4249 = vmatprep.subr.mxu0 0.0
  %4250 = vmatpush2.xpose.msra.mxu0 0.0
  %4251 = vmatprep.subr.mxu0 0.0
  %4252 = vmatpush2.xpose.msra.mxu0 0.0
  %4253 = vmatprep.subr.mxu0 0.0
  %4254 = vmatpush2.xpose.msra.mxu0 0.0
  %4255 = vmatprep.subr.mxu0 0.0
  %4256 = vmatpush2.xpose.msra.mxu0 0.0
  %4257 = vmatprep.subr.mxu0 0.0
  %4258 = vmatpush2.xpose.msra.mxu0 0.0
  %4259 = vmatprep.subr.mxu0 0.0
  %4260 = vmatpush2.xpose.msra.mxu0 0.0
  %4261 = vmatprep.subr.mxu0 0.0
  %4262 = vmatpush2.xpose.msra.mxu0 0.0
  %4263 = vmatprep.subr.mxu0 0.0
  %4264 = vmatpush2.xpose.msra.mxu0 0.0
  %4265 = vmatprep.subr.mxu0 0.0
  %4266 = vmatpush2.xpose.msra.mxu0 0.0
  %4267 = vmatprep.subr.mxu0 0.0
  %4268 = vmatpush2.xpose.msra.mxu0 0.0
  %4269 = vmatprep.subr.mxu0 0.0
  %4270 = vmatpush2.xpose.msra.mxu0 0.0
  %4271 = vmatprep.subr.mxu0 0.0
  %4272 = vmatpush2.xpose.msra.mxu0 0.0
  %4273 = vmatprep.subr.mxu0 0.0
  %4274 = vmatpush2.xpose.msra.mxu0 0.0
  %4275 = vmatprep.subr.mxu0 0.0
  %4276 = vmatpush2.xpose.msra.mxu0 0.0
  %4277 = vmatprep.subr.mxu0 0.0
  %4278 = vmatpush2.xpose.msra.mxu0 0.0
  %4279 = vmatprep.mubr.f32.mxu0 0.0
  %4280 = vmatmul.mubr.f32.gmra.mxu0 %v4211
  %v4281 = vpop.f32.mrf.mxu0
  %v4282 = vadd.f32 0.0, %v4281
  %v4283 = vpop.f32.mrf.mxu0
  %4284 = vdwg.mxu0
  %v4285 = vsel %vm4110, %v4282, -inf
  %4286 = vmax.xlane.f32.xlu0 %v4285
  %v4287 = vpop.xlane.xlu0 %4286
  %v4288 = vsub.f32 %v4282, %v4287
  %v4289 = vmul.f32 %v4288, 1.442695
  %v4290 = vpow.pop %v4289
  %v4291 = vsel %vm4110, %v4290, 0.0
  %4292 = vadd.xlane.f32.xlu0 %v4291
  %v4293 = vpop.xlane.xlu0 %4292
  %v4294 = vrcp.pop %v4293
  %v4295 = vmul.f32 %v4290, %v4294
  %v4296 = vsel %vm4110, %v4295, 0.0
  %v4297 = vrot.slane %v4296, 4
  %v4298 = vadd.f32 %v4296, %v4297
  %v4299 = vrot.slane %v4298, 2
  %v4300 = vadd.f32 %v4298, %v4299
  %v4301 = vrot.slane %v4300, 1
  %v4302 = vadd.f32 %v4300, %v4301
  %v4303 = vmul.f32 %v4302, %v4129
  %4304 = vrot.lane.b32.xlu0 %v3831, 48
  %v4305 = vpop.permute.xlu0 %4304
  %v4308 = vsel %vm4110, %v4303, 0
  %4310 = vmatprep.subr.mxu0 0.0
  %4311 = vmatpush1.msra.mxu0 0.0
  %4312 = vmatprep.subr.mxu0 0.0
  %4313 = vmatpush1.msra.mxu0 0.0
  %4314 = vmatprep.subr.mxu0 0.0
  %4315 = vmatpush1.msra.mxu0 0.0
  %4316 = vmatprep.subr.mxu0 0.0
  %4317 = vmatpush1.msra.mxu0 0.0
  %4318 = vmatprep.subr.mxu0 0.0
  %4319 = vmatpush1.msra.mxu0 0.0
  %4320 = vmatprep.subr.mxu0 0.0
  %4321 = vmatpush1.msra.mxu0 0.0
  %4322 = vmatprep.subr.mxu0 0.0
  %4323 = vmatpush1.msra.mxu0 0.0
  %4324 = vmatprep.subr.mxu0 0.0
  %4325 = vmatpush1.msra.mxu0 0.0
  %4326 = vmatprep.subr.mxu0 0.0
  %4327 = vmatpush1.msra.mxu0 0.0
  %4328 = vmatprep.subr.mxu0 0.0
  %4329 = vmatpush1.msra.mxu0 0.0
  %4330 = vmatprep.subr.mxu0 0.0
  %4331 = vmatpush1.msra.mxu0 0.0
  %4332 = vmatprep.subr.mxu0 0.0
  %4333 = vmatpush1.msra.mxu0 0.0
  %4334 = vmatprep.subr.mxu0 0.0
  %4335 = vmatpush1.msra.mxu0 0.0
  %4336 = vmatprep.subr.mxu0 0.0
  %4337 = vmatpush1.msra.mxu0 0.0
  %4338 = vmatprep.subr.mxu0 0.0
  %4339 = vmatpush1.msra.mxu0 0.0
  %4340 = vmatprep.subr.mxu0 0.0
  %4341 = vmatpush1.msra.mxu0 %v4305
  %4342 = vmatprep.subr.mxu0 0.0
  %4343 = vmatpush2.msra.mxu0 0.0
  %4344 = vmatprep.subr.mxu0 0.0
  %4345 = vmatpush2.msra.mxu0 0.0
  %4346 = vmatprep.subr.mxu0 0.0
  %4347 = vmatpush2.msra.mxu0 0.0
  %4348 = vmatprep.subr.mxu0 0.0
  %4349 = vmatpush2.msra.mxu0 0.0
  %4350 = vmatprep.subr.mxu0 0.0
  %4351 = vmatpush2.msra.mxu0 0.0
  %4352 = vmatprep.subr.mxu0 0.0
  %4353 = vmatpush2.msra.mxu0 0.0
  %4354 = vmatprep.subr.mxu0 0.0
  %4355 = vmatpush2.msra.mxu0 0.0
  %4356 = vmatprep.subr.mxu0 0.0
  %4357 = vmatpush2.msra.mxu0 0.0
  %4358 = vmatprep.subr.mxu0 0.0
  %4359 = vmatpush2.msra.mxu0 0.0
  %4360 = vmatprep.subr.mxu0 0.0
  %4361 = vmatpush2.msra.mxu0 0.0
  %4362 = vmatprep.subr.mxu0 0.0
  %4363 = vmatpush2.msra.mxu0 0.0
  %4364 = vmatprep.subr.mxu0 0.0
  %4365 = vmatpush2.msra.mxu0 0.0
  %4366 = vmatprep.subr.mxu0 0.0
  %4367 = vmatpush2.msra.mxu0 0.0
  %4368 = vmatprep.subr.mxu0 0.0
  %4369 = vmatpush2.msra.mxu0 0.0
  %4370 = vmatprep.subr.mxu0 0.0
  %4371 = vmatpush2.msra.mxu0 0.0
  %4372 = vmatprep.subr.mxu0 0.0
  %4373 = vmatpush2.msra.mxu0 0.0
  %4374 = vmatprep.mubr.f32.mxu0 0.0
  %4375 = vmatmul.mubr.f32.gmra.mxu0 %v4308
  %v4376 = vpop.f32.mrf.mxu0
  %v4377 = vadd.f32 0.0, %v4376
  %v4378 = vpop.f32.mrf.mxu0
  %4379 = vdwg.mxu0
  %4380 = vrot.lane.b32.xlu0 %v4032, 96
  %v4381 = vpop.permute.xlu0 %4380
  %4382 = vrot.lane.b32.xlu0 %v3831, 96
  %v4383 = vpop.permute.xlu0 %4382
  %v4384 = vsel %vm4033, %v4381, 0
  %v4386 = vsel %vm4033, %v4383, 0
  %4388 = vmatprep.subr.mxu0 0.0
  %4389 = vmatpush1.xpose.msra.mxu0 0.0
  %4390 = vmatprep.subr.mxu0 0.0
  %4391 = vmatpush1.xpose.msra.mxu0 0.0
  %4392 = vmatprep.subr.mxu0 0.0
  %4393 = vmatpush1.xpose.msra.mxu0 0.0
  %4394 = vmatprep.subr.mxu0 0.0
  %4395 = vmatpush1.xpose.msra.mxu0 0.0
  %4396 = vmatprep.subr.mxu0 0.0
  %4397 = vmatpush1.xpose.msra.mxu0 0.0
  %4398 = vmatprep.subr.mxu0 0.0
  %4399 = vmatpush1.xpose.msra.mxu0 0.0
  %4400 = vmatprep.subr.mxu0 0.0
  %4401 = vmatpush1.xpose.msra.mxu0 0.0
  %4402 = vmatprep.subr.mxu0 0.0
  %4403 = vmatpush1.xpose.msra.mxu0 0.0
  %4404 = vmatprep.subr.mxu0 0.0
  %4405 = vmatpush1.xpose.msra.mxu0 0.0
  %4406 = vmatprep.subr.mxu0 0.0
  %4407 = vmatpush1.xpose.msra.mxu0 0.0
  %4408 = vmatprep.subr.mxu0 0.0
  %4409 = vmatpush1.xpose.msra.mxu0 0.0
  %4410 = vmatprep.subr.mxu0 0.0
  %4411 = vmatpush1.xpose.msra.mxu0 0.0
  %4412 = vmatprep.subr.mxu0 0.0
  %4413 = vmatpush1.xpose.msra.mxu0 0.0
  %4414 = vmatprep.subr.mxu0 0.0
  %4415 = vmatpush1.xpose.msra.mxu0 0.0
  %4416 = vmatprep.subr.mxu0 0.0
  %4417 = vmatpush1.xpose.msra.mxu0 0.0
  %4418 = vmatprep.subr.mxu0 0.0
  %4419 = vmatpush1.xpose.msra.mxu0 %v4386
  %4420 = vmatprep.subr.mxu0 0.0
  %4421 = vmatpush2.xpose.msra.mxu0 0.0
  %4422 = vmatprep.subr.mxu0 0.0
  %4423 = vmatpush2.xpose.msra.mxu0 0.0
  %4424 = vmatprep.subr.mxu0 0.0
  %4425 = vmatpush2.xpose.msra.mxu0 0.0
  %4426 = vmatprep.subr.mxu0 0.0
  %4427 = vmatpush2.xpose.msra.mxu0 0.0
  %4428 = vmatprep.subr.mxu0 0.0
  %4429 = vmatpush2.xpose.msra.mxu0 0.0
  %4430 = vmatprep.subr.mxu0 0.0
  %4431 = vmatpush2.xpose.msra.mxu0 0.0
  %4432 = vmatprep.subr.mxu0 0.0
  %4433 = vmatpush2.xpose.msra.mxu0 0.0
  %4434 = vmatprep.subr.mxu0 0.0
  %4435 = vmatpush2.xpose.msra.mxu0 0.0
  %4436 = vmatprep.subr.mxu0 0.0
  %4437 = vmatpush2.xpose.msra.mxu0 0.0
  %4438 = vmatprep.subr.mxu0 0.0
  %4439 = vmatpush2.xpose.msra.mxu0 0.0
  %4440 = vmatprep.subr.mxu0 0.0
  %4441 = vmatpush2.xpose.msra.mxu0 0.0
  %4442 = vmatprep.subr.mxu0 0.0
  %4443 = vmatpush2.xpose.msra.mxu0 0.0
  %4444 = vmatprep.subr.mxu0 0.0
  %4445 = vmatpush2.xpose.msra.mxu0 0.0
  %4446 = vmatprep.subr.mxu0 0.0
  %4447 = vmatpush2.xpose.msra.mxu0 0.0
  %4448 = vmatprep.subr.mxu0 0.0
  %4449 = vmatpush2.xpose.msra.mxu0 0.0
  %4450 = vmatprep.subr.mxu0 0.0
  %4451 = vmatpush2.xpose.msra.mxu0 0.0
  %4452 = vmatprep.mubr.f32.mxu0 0.0
  %4453 = vmatmul.mubr.f32.gmra.mxu0 %v4384
  %v4454 = vpop.f32.mrf.mxu0
  %v4455 = vadd.f32 0.0, %v4454
  %v4456 = vpop.f32.mrf.mxu0
  %4457 = vdwg.mxu0
  %v4458 = vsel %vm4110, %v4455, -inf
  %4459 = vmax.xlane.f32.xlu0 %v4458
  %v4460 = vpop.xlane.xlu0 %4459
  %v4461 = vsub.f32 %v4455, %v4460
  %v4462 = vmul.f32 %v4461, 1.442695
  %v4463 = vpow.pop %v4462
  %v4464 = vsel %vm4110, %v4463, 0.0
  %4465 = vadd.xlane.f32.xlu0 %v4464
  %v4466 = vpop.xlane.xlu0 %4465
  %v4467 = vrcp.pop %v4466
  %v4468 = vmul.f32 %v4463, %v4467
  %v4469 = vsel %vm4110, %v4468, 0.0
  %v4470 = vrot.slane %v4469, 4
  %v4471 = vadd.f32 %v4469, %v4470
  %v4472 = vrot.slane %v4471, 2
  %v4473 = vadd.f32 %v4471, %v4472
  %v4474 = vrot.slane %v4473, 1
  %v4475 = vadd.f32 %v4473, %v4474
  %v4476 = vmul.f32 %v4475, %v4129
  %4477 = vrot.lane.b32.xlu0 %v3831, 32
  %v4478 = vpop.permute.xlu0 %4477
  %v4481 = vsel %vm4110, %v4476, 0
  %4483 = vmatprep.subr.mxu0 0.0
  %4484 = vmatpush1.msra.mxu0 0.0
  %4485 = vmatprep.subr.mxu0 0.0
  %4486 = vmatpush1.msra.mxu0 0.0
  %4487 = vmatprep.subr.mxu0 0.0
  %4488 = vmatpush1.msra.mxu0 0.0
  %4489 = vmatprep.subr.mxu0 0.0
  %4490 = vmatpush1.msra.mxu0 0.0
  %4491 = vmatprep.subr.mxu0 0.0
  %4492 = vmatpush1.msra.mxu0 0.0
  %4493 = vmatprep.subr.mxu0 0.0
  %4494 = vmatpush1.msra.mxu0 0.0
  %4495 = vmatprep.subr.mxu0 0.0
  %4496 = vmatpush1.msra.mxu0 0.0
  %4497 = vmatprep.subr.mxu0 0.0
  %4498 = vmatpush1.msra.mxu0 0.0
  %4499 = vmatprep.subr.mxu0 0.0
  %4500 = vmatpush1.msra.mxu0 0.0
  %4501 = vmatprep.subr.mxu0 0.0
  %4502 = vmatpush1.msra.mxu0 0.0
  %4503 = vmatprep.subr.mxu0 0.0
  %4504 = vmatpush1.msra.mxu0 0.0
  %4505 = vmatprep.subr.mxu0 0.0
  %4506 = vmatpush1.msra.mxu0 0.0
  %4507 = vmatprep.subr.mxu0 0.0
  %4508 = vmatpush1.msra.mxu0 0.0
  %4509 = vmatprep.subr.mxu0 0.0
  %4510 = vmatpush1.msra.mxu0 0.0
  %4511 = vmatprep.subr.mxu0 0.0
  %4512 = vmatpush1.msra.mxu0 0.0
  %4513 = vmatprep.subr.mxu0 0.0
  %4514 = vmatpush1.msra.mxu0 %v4478
  %4515 = vmatprep.subr.mxu0 0.0
  %4516 = vmatpush2.msra.mxu0 0.0
  %4517 = vmatprep.subr.mxu0 0.0
  %4518 = vmatpush2.msra.mxu0 0.0
  %4519 = vmatprep.subr.mxu0 0.0
  %4520 = vmatpush2.msra.mxu0 0.0
  %4521 = vmatprep.subr.mxu0 0.0
  %4522 = vmatpush2.msra.mxu0 0.0
  %4523 = vmatprep.subr.mxu0 0.0
  %4524 = vmatpush2.msra.mxu0 0.0
  %4525 = vmatprep.subr.mxu0 0.0
  %4526 = vmatpush2.msra.mxu0 0.0
  %4527 = vmatprep.subr.mxu0 0.0
  %4528 = vmatpush2.msra.mxu0 0.0
  %4529 = vmatprep.subr.mxu0 0.0
  %4530 = vmatpush2.msra.mxu0 0.0
  %4531 = vmatprep.subr.mxu0 0.0
  %4532 = vmatpush2.msra.mxu0 0.0
  %4533 = vmatprep.subr.mxu0 0.0
  %4534 = vmatpush2.msra.mxu0 0.0
  %4535 = vmatprep.subr.mxu0 0.0
  %4536 = vmatpush2.msra.mxu0 0.0
  %4537 = vmatprep.subr.mxu0 0.0
  %4538 = vmatpush2.msra.mxu0 0.0
  %4539 = vmatprep.subr.mxu0 0.0
  %4540 = vmatpush2.msra.mxu0 0.0
  %4541 = vmatprep.subr.mxu0 0.0
  %4542 = vmatpush2.msra.mxu0 0.0
  %4543 = vmatprep.subr.mxu0 0.0
  %4544 = vmatpush2.msra.mxu0 0.0
  %4545 = vmatprep.subr.mxu0 0.0
  %4546 = vmatpush2.msra.mxu0 0.0
  %4547 = vmatprep.mubr.f32.mxu0 0.0
  %4548 = vmatmul.mubr.f32.gmra.mxu0 %v4481
  %v4549 = vpop.f32.mrf.mxu0
  %v4550 = vadd.f32 0.0, %v4549
  %v4551 = vpop.f32.mrf.mxu0
  %4552 = vdwg.mxu0
  %4553 = vrot.lane.b32.xlu0 %v4032, 80
  %v4554 = vpop.permute.xlu0 %4553
  %4555 = vrot.lane.b32.xlu0 %v3831, 80
  %v4556 = vpop.permute.xlu0 %4555
  %v4557 = vsel %vm4033, %v4554, 0
  %v4559 = vsel %vm4033, %v4556, 0
  %4561 = vmatprep.subr.mxu0 0.0
  %4562 = vmatpush1.xpose.msra.mxu0 0.0
  %4563 = vmatprep.subr.mxu0 0.0
  %4564 = vmatpush1.xpose.msra.mxu0 0.0
  %4565 = vmatprep.subr.mxu0 0.0
  %4566 = vmatpush1.xpose.msra.mxu0 0.0
  %4567 = vmatprep.subr.mxu0 0.0
  %4568 = vmatpush1.xpose.msra.mxu0 0.0
  %4569 = vmatprep.subr.mxu0 0.0
  %4570 = vmatpush1.xpose.msra.mxu0 0.0
  %4571 = vmatprep.subr.mxu0 0.0
  %4572 = vmatpush1.xpose.msra.mxu0 0.0
  %4573 = vmatprep.subr.mxu0 0.0
  %4574 = vmatpush1.xpose.msra.mxu0 0.0
  %4575 = vmatprep.subr.mxu0 0.0
  %4576 = vmatpush1.xpose.msra.mxu0 0.0
  %4577 = vmatprep.subr.mxu0 0.0
  %4578 = vmatpush1.xpose.msra.mxu0 0.0
  %4579 = vmatprep.subr.mxu0 0.0
  %4580 = vmatpush1.xpose.msra.mxu0 0.0
  %4581 = vmatprep.subr.mxu0 0.0
  %4582 = vmatpush1.xpose.msra.mxu0 0.0
  %4583 = vmatprep.subr.mxu0 0.0
  %4584 = vmatpush1.xpose.msra.mxu0 0.0
  %4585 = vmatprep.subr.mxu0 0.0
  %4586 = vmatpush1.xpose.msra.mxu0 0.0
  %4587 = vmatprep.subr.mxu0 0.0
  %4588 = vmatpush1.xpose.msra.mxu0 0.0
  %4589 = vmatprep.subr.mxu0 0.0
  %4590 = vmatpush1.xpose.msra.mxu0 0.0
  %4591 = vmatprep.subr.mxu0 0.0
  %4592 = vmatpush1.xpose.msra.mxu0 %v4559
  %4593 = vmatprep.subr.mxu0 0.0
  %4594 = vmatpush2.xpose.msra.mxu0 0.0
  %4595 = vmatprep.subr.mxu0 0.0
  %4596 = vmatpush2.xpose.msra.mxu0 0.0
  %4597 = vmatprep.subr.mxu0 0.0
  %4598 = vmatpush2.xpose.msra.mxu0 0.0
  %4599 = vmatprep.subr.mxu0 0.0
  %4600 = vmatpush2.xpose.msra.mxu0 0.0
  %4601 = vmatprep.subr.mxu0 0.0
  %4602 = vmatpush2.xpose.msra.mxu0 0.0
  %4603 = vmatprep.subr.mxu0 0.0
  %4604 = vmatpush2.xpose.msra.mxu0 0.0
  %4605 = vmatprep.subr.mxu0 0.0
  %4606 = vmatpush2.xpose.msra.mxu0 0.0
  %4607 = vmatprep.subr.mxu0 0.0
  %4608 = vmatpush2.xpose.msra.mxu0 0.0
  %4609 = vmatprep.subr.mxu0 0.0
  %4610 = vmatpush2.xpose.msra.mxu0 0.0
  %4611 = vmatprep.subr.mxu0 0.0
  %4612 = vmatpush2.xpose.msra.mxu0 0.0
  %4613 = vmatprep.subr.mxu0 0.0
  %4614 = vmatpush2.xpose.msra.mxu0 0.0
  %4615 = vmatprep.subr.mxu0 0.0
  %4616 = vmatpush2.xpose.msra.mxu0 0.0
  %4617 = vmatprep.subr.mxu0 0.0
  %4618 = vmatpush2.xpose.msra.mxu0 0.0
  %4619 = vmatprep.subr.mxu0 0.0
  %4620 = vmatpush2.xpose.msra.mxu0 0.0
  %4621 = vmatprep.subr.mxu0 0.0
  %4622 = vmatpush2.xpose.msra.mxu0 0.0
  %4623 = vmatprep.subr.mxu0 0.0
  %4624 = vmatpush2.xpose.msra.mxu0 0.0
  %4625 = vmatprep.mubr.f32.mxu0 0.0
  %4626 = vmatmul.mubr.f32.gmra.mxu0 %v4557
  %v4627 = vpop.f32.mrf.mxu0
  %v4628 = vadd.f32 0.0, %v4627
  %v4629 = vpop.f32.mrf.mxu0
  %4630 = vdwg.mxu0
  %v4631 = vsel %vm4110, %v4628, -inf
  %4632 = vmax.xlane.f32.xlu0 %v4631
  %v4633 = vpop.xlane.xlu0 %4632
  %v4634 = vsub.f32 %v4628, %v4633
  %v4635 = vmul.f32 %v4634, 1.442695
  %v4636 = vpow.pop %v4635
  %v4637 = vsel %vm4110, %v4636, 0.0
  %4638 = vadd.xlane.f32.xlu0 %v4637
  %v4639 = vpop.xlane.xlu0 %4638
  %v4640 = vrcp.pop %v4639
  %v4641 = vmul.f32 %v4636, %v4640
  %v4642 = vsel %vm4110, %v4641, 0.0
  %v4643 = vrot.slane %v4642, 4
  %v4644 = vadd.f32 %v4642, %v4643
  %v4645 = vrot.slane %v4644, 2
  %v4646 = vadd.f32 %v4644, %v4645
  %v4647 = vrot.slane %v4646, 1
  %v4648 = vadd.f32 %v4646, %v4647
  %v4649 = vmul.f32 %v4648, %v4129
  %4650 = vrot.lane.b32.xlu0 %v3831, 16
  %v4651 = vpop.permute.xlu0 %4650
  %v4654 = vsel %vm4110, %v4649, 0
  %4656 = vmatprep.subr.mxu0 0.0
  %4657 = vmatpush1.msra.mxu0 0.0
  %4658 = vmatprep.subr.mxu0 0.0
  %4659 = vmatpush1.msra.mxu0 0.0
  %4660 = vmatprep.subr.mxu0 0.0
  %4661 = vmatpush1.msra.mxu0 0.0
  %4662 = vmatprep.subr.mxu0 0.0
  %4663 = vmatpush1.msra.mxu0 0.0
  %4664 = vmatprep.subr.mxu0 0.0
  %4665 = vmatpush1.msra.mxu0 0.0
  %4666 = vmatprep.subr.mxu0 0.0
  %4667 = vmatpush1.msra.mxu0 0.0
  %4668 = vmatprep.subr.mxu0 0.0
  %4669 = vmatpush1.msra.mxu0 0.0
  %4670 = vmatprep.subr.mxu0 0.0
  %4671 = vmatpush1.msra.mxu0 0.0
  %4672 = vmatprep.subr.mxu0 0.0
  %4673 = vmatpush1.msra.mxu0 0.0
  %4674 = vmatprep.subr.mxu0 0.0
  %4675 = vmatpush1.msra.mxu0 0.0
  %4676 = vmatprep.subr.mxu0 0.0
  %4677 = vmatpush1.msra.mxu0 0.0
  %4678 = vmatprep.subr.mxu0 0.0
  %4679 = vmatpush1.msra.mxu0 0.0
  %4680 = vmatprep.subr.mxu0 0.0
  %4681 = vmatpush1.msra.mxu0 0.0
  %4682 = vmatprep.subr.mxu0 0.0
  %4683 = vmatpush1.msra.mxu0 0.0
  %4684 = vmatprep.subr.mxu0 0.0
  %4685 = vmatpush1.msra.mxu0 0.0
  %4686 = vmatprep.subr.mxu0 0.0
  %4687 = vmatpush1.msra.mxu0 %v4651
  %4688 = vmatprep.subr.mxu0 0.0
  %4689 = vmatpush2.msra.mxu0 0.0
  %4690 = vmatprep.subr.mxu0 0.0
  %4691 = vmatpush2.msra.mxu0 0.0
  %4692 = vmatprep.subr.mxu0 0.0
  %4693 = vmatpush2.msra.mxu0 0.0
  %4694 = vmatprep.subr.mxu0 0.0
  %4695 = vmatpush2.msra.mxu0 0.0
  %4696 = vmatprep.subr.mxu0 0.0
  %4697 = vmatpush2.msra.mxu0 0.0
  %4698 = vmatprep.subr.mxu0 0.0
  %4699 = vmatpush2.msra.mxu0 0.0
  %4700 = vmatprep.subr.mxu0 0.0
  %4701 = vmatpush2.msra.mxu0 0.0
  %4702 = vmatprep.subr.mxu0 0.0
  %4703 = vmatpush2.msra.mxu0 0.0
  %4704 = vmatprep.subr.mxu0 0.0
  %4705 = vmatpush2.msra.mxu0 0.0
  %4706 = vmatprep.subr.mxu0 0.0
  %4707 = vmatpush2.msra.mxu0 0.0
  %4708 = vmatprep.subr.mxu0 0.0
  %4709 = vmatpush2.msra.mxu0 0.0
  %4710 = vmatprep.subr.mxu0 0.0
  %4711 = vmatpush2.msra.mxu0 0.0
  %4712 = vmatprep.subr.mxu0 0.0
  %4713 = vmatpush2.msra.mxu0 0.0
  %4714 = vmatprep.subr.mxu0 0.0
  %4715 = vmatpush2.msra.mxu0 0.0
  %4716 = vmatprep.subr.mxu0 0.0
  %4717 = vmatpush2.msra.mxu0 0.0
  %4718 = vmatprep.subr.mxu0 0.0
  %4719 = vmatpush2.msra.mxu0 0.0
  %4720 = vmatprep.mubr.f32.mxu0 0.0
  %4721 = vmatmul.mubr.f32.gmra.mxu0 %v4654
  %v4722 = vpop.f32.mrf.mxu0
  %v4723 = vadd.f32 0.0, %v4722
  %v4724 = vpop.f32.mrf.mxu0
  %4725 = vdwg.mxu0
  %4727 = vrot.lane.b32.xlu0 %v4377, 16
  %v4728 = vpop.permute.xlu0 %4727
  %4731 = vrot.lane.b32.xlu0 %v4550, 32
  %v4732 = vpop.permute.xlu0 %4731
  %4735 = vrot.lane.b32.xlu0 %v4723, 48
  %v4736 = vpop.permute.xlu0 %4735
  %v4738 = vsel %vm4033, %v4204, %v4728
  %v4739 = vsel %vm103, %v4738, %v4732
  %vm4740 = vcmask 392192
  %v4741 = vsel %vm4740, %v4739, %v4736
  %v4742 = vmul.f32 %v4028, 0.25
  %v4744 = vsel %vm4033, %v4742, 0
  %v4747 = vsel %vm4033, %v3837, 0
  %4749 = vmatprep.subr.mxu0 0.0
  %4750 = vmatpush1.xpose.msra.mxu0 0.0
  %4751 = vmatprep.subr.mxu0 0.0
  %4752 = vmatpush1.xpose.msra.mxu0 0.0
  %4753 = vmatprep.subr.mxu0 0.0
  %4754 = vmatpush1.xpose.msra.mxu0 0.0
  %4755 = vmatprep.subr.mxu0 0.0
  %4756 = vmatpush1.xpose.msra.mxu0 0.0
  %4757 = vmatprep.subr.mxu0 0.0
  %4758 = vmatpush1.xpose.msra.mxu0 0.0
  %4759 = vmatprep.subr.mxu0 0.0
  %4760 = vmatpush1.xpose.msra.mxu0 0.0
  %4761 = vmatprep.subr.mxu0 0.0
  %4762 = vmatpush1.xpose.msra.mxu0 0.0
  %4763 = vmatprep.subr.mxu0 0.0
  %4764 = vmatpush1.xpose.msra.mxu0 0.0
  %4765 = vmatprep.subr.mxu0 0.0
  %4766 = vmatpush1.xpose.msra.mxu0 0.0
  %4767 = vmatprep.subr.mxu0 0.0
  %4768 = vmatpush1.xpose.msra.mxu0 0.0
  %4769 = vmatprep.subr.mxu0 0.0
  %4770 = vmatpush1.xpose.msra.mxu0 0.0
  %4771 = vmatprep.subr.mxu0 0.0
  %4772 = vmatpush1.xpose.msra.mxu0 0.0
  %4773 = vmatprep.subr.mxu0 0.0
  %4774 = vmatpush1.xpose.msra.mxu0 0.0
  %4775 = vmatprep.subr.mxu0 0.0
  %4776 = vmatpush1.xpose.msra.mxu0 0.0
  %4777 = vmatprep.subr.mxu0 0.0
  %4778 = vmatpush1.xpose.msra.mxu0 0.0
  %4779 = vmatprep.subr.mxu0 0.0
  %4780 = vmatpush1.xpose.msra.mxu0 %v4747
  %4781 = vmatprep.subr.mxu0 0.0
  %4782 = vmatpush2.xpose.msra.mxu0 0.0
  %4783 = vmatprep.subr.mxu0 0.0
  %4784 = vmatpush2.xpose.msra.mxu0 0.0
  %4785 = vmatprep.subr.mxu0 0.0
  %4786 = vmatpush2.xpose.msra.mxu0 0.0
  %4787 = vmatprep.subr.mxu0 0.0
  %4788 = vmatpush2.xpose.msra.mxu0 0.0
  %4789 = vmatprep.subr.mxu0 0.0
  %4790 = vmatpush2.xpose.msra.mxu0 0.0
  %4791 = vmatprep.subr.mxu0 0.0
  %4792 = vmatpush2.xpose.msra.mxu0 0.0
  %4793 = vmatprep.subr.mxu0 0.0
  %4794 = vmatpush2.xpose.msra.mxu0 0.0
  %4795 = vmatprep.subr.mxu0 0.0
  %4796 = vmatpush2.xpose.msra.mxu0 0.0
  %4797 = vmatprep.subr.mxu0 0.0
  %4798 = vmatpush2.xpose.msra.mxu0 0.0
  %4799 = vmatprep.subr.mxu0 0.0
  %4800 = vmatpush2.xpose.msra.mxu0 0.0
  %4801 = vmatprep.subr.mxu0 0.0
  %4802 = vmatpush2.xpose.msra.mxu0 0.0
  %4803 = vmatprep.subr.mxu0 0.0
  %4804 = vmatpush2.xpose.msra.mxu0 0.0
  %4805 = vmatprep.subr.mxu0 0.0
  %4806 = vmatpush2.xpose.msra.mxu0 0.0
  %4807 = vmatprep.subr.mxu0 0.0
  %4808 = vmatpush2.xpose.msra.mxu0 0.0
  %4809 = vmatprep.subr.mxu0 0.0
  %4810 = vmatpush2.xpose.msra.mxu0 0.0
  %4811 = vmatprep.subr.mxu0 0.0
  %4812 = vmatpush2.xpose.msra.mxu0 0.0
  %4813 = vmatprep.mubr.f32.mxu0 0.0
  %4814 = vmatmul.mubr.f32.gmra.mxu0 %v4744
  %v4815 = vpop.f32.mrf.mxu0
  %v4816 = vadd.f32 0.0, %v4815
  %v4817 = vpop.f32.mrf.mxu0
  %4818 = vdwg.mxu0
  %v4819 = vsel %vm4110, %v4816, -inf
  %4820 = vmax.xlane.f32.xlu0 %v4819
  %v4821 = vpop.xlane.xlu0 %4820
  %v4822 = vsub.f32 %v4816, %v4821
  %v4823 = vmul.f32 %v4822, 1.442695
  %v4824 = vpow.pop %v4823
  %v4825 = vsel %vm4110, %v4824, 0.0
  %4826 = vadd.xlane.f32.xlu0 %v4825
  %v4827 = vpop.xlane.xlu0 %4826
  %v4828 = vrcp.pop %v4827
  %v4829 = vmul.f32 %v4824, %v4828
  %v4830 = vsel %vm4110, %v4829, 0.0
  %v4831 = vrot.slane %v4830, 4
  %v4832 = vadd.f32 %v4830, %v4831
  %v4833 = vrot.slane %v4832, 2
  %v4834 = vadd.f32 %v4832, %v4833
  %v4835 = vrot.slane %v4834, 1
  %v4836 = vadd.f32 %v4834, %v4835
  %v4837 = vmul.f32 %v4836, %v4129
  %4838 = vrot.lane.b32.xlu0 %v3837, 64
  %v4839 = vpop.permute.xlu0 %4838
  %v4842 = vsel %vm4110, %v4837, 0
  %4844 = vmatprep.subr.mxu0 0.0
  %4845 = vmatpush1.msra.mxu0 0.0
  %4846 = vmatprep.subr.mxu0 0.0
  %4847 = vmatpush1.msra.mxu0 0.0
  %4848 = vmatprep.subr.mxu0 0.0
  %4849 = vmatpush1.msra.mxu0 0.0
  %4850 = vmatprep.subr.mxu0 0.0
  %4851 = vmatpush1.msra.mxu0 0.0
  %4852 = vmatprep.subr.mxu0 0.0
  %4853 = vmatpush1.msra.mxu0 0.0
  %4854 = vmatprep.subr.mxu0 0.0
  %4855 = vmatpush1.msra.mxu0 0.0
  %4856 = vmatprep.subr.mxu0 0.0
  %4857 = vmatpush1.msra.mxu0 0.0
  %4858 = vmatprep.subr.mxu0 0.0
  %4859 = vmatpush1.msra.mxu0 0.0
  %4860 = vmatprep.subr.mxu0 0.0
  %4861 = vmatpush1.msra.mxu0 0.0
  %4862 = vmatprep.subr.mxu0 0.0
  %4863 = vmatpush1.msra.mxu0 0.0
  %4864 = vmatprep.subr.mxu0 0.0
  %4865 = vmatpush1.msra.mxu0 0.0
  %4866 = vmatprep.subr.mxu0 0.0
  %4867 = vmatpush1.msra.mxu0 0.0
  %4868 = vmatprep.subr.mxu0 0.0
  %4869 = vmatpush1.msra.mxu0 0.0
  %4870 = vmatprep.subr.mxu0 0.0
  %4871 = vmatpush1.msra.mxu0 0.0
  %4872 = vmatprep.subr.mxu0 0.0
  %4873 = vmatpush1.msra.mxu0 0.0
  %4874 = vmatprep.subr.mxu0 0.0
  %4875 = vmatpush1.msra.mxu0 %v4839
  %4876 = vmatprep.subr.mxu0 0.0
  %4877 = vmatpush2.msra.mxu0 0.0
  %4878 = vmatprep.subr.mxu0 0.0
  %4879 = vmatpush2.msra.mxu0 0.0
  %4880 = vmatprep.subr.mxu0 0.0
  %4881 = vmatpush2.msra.mxu0 0.0
  %4882 = vmatprep.subr.mxu0 0.0
  %4883 = vmatpush2.msra.mxu0 0.0
  %4884 = vmatprep.subr.mxu0 0.0
  %4885 = vmatpush2.msra.mxu0 0.0
  %4886 = vmatprep.subr.mxu0 0.0
  %4887 = vmatpush2.msra.mxu0 0.0
  %4888 = vmatprep.subr.mxu0 0.0
  %4889 = vmatpush2.msra.mxu0 0.0
  %4890 = vmatprep.subr.mxu0 0.0
  %4891 = vmatpush2.msra.mxu0 0.0
  %4892 = vmatprep.subr.mxu0 0.0
  %4893 = vmatpush2.msra.mxu0 0.0
  %4894 = vmatprep.subr.mxu0 0.0
  %4895 = vmatpush2.msra.mxu0 0.0
  %4896 = vmatprep.subr.mxu0 0.0
  %4897 = vmatpush2.msra.mxu0 0.0
  %4898 = vmatprep.subr.mxu0 0.0
  %4899 = vmatpush2.msra.mxu0 0.0
  %4900 = vmatprep.subr.mxu0 0.0
  %4901 = vmatpush2.msra.mxu0 0.0
  %4902 = vmatprep.subr.mxu0 0.0
  %4903 = vmatpush2.msra.mxu0 0.0
  %4904 = vmatprep.subr.mxu0 0.0
  %4905 = vmatpush2.msra.mxu0 0.0
  %4906 = vmatprep.subr.mxu0 0.0
  %4907 = vmatpush2.msra.mxu0 0.0
  %4908 = vmatprep.mubr.f32.mxu0 0.0
  %4909 = vmatmul.mubr.f32.gmra.mxu0 %v4842
  %v4910 = vpop.f32.mrf.mxu0
  %v4911 = vadd.f32 0.0, %v4910
  %v4912 = vpop.f32.mrf.mxu0
  %4913 = vdwg.mxu0
  %4914 = vrot.lane.b32.xlu0 %v4742, 112
  %v4915 = vpop.permute.xlu0 %4914
  %4916 = vrot.lane.b32.xlu0 %v3837, 112
  %v4917 = vpop.permute.xlu0 %4916
  %v4918 = vsel %vm4033, %v4915, 0
  %v4920 = vsel %vm4033, %v4917, 0
  %4922 = vmatprep.subr.mxu0 0.0
  %4923 = vmatpush1.xpose.msra.mxu0 0.0
  %4924 = vmatprep.subr.mxu0 0.0
  %4925 = vmatpush1.xpose.msra.mxu0 0.0
  %4926 = vmatprep.subr.mxu0 0.0
  %4927 = vmatpush1.xpose.msra.mxu0 0.0
  %4928 = vmatprep.subr.mxu0 0.0
  %4929 = vmatpush1.xpose.msra.mxu0 0.0
  %4930 = vmatprep.subr.mxu0 0.0
  %4931 = vmatpush1.xpose.msra.mxu0 0.0
  %4932 = vmatprep.subr.mxu0 0.0
  %4933 = vmatpush1.xpose.msra.mxu0 0.0
  %4934 = vmatprep.subr.mxu0 0.0
  %4935 = vmatpush1.xpose.msra.mxu0 0.0
  %4936 = vmatprep.subr.mxu0 0.0
  %4937 = vmatpush1.xpose.msra.mxu0 0.0
  %4938 = vmatprep.subr.mxu0 0.0
  %4939 = vmatpush1.xpose.msra.mxu0 0.0
  %4940 = vmatprep.subr.mxu0 0.0
  %4941 = vmatpush1.xpose.msra.mxu0 0.0
  %4942 = vmatprep.subr.mxu0 0.0
  %4943 = vmatpush1.xpose.msra.mxu0 0.0
  %4944 = vmatprep.subr.mxu0 0.0
  %4945 = vmatpush1.xpose.msra.mxu0 0.0
  %4946 = vmatprep.subr.mxu0 0.0
  %4947 = vmatpush1.xpose.msra.mxu0 0.0
  %4948 = vmatprep.subr.mxu0 0.0
  %4949 = vmatpush1.xpose.msra.mxu0 0.0
  %4950 = vmatprep.subr.mxu0 0.0
  %4951 = vmatpush1.xpose.msra.mxu0 0.0
  %4952 = vmatprep.subr.mxu0 0.0
  %4953 = vmatpush1.xpose.msra.mxu0 %v4920
  %4954 = vmatprep.subr.mxu0 0.0
  %4955 = vmatpush2.xpose.msra.mxu0 0.0
  %4956 = vmatprep.subr.mxu0 0.0
  %4957 = vmatpush2.xpose.msra.mxu0 0.0
  %4958 = vmatprep.subr.mxu0 0.0
  %4959 = vmatpush2.xpose.msra.mxu0 0.0
  %4960 = vmatprep.subr.mxu0 0.0
  %4961 = vmatpush2.xpose.msra.mxu0 0.0
  %4962 = vmatprep.subr.mxu0 0.0
  %4963 = vmatpush2.xpose.msra.mxu0 0.0
  %4964 = vmatprep.subr.mxu0 0.0
  %4965 = vmatpush2.xpose.msra.mxu0 0.0
  %4966 = vmatprep.subr.mxu0 0.0
  %4967 = vmatpush2.xpose.msra.mxu0 0.0
  %4968 = vmatprep.subr.mxu0 0.0
  %4969 = vmatpush2.xpose.msra.mxu0 0.0
  %4970 = vmatprep.subr.mxu0 0.0
  %4971 = vmatpush2.xpose.msra.mxu0 0.0
  %4972 = vmatprep.subr.mxu0 0.0
  %4973 = vmatpush2.xpose.msra.mxu0 0.0
  %4974 = vmatprep.subr.mxu0 0.0
  %4975 = vmatpush2.xpose.msra.mxu0 0.0
  %4976 = vmatprep.subr.mxu0 0.0
  %4977 = vmatpush2.xpose.msra.mxu0 0.0
  %4978 = vmatprep.subr.mxu0 0.0
  %4979 = vmatpush2.xpose.msra.mxu0 0.0
  %4980 = vmatprep.subr.mxu0 0.0
  %4981 = vmatpush2.xpose.msra.mxu0 0.0
  %4982 = vmatprep.subr.mxu0 0.0
  %4983 = vmatpush2.xpose.msra.mxu0 0.0
  %4984 = vmatprep.subr.mxu0 0.0
  %4985 = vmatpush2.xpose.msra.mxu0 0.0
  %4986 = vmatprep.mubr.f32.mxu0 0.0
  %4987 = vmatmul.mubr.f32.gmra.mxu0 %v4918
  %v4988 = vpop.f32.mrf.mxu0
  %v4989 = vadd.f32 0.0, %v4988
  %v4990 = vpop.f32.mrf.mxu0
  %4991 = vdwg.mxu0
  %v4992 = vsel %vm4110, %v4989, -inf
  %4993 = vmax.xlane.f32.xlu0 %v4992
  %v4994 = vpop.xlane.xlu0 %4993
  %v4995 = vsub.f32 %v4989, %v4994
  %v4996 = vmul.f32 %v4995, 1.442695
  %v4997 = vpow.pop %v4996
  %v4998 = vsel %vm4110, %v4997, 0.0
  %4999 = vadd.xlane.f32.xlu0 %v4998
  %v5000 = vpop.xlane.xlu0 %4999
  %v5001 = vrcp.pop %v5000
  %v5002 = vmul.f32 %v4997, %v5001
  %v5003 = vsel %vm4110, %v5002, 0.0
  %v5004 = vrot.slane %v5003, 4
  %v5005 = vadd.f32 %v5003, %v5004
  %v5006 = vrot.slane %v5005, 2
  %v5007 = vadd.f32 %v5005, %v5006
  %v5008 = vrot.slane %v5007, 1
  %v5009 = vadd.f32 %v5007, %v5008
  %v5010 = vmul.f32 %v5009, %v4129
  %5011 = vrot.lane.b32.xlu0 %v3837, 48
  %v5012 = vpop.permute.xlu0 %5011
  %v5015 = vsel %vm4110, %v5010, 0
  %5017 = vmatprep.subr.mxu0 0.0
  %5018 = vmatpush1.msra.mxu0 0.0
  %5019 = vmatprep.subr.mxu0 0.0
  %5020 = vmatpush1.msra.mxu0 0.0
  %5021 = vmatprep.subr.mxu0 0.0
  %5022 = vmatpush1.msra.mxu0 0.0
  %5023 = vmatprep.subr.mxu0 0.0
  %5024 = vmatpush1.msra.mxu0 0.0
  %5025 = vmatprep.subr.mxu0 0.0
  %5026 = vmatpush1.msra.mxu0 0.0
  %5027 = vmatprep.subr.mxu0 0.0
  %5028 = vmatpush1.msra.mxu0 0.0
  %5029 = vmatprep.subr.mxu0 0.0
  %5030 = vmatpush1.msra.mxu0 0.0
  %5031 = vmatprep.subr.mxu0 0.0
  %5032 = vmatpush1.msra.mxu0 0.0
  %5033 = vmatprep.subr.mxu0 0.0
  %5034 = vmatpush1.msra.mxu0 0.0
  %5035 = vmatprep.subr.mxu0 0.0
  %5036 = vmatpush1.msra.mxu0 0.0
  %5037 = vmatprep.subr.mxu0 0.0
  %5038 = vmatpush1.msra.mxu0 0.0
  %5039 = vmatprep.subr.mxu0 0.0
  %5040 = vmatpush1.msra.mxu0 0.0
  %5041 = vmatprep.subr.mxu0 0.0
  %5042 = vmatpush1.msra.mxu0 0.0
  %5043 = vmatprep.subr.mxu0 0.0
  %5044 = vmatpush1.msra.mxu0 0.0
  %5045 = vmatprep.subr.mxu0 0.0
  %5046 = vmatpush1.msra.mxu0 0.0
  %5047 = vmatprep.subr.mxu0 0.0
  %5048 = vmatpush1.msra.mxu0 %v5012
  %5049 = vmatprep.subr.mxu0 0.0
  %5050 = vmatpush2.msra.mxu0 0.0
  %5051 = vmatprep.subr.mxu0 0.0
  %5052 = vmatpush2.msra.mxu0 0.0
  %5053 = vmatprep.subr.mxu0 0.0
  %5054 = vmatpush2.msra.mxu0 0.0
  %5055 = vmatprep.subr.mxu0 0.0
  %5056 = vmatpush2.msra.mxu0 0.0
  %5057 = vmatprep.subr.mxu0 0.0
  %5058 = vmatpush2.msra.mxu0 0.0
  %5059 = vmatprep.subr.mxu0 0.0
  %5060 = vmatpush2.msra.mxu0 0.0
  %5061 = vmatprep.subr.mxu0 0.0
  %5062 = vmatpush2.msra.mxu0 0.0
  %5063 = vmatprep.subr.mxu0 0.0
  %5064 = vmatpush2.msra.mxu0 0.0
  %5065 = vmatprep.subr.mxu0 0.0
  %5066 = vmatpush2.msra.mxu0 0.0
  %5067 = vmatprep.subr.mxu0 0.0
  %5068 = vmatpush2.msra.mxu0 0.0
  %5069 = vmatprep.subr.mxu0 0.0
  %5070 = vmatpush2.msra.mxu0 0.0
  %5071 = vmatprep.subr.mxu0 0.0
  %5072 = vmatpush2.msra.mxu0 0.0
  %5073 = vmatprep.subr.mxu0 0.0
  %5074 = vmatpush2.msra.mxu0 0.0
  %5075 = vmatprep.subr.mxu0 0.0
  %5076 = vmatpush2.msra.mxu0 0.0
  %5077 = vmatprep.subr.mxu0 0.0
  %5078 = vmatpush2.msra.mxu0 0.0
  %5079 = vmatprep.subr.mxu0 0.0
  %5080 = vmatpush2.msra.mxu0 0.0
  %5081 = vmatprep.mubr.f32.mxu0 0.0
  %5082 = vmatmul.mubr.f32.gmra.mxu0 %v5015
  %v5083 = vpop.f32.mrf.mxu0
  %v5084 = vadd.f32 0.0, %v5083
  %v5085 = vpop.f32.mrf.mxu0
  %5086 = vdwg.mxu0
  %5087 = vrot.lane.b32.xlu0 %v4742, 96
  %v5088 = vpop.permute.xlu0 %5087
  %5089 = vrot.lane.b32.xlu0 %v3837, 96
  %v5090 = vpop.permute.xlu0 %5089
  %v5091 = vsel %vm4033, %v5088, 0
  %v5093 = vsel %vm4033, %v5090, 0
  %5095 = vmatprep.subr.mxu0 0.0
  %5096 = vmatpush1.xpose.msra.mxu0 0.0
  %5097 = vmatprep.subr.mxu0 0.0
  %5098 = vmatpush1.xpose.msra.mxu0 0.0
  %5099 = vmatprep.subr.mxu0 0.0
  %5100 = vmatpush1.xpose.msra.mxu0 0.0
  %5101 = vmatprep.subr.mxu0 0.0
  %5102 = vmatpush1.xpose.msra.mxu0 0.0
  %5103 = vmatprep.subr.mxu0 0.0
  %5104 = vmatpush1.xpose.msra.mxu0 0.0
  %5105 = vmatprep.subr.mxu0 0.0
  %5106 = vmatpush1.xpose.msra.mxu0 0.0
  %5107 = vmatprep.subr.mxu0 0.0
  %5108 = vmatpush1.xpose.msra.mxu0 0.0
  %5109 = vmatprep.subr.mxu0 0.0
  %5110 = vmatpush1.xpose.msra.mxu0 0.0
  %5111 = vmatprep.subr.mxu0 0.0
  %5112 = vmatpush1.xpose.msra.mxu0 0.0
  %5113 = vmatprep.subr.mxu0 0.0
  %5114 = vmatpush1.xpose.msra.mxu0 0.0
  %5115 = vmatprep.subr.mxu0 0.0
  %5116 = vmatpush1.xpose.msra.mxu0 0.0
  %5117 = vmatprep.subr.mxu0 0.0
  %5118 = vmatpush1.xpose.msra.mxu0 0.0
  %5119 = vmatprep.subr.mxu0 0.0
  %5120 = vmatpush1.xpose.msra.mxu0 0.0
  %5121 = vmatprep.subr.mxu0 0.0
  %5122 = vmatpush1.xpose.msra.mxu0 0.0
  %5123 = vmatprep.subr.mxu0 0.0
  %5124 = vmatpush1.xpose.msra.mxu0 0.0
  %5125 = vmatprep.subr.mxu0 0.0
  %5126 = vmatpush1.xpose.msra.mxu0 %v5093
  %5127 = vmatprep.subr.mxu0 0.0
  %5128 = vmatpush2.xpose.msra.mxu0 0.0
  %5129 = vmatprep.subr.mxu0 0.0
  %5130 = vmatpush2.xpose.msra.mxu0 0.0
  %5131 = vmatprep.subr.mxu0 0.0
  %5132 = vmatpush2.xpose.msra.mxu0 0.0
  %5133 = vmatprep.subr.mxu0 0.0
  %5134 = vmatpush2.xpose.msra.mxu0 0.0
  %5135 = vmatprep.subr.mxu0 0.0
  %5136 = vmatpush2.xpose.msra.mxu0 0.0
  %5137 = vmatprep.subr.mxu0 0.0
  %5138 = vmatpush2.xpose.msra.mxu0 0.0
  %5139 = vmatprep.subr.mxu0 0.0
  %5140 = vmatpush2.xpose.msra.mxu0 0.0
  %5141 = vmatprep.subr.mxu0 0.0
  %5142 = vmatpush2.xpose.msra.mxu0 0.0
  %5143 = vmatprep.subr.mxu0 0.0
  %5144 = vmatpush2.xpose.msra.mxu0 0.0
  %5145 = vmatprep.subr.mxu0 0.0
  %5146 = vmatpush2.xpose.msra.mxu0 0.0
  %5147 = vmatprep.subr.mxu0 0.0
  %5148 = vmatpush2.xpose.msra.mxu0 0.0
  %5149 = vmatprep.subr.mxu0 0.0
  %5150 = vmatpush2.xpose.msra.mxu0 0.0
  %5151 = vmatprep.subr.mxu0 0.0
  %5152 = vmatpush2.xpose.msra.mxu0 0.0
  %5153 = vmatprep.subr.mxu0 0.0
  %5154 = vmatpush2.xpose.msra.mxu0 0.0
  %5155 = vmatprep.subr.mxu0 0.0
  %5156 = vmatpush2.xpose.msra.mxu0 0.0
  %5157 = vmatprep.subr.mxu0 0.0
  %5158 = vmatpush2.xpose.msra.mxu0 0.0
  %5159 = vmatprep.mubr.f32.mxu0 0.0
  %5160 = vmatmul.mubr.f32.gmra.mxu0 %v5091
  %v5161 = vpop.f32.mrf.mxu0
  %v5162 = vadd.f32 0.0, %v5161
  %v5163 = vpop.f32.mrf.mxu0
  %5164 = vdwg.mxu0
  %v5165 = vsel %vm4110, %v5162, -inf
  %5166 = vmax.xlane.f32.xlu0 %v5165
  %v5167 = vpop.xlane.xlu0 %5166
  %v5168 = vsub.f32 %v5162, %v5167
  %v5169 = vmul.f32 %v5168, 1.442695
  %v5170 = vpow.pop %v5169
  %v5171 = vsel %vm4110, %v5170, 0.0
  %5172 = vadd.xlane.f32.xlu0 %v5171
  %v5173 = vpop.xlane.xlu0 %5172
  %v5174 = vrcp.pop %v5173
  %v5175 = vmul.f32 %v5170, %v5174
  %v5176 = vsel %vm4110, %v5175, 0.0
  %v5177 = vrot.slane %v5176, 4
  %v5178 = vadd.f32 %v5176, %v5177
  %v5179 = vrot.slane %v5178, 2
  %v5180 = vadd.f32 %v5178, %v5179
  %v5181 = vrot.slane %v5180, 1
  %v5182 = vadd.f32 %v5180, %v5181
  %v5183 = vmul.f32 %v5182, %v4129
  %5184 = vrot.lane.b32.xlu0 %v3837, 32
  %v5185 = vpop.permute.xlu0 %5184
  %v5188 = vsel %vm4110, %v5183, 0
  %5190 = vmatprep.subr.mxu0 0.0
  %5191 = vmatpush1.msra.mxu0 0.0
  %5192 = vmatprep.subr.mxu0 0.0
  %5193 = vmatpush1.msra.mxu0 0.0
  %5194 = vmatprep.subr.mxu0 0.0
  %5195 = vmatpush1.msra.mxu0 0.0
  %5196 = vmatprep.subr.mxu0 0.0
  %5197 = vmatpush1.msra.mxu0 0.0
  %5198 = vmatprep.subr.mxu0 0.0
  %5199 = vmatpush1.msra.mxu0 0.0
  %5200 = vmatprep.subr.mxu0 0.0
  %5201 = vmatpush1.msra.mxu0 0.0
  %5202 = vmatprep.subr.mxu0 0.0
  %5203 = vmatpush1.msra.mxu0 0.0
  %5204 = vmatprep.subr.mxu0 0.0
  %5205 = vmatpush1.msra.mxu0 0.0
  %5206 = vmatprep.subr.mxu0 0.0
  %5207 = vmatpush1.msra.mxu0 0.0
  %5208 = vmatprep.subr.mxu0 0.0
  %5209 = vmatpush1.msra.mxu0 0.0
  %5210 = vmatprep.subr.mxu0 0.0
  %5211 = vmatpush1.msra.mxu0 0.0
  %5212 = vmatprep.subr.mxu0 0.0
  %5213 = vmatpush1.msra.mxu0 0.0
  %5214 = vmatprep.subr.mxu0 0.0
  %5215 = vmatpush1.msra.mxu0 0.0
  %5216 = vmatprep.subr.mxu0 0.0
  %5217 = vmatpush1.msra.mxu0 0.0
  %5218 = vmatprep.subr.mxu0 0.0
  %5219 = vmatpush1.msra.mxu0 0.0
  %5220 = vmatprep.subr.mxu0 0.0
  %5221 = vmatpush1.msra.mxu0 %v5185
  %5222 = vmatprep.subr.mxu0 0.0
  %5223 = vmatpush2.msra.mxu0 0.0
  %5224 = vmatprep.subr.mxu0 0.0
  %5225 = vmatpush2.msra.mxu0 0.0
  %5226 = vmatprep.subr.mxu0 0.0
  %5227 = vmatpush2.msra.mxu0 0.0
  %5228 = vmatprep.subr.mxu0 0.0
  %5229 = vmatpush2.msra.mxu0 0.0
  %5230 = vmatprep.subr.mxu0 0.0
  %5231 = vmatpush2.msra.mxu0 0.0
  %5232 = vmatprep.subr.mxu0 0.0
  %5233 = vmatpush2.msra.mxu0 0.0
  %5234 = vmatprep.subr.mxu0 0.0
  %5235 = vmatpush2.msra.mxu0 0.0
  %5236 = vmatprep.subr.mxu0 0.0
  %5237 = vmatpush2.msra.mxu0 0.0
  %5238 = vmatprep.subr.mxu0 0.0
  %5239 = vmatpush2.msra.mxu0 0.0
  %5240 = vmatprep.subr.mxu0 0.0
  %5241 = vmatpush2.msra.mxu0 0.0
  %5242 = vmatprep.subr.mxu0 0.0
  %5243 = vmatpush2.msra.mxu0 0.0
  %5244 = vmatprep.subr.mxu0 0.0
  %5245 = vmatpush2.msra.mxu0 0.0
  %5246 = vmatprep.subr.mxu0 0.0
  %5247 = vmatpush2.msra.mxu0 0.0
  %5248 = vmatprep.subr.mxu0 0.0
  %5249 = vmatpush2.msra.mxu0 0.0
  %5250 = vmatprep.subr.mxu0 0.0
  %5251 = vmatpush2.msra.mxu0 0.0
  %5252 = vmatprep.subr.mxu0 0.0
  %5253 = vmatpush2.msra.mxu0 0.0
  %5254 = vmatprep.mubr.f32.mxu0 0.0
  %5255 = vmatmul.mubr.f32.gmra.mxu0 %v5188
  %v5256 = vpop.f32.mrf.mxu0
  %v5257 = vadd.f32 0.0, %v5256
  %v5258 = vpop.f32.mrf.mxu0
  %5259 = vdwg.mxu0
  %5260 = vrot.lane.b32.xlu0 %v4742, 80
  %v5261 = vpop.permute.xlu0 %5260
  %5262 = vrot.lane.b32.xlu0 %v3837, 80
  %v5263 = vpop.permute.xlu0 %5262
  %v5264 = vsel %vm4033, %v5261, 0
  %v5266 = vsel %vm4033, %v5263, 0
  %5268 = vmatprep.subr.mxu0 0.0
  %5269 = vmatpush1.xpose.msra.mxu0 0.0
  %5270 = vmatprep.subr.mxu0 0.0
  %5271 = vmatpush1.xpose.msra.mxu0 0.0
  %5272 = vmatprep.subr.mxu0 0.0
  %5273 = vmatpush1.xpose.msra.mxu0 0.0
  %5274 = vmatprep.subr.mxu0 0.0
  %5275 = vmatpush1.xpose.msra.mxu0 0.0
  %5276 = vmatprep.subr.mxu0 0.0
  %5277 = vmatpush1.xpose.msra.mxu0 0.0
  %5278 = vmatprep.subr.mxu0 0.0
  %5279 = vmatpush1.xpose.msra.mxu0 0.0
  %5280 = vmatprep.subr.mxu0 0.0
  %5281 = vmatpush1.xpose.msra.mxu0 0.0
  %5282 = vmatprep.subr.mxu0 0.0
  %5283 = vmatpush1.xpose.msra.mxu0 0.0
  %5284 = vmatprep.subr.mxu0 0.0
  %5285 = vmatpush1.xpose.msra.mxu0 0.0
  %5286 = vmatprep.subr.mxu0 0.0
  %5287 = vmatpush1.xpose.msra.mxu0 0.0
  %5288 = vmatprep.subr.mxu0 0.0
  %5289 = vmatpush1.xpose.msra.mxu0 0.0
  %5290 = vmatprep.subr.mxu0 0.0
  %5291 = vmatpush1.xpose.msra.mxu0 0.0
  %5292 = vmatprep.subr.mxu0 0.0
  %5293 = vmatpush1.xpose.msra.mxu0 0.0
  %5294 = vmatprep.subr.mxu0 0.0
  %5295 = vmatpush1.xpose.msra.mxu0 0.0
  %5296 = vmatprep.subr.mxu0 0.0
  %5297 = vmatpush1.xpose.msra.mxu0 0.0
  %5298 = vmatprep.subr.mxu0 0.0
  %5299 = vmatpush1.xpose.msra.mxu0 %v5266
  %5300 = vmatprep.subr.mxu0 0.0
  %5301 = vmatpush2.xpose.msra.mxu0 0.0
  %5302 = vmatprep.subr.mxu0 0.0
  %5303 = vmatpush2.xpose.msra.mxu0 0.0
  %5304 = vmatprep.subr.mxu0 0.0
  %5305 = vmatpush2.xpose.msra.mxu0 0.0
  %5306 = vmatprep.subr.mxu0 0.0
  %5307 = vmatpush2.xpose.msra.mxu0 0.0
  %5308 = vmatprep.subr.mxu0 0.0
  %5309 = vmatpush2.xpose.msra.mxu0 0.0
  %5310 = vmatprep.subr.mxu0 0.0
  %5311 = vmatpush2.xpose.msra.mxu0 0.0
  %5312 = vmatprep.subr.mxu0 0.0
  %5313 = vmatpush2.xpose.msra.mxu0 0.0
  %5314 = vmatprep.subr.mxu0 0.0
  %5315 = vmatpush2.xpose.msra.mxu0 0.0
  %5316 = vmatprep.subr.mxu0 0.0
  %5317 = vmatpush2.xpose.msra.mxu0 0.0
  %5318 = vmatprep.subr.mxu0 0.0
  %5319 = vmatpush2.xpose.msra.mxu0 0.0
  %5320 = vmatprep.subr.mxu0 0.0
  %5321 = vmatpush2.xpose.msra.mxu0 0.0
  %5322 = vmatprep.subr.mxu0 0.0
  %5323 = vmatpush2.xpose.msra.mxu0 0.0
  %5324 = vmatprep.subr.mxu0 0.0
  %5325 = vmatpush2.xpose.msra.mxu0 0.0
  %5326 = vmatprep.subr.mxu0 0.0
  %5327 = vmatpush2.xpose.msra.mxu0 0.0
  %5328 = vmatprep.subr.mxu0 0.0
  %5329 = vmatpush2.xpose.msra.mxu0 0.0
  %5330 = vmatprep.subr.mxu0 0.0
  %5331 = vmatpush2.xpose.msra.mxu0 0.0
  %5332 = vmatprep.mubr.f32.mxu0 0.0
  %5333 = vmatmul.mubr.f32.gmra.mxu0 %v5264
  %v5334 = vpop.f32.mrf.mxu0
  %v5335 = vadd.f32 0.0, %v5334
  %v5336 = vpop.f32.mrf.mxu0
  %5337 = vdwg.mxu0
  %v5338 = vsel %vm4110, %v5335, -inf
  %5339 = vmax.xlane.f32.xlu0 %v5338
  %v5340 = vpop.xlane.xlu0 %5339
  %v5341 = vsub.f32 %v5335, %v5340
  %v5342 = vmul.f32 %v5341, 1.442695
  %v5343 = vpow.pop %v5342
  %v5344 = vsel %vm4110, %v5343, 0.0
  %5345 = vadd.xlane.f32.xlu0 %v5344
  %v5346 = vpop.xlane.xlu0 %5345
  %v5347 = vrcp.pop %v5346
  %v5348 = vmul.f32 %v5343, %v5347
  %v5349 = vsel %vm4110, %v5348, 0.0
  %v5350 = vrot.slane %v5349, 4
  %v5351 = vadd.f32 %v5349, %v5350
  %v5352 = vrot.slane %v5351, 2
  %v5353 = vadd.f32 %v5351, %v5352
  %v5354 = vrot.slane %v5353, 1
  %v5355 = vadd.f32 %v5353, %v5354
  %v5356 = vmul.f32 %v5355, %v4129
  %5357 = vrot.lane.b32.xlu0 %v3837, 16
  %v5358 = vpop.permute.xlu0 %5357
  %v5361 = vsel %vm4110, %v5356, 0
  %5363 = vmatprep.subr.mxu0 0.0
  %5364 = vmatpush1.msra.mxu0 0.0
  %5365 = vmatprep.subr.mxu0 0.0
  %5366 = vmatpush1.msra.mxu0 0.0
  %5367 = vmatprep.subr.mxu0 0.0
  %5368 = vmatpush1.msra.mxu0 0.0
  %5369 = vmatprep.subr.mxu0 0.0
  %5370 = vmatpush1.msra.mxu0 0.0
  %5371 = vmatprep.subr.mxu0 0.0
  %5372 = vmatpush1.msra.mxu0 0.0
  %5373 = vmatprep.subr.mxu0 0.0
  %5374 = vmatpush1.msra.mxu0 0.0
  %5375 = vmatprep.subr.mxu0 0.0
  %5376 = vmatpush1.msra.mxu0 0.0
  %5377 = vmatprep.subr.mxu0 0.0
  %5378 = vmatpush1.msra.mxu0 0.0
  %5379 = vmatprep.subr.mxu0 0.0
  %5380 = vmatpush1.msra.mxu0 0.0
  %5381 = vmatprep.subr.mxu0 0.0
  %5382 = vmatpush1.msra.mxu0 0.0
  %5383 = vmatprep.subr.mxu0 0.0
  %5384 = vmatpush1.msra.mxu0 0.0
  %5385 = vmatprep.subr.mxu0 0.0
  %5386 = vmatpush1.msra.mxu0 0.0
  %5387 = vmatprep.subr.mxu0 0.0
  %5388 = vmatpush1.msra.mxu0 0.0
  %5389 = vmatprep.subr.mxu0 0.0
  %5390 = vmatpush1.msra.mxu0 0.0
  %5391 = vmatprep.subr.mxu0 0.0
  %5392 = vmatpush1.msra.mxu0 0.0
  %5393 = vmatprep.subr.mxu0 0.0
  %5394 = vmatpush1.msra.mxu0 %v5358
  %5395 = vmatprep.subr.mxu0 0.0
  %5396 = vmatpush2.msra.mxu0 0.0
  %5397 = vmatprep.subr.mxu0 0.0
  %5398 = vmatpush2.msra.mxu0 0.0
  %5399 = vmatprep.subr.mxu0 0.0
  %5400 = vmatpush2.msra.mxu0 0.0
  %5401 = vmatprep.subr.mxu0 0.0
  %5402 = vmatpush2.msra.mxu0 0.0
  %5403 = vmatprep.subr.mxu0 0.0
  %5404 = vmatpush2.msra.mxu0 0.0
  %5405 = vmatprep.subr.mxu0 0.0
  %5406 = vmatpush2.msra.mxu0 0.0
  %5407 = vmatprep.subr.mxu0 0.0
  %5408 = vmatpush2.msra.mxu0 0.0
  %5409 = vmatprep.subr.mxu0 0.0
  %5410 = vmatpush2.msra.mxu0 0.0
  %5411 = vmatprep.subr.mxu0 0.0
  %5412 = vmatpush2.msra.mxu0 0.0
  %5413 = vmatprep.subr.mxu0 0.0
  %5414 = vmatpush2.msra.mxu0 0.0
  %5415 = vmatprep.subr.mxu0 0.0
  %5416 = vmatpush2.msra.mxu0 0.0
  %5417 = vmatprep.subr.mxu0 0.0
  %5418 = vmatpush2.msra.mxu0 0.0
  %5419 = vmatprep.subr.mxu0 0.0
  %5420 = vmatpush2.msra.mxu0 0.0
  %5421 = vmatprep.subr.mxu0 0.0
  %5422 = vmatpush2.msra.mxu0 0.0
  %5423 = vmatprep.subr.mxu0 0.0
  %5424 = vmatpush2.msra.mxu0 0.0
  %5425 = vmatprep.subr.mxu0 0.0
  %5426 = vmatpush2.msra.mxu0 0.0
  %5427 = vmatprep.mubr.f32.mxu0 0.0
  %5428 = vmatmul.mubr.f32.gmra.mxu0 %v5361
  %v5429 = vpop.f32.mrf.mxu0
  %v5430 = vadd.f32 0.0, %v5429
  %v5431 = vpop.f32.mrf.mxu0
  %5432 = vdwg.mxu0
  %5434 = vrot.lane.b32.xlu0 %v5084, 16
  %v5435 = vpop.permute.xlu0 %5434
  %5438 = vrot.lane.b32.xlu0 %v5257, 32
  %v5439 = vpop.permute.xlu0 %5438
  %5442 = vrot.lane.b32.xlu0 %v5430, 48
  %v5443 = vpop.permute.xlu0 %5442
  %v5445 = vsel %vm4033, %v4911, %v5435
  %v5446 = vsel %vm103, %v5445, %v5439
  %v5447 = vsel %vm4740, %v5446, %v5443
  %v5449 = vrot.slane %v5447, 7
  %vm5451 = vcmask 1040384
  %v5452 = vsel %vm5451, %v4741, %v5449
  %v5453 = vmul.f32 %v3833, 0.25
  %5455 = vrot.lane.b32.xlu0 %v4022, 64
  %v5456 = vpop.permute.xlu0 %5455
  %v5458 = vsel %vm4033, %v5453, 0
  %v5460 = vsel %vm4033, %v5456, 0
  %5462 = vmatprep.subr.mxu0 0.0
  %5463 = vmatpush1.xpose.msra.mxu0 0.0
  %5464 = vmatprep.subr.mxu0 0.0
  %5465 = vmatpush1.xpose.msra.mxu0 0.0
  %5466 = vmatprep.subr.mxu0 0.0
  %5467 = vmatpush1.xpose.msra.mxu0 0.0
  %5468 = vmatprep.subr.mxu0 0.0
  %5469 = vmatpush1.xpose.msra.mxu0 0.0
  %5470 = vmatprep.subr.mxu0 0.0
  %5471 = vmatpush1.xpose.msra.mxu0 0.0
  %5472 = vmatprep.subr.mxu0 0.0
  %5473 = vmatpush1.xpose.msra.mxu0 0.0
  %5474 = vmatprep.subr.mxu0 0.0
  %5475 = vmatpush1.xpose.msra.mxu0 0.0
  %5476 = vmatprep.subr.mxu0 0.0
  %5477 = vmatpush1.xpose.msra.mxu0 0.0
  %5478 = vmatprep.subr.mxu0 0.0
  %5479 = vmatpush1.xpose.msra.mxu0 0.0
  %5480 = vmatprep.subr.mxu0 0.0
  %5481 = vmatpush1.xpose.msra.mxu0 0.0
  %5482 = vmatprep.subr.mxu0 0.0
  %5483 = vmatpush1.xpose.msra.mxu0 0.0
  %5484 = vmatprep.subr.mxu0 0.0
  %5485 = vmatpush1.xpose.msra.mxu0 0.0
  %5486 = vmatprep.subr.mxu0 0.0
  %5487 = vmatpush1.xpose.msra.mxu0 0.0
  %5488 = vmatprep.subr.mxu0 0.0
  %5489 = vmatpush1.xpose.msra.mxu0 0.0
  %5490 = vmatprep.subr.mxu0 0.0
  %5491 = vmatpush1.xpose.msra.mxu0 0.0
  %5492 = vmatprep.subr.mxu0 0.0
  %5493 = vmatpush1.xpose.msra.mxu0 %v5460
  %5494 = vmatprep.subr.mxu0 0.0
  %5495 = vmatpush2.xpose.msra.mxu0 0.0
  %5496 = vmatprep.subr.mxu0 0.0
  %5497 = vmatpush2.xpose.msra.mxu0 0.0
  %5498 = vmatprep.subr.mxu0 0.0
  %5499 = vmatpush2.xpose.msra.mxu0 0.0
  %5500 = vmatprep.subr.mxu0 0.0
  %5501 = vmatpush2.xpose.msra.mxu0 0.0
  %5502 = vmatprep.subr.mxu0 0.0
  %5503 = vmatpush2.xpose.msra.mxu0 0.0
  %5504 = vmatprep.subr.mxu0 0.0
  %5505 = vmatpush2.xpose.msra.mxu0 0.0
  %5506 = vmatprep.subr.mxu0 0.0
  %5507 = vmatpush2.xpose.msra.mxu0 0.0
  %5508 = vmatprep.subr.mxu0 0.0
  %5509 = vmatpush2.xpose.msra.mxu0 0.0
  %5510 = vmatprep.subr.mxu0 0.0
  %5511 = vmatpush2.xpose.msra.mxu0 0.0
  %5512 = vmatprep.subr.mxu0 0.0
  %5513 = vmatpush2.xpose.msra.mxu0 0.0
  %5514 = vmatprep.subr.mxu0 0.0
  %5515 = vmatpush2.xpose.msra.mxu0 0.0
  %5516 = vmatprep.subr.mxu0 0.0
  %5517 = vmatpush2.xpose.msra.mxu0 0.0
  %5518 = vmatprep.subr.mxu0 0.0
  %5519 = vmatpush2.xpose.msra.mxu0 0.0
  %5520 = vmatprep.subr.mxu0 0.0
  %5521 = vmatpush2.xpose.msra.mxu0 0.0
  %5522 = vmatprep.subr.mxu0 0.0
  %5523 = vmatpush2.xpose.msra.mxu0 0.0
  %5524 = vmatprep.subr.mxu0 0.0
  %5525 = vmatpush2.xpose.msra.mxu0 0.0
  %5526 = vmatprep.mubr.f32.mxu0 0.0
  %5527 = vmatmul.mubr.f32.gmra.mxu0 %v5458
  %v5528 = vpop.f32.mrf.mxu0
  %v5529 = vadd.f32 0.0, %v5528
  %v5530 = vpop.f32.mrf.mxu0
  %5531 = vdwg.mxu0
  %v5532 = vsel %vm4110, %v5529, -inf
  %5533 = vmax.xlane.f32.xlu0 %v5532
  %v5534 = vpop.xlane.xlu0 %5533
  %v5535 = vsub.f32 %v5529, %v5534
  %v5536 = vmul.f32 %v5535, 1.442695
  %v5537 = vpow.pop %v5536
  %v5538 = vsel %vm4110, %v5537, 0.0
  %5539 = vadd.xlane.f32.xlu0 %v5538
  %v5540 = vpop.xlane.xlu0 %5539
  %v5541 = vrcp.pop %v5540
  %v5542 = vmul.f32 %v5537, %v5541
  %v5543 = vsel %vm4110, %v5542, 0.0
  %v5544 = vrot.slane %v5543, 4
  %v5545 = vadd.f32 %v5543, %v5544
  %v5546 = vrot.slane %v5545, 2
  %v5547 = vadd.f32 %v5545, %v5546
  %v5548 = vrot.slane %v5547, 1
  %v5549 = vadd.f32 %v5547, %v5548
  %v5550 = vmul.f32 %v5549, %v4129
  %v5552 = vsel %vm4110, %v5550, 0
  %5554 = vmatprep.subr.mxu0 0.0
  %5555 = vmatpush1.msra.mxu0 0.0
  %5556 = vmatprep.subr.mxu0 0.0
  %5557 = vmatpush1.msra.mxu0 0.0
  %5558 = vmatprep.subr.mxu0 0.0
  %5559 = vmatpush1.msra.mxu0 0.0
  %5560 = vmatprep.subr.mxu0 0.0
  %5561 = vmatpush1.msra.mxu0 0.0
  %5562 = vmatprep.subr.mxu0 0.0
  %5563 = vmatpush1.msra.mxu0 0.0
  %5564 = vmatprep.subr.mxu0 0.0
  %5565 = vmatpush1.msra.mxu0 0.0
  %5566 = vmatprep.subr.mxu0 0.0
  %5567 = vmatpush1.msra.mxu0 0.0
  %5568 = vmatprep.subr.mxu0 0.0
  %5569 = vmatpush1.msra.mxu0 0.0
  %5570 = vmatprep.subr.mxu0 0.0
  %5571 = vmatpush1.msra.mxu0 0.0
  %5572 = vmatprep.subr.mxu0 0.0
  %5573 = vmatpush1.msra.mxu0 0.0
  %5574 = vmatprep.subr.mxu0 0.0
  %5575 = vmatpush1.msra.mxu0 0.0
  %5576 = vmatprep.subr.mxu0 0.0
  %5577 = vmatpush1.msra.mxu0 0.0
  %5578 = vmatprep.subr.mxu0 0.0
  %5579 = vmatpush1.msra.mxu0 0.0
  %5580 = vmatprep.subr.mxu0 0.0
  %5581 = vmatpush1.msra.mxu0 0.0
  %5582 = vmatprep.subr.mxu0 0.0
  %5583 = vmatpush1.msra.mxu0 0.0
  %5584 = vmatprep.subr.mxu0 0.0
  %5585 = vmatpush1.msra.mxu0 %v4024
  %5586 = vmatprep.subr.mxu0 0.0
  %5587 = vmatpush2.msra.mxu0 0.0
  %5588 = vmatprep.subr.mxu0 0.0
  %5589 = vmatpush2.msra.mxu0 0.0
  %5590 = vmatprep.subr.mxu0 0.0
  %5591 = vmatpush2.msra.mxu0 0.0
  %5592 = vmatprep.subr.mxu0 0.0
  %5593 = vmatpush2.msra.mxu0 0.0
  %5594 = vmatprep.subr.mxu0 0.0
  %5595 = vmatpush2.msra.mxu0 0.0
  %5596 = vmatprep.subr.mxu0 0.0
  %5597 = vmatpush2.msra.mxu0 0.0
  %5598 = vmatprep.subr.mxu0 0.0
  %5599 = vmatpush2.msra.mxu0 0.0
  %5600 = vmatprep.subr.mxu0 0.0
  %5601 = vmatpush2.msra.mxu0 0.0
  %5602 = vmatprep.subr.mxu0 0.0
  %5603 = vmatpush2.msra.mxu0 0.0
  %5604 = vmatprep.subr.mxu0 0.0
  %5605 = vmatpush2.msra.mxu0 0.0
  %5606 = vmatprep.subr.mxu0 0.0
  %5607 = vmatpush2.msra.mxu0 0.0
  %5608 = vmatprep.subr.mxu0 0.0
  %5609 = vmatpush2.msra.mxu0 0.0
  %5610 = vmatprep.subr.mxu0 0.0
  %5611 = vmatpush2.msra.mxu0 0.0
  %5612 = vmatprep.subr.mxu0 0.0
  %5613 = vmatpush2.msra.mxu0 0.0
  %5614 = vmatprep.subr.mxu0 0.0
  %5615 = vmatpush2.msra.mxu0 0.0
  %5616 = vmatprep.subr.mxu0 0.0
  %5617 = vmatpush2.msra.mxu0 0.0
  %5618 = vmatprep.mubr.f32.mxu0 0.0
  %5619 = vmatmul.mubr.f32.gmra.mxu0 %v5552
  %v5620 = vpop.f32.mrf.mxu0
  %v5621 = vadd.f32 0.0, %v5620
  %v5622 = vpop.f32.mrf.mxu0
  %5623 = vdwg.mxu0
  %5624 = vrot.lane.b32.xlu0 %v5453, 112
  %v5625 = vpop.permute.xlu0 %5624
  %5626 = vrot.lane.b32.xlu0 %v4022, 48
  %v5627 = vpop.permute.xlu0 %5626
  %v5628 = vsel %vm4033, %v5625, 0
  %v5630 = vsel %vm4033, %v5627, 0
  %5632 = vmatprep.subr.mxu0 0.0
  %5633 = vmatpush1.xpose.msra.mxu0 0.0
  %5634 = vmatprep.subr.mxu0 0.0
  %5635 = vmatpush1.xpose.msra.mxu0 0.0
  %5636 = vmatprep.subr.mxu0 0.0
  %5637 = vmatpush1.xpose.msra.mxu0 0.0
  %5638 = vmatprep.subr.mxu0 0.0
  %5639 = vmatpush1.xpose.msra.mxu0 0.0
  %5640 = vmatprep.subr.mxu0 0.0
  %5641 = vmatpush1.xpose.msra.mxu0 0.0
  %5642 = vmatprep.subr.mxu0 0.0
  %5643 = vmatpush1.xpose.msra.mxu0 0.0
  %5644 = vmatprep.subr.mxu0 0.0
  %5645 = vmatpush1.xpose.msra.mxu0 0.0
  %5646 = vmatprep.subr.mxu0 0.0
  %5647 = vmatpush1.xpose.msra.mxu0 0.0
  %5648 = vmatprep.subr.mxu0 0.0
  %5649 = vmatpush1.xpose.msra.mxu0 0.0
  %5650 = vmatprep.subr.mxu0 0.0
  %5651 = vmatpush1.xpose.msra.mxu0 0.0
  %5652 = vmatprep.subr.mxu0 0.0
  %5653 = vmatpush1.xpose.msra.mxu0 0.0
  %5654 = vmatprep.subr.mxu0 0.0
  %5655 = vmatpush1.xpose.msra.mxu0 0.0
  %5656 = vmatprep.subr.mxu0 0.0
  %5657 = vmatpush1.xpose.msra.mxu0 0.0
  %5658 = vmatprep.subr.mxu0 0.0
  %5659 = vmatpush1.xpose.msra.mxu0 0.0
  %5660 = vmatprep.subr.mxu0 0.0
  %5661 = vmatpush1.xpose.msra.mxu0 0.0
  %5662 = vmatprep.subr.mxu0 0.0
  %5663 = vmatpush1.xpose.msra.mxu0 %v5630
  %5664 = vmatprep.subr.mxu0 0.0
  %5665 = vmatpush2.xpose.msra.mxu0 0.0
  %5666 = vmatprep.subr.mxu0 0.0
  %5667 = vmatpush2.xpose.msra.mxu0 0.0
  %5668 = vmatprep.subr.mxu0 0.0
  %5669 = vmatpush2.xpose.msra.mxu0 0.0
  %5670 = vmatprep.subr.mxu0 0.0
  %5671 = vmatpush2.xpose.msra.mxu0 0.0
  %5672 = vmatprep.subr.mxu0 0.0
  %5673 = vmatpush2.xpose.msra.mxu0 0.0
  %5674 = vmatprep.subr.mxu0 0.0
  %5675 = vmatpush2.xpose.msra.mxu0 0.0
  %5676 = vmatprep.subr.mxu0 0.0
  %5677 = vmatpush2.xpose.msra.mxu0 0.0
  %5678 = vmatprep.subr.mxu0 0.0
  %5679 = vmatpush2.xpose.msra.mxu0 0.0
  %5680 = vmatprep.subr.mxu0 0.0
  %5681 = vmatpush2.xpose.msra.mxu0 0.0
  %5682 = vmatprep.subr.mxu0 0.0
  %5683 = vmatpush2.xpose.msra.mxu0 0.0
  %5684 = vmatprep.subr.mxu0 0.0
  %5685 = vmatpush2.xpose.msra.mxu0 0.0
  %5686 = vmatprep.subr.mxu0 0.0
  %5687 = vmatpush2.xpose.msra.mxu0 0.0
  %5688 = vmatprep.subr.mxu0 0.0
  %5689 = vmatpush2.xpose.msra.mxu0 0.0
  %5690 = vmatprep.subr.mxu0 0.0
  %5691 = vmatpush2.xpose.msra.mxu0 0.0
  %5692 = vmatprep.subr.mxu0 0.0
  %5693 = vmatpush2.xpose.msra.mxu0 0.0
  %5694 = vmatprep.subr.mxu0 0.0
  %5695 = vmatpush2.xpose.msra.mxu0 0.0
  %5696 = vmatprep.mubr.f32.mxu0 0.0
  %5697 = vmatmul.mubr.f32.gmra.mxu0 %v5628
  %v5698 = vpop.f32.mrf.mxu0
  %v5699 = vadd.f32 0.0, %v5698
  %v5700 = vpop.f32.mrf.mxu0
  %5701 = vdwg.mxu0
  %v5702 = vsel %vm4110, %v5699, -inf
  %5703 = vmax.xlane.f32.xlu0 %v5702
  %v5704 = vpop.xlane.xlu0 %5703
  %v5705 = vsub.f32 %v5699, %v5704
  %v5706 = vmul.f32 %v5705, 1.442695
  %v5707 = vpow.pop %v5706
  %v5708 = vsel %vm4110, %v5707, 0.0
  %5709 = vadd.xlane.f32.xlu0 %v5708
  %v5710 = vpop.xlane.xlu0 %5709
  %v5711 = vrcp.pop %v5710
  %v5712 = vmul.f32 %v5707, %v5711
  %v5713 = vsel %vm4110, %v5712, 0.0
  %v5714 = vrot.slane %v5713, 4
  %v5715 = vadd.f32 %v5713, %v5714
  %v5716 = vrot.slane %v5715, 2
  %v5717 = vadd.f32 %v5715, %v5716
  %v5718 = vrot.slane %v5717, 1
  %v5719 = vadd.f32 %v5717, %v5718
  %v5720 = vmul.f32 %v5719, %v4129
  %5722 = vrot.lane.b32.xlu0 %v4024, 112
  %v5723 = vpop.permute.xlu0 %5722
  %v5726 = vsel %vm4110, %v5720, 0
  %5728 = vmatprep.subr.mxu0 0.0
  %5729 = vmatpush1.msra.mxu0 0.0
  %5730 = vmatprep.subr.mxu0 0.0
  %5731 = vmatpush1.msra.mxu0 0.0
  %5732 = vmatprep.subr.mxu0 0.0
  %5733 = vmatpush1.msra.mxu0 0.0
  %5734 = vmatprep.subr.mxu0 0.0
  %5735 = vmatpush1.msra.mxu0 0.0
  %5736 = vmatprep.subr.mxu0 0.0
  %5737 = vmatpush1.msra.mxu0 0.0
  %5738 = vmatprep.subr.mxu0 0.0
  %5739 = vmatpush1.msra.mxu0 0.0
  %5740 = vmatprep.subr.mxu0 0.0
  %5741 = vmatpush1.msra.mxu0 0.0
  %5742 = vmatprep.subr.mxu0 0.0
  %5743 = vmatpush1.msra.mxu0 0.0
  %5744 = vmatprep.subr.mxu0 0.0
  %5745 = vmatpush1.msra.mxu0 0.0
  %5746 = vmatprep.subr.mxu0 0.0
  %5747 = vmatpush1.msra.mxu0 0.0
  %5748 = vmatprep.subr.mxu0 0.0
  %5749 = vmatpush1.msra.mxu0 0.0
  %5750 = vmatprep.subr.mxu0 0.0
  %5751 = vmatpush1.msra.mxu0 0.0
  %5752 = vmatprep.subr.mxu0 0.0
  %5753 = vmatpush1.msra.mxu0 0.0
  %5754 = vmatprep.subr.mxu0 0.0
  %5755 = vmatpush1.msra.mxu0 0.0
  %5756 = vmatprep.subr.mxu0 0.0
  %5757 = vmatpush1.msra.mxu0 0.0
  %5758 = vmatprep.subr.mxu0 0.0
  %5759 = vmatpush1.msra.mxu0 %v5723
  %5760 = vmatprep.subr.mxu0 0.0
  %5761 = vmatpush2.msra.mxu0 0.0
  %5762 = vmatprep.subr.mxu0 0.0
  %5763 = vmatpush2.msra.mxu0 0.0
  %5764 = vmatprep.subr.mxu0 0.0
  %5765 = vmatpush2.msra.mxu0 0.0
  %5766 = vmatprep.subr.mxu0 0.0
  %5767 = vmatpush2.msra.mxu0 0.0
  %5768 = vmatprep.subr.mxu0 0.0
  %5769 = vmatpush2.msra.mxu0 0.0
  %5770 = vmatprep.subr.mxu0 0.0
  %5771 = vmatpush2.msra.mxu0 0.0
  %5772 = vmatprep.subr.mxu0 0.0
  %5773 = vmatpush2.msra.mxu0 0.0
  %5774 = vmatprep.subr.mxu0 0.0
  %5775 = vmatpush2.msra.mxu0 0.0
  %5776 = vmatprep.subr.mxu0 0.0
  %5777 = vmatpush2.msra.mxu0 0.0
  %5778 = vmatprep.subr.mxu0 0.0
  %5779 = vmatpush2.msra.mxu0 0.0
  %5780 = vmatprep.subr.mxu0 0.0
  %5781 = vmatpush2.msra.mxu0 0.0
  %5782 = vmatprep.subr.mxu0 0.0
  %5783 = vmatpush2.msra.mxu0 0.0
  %5784 = vmatprep.subr.mxu0 0.0
  %5785 = vmatpush2.msra.mxu0 0.0
  %5786 = vmatprep.subr.mxu0 0.0
  %5787 = vmatpush2.msra.mxu0 0.0
  %5788 = vmatprep.subr.mxu0 0.0
  %5789 = vmatpush2.msra.mxu0 0.0
  %5790 = vmatprep.subr.mxu0 0.0
  %5791 = vmatpush2.msra.mxu0 0.0
  %5792 = vmatprep.mubr.f32.mxu0 0.0
  %5793 = vmatmul.mubr.f32.gmra.mxu0 %v5726
  %v5794 = vpop.f32.mrf.mxu0
  %v5795 = vadd.f32 0.0, %v5794
  %v5796 = vpop.f32.mrf.mxu0
  %5797 = vdwg.mxu0
  %5798 = vrot.lane.b32.xlu0 %v5453, 96
  %v5799 = vpop.permute.xlu0 %5798
  %5800 = vrot.lane.b32.xlu0 %v4022, 32
  %v5801 = vpop.permute.xlu0 %5800
  %v5802 = vsel %vm4033, %v5799, 0
  %v5804 = vsel %vm4033, %v5801, 0
  %5806 = vmatprep.subr.mxu0 0.0
  %5807 = vmatpush1.xpose.msra.mxu0 0.0
  %5808 = vmatprep.subr.mxu0 0.0
  %5809 = vmatpush1.xpose.msra.mxu0 0.0
  %5810 = vmatprep.subr.mxu0 0.0
  %5811 = vmatpush1.xpose.msra.mxu0 0.0
  %5812 = vmatprep.subr.mxu0 0.0
  %5813 = vmatpush1.xpose.msra.mxu0 0.0
  %5814 = vmatprep.subr.mxu0 0.0
  %5815 = vmatpush1.xpose.msra.mxu0 0.0
  %5816 = vmatprep.subr.mxu0 0.0
  %5817 = vmatpush1.xpose.msra.mxu0 0.0
  %5818 = vmatprep.subr.mxu0 0.0
  %5819 = vmatpush1.xpose.msra.mxu0 0.0
  %5820 = vmatprep.subr.mxu0 0.0
  %5821 = vmatpush1.xpose.msra.mxu0 0.0
  %5822 = vmatprep.subr.mxu0 0.0
  %5823 = vmatpush1.xpose.msra.mxu0 0.0
  %5824 = vmatprep.subr.mxu0 0.0
  %5825 = vmatpush1.xpose.msra.mxu0 0.0
  %5826 = vmatprep.subr.mxu0 0.0
  %5827 = vmatpush1.xpose.msra.mxu0 0.0
  %5828 = vmatprep.subr.mxu0 0.0
  %5829 = vmatpush1.xpose.msra.mxu0 0.0
  %5830 = vmatprep.subr.mxu0 0.0
  %5831 = vmatpush1.xpose.msra.mxu0 0.0
  %5832 = vmatprep.subr.mxu0 0.0
  %5833 = vmatpush1.xpose.msra.mxu0 0.0
  %5834 = vmatprep.subr.mxu0 0.0
  %5835 = vmatpush1.xpose.msra.mxu0 0.0
  %5836 = vmatprep.subr.mxu0 0.0
  %5837 = vmatpush1.xpose.msra.mxu0 %v5804
  %5838 = vmatprep.subr.mxu0 0.0
  %5839 = vmatpush2.xpose.msra.mxu0 0.0
  %5840 = vmatprep.subr.mxu0 0.0
  %5841 = vmatpush2.xpose.msra.mxu0 0.0
  %5842 = vmatprep.subr.mxu0 0.0
  %5843 = vmatpush2.xpose.msra.mxu0 0.0
  %5844 = vmatprep.subr.mxu0 0.0
  %5845 = vmatpush2.xpose.msra.mxu0 0.0
  %5846 = vmatprep.subr.mxu0 0.0
  %5847 = vmatpush2.xpose.msra.mxu0 0.0
  %5848 = vmatprep.subr.mxu0 0.0
  %5849 = vmatpush2.xpose.msra.mxu0 0.0
  %5850 = vmatprep.subr.mxu0 0.0
  %5851 = vmatpush2.xpose.msra.mxu0 0.0
  %5852 = vmatprep.subr.mxu0 0.0
  %5853 = vmatpush2.xpose.msra.mxu0 0.0
  %5854 = vmatprep.subr.mxu0 0.0
  %5855 = vmatpush2.xpose.msra.mxu0 0.0
  %5856 = vmatprep.subr.mxu0 0.0
  %5857 = vmatpush2.xpose.msra.mxu0 0.0
  %5858 = vmatprep.subr.mxu0 0.0
  %5859 = vmatpush2.xpose.msra.mxu0 0.0
  %5860 = vmatprep.subr.mxu0 0.0
  %5861 = vmatpush2.xpose.msra.mxu0 0.0
  %5862 = vmatprep.subr.mxu0 0.0
  %5863 = vmatpush2.xpose.msra.mxu0 0.0
  %5864 = vmatprep.subr.mxu0 0.0
  %5865 = vmatpush2.xpose.msra.mxu0 0.0
  %5866 = vmatprep.subr.mxu0 0.0
  %5867 = vmatpush2.xpose.msra.mxu0 0.0
  %5868 = vmatprep.subr.mxu0 0.0
  %5869 = vmatpush2.xpose.msra.mxu0 0.0
  %5870 = vmatprep.mubr.f32.mxu0 0.0
  %5871 = vmatmul.mubr.f32.gmra.mxu0 %v5802
  %v5872 = vpop.f32.mrf.mxu0
  %v5873 = vadd.f32 0.0, %v5872
  %v5874 = vpop.f32.mrf.mxu0
  %5875 = vdwg.mxu0
  %v5876 = vsel %vm4110, %v5873, -inf
  %5877 = vmax.xlane.f32.xlu0 %v5876
  %v5878 = vpop.xlane.xlu0 %5877
  %v5879 = vsub.f32 %v5873, %v5878
  %v5880 = vmul.f32 %v5879, 1.442695
  %v5881 = vpow.pop %v5880
  %v5882 = vsel %vm4110, %v5881, 0.0
  %5883 = vadd.xlane.f32.xlu0 %v5882
  %v5884 = vpop.xlane.xlu0 %5883
  %v5885 = vrcp.pop %v5884
  %v5886 = vmul.f32 %v5881, %v5885
  %v5887 = vsel %vm4110, %v5886, 0.0
  %v5888 = vrot.slane %v5887, 4
  %v5889 = vadd.f32 %v5887, %v5888
  %v5890 = vrot.slane %v5889, 2
  %v5891 = vadd.f32 %v5889, %v5890
  %v5892 = vrot.slane %v5891, 1
  %v5893 = vadd.f32 %v5891, %v5892
  %v5894 = vmul.f32 %v5893, %v4129
  %5895 = vrot.lane.b32.xlu0 %v4024, 96
  %v5896 = vpop.permute.xlu0 %5895
  %v5899 = vsel %vm4110, %v5894, 0
  %5901 = vmatprep.subr.mxu0 0.0
  %5902 = vmatpush1.msra.mxu0 0.0
  %5903 = vmatprep.subr.mxu0 0.0
  %5904 = vmatpush1.msra.mxu0 0.0
  %5905 = vmatprep.subr.mxu0 0.0
  %5906 = vmatpush1.msra.mxu0 0.0
  %5907 = vmatprep.subr.mxu0 0.0
  %5908 = vmatpush1.msra.mxu0 0.0
  %5909 = vmatprep.subr.mxu0 0.0
  %5910 = vmatpush1.msra.mxu0 0.0
  %5911 = vmatprep.subr.mxu0 0.0
  %5912 = vmatpush1.msra.mxu0 0.0
  %5913 = vmatprep.subr.mxu0 0.0
  %5914 = vmatpush1.msra.mxu0 0.0
  %5915 = vmatprep.subr.mxu0 0.0
  %5916 = vmatpush1.msra.mxu0 0.0
  %5917 = vmatprep.subr.mxu0 0.0
  %5918 = vmatpush1.msra.mxu0 0.0
  %5919 = vmatprep.subr.mxu0 0.0
  %5920 = vmatpush1.msra.mxu0 0.0
  %5921 = vmatprep.subr.mxu0 0.0
  %5922 = vmatpush1.msra.mxu0 0.0
  %5923 = vmatprep.subr.mxu0 0.0
  %5924 = vmatpush1.msra.mxu0 0.0
  %5925 = vmatprep.subr.mxu0 0.0
  %5926 = vmatpush1.msra.mxu0 0.0
  %5927 = vmatprep.subr.mxu0 0.0
  %5928 = vmatpush1.msra.mxu0 0.0
  %5929 = vmatprep.subr.mxu0 0.0
  %5930 = vmatpush1.msra.mxu0 0.0
  %5931 = vmatprep.subr.mxu0 0.0
  %5932 = vmatpush1.msra.mxu0 %v5896
  %5933 = vmatprep.subr.mxu0 0.0
  %5934 = vmatpush2.msra.mxu0 0.0
  %5935 = vmatprep.subr.mxu0 0.0
  %5936 = vmatpush2.msra.mxu0 0.0
  %5937 = vmatprep.subr.mxu0 0.0
  %5938 = vmatpush2.msra.mxu0 0.0
  %5939 = vmatprep.subr.mxu0 0.0
  %5940 = vmatpush2.msra.mxu0 0.0
  %5941 = vmatprep.subr.mxu0 0.0
  %5942 = vmatpush2.msra.mxu0 0.0
  %5943 = vmatprep.subr.mxu0 0.0
  %5944 = vmatpush2.msra.mxu0 0.0
  %5945 = vmatprep.subr.mxu0 0.0
  %5946 = vmatpush2.msra.mxu0 0.0
  %5947 = vmatprep.subr.mxu0 0.0
  %5948 = vmatpush2.msra.mxu0 0.0
  %5949 = vmatprep.subr.mxu0 0.0
  %5950 = vmatpush2.msra.mxu0 0.0
  %5951 = vmatprep.subr.mxu0 0.0
  %5952 = vmatpush2.msra.mxu0 0.0
  %5953 = vmatprep.subr.mxu0 0.0
  %5954 = vmatpush2.msra.mxu0 0.0
  %5955 = vmatprep.subr.mxu0 0.0
  %5956 = vmatpush2.msra.mxu0 0.0
  %5957 = vmatprep.subr.mxu0 0.0
  %5958 = vmatpush2.msra.mxu0 0.0
  %5959 = vmatprep.subr.mxu0 0.0
  %5960 = vmatpush2.msra.mxu0 0.0
  %5961 = vmatprep.subr.mxu0 0.0
  %5962 = vmatpush2.msra.mxu0 0.0
  %5963 = vmatprep.subr.mxu0 0.0
  %5964 = vmatpush2.msra.mxu0 0.0
  %5965 = vmatprep.mubr.f32.mxu0 0.0
  %5966 = vmatmul.mubr.f32.gmra.mxu0 %v5899
  %v5967 = vpop.f32.mrf.mxu0
  %v5968 = vadd.f32 0.0, %v5967
  %v5969 = vpop.f32.mrf.mxu0
  %5970 = vdwg.mxu0
  %5971 = vrot.lane.b32.xlu0 %v5453, 80
  %v5972 = vpop.permute.xlu0 %5971
  %5973 = vrot.lane.b32.xlu0 %v4022, 16
  %v5974 = vpop.permute.xlu0 %5973
  %v5975 = vsel %vm4033, %v5972, 0
  %v5977 = vsel %vm4033, %v5974, 0
  %5979 = vmatprep.subr.mxu0 0.0
  %5980 = vmatpush1.xpose.msra.mxu0 0.0
  %5981 = vmatprep.subr.mxu0 0.0
  %5982 = vmatpush1.xpose.msra.mxu0 0.0
  %5983 = vmatprep.subr.mxu0 0.0
  %5984 = vmatpush1.xpose.msra.mxu0 0.0
  %5985 = vmatprep.subr.mxu0 0.0
  %5986 = vmatpush1.xpose.msra.mxu0 0.0
  %5987 = vmatprep.subr.mxu0 0.0
  %5988 = vmatpush1.xpose.msra.mxu0 0.0
  %5989 = vmatprep.subr.mxu0 0.0
  %5990 = vmatpush1.xpose.msra.mxu0 0.0
  %5991 = vmatprep.subr.mxu0 0.0
  %5992 = vmatpush1.xpose.msra.mxu0 0.0
  %5993 = vmatprep.subr.mxu0 0.0
  %5994 = vmatpush1.xpose.msra.mxu0 0.0
  %5995 = vmatprep.subr.mxu0 0.0
  %5996 = vmatpush1.xpose.msra.mxu0 0.0
  %5997 = vmatprep.subr.mxu0 0.0
  %5998 = vmatpush1.xpose.msra.mxu0 0.0
  %5999 = vmatprep.subr.mxu0 0.0
  %6000 = vmatpush1.xpose.msra.mxu0 0.0
  %6001 = vmatprep.subr.mxu0 0.0
  %6002 = vmatpush1.xpose.msra.mxu0 0.0
  %6003 = vmatprep.subr.mxu0 0.0
  %6004 = vmatpush1.xpose.msra.mxu0 0.0
  %6005 = vmatprep.subr.mxu0 0.0
  %6006 = vmatpush1.xpose.msra.mxu0 0.0
  %6007 = vmatprep.subr.mxu0 0.0
  %6008 = vmatpush1.xpose.msra.mxu0 0.0
  %6009 = vmatprep.subr.mxu0 0.0
  %6010 = vmatpush1.xpose.msra.mxu0 %v5977
  %6011 = vmatprep.subr.mxu0 0.0
  %6012 = vmatpush2.xpose.msra.mxu0 0.0
  %6013 = vmatprep.subr.mxu0 0.0
  %6014 = vmatpush2.xpose.msra.mxu0 0.0
  %6015 = vmatprep.subr.mxu0 0.0
  %6016 = vmatpush2.xpose.msra.mxu0 0.0
  %6017 = vmatprep.subr.mxu0 0.0
  %6018 = vmatpush2.xpose.msra.mxu0 0.0
  %6019 = vmatprep.subr.mxu0 0.0
  %6020 = vmatpush2.xpose.msra.mxu0 0.0
  %6021 = vmatprep.subr.mxu0 0.0
  %6022 = vmatpush2.xpose.msra.mxu0 0.0
  %6023 = vmatprep.subr.mxu0 0.0
  %6024 = vmatpush2.xpose.msra.mxu0 0.0
  %6025 = vmatprep.subr.mxu0 0.0
  %6026 = vmatpush2.xpose.msra.mxu0 0.0
  %6027 = vmatprep.subr.mxu0 0.0
  %6028 = vmatpush2.xpose.msra.mxu0 0.0
  %6029 = vmatprep.subr.mxu0 0.0
  %6030 = vmatpush2.xpose.msra.mxu0 0.0
  %6031 = vmatprep.subr.mxu0 0.0
  %6032 = vmatpush2.xpose.msra.mxu0 0.0
  %6033 = vmatprep.subr.mxu0 0.0
  %6034 = vmatpush2.xpose.msra.mxu0 0.0
  %6035 = vmatprep.subr.mxu0 0.0
  %6036 = vmatpush2.xpose.msra.mxu0 0.0
  %6037 = vmatprep.subr.mxu0 0.0
  %6038 = vmatpush2.xpose.msra.mxu0 0.0
  %6039 = vmatprep.subr.mxu0 0.0
  %6040 = vmatpush2.xpose.msra.mxu0 0.0
  %6041 = vmatprep.subr.mxu0 0.0
  %6042 = vmatpush2.xpose.msra.mxu0 0.0
  %6043 = vmatprep.mubr.f32.mxu0 0.0
  %6044 = vmatmul.mubr.f32.gmra.mxu0 %v5975
  %v6045 = vpop.f32.mrf.mxu0
  %v6046 = vadd.f32 0.0, %v6045
  %v6047 = vpop.f32.mrf.mxu0
  %6048 = vdwg.mxu0
  %v6049 = vsel %vm4110, %v6046, -inf
  %6050 = vmax.xlane.f32.xlu0 %v6049
  %v6051 = vpop.xlane.xlu0 %6050
  %v6052 = vsub.f32 %v6046, %v6051
  %v6053 = vmul.f32 %v6052, 1.442695
  %v6054 = vpow.pop %v6053
  %v6055 = vsel %vm4110, %v6054, 0.0
  %6056 = vadd.xlane.f32.xlu0 %v6055
  %v6057 = vpop.xlane.xlu0 %6056
  %v6058 = vrcp.pop %v6057
  %v6059 = vmul.f32 %v6054, %v6058
  %v6060 = vsel %vm4110, %v6059, 0.0
  %v6061 = vrot.slane %v6060, 4
  %v6062 = vadd.f32 %v6060, %v6061
  %v6063 = vrot.slane %v6062, 2
  %v6064 = vadd.f32 %v6062, %v6063
  %v6065 = vrot.slane %v6064, 1
  %v6066 = vadd.f32 %v6064, %v6065
  %v6067 = vmul.f32 %v6066, %v4129
  %6068 = vrot.lane.b32.xlu0 %v4024, 80
  %v6069 = vpop.permute.xlu0 %6068
  %v6072 = vsel %vm4110, %v6067, 0
  %6074 = vmatprep.subr.mxu0 0.0
  %6075 = vmatpush1.msra.mxu0 0.0
  %6076 = vmatprep.subr.mxu0 0.0
  %6077 = vmatpush1.msra.mxu0 0.0
  %6078 = vmatprep.subr.mxu0 0.0
  %6079 = vmatpush1.msra.mxu0 0.0
  %6080 = vmatprep.subr.mxu0 0.0
  %6081 = vmatpush1.msra.mxu0 0.0
  %6082 = vmatprep.subr.mxu0 0.0
  %6083 = vmatpush1.msra.mxu0 0.0
  %6084 = vmatprep.subr.mxu0 0.0
  %6085 = vmatpush1.msra.mxu0 0.0
  %6086 = vmatprep.subr.mxu0 0.0
  %6087 = vmatpush1.msra.mxu0 0.0
  %6088 = vmatprep.subr.mxu0 0.0
  %6089 = vmatpush1.msra.mxu0 0.0
  %6090 = vmatprep.subr.mxu0 0.0
  %6091 = vmatpush1.msra.mxu0 0.0
  %6092 = vmatprep.subr.mxu0 0.0
  %6093 = vmatpush1.msra.mxu0 0.0
  %6094 = vmatprep.subr.mxu0 0.0
  %6095 = vmatpush1.msra.mxu0 0.0
  %6096 = vmatprep.subr.mxu0 0.0
  %6097 = vmatpush1.msra.mxu0 0.0
  %6098 = vmatprep.subr.mxu0 0.0
  %6099 = vmatpush1.msra.mxu0 0.0
  %6100 = vmatprep.subr.mxu0 0.0
  %6101 = vmatpush1.msra.mxu0 0.0
  %6102 = vmatprep.subr.mxu0 0.0
  %6103 = vmatpush1.msra.mxu0 0.0
  %6104 = vmatprep.subr.mxu0 0.0
  %6105 = vmatpush1.msra.mxu0 %v6069
  %6106 = vmatprep.subr.mxu0 0.0
  %6107 = vmatpush2.msra.mxu0 0.0
  %6108 = vmatprep.subr.mxu0 0.0
  %6109 = vmatpush2.msra.mxu0 0.0
  %6110 = vmatprep.subr.mxu0 0.0
  %6111 = vmatpush2.msra.mxu0 0.0
  %6112 = vmatprep.subr.mxu0 0.0
  %6113 = vmatpush2.msra.mxu0 0.0
  %6114 = vmatprep.subr.mxu0 0.0
  %6115 = vmatpush2.msra.mxu0 0.0
  %6116 = vmatprep.subr.mxu0 0.0
  %6117 = vmatpush2.msra.mxu0 0.0
  %6118 = vmatprep.subr.mxu0 0.0
  %6119 = vmatpush2.msra.mxu0 0.0
  %6120 = vmatprep.subr.mxu0 0.0
  %6121 = vmatpush2.msra.mxu0 0.0
  %6122 = vmatprep.subr.mxu0 0.0
  %6123 = vmatpush2.msra.mxu0 0.0
  %6124 = vmatprep.subr.mxu0 0.0
  %6125 = vmatpush2.msra.mxu0 0.0
  %6126 = vmatprep.subr.mxu0 0.0
  %6127 = vmatpush2.msra.mxu0 0.0
  %6128 = vmatprep.subr.mxu0 0.0
  %6129 = vmatpush2.msra.mxu0 0.0
  %6130 = vmatprep.subr.mxu0 0.0
  %6131 = vmatpush2.msra.mxu0 0.0
  %6132 = vmatprep.subr.mxu0 0.0
  %6133 = vmatpush2.msra.mxu0 0.0
  %6134 = vmatprep.subr.mxu0 0.0
  %6135 = vmatpush2.msra.mxu0 0.0
  %6136 = vmatprep.subr.mxu0 0.0
  %6137 = vmatpush2.msra.mxu0 0.0
  %6138 = vmatprep.mubr.f32.mxu0 0.0
  %6139 = vmatmul.mubr.f32.gmra.mxu0 %v6072
  %v6140 = vpop.f32.mrf.mxu0
  %v6141 = vadd.f32 0.0, %v6140
  %v6142 = vpop.f32.mrf.mxu0
  %6143 = vdwg.mxu0
  %6145 = vrot.lane.b32.xlu0 %v5795, 16
  %v6146 = vpop.permute.xlu0 %6145
  %6149 = vrot.lane.b32.xlu0 %v5968, 32
  %v6150 = vpop.permute.xlu0 %6149
  %6153 = vrot.lane.b32.xlu0 %v6141, 48
  %v6154 = vpop.permute.xlu0 %6153
  %v6156 = vsel %vm4033, %v5621, %v6146
  %v6157 = vsel %vm103, %v6156, %v6150
  %v6158 = vsel %vm4740, %v6157, %v6154
  %v6159 = vmul.f32 %v3839, 0.25
  %6161 = vrot.lane.b32.xlu0 %v4028, 64
  %v6162 = vpop.permute.xlu0 %6161
  %v6164 = vsel %vm4033, %v6159, 0
  %v6166 = vsel %vm4033, %v6162, 0
  %6168 = vmatprep.subr.mxu0 0.0
  %6169 = vmatpush1.xpose.msra.mxu0 0.0
  %6170 = vmatprep.subr.mxu0 0.0
  %6171 = vmatpush1.xpose.msra.mxu0 0.0
  %6172 = vmatprep.subr.mxu0 0.0
  %6173 = vmatpush1.xpose.msra.mxu0 0.0
  %6174 = vmatprep.subr.mxu0 0.0
  %6175 = vmatpush1.xpose.msra.mxu0 0.0
  %6176 = vmatprep.subr.mxu0 0.0
  %6177 = vmatpush1.xpose.msra.mxu0 0.0
  %6178 = vmatprep.subr.mxu0 0.0
  %6179 = vmatpush1.xpose.msra.mxu0 0.0
  %6180 = vmatprep.subr.mxu0 0.0
  %6181 = vmatpush1.xpose.msra.mxu0 0.0
  %6182 = vmatprep.subr.mxu0 0.0
  %6183 = vmatpush1.xpose.msra.mxu0 0.0
  %6184 = vmatprep.subr.mxu0 0.0
  %6185 = vmatpush1.xpose.msra.mxu0 0.0
  %6186 = vmatprep.subr.mxu0 0.0
  %6187 = vmatpush1.xpose.msra.mxu0 0.0
  %6188 = vmatprep.subr.mxu0 0.0
  %6189 = vmatpush1.xpose.msra.mxu0 0.0
  %6190 = vmatprep.subr.mxu0 0.0
  %6191 = vmatpush1.xpose.msra.mxu0 0.0
  %6192 = vmatprep.subr.mxu0 0.0
  %6193 = vmatpush1.xpose.msra.mxu0 0.0
  %6194 = vmatprep.subr.mxu0 0.0
  %6195 = vmatpush1.xpose.msra.mxu0 0.0
  %6196 = vmatprep.subr.mxu0 0.0
  %6197 = vmatpush1.xpose.msra.mxu0 0.0
  %6198 = vmatprep.subr.mxu0 0.0
  %6199 = vmatpush1.xpose.msra.mxu0 %v6166
  %6200 = vmatprep.subr.mxu0 0.0
  %6201 = vmatpush2.xpose.msra.mxu0 0.0
  %6202 = vmatprep.subr.mxu0 0.0
  %6203 = vmatpush2.xpose.msra.mxu0 0.0
  %6204 = vmatprep.subr.mxu0 0.0
  %6205 = vmatpush2.xpose.msra.mxu0 0.0
  %6206 = vmatprep.subr.mxu0 0.0
  %6207 = vmatpush2.xpose.msra.mxu0 0.0
  %6208 = vmatprep.subr.mxu0 0.0
  %6209 = vmatpush2.xpose.msra.mxu0 0.0
  %6210 = vmatprep.subr.mxu0 0.0
  %6211 = vmatpush2.xpose.msra.mxu0 0.0
  %6212 = vmatprep.subr.mxu0 0.0
  %6213 = vmatpush2.xpose.msra.mxu0 0.0
  %6214 = vmatprep.subr.mxu0 0.0
  %6215 = vmatpush2.xpose.msra.mxu0 0.0
  %6216 = vmatprep.subr.mxu0 0.0
  %6217 = vmatpush2.xpose.msra.mxu0 0.0
  %6218 = vmatprep.subr.mxu0 0.0
  %6219 = vmatpush2.xpose.msra.mxu0 0.0
  %6220 = vmatprep.subr.mxu0 0.0
  %6221 = vmatpush2.xpose.msra.mxu0 0.0
  %6222 = vmatprep.subr.mxu0 0.0
  %6223 = vmatpush2.xpose.msra.mxu0 0.0
  %6224 = vmatprep.subr.mxu0 0.0
  %6225 = vmatpush2.xpose.msra.mxu0 0.0
  %6226 = vmatprep.subr.mxu0 0.0
  %6227 = vmatpush2.xpose.msra.mxu0 0.0
  %6228 = vmatprep.subr.mxu0 0.0
  %6229 = vmatpush2.xpose.msra.mxu0 0.0
  %6230 = vmatprep.subr.mxu0 0.0
  %6231 = vmatpush2.xpose.msra.mxu0 0.0
  %6232 = vmatprep.mubr.f32.mxu0 0.0
  %6233 = vmatmul.mubr.f32.gmra.mxu0 %v6164
  %v6234 = vpop.f32.mrf.mxu0
  %v6235 = vadd.f32 0.0, %v6234
  %v6236 = vpop.f32.mrf.mxu0
  %6237 = vdwg.mxu0
  %v6238 = vsel %vm4110, %v6235, -inf
  %6239 = vmax.xlane.f32.xlu0 %v6238
  %v6240 = vpop.xlane.xlu0 %6239
  %v6241 = vsub.f32 %v6235, %v6240
  %v6242 = vmul.f32 %v6241, 1.442695
  %v6243 = vpow.pop %v6242
  %v6244 = vsel %vm4110, %v6243, 0.0
  %6245 = vadd.xlane.f32.xlu0 %v6244
  %v6246 = vpop.xlane.xlu0 %6245
  %v6247 = vrcp.pop %v6246
  %v6248 = vmul.f32 %v6243, %v6247
  %v6249 = vsel %vm4110, %v6248, 0.0
  %v6250 = vrot.slane %v6249, 4
  %v6251 = vadd.f32 %v6249, %v6250
  %v6252 = vrot.slane %v6251, 2
  %v6253 = vadd.f32 %v6251, %v6252
  %v6254 = vrot.slane %v6253, 1
  %v6255 = vadd.f32 %v6253, %v6254
  %v6256 = vmul.f32 %v6255, %v4129
  %v6258 = vsel %vm4110, %v6256, 0
  %6260 = vmatprep.subr.mxu0 0.0
  %6261 = vmatpush1.msra.mxu0 0.0
  %6262 = vmatprep.subr.mxu0 0.0
  %6263 = vmatpush1.msra.mxu0 0.0
  %6264 = vmatprep.subr.mxu0 0.0
  %6265 = vmatpush1.msra.mxu0 0.0
  %6266 = vmatprep.subr.mxu0 0.0
  %6267 = vmatpush1.msra.mxu0 0.0
  %6268 = vmatprep.subr.mxu0 0.0
  %6269 = vmatpush1.msra.mxu0 0.0
  %6270 = vmatprep.subr.mxu0 0.0
  %6271 = vmatpush1.msra.mxu0 0.0
  %6272 = vmatprep.subr.mxu0 0.0
  %6273 = vmatpush1.msra.mxu0 0.0
  %6274 = vmatprep.subr.mxu0 0.0
  %6275 = vmatpush1.msra.mxu0 0.0
  %6276 = vmatprep.subr.mxu0 0.0
  %6277 = vmatpush1.msra.mxu0 0.0
  %6278 = vmatprep.subr.mxu0 0.0
  %6279 = vmatpush1.msra.mxu0 0.0
  %6280 = vmatprep.subr.mxu0 0.0
  %6281 = vmatpush1.msra.mxu0 0.0
  %6282 = vmatprep.subr.mxu0 0.0
  %6283 = vmatpush1.msra.mxu0 0.0
  %6284 = vmatprep.subr.mxu0 0.0
  %6285 = vmatpush1.msra.mxu0 0.0
  %6286 = vmatprep.subr.mxu0 0.0
  %6287 = vmatpush1.msra.mxu0 0.0
  %6288 = vmatprep.subr.mxu0 0.0
  %6289 = vmatpush1.msra.mxu0 0.0
  %6290 = vmatprep.subr.mxu0 0.0
  %6291 = vmatpush1.msra.mxu0 %v4030
  %6292 = vmatprep.subr.mxu0 0.0
  %6293 = vmatpush2.msra.mxu0 0.0
  %6294 = vmatprep.subr.mxu0 0.0
  %6295 = vmatpush2.msra.mxu0 0.0
  %6296 = vmatprep.subr.mxu0 0.0
  %6297 = vmatpush2.msra.mxu0 0.0
  %6298 = vmatprep.subr.mxu0 0.0
  %6299 = vmatpush2.msra.mxu0 0.0
  %6300 = vmatprep.subr.mxu0 0.0
  %6301 = vmatpush2.msra.mxu0 0.0
  %6302 = vmatprep.subr.mxu0 0.0
  %6303 = vmatpush2.msra.mxu0 0.0
  %6304 = vmatprep.subr.mxu0 0.0
  %6305 = vmatpush2.msra.mxu0 0.0
  %6306 = vmatprep.subr.mxu0 0.0
  %6307 = vmatpush2.msra.mxu0 0.0
  %6308 = vmatprep.subr.mxu0 0.0
  %6309 = vmatpush2.msra.mxu0 0.0
  %6310 = vmatprep.subr.mxu0 0.0
  %6311 = vmatpush2.msra.mxu0 0.0
  %6312 = vmatprep.subr.mxu0 0.0
  %6313 = vmatpush2.msra.mxu0 0.0
  %6314 = vmatprep.subr.mxu0 0.0
  %6315 = vmatpush2.msra.mxu0 0.0
  %6316 = vmatprep.subr.mxu0 0.0
  %6317 = vmatpush2.msra.mxu0 0.0
  %6318 = vmatprep.subr.mxu0 0.0
  %6319 = vmatpush2.msra.mxu0 0.0
  %6320 = vmatprep.subr.mxu0 0.0
  %6321 = vmatpush2.msra.mxu0 0.0
  %6322 = vmatprep.subr.mxu0 0.0
  %6323 = vmatpush2.msra.mxu0 0.0
  %6324 = vmatprep.mubr.f32.mxu0 0.0
  %6325 = vmatmul.mubr.f32.gmra.mxu0 %v6258
  %v6326 = vpop.f32.mrf.mxu0
  %v6327 = vadd.f32 0.0, %v6326
  %v6328 = vpop.f32.mrf.mxu0
  %6329 = vdwg.mxu0
  %6330 = vrot.lane.b32.xlu0 %v6159, 112
  %v6331 = vpop.permute.xlu0 %6330
  %6332 = vrot.lane.b32.xlu0 %v4028, 48
  %v6333 = vpop.permute.xlu0 %6332
  %v6334 = vsel %vm4033, %v6331, 0
  %v6336 = vsel %vm4033, %v6333, 0
  %6338 = vmatprep.subr.mxu0 0.0
  %6339 = vmatpush1.xpose.msra.mxu0 0.0
  %6340 = vmatprep.subr.mxu0 0.0
  %6341 = vmatpush1.xpose.msra.mxu0 0.0
  %6342 = vmatprep.subr.mxu0 0.0
  %6343 = vmatpush1.xpose.msra.mxu0 0.0
  %6344 = vmatprep.subr.mxu0 0.0
  %6345 = vmatpush1.xpose.msra.mxu0 0.0
  %6346 = vmatprep.subr.mxu0 0.0
  %6347 = vmatpush1.xpose.msra.mxu0 0.0
  %6348 = vmatprep.subr.mxu0 0.0
  %6349 = vmatpush1.xpose.msra.mxu0 0.0
  %6350 = vmatprep.subr.mxu0 0.0
  %6351 = vmatpush1.xpose.msra.mxu0 0.0
  %6352 = vmatprep.subr.mxu0 0.0
  %6353 = vmatpush1.xpose.msra.mxu0 0.0
  %6354 = vmatprep.subr.mxu0 0.0
  %6355 = vmatpush1.xpose.msra.mxu0 0.0
  %6356 = vmatprep.subr.mxu0 0.0
  %6357 = vmatpush1.xpose.msra.mxu0 0.0
  %6358 = vmatprep.subr.mxu0 0.0
  %6359 = vmatpush1.xpose.msra.mxu0 0.0
  %6360 = vmatprep.subr.mxu0 0.0
  %6361 = vmatpush1.xpose.msra.mxu0 0.0
  %6362 = vmatprep.subr.mxu0 0.0
  %6363 = vmatpush1.xpose.msra.mxu0 0.0
  %6364 = vmatprep.subr.mxu0 0.0
  %6365 = vmatpush1.xpose.msra.mxu0 0.0
  %6366 = vmatprep.subr.mxu0 0.0
  %6367 = vmatpush1.xpose.msra.mxu0 0.0
  %6368 = vmatprep.subr.mxu0 0.0
  %6369 = vmatpush1.xpose.msra.mxu0 %v6336
  %6370 = vmatprep.subr.mxu0 0.0
  %6371 = vmatpush2.xpose.msra.mxu0 0.0
  %6372 = vmatprep.subr.mxu0 0.0
  %6373 = vmatpush2.xpose.msra.mxu0 0.0
  %6374 = vmatprep.subr.mxu0 0.0
  %6375 = vmatpush2.xpose.msra.mxu0 0.0
  %6376 = vmatprep.subr.mxu0 0.0
  %6377 = vmatpush2.xpose.msra.mxu0 0.0
  %6378 = vmatprep.subr.mxu0 0.0
  %6379 = vmatpush2.xpose.msra.mxu0 0.0
  %6380 = vmatprep.subr.mxu0 0.0
  %6381 = vmatpush2.xpose.msra.mxu0 0.0
  %6382 = vmatprep.subr.mxu0 0.0
  %6383 = vmatpush2.xpose.msra.mxu0 0.0
  %6384 = vmatprep.subr.mxu0 0.0
  %6385 = vmatpush2.xpose.msra.mxu0 0.0
  %6386 = vmatprep.subr.mxu0 0.0
  %6387 = vmatpush2.xpose.msra.mxu0 0.0
  %6388 = vmatprep.subr.mxu0 0.0
  %6389 = vmatpush2.xpose.msra.mxu0 0.0
  %6390 = vmatprep.subr.mxu0 0.0
  %6391 = vmatpush2.xpose.msra.mxu0 0.0
  %6392 = vmatprep.subr.mxu0 0.0
  %6393 = vmatpush2.xpose.msra.mxu0 0.0
  %6394 = vmatprep.subr.mxu0 0.0
  %6395 = vmatpush2.xpose.msra.mxu0 0.0
  %6396 = vmatprep.subr.mxu0 0.0
  %6397 = vmatpush2.xpose.msra.mxu0 0.0
  %6398 = vmatprep.subr.mxu0 0.0
  %6399 = vmatpush2.xpose.msra.mxu0 0.0
  %6400 = vmatprep.subr.mxu0 0.0
  %6401 = vmatpush2.xpose.msra.mxu0 0.0
  %6402 = vmatprep.mubr.f32.mxu0 0.0
  %6403 = vmatmul.mubr.f32.gmra.mxu0 %v6334
  %v6404 = vpop.f32.mrf.mxu0
  %v6405 = vadd.f32 0.0, %v6404
  %v6406 = vpop.f32.mrf.mxu0
  %6407 = vdwg.mxu0
  %v6408 = vsel %vm4110, %v6405, -inf
  %6409 = vmax.xlane.f32.xlu0 %v6408
  %v6410 = vpop.xlane.xlu0 %6409
  %v6411 = vsub.f32 %v6405, %v6410
  %v6412 = vmul.f32 %v6411, 1.442695
  %v6413 = vpow.pop %v6412
  %v6414 = vsel %vm4110, %v6413, 0.0
  %6415 = vadd.xlane.f32.xlu0 %v6414
  %v6416 = vpop.xlane.xlu0 %6415
  %v6417 = vrcp.pop %v6416
  %v6418 = vmul.f32 %v6413, %v6417
  %v6419 = vsel %vm4110, %v6418, 0.0
  %v6420 = vrot.slane %v6419, 4
  %v6421 = vadd.f32 %v6419, %v6420
  %v6422 = vrot.slane %v6421, 2
  %v6423 = vadd.f32 %v6421, %v6422
  %v6424 = vrot.slane %v6423, 1
  %v6425 = vadd.f32 %v6423, %v6424
  %v6426 = vmul.f32 %v6425, %v4129
  %6428 = vrot.lane.b32.xlu0 %v4030, 112
  %v6429 = vpop.permute.xlu0 %6428
  %v6432 = vsel %vm4110, %v6426, 0
  %6434 = vmatprep.subr.mxu0 0.0
  %6435 = vmatpush1.msra.mxu0 0.0
  %6436 = vmatprep.subr.mxu0 0.0
  %6437 = vmatpush1.msra.mxu0 0.0
  %6438 = vmatprep.subr.mxu0 0.0
  %6439 = vmatpush1.msra.mxu0 0.0
  %6440 = vmatprep.subr.mxu0 0.0
  %6441 = vmatpush1.msra.mxu0 0.0
  %6442 = vmatprep.subr.mxu0 0.0
  %6443 = vmatpush1.msra.mxu0 0.0
  %6444 = vmatprep.subr.mxu0 0.0
  %6445 = vmatpush1.msra.mxu0 0.0
  %6446 = vmatprep.subr.mxu0 0.0
  %6447 = vmatpush1.msra.mxu0 0.0
  %6448 = vmatprep.subr.mxu0 0.0
  %6449 = vmatpush1.msra.mxu0 0.0
  %6450 = vmatprep.subr.mxu0 0.0
  %6451 = vmatpush1.msra.mxu0 0.0
  %6452 = vmatprep.subr.mxu0 0.0
  %6453 = vmatpush1.msra.mxu0 0.0
  %6454 = vmatprep.subr.mxu0 0.0
  %6455 = vmatpush1.msra.mxu0 0.0
  %6456 = vmatprep.subr.mxu0 0.0
  %6457 = vmatpush1.msra.mxu0 0.0
  %6458 = vmatprep.subr.mxu0 0.0
  %6459 = vmatpush1.msra.mxu0 0.0
  %6460 = vmatprep.subr.mxu0 0.0
  %6461 = vmatpush1.msra.mxu0 0.0
  %6462 = vmatprep.subr.mxu0 0.0
  %6463 = vmatpush1.msra.mxu0 0.0
  %6464 = vmatprep.subr.mxu0 0.0
  %6465 = vmatpush1.msra.mxu0 %v6429
  %6466 = vmatprep.subr.mxu0 0.0
  %6467 = vmatpush2.msra.mxu0 0.0
  %6468 = vmatprep.subr.mxu0 0.0
  %6469 = vmatpush2.msra.mxu0 0.0
  %6470 = vmatprep.subr.mxu0 0.0
  %6471 = vmatpush2.msra.mxu0 0.0
  %6472 = vmatprep.subr.mxu0 0.0
  %6473 = vmatpush2.msra.mxu0 0.0
  %6474 = vmatprep.subr.mxu0 0.0
  %6475 = vmatpush2.msra.mxu0 0.0
  %6476 = vmatprep.subr.mxu0 0.0
  %6477 = vmatpush2.msra.mxu0 0.0
  %6478 = vmatprep.subr.mxu0 0.0
  %6479 = vmatpush2.msra.mxu0 0.0
  %6480 = vmatprep.subr.mxu0 0.0
  %6481 = vmatpush2.msra.mxu0 0.0
  %6482 = vmatprep.subr.mxu0 0.0
  %6483 = vmatpush2.msra.mxu0 0.0
  %6484 = vmatprep.subr.mxu0 0.0
  %6485 = vmatpush2.msra.mxu0 0.0
  %6486 = vmatprep.subr.mxu0 0.0
  %6487 = vmatpush2.msra.mxu0 0.0
  %6488 = vmatprep.subr.mxu0 0.0
  %6489 = vmatpush2.msra.mxu0 0.0
  %6490 = vmatprep.subr.mxu0 0.0
  %6491 = vmatpush2.msra.mxu0 0.0
  %6492 = vmatprep.subr.mxu0 0.0
  %6493 = vmatpush2.msra.mxu0 0.0
  %6494 = vmatprep.subr.mxu0 0.0
  %6495 = vmatpush2.msra.mxu0 0.0
  %6496 = vmatprep.subr.mxu0 0.0
  %6497 = vmatpush2.msra.mxu0 0.0
  %6498 = vmatprep.mubr.f32.mxu0 0.0
  %6499 = vmatmul.mubr.f32.gmra.mxu0 %v6432
  %v6500 = vpop.f32.mrf.mxu0
  %v6501 = vadd.f32 0.0, %v6500
  %v6502 = vpop.f32.mrf.mxu0
  %6503 = vdwg.mxu0
  %6504 = vrot.lane.b32.xlu0 %v6159, 96
  %v6505 = vpop.permute.xlu0 %6504
  %6506 = vrot.lane.b32.xlu0 %v4028, 32
  %v6507 = vpop.permute.xlu0 %6506
  %v6508 = vsel %vm4033, %v6505, 0
  %v6510 = vsel %vm4033, %v6507, 0
  %6512 = vmatprep.subr.mxu0 0.0
  %6513 = vmatpush1.xpose.msra.mxu0 0.0
  %6514 = vmatprep.subr.mxu0 0.0
  %6515 = vmatpush1.xpose.msra.mxu0 0.0
  %6516 = vmatprep.subr.mxu0 0.0
  %6517 = vmatpush1.xpose.msra.mxu0 0.0
  %6518 = vmatprep.subr.mxu0 0.0
  %6519 = vmatpush1.xpose.msra.mxu0 0.0
  %6520 = vmatprep.subr.mxu0 0.0
  %6521 = vmatpush1.xpose.msra.mxu0 0.0
  %6522 = vmatprep.subr.mxu0 0.0
  %6523 = vmatpush1.xpose.msra.mxu0 0.0
  %6524 = vmatprep.subr.mxu0 0.0
  %6525 = vmatpush1.xpose.msra.mxu0 0.0
  %6526 = vmatprep.subr.mxu0 0.0
  %6527 = vmatpush1.xpose.msra.mxu0 0.0
  %6528 = vmatprep.subr.mxu0 0.0
  %6529 = vmatpush1.xpose.msra.mxu0 0.0
  %6530 = vmatprep.subr.mxu0 0.0
  %6531 = vmatpush1.xpose.msra.mxu0 0.0
  %6532 = vmatprep.subr.mxu0 0.0
  %6533 = vmatpush1.xpose.msra.mxu0 0.0
  %6534 = vmatprep.subr.mxu0 0.0
  %6535 = vmatpush1.xpose.msra.mxu0 0.0
  %6536 = vmatprep.subr.mxu0 0.0
  %6537 = vmatpush1.xpose.msra.mxu0 0.0
  %6538 = vmatprep.subr.mxu0 0.0
  %6539 = vmatpush1.xpose.msra.mxu0 0.0
  %6540 = vmatprep.subr.mxu0 0.0
  %6541 = vmatpush1.xpose.msra.mxu0 0.0
  %6542 = vmatprep.subr.mxu0 0.0
  %6543 = vmatpush1.xpose.msra.mxu0 %v6510
  %6544 = vmatprep.subr.mxu0 0.0
  %6545 = vmatpush2.xpose.msra.mxu0 0.0
  %6546 = vmatprep.subr.mxu0 0.0
  %6547 = vmatpush2.xpose.msra.mxu0 0.0
  %6548 = vmatprep.subr.mxu0 0.0
  %6549 = vmatpush2.xpose.msra.mxu0 0.0
  %6550 = vmatprep.subr.mxu0 0.0
  %6551 = vmatpush2.xpose.msra.mxu0 0.0
  %6552 = vmatprep.subr.mxu0 0.0
  %6553 = vmatpush2.xpose.msra.mxu0 0.0
  %6554 = vmatprep.subr.mxu0 0.0
  %6555 = vmatpush2.xpose.msra.mxu0 0.0
  %6556 = vmatprep.subr.mxu0 0.0
  %6557 = vmatpush2.xpose.msra.mxu0 0.0
  %6558 = vmatprep.subr.mxu0 0.0
  %6559 = vmatpush2.xpose.msra.mxu0 0.0
  %6560 = vmatprep.subr.mxu0 0.0
  %6561 = vmatpush2.xpose.msra.mxu0 0.0
  %6562 = vmatprep.subr.mxu0 0.0
  %6563 = vmatpush2.xpose.msra.mxu0 0.0
  %6564 = vmatprep.subr.mxu0 0.0
  %6565 = vmatpush2.xpose.msra.mxu0 0.0
  %6566 = vmatprep.subr.mxu0 0.0
  %6567 = vmatpush2.xpose.msra.mxu0 0.0
  %6568 = vmatprep.subr.mxu0 0.0
  %6569 = vmatpush2.xpose.msra.mxu0 0.0
  %6570 = vmatprep.subr.mxu0 0.0
  %6571 = vmatpush2.xpose.msra.mxu0 0.0
  %6572 = vmatprep.subr.mxu0 0.0
  %6573 = vmatpush2.xpose.msra.mxu0 0.0
  %6574 = vmatprep.subr.mxu0 0.0
  %6575 = vmatpush2.xpose.msra.mxu0 0.0
  %6576 = vmatprep.mubr.f32.mxu0 0.0
  %6577 = vmatmul.mubr.f32.gmra.mxu0 %v6508
  %v6578 = vpop.f32.mrf.mxu0
  %v6579 = vadd.f32 0.0, %v6578
  %v6580 = vpop.f32.mrf.mxu0
  %6581 = vdwg.mxu0
  %v6582 = vsel %vm4110, %v6579, -inf
  %6583 = vmax.xlane.f32.xlu0 %v6582
  %v6584 = vpop.xlane.xlu0 %6583
  %v6585 = vsub.f32 %v6579, %v6584
  %v6586 = vmul.f32 %v6585, 1.442695
  %v6587 = vpow.pop %v6586
  %v6588 = vsel %vm4110, %v6587, 0.0
  %6589 = vadd.xlane.f32.xlu0 %v6588
  %v6590 = vpop.xlane.xlu0 %6589
  %v6591 = vrcp.pop %v6590
  %v6592 = vmul.f32 %v6587, %v6591
  %v6593 = vsel %vm4110, %v6592, 0.0
  %v6594 = vrot.slane %v6593, 4
  %v6595 = vadd.f32 %v6593, %v6594
  %v6596 = vrot.slane %v6595, 2
  %v6597 = vadd.f32 %v6595, %v6596
  %v6598 = vrot.slane %v6597, 1
  %v6599 = vadd.f32 %v6597, %v6598
  %v6600 = vmul.f32 %v6599, %v4129
  %6601 = vrot.lane.b32.xlu0 %v4030, 96
  %v6602 = vpop.permute.xlu0 %6601
  %v6605 = vsel %vm4110, %v6600, 0
  %6607 = vmatprep.subr.mxu0 0.0
  %6608 = vmatpush1.msra.mxu0 0.0
  %6609 = vmatprep.subr.mxu0 0.0
  %6610 = vmatpush1.msra.mxu0 0.0
  %6611 = vmatprep.subr.mxu0 0.0
  %6612 = vmatpush1.msra.mxu0 0.0
  %6613 = vmatprep.subr.mxu0 0.0
  %6614 = vmatpush1.msra.mxu0 0.0
  %6615 = vmatprep.subr.mxu0 0.0
  %6616 = vmatpush1.msra.mxu0 0.0
  %6617 = vmatprep.subr.mxu0 0.0
  %6618 = vmatpush1.msra.mxu0 0.0
  %6619 = vmatprep.subr.mxu0 0.0
  %6620 = vmatpush1.msra.mxu0 0.0
  %6621 = vmatprep.subr.mxu0 0.0
  %6622 = vmatpush1.msra.mxu0 0.0
  %6623 = vmatprep.subr.mxu0 0.0
  %6624 = vmatpush1.msra.mxu0 0.0
  %6625 = vmatprep.subr.mxu0 0.0
  %6626 = vmatpush1.msra.mxu0 0.0
  %6627 = vmatprep.subr.mxu0 0.0
  %6628 = vmatpush1.msra.mxu0 0.0
  %6629 = vmatprep.subr.mxu0 0.0
  %6630 = vmatpush1.msra.mxu0 0.0
  %6631 = vmatprep.subr.mxu0 0.0
  %6632 = vmatpush1.msra.mxu0 0.0
  %6633 = vmatprep.subr.mxu0 0.0
  %6634 = vmatpush1.msra.mxu0 0.0
  %6635 = vmatprep.subr.mxu0 0.0
  %6636 = vmatpush1.msra.mxu0 0.0
  %6637 = vmatprep.subr.mxu0 0.0
  %6638 = vmatpush1.msra.mxu0 %v6602
  %6639 = vmatprep.subr.mxu0 0.0
  %6640 = vmatpush2.msra.mxu0 0.0
  %6641 = vmatprep.subr.mxu0 0.0
  %6642 = vmatpush2.msra.mxu0 0.0
  %6643 = vmatprep.subr.mxu0 0.0
  %6644 = vmatpush2.msra.mxu0 0.0
  %6645 = vmatprep.subr.mxu0 0.0
  %6646 = vmatpush2.msra.mxu0 0.0
  %6647 = vmatprep.subr.mxu0 0.0
  %6648 = vmatpush2.msra.mxu0 0.0
  %6649 = vmatprep.subr.mxu0 0.0
  %6650 = vmatpush2.msra.mxu0 0.0
  %6651 = vmatprep.subr.mxu0 0.0
  %6652 = vmatpush2.msra.mxu0 0.0
  %6653 = vmatprep.subr.mxu0 0.0
  %6654 = vmatpush2.msra.mxu0 0.0
  %6655 = vmatprep.subr.mxu0 0.0
  %6656 = vmatpush2.msra.mxu0 0.0
  %6657 = vmatprep.subr.mxu0 0.0
  %6658 = vmatpush2.msra.mxu0 0.0
  %6659 = vmatprep.subr.mxu0 0.0
  %6660 = vmatpush2.msra.mxu0 0.0
  %6661 = vmatprep.subr.mxu0 0.0
  %6662 = vmatpush2.msra.mxu0 0.0
  %6663 = vmatprep.subr.mxu0 0.0
  %6664 = vmatpush2.msra.mxu0 0.0
  %6665 = vmatprep.subr.mxu0 0.0
  %6666 = vmatpush2.msra.mxu0 0.0
  %6667 = vmatprep.subr.mxu0 0.0
  %6668 = vmatpush2.msra.mxu0 0.0
  %6669 = vmatprep.subr.mxu0 0.0
  %6670 = vmatpush2.msra.mxu0 0.0
  %6671 = vmatprep.mubr.f32.mxu0 0.0
  %6672 = vmatmul.mubr.f32.gmra.mxu0 %v6605
  %v6673 = vpop.f32.mrf.mxu0
  %v6674 = vadd.f32 0.0, %v6673
  %v6675 = vpop.f32.mrf.mxu0
  %6676 = vdwg.mxu0
  %6677 = vrot.lane.b32.xlu0 %v6159, 80
  %v6678 = vpop.permute.xlu0 %6677
  %6679 = vrot.lane.b32.xlu0 %v4028, 16
  %v6680 = vpop.permute.xlu0 %6679
  %v6681 = vsel %vm4033, %v6678, 0
  %v6683 = vsel %vm4033, %v6680, 0
  %6685 = vmatprep.subr.mxu0 0.0
  %6686 = vmatpush1.xpose.msra.mxu0 0.0
  %6687 = vmatprep.subr.mxu0 0.0
  %6688 = vmatpush1.xpose.msra.mxu0 0.0
  %6689 = vmatprep.subr.mxu0 0.0
  %6690 = vmatpush1.xpose.msra.mxu0 0.0
  %6691 = vmatprep.subr.mxu0 0.0
  %6692 = vmatpush1.xpose.msra.mxu0 0.0
  %6693 = vmatprep.subr.mxu0 0.0
  %6694 = vmatpush1.xpose.msra.mxu0 0.0
  %6695 = vmatprep.subr.mxu0 0.0
  %6696 = vmatpush1.xpose.msra.mxu0 0.0
  %6697 = vmatprep.subr.mxu0 0.0
  %6698 = vmatpush1.xpose.msra.mxu0 0.0
  %6699 = vmatprep.subr.mxu0 0.0
  %6700 = vmatpush1.xpose.msra.mxu0 0.0
  %6701 = vmatprep.subr.mxu0 0.0
  %6702 = vmatpush1.xpose.msra.mxu0 0.0
  %6703 = vmatprep.subr.mxu0 0.0
  %6704 = vmatpush1.xpose.msra.mxu0 0.0
  %6705 = vmatprep.subr.mxu0 0.0
  %6706 = vmatpush1.xpose.msra.mxu0 0.0
  %6707 = vmatprep.subr.mxu0 0.0
  %6708 = vmatpush1.xpose.msra.mxu0 0.0
  %6709 = vmatprep.subr.mxu0 0.0
  %6710 = vmatpush1.xpose.msra.mxu0 0.0
  %6711 = vmatprep.subr.mxu0 0.0
  %6712 = vmatpush1.xpose.msra.mxu0 0.0
  %6713 = vmatprep.subr.mxu0 0.0
  %6714 = vmatpush1.xpose.msra.mxu0 0.0
  %6715 = vmatprep.subr.mxu0 0.0
  %6716 = vmatpush1.xpose.msra.mxu0 %v6683
  %6717 = vmatprep.subr.mxu0 0.0
  %6718 = vmatpush2.xpose.msra.mxu0 0.0
  %6719 = vmatprep.subr.mxu0 0.0
  %6720 = vmatpush2.xpose.msra.mxu0 0.0
  %6721 = vmatprep.subr.mxu0 0.0
  %6722 = vmatpush2.xpose.msra.mxu0 0.0
  %6723 = vmatprep.subr.mxu0 0.0
  %6724 = vmatpush2.xpose.msra.mxu0 0.0
  %6725 = vmatprep.subr.mxu0 0.0
  %6726 = vmatpush2.xpose.msra.mxu0 0.0
  %6727 = vmatprep.subr.mxu0 0.0
  %6728 = vmatpush2.xpose.msra.mxu0 0.0
  %6729 = vmatprep.subr.mxu0 0.0
  %6730 = vmatpush2.xpose.msra.mxu0 0.0
  %6731 = vmatprep.subr.mxu0 0.0
  %6732 = vmatpush2.xpose.msra.mxu0 0.0
  %6733 = vmatprep.subr.mxu0 0.0
  %6734 = vmatpush2.xpose.msra.mxu0 0.0
  %6735 = vmatprep.subr.mxu0 0.0
  %6736 = vmatpush2.xpose.msra.mxu0 0.0
  %6737 = vmatprep.subr.mxu0 0.0
  %6738 = vmatpush2.xpose.msra.mxu0 0.0
  %6739 = vmatprep.subr.mxu0 0.0
  %6740 = vmatpush2.xpose.msra.mxu0 0.0
  %6741 = vmatprep.subr.mxu0 0.0
  %6742 = vmatpush2.xpose.msra.mxu0 0.0
  %6743 = vmatprep.subr.mxu0 0.0
  %6744 = vmatpush2.xpose.msra.mxu0 0.0
  %6745 = vmatprep.subr.mxu0 0.0
  %6746 = vmatpush2.xpose.msra.mxu0 0.0
  %6747 = vmatprep.subr.mxu0 0.0
  %6748 = vmatpush2.xpose.msra.mxu0 0.0
  %6749 = vmatprep.mubr.f32.mxu0 0.0
  %6750 = vmatmul.mubr.f32.gmra.mxu0 %v6681
  %v6751 = vpop.f32.mrf.mxu0
  %v6752 = vadd.f32 0.0, %v6751
  %v6753 = vpop.f32.mrf.mxu0
  %6754 = vdwg.mxu0
  %v6755 = vsel %vm4110, %v6752, -inf
  %6756 = vmax.xlane.f32.xlu0 %v6755
  %v6757 = vpop.xlane.xlu0 %6756
  %v6758 = vsub.f32 %v6752, %v6757
  %v6759 = vmul.f32 %v6758, 1.442695
  %v6760 = vpow.pop %v6759
  %v6761 = vsel %vm4110, %v6760, 0.0
  %6762 = vadd.xlane.f32.xlu0 %v6761
  %v6763 = vpop.xlane.xlu0 %6762
  %v6764 = vrcp.pop %v6763
  %v6765 = vmul.f32 %v6760, %v6764
  %v6766 = vsel %vm4110, %v6765, 0.0
  %v6767 = vrot.slane %v6766, 4
  %v6768 = vadd.f32 %v6766, %v6767
  %v6769 = vrot.slane %v6768, 2
  %v6770 = vadd.f32 %v6768, %v6769
  %v6771 = vrot.slane %v6770, 1
  %v6772 = vadd.f32 %v6770, %v6771
  %v6773 = vmul.f32 %v6772, %v4129
  %6774 = vrot.lane.b32.xlu0 %v4030, 80
  %v6775 = vpop.permute.xlu0 %6774
  %v6778 = vsel %vm4110, %v6773, 0
  %6780 = vmatprep.subr.mxu0 0.0
  %6781 = vmatpush1.msra.mxu0 0.0
  %6782 = vmatprep.subr.mxu0 0.0
  %6783 = vmatpush1.msra.mxu0 0.0
  %6784 = vmatprep.subr.mxu0 0.0
  %6785 = vmatpush1.msra.mxu0 0.0
  %6786 = vmatprep.subr.mxu0 0.0
  %6787 = vmatpush1.msra.mxu0 0.0
  %6788 = vmatprep.subr.mxu0 0.0
  %6789 = vmatpush1.msra.mxu0 0.0
  %6790 = vmatprep.subr.mxu0 0.0
  %6791 = vmatpush1.msra.mxu0 0.0
  %6792 = vmatprep.subr.mxu0 0.0
  %6793 = vmatpush1.msra.mxu0 0.0
  %6794 = vmatprep.subr.mxu0 0.0
  %6795 = vmatpush1.msra.mxu0 0.0
  %6796 = vmatprep.subr.mxu0 0.0
  %6797 = vmatpush1.msra.mxu0 0.0
  %6798 = vmatprep.subr.mxu0 0.0
  %6799 = vmatpush1.msra.mxu0 0.0
  %6800 = vmatprep.subr.mxu0 0.0
  %6801 = vmatpush1.msra.mxu0 0.0
  %6802 = vmatprep.subr.mxu0 0.0
  %6803 = vmatpush1.msra.mxu0 0.0
  %6804 = vmatprep.subr.mxu0 0.0
  %6805 = vmatpush1.msra.mxu0 0.0
  %6806 = vmatprep.subr.mxu0 0.0
  %6807 = vmatpush1.msra.mxu0 0.0
  %6808 = vmatprep.subr.mxu0 0.0
  %6809 = vmatpush1.msra.mxu0 0.0
  %6810 = vmatprep.subr.mxu0 0.0
  %6811 = vmatpush1.msra.mxu0 %v6775
  %6812 = vmatprep.subr.mxu0 0.0
  %6813 = vmatpush2.msra.mxu0 0.0
  %6814 = vmatprep.subr.mxu0 0.0
  %6815 = vmatpush2.msra.mxu0 0.0
  %6816 = vmatprep.subr.mxu0 0.0
  %6817 = vmatpush2.msra.mxu0 0.0
  %6818 = vmatprep.subr.mxu0 0.0
  %6819 = vmatpush2.msra.mxu0 0.0
  %6820 = vmatprep.subr.mxu0 0.0
  %6821 = vmatpush2.msra.mxu0 0.0
  %6822 = vmatprep.subr.mxu0 0.0
  %6823 = vmatpush2.msra.mxu0 0.0
  %6824 = vmatprep.subr.mxu0 0.0
  %6825 = vmatpush2.msra.mxu0 0.0
  %6826 = vmatprep.subr.mxu0 0.0
  %6827 = vmatpush2.msra.mxu0 0.0
  %6828 = vmatprep.subr.mxu0 0.0
  %6829 = vmatpush2.msra.mxu0 0.0
  %6830 = vmatprep.subr.mxu0 0.0
  %6831 = vmatpush2.msra.mxu0 0.0
  %6832 = vmatprep.subr.mxu0 0.0
  %6833 = vmatpush2.msra.mxu0 0.0
  %6834 = vmatprep.subr.mxu0 0.0
  %6835 = vmatpush2.msra.mxu0 0.0
  %6836 = vmatprep.subr.mxu0 0.0
  %6837 = vmatpush2.msra.mxu0 0.0
  %6838 = vmatprep.subr.mxu0 0.0
  %6839 = vmatpush2.msra.mxu0 0.0
  %6840 = vmatprep.subr.mxu0 0.0
  %6841 = vmatpush2.msra.mxu0 0.0
  %6842 = vmatprep.subr.mxu0 0.0
  %6843 = vmatpush2.msra.mxu0 0.0
  %6844 = vmatprep.mubr.f32.mxu0 0.0
  %6845 = vmatmul.mubr.f32.gmra.mxu0 %v6778
  %v6846 = vpop.f32.mrf.mxu0
  %v6847 = vadd.f32 0.0, %v6846
  %v6848 = vpop.f32.mrf.mxu0
  %6849 = vdwg.mxu0
  %6851 = vrot.lane.b32.xlu0 %v6501, 16
  %v6852 = vpop.permute.xlu0 %6851
  %6855 = vrot.lane.b32.xlu0 %v6674, 32
  %v6856 = vpop.permute.xlu0 %6855
  %6859 = vrot.lane.b32.xlu0 %v6847, 48
  %v6860 = vpop.permute.xlu0 %6859
  %v6862 = vsel %vm4033, %v6327, %v6852
  %v6863 = vsel %vm103, %v6862, %v6856
  %v6864 = vsel %vm4740, %v6863, %v6860
  %v6866 = vrot.slane %v6864, 7
  %v6868 = vsel %vm5451, %v6158, %v6866
  %v6869 = vld [vmem:[%s15] sm:$0xff]
  %v6870 = vld [vmem:[%s15 + $0x8] sm:$0xff]
  %v6871 = vld [vmem:[%s15 + $0x10] sm:$0xff]
  %v6872 = vld [vmem:[%s15 + $0x18] sm:$0xff]
  %v6873 = vld [vmem:[%s15 + $0x20] sm:$0xff]
  %v6874 = vld [vmem:[%s15 + $0x28] sm:$0xff]
  %v6875 = vld [vmem:[%s15 + $0x30] sm:$0xff]
  %v6876 = vld [vmem:[%s15 + $0x38] sm:$0xff]
  %v6877 = vld [vmem:[%s16] sm:$0x1]
  %v6879 = vlaneseq
  %v6880 = vshrl.u32 %v6879, 7
  %v6881 = vsub.s32 0, %v6880
  %v6882 = vrot.slane %v6877, %v6881
  %v6885 = vsel %vm3685, %v5452, 0
  %v6888 = vsel %vm3685, %v6869, 0
  %v6891 = vsel %vm3685, %v6870, 0
  %v6894 = vsel %vm3685, %v6871, 0
  %v6897 = vsel %vm3685, %v6872, 0
  %v6900 = vsel %vm3685, %v6873, 0
  %v6903 = vsel %vm3685, %v6874, 0
  %v6906 = vsel %vm3685, %v6875, 0
  %v6909 = vsel %vm3685, %v6876, 0
  %6911 = vmatprep.subr.mxu0 0.0
  %6912 = vmatpush1.xpose.msra.mxu0 0.0
  %6913 = vmatprep.subr.mxu0 0.0
  %6914 = vmatpush1.xpose.msra.mxu0 0.0
  %6915 = vmatprep.subr.mxu0 0.0
  %6916 = vmatpush1.xpose.msra.mxu0 0.0
  %6917 = vmatprep.subr.mxu0 0.0
  %6918 = vmatpush1.xpose.msra.mxu0 0.0
  %6919 = vmatprep.subr.mxu0 0.0
  %6920 = vmatpush1.xpose.msra.mxu0 0.0
  %6921 = vmatprep.subr.mxu0 0.0
  %6922 = vmatpush1.xpose.msra.mxu0 0.0
  %6923 = vmatprep.subr.mxu0 0.0
  %6924 = vmatpush1.xpose.msra.mxu0 0.0
  %6925 = vmatprep.subr.mxu0 0.0
  %6926 = vmatpush1.xpose.msra.mxu0 0.0
  %6927 = vmatprep.subr.mxu0 0.0
  %6928 = vmatpush1.xpose.msra.mxu0 %v6909
  %6929 = vmatprep.subr.mxu0 0.0
  %6930 = vmatpush1.xpose.msra.mxu0 %v6906
  %6931 = vmatprep.subr.mxu0 0.0
  %6932 = vmatpush1.xpose.msra.mxu0 %v6903
  %6933 = vmatprep.subr.mxu0 0.0
  %6934 = vmatpush1.xpose.msra.mxu0 %v6900
  %6935 = vmatprep.subr.mxu0 0.0
  %6936 = vmatpush1.xpose.msra.mxu0 %v6897
  %6937 = vmatprep.subr.mxu0 0.0
  %6938 = vmatpush1.xpose.msra.mxu0 %v6894
  %6939 = vmatprep.subr.mxu0 0.0
  %6940 = vmatpush1.xpose.msra.mxu0 %v6891
  %6941 = vmatprep.subr.mxu0 0.0
  %6942 = vmatpush1.xpose.msra.mxu0 %v6888
  %6943 = vmatprep.subr.mxu0 0.0
  %6944 = vmatpush2.xpose.msra.mxu0 0.0
  %6945 = vmatprep.subr.mxu0 0.0
  %6946 = vmatpush2.xpose.msra.mxu0 0.0
  %6947 = vmatprep.subr.mxu0 0.0
  %6948 = vmatpush2.xpose.msra.mxu0 0.0
  %6949 = vmatprep.subr.mxu0 0.0
  %6950 = vmatpush2.xpose.msra.mxu0 0.0
  %6951 = vmatprep.subr.mxu0 0.0
  %6952 = vmatpush2.xpose.msra.mxu0 0.0
  %6953 = vmatprep.subr.mxu0 0.0
  %6954 = vmatpush2.xpose.msra.mxu0 0.0
  %6955 = vmatprep.subr.mxu0 0.0
  %6956 = vmatpush2.xpose.msra.mxu0 0.0
  %6957 = vmatprep.subr.mxu0 0.0
  %6958 = vmatpush2.xpose.msra.mxu0 0.0
  %6959 = vmatprep.subr.mxu0 0.0
  %6960 = vmatpush2.xpose.msra.mxu0 0.0
  %6961 = vmatprep.subr.mxu0 0.0
  %6962 = vmatpush2.xpose.msra.mxu0 0.0
  %6963 = vmatprep.subr.mxu0 0.0
  %6964 = vmatpush2.xpose.msra.mxu0 0.0
  %6965 = vmatprep.subr.mxu0 0.0
  %6966 = vmatpush2.xpose.msra.mxu0 0.0
  %6967 = vmatprep.subr.mxu0 0.0
  %6968 = vmatpush2.xpose.msra.mxu0 0.0
  %6969 = vmatprep.subr.mxu0 0.0
  %6970 = vmatpush2.xpose.msra.mxu0 0.0
  %6971 = vmatprep.subr.mxu0 0.0
  %6972 = vmatpush2.xpose.msra.mxu0 0.0
  %6973 = vmatprep.subr.mxu0 0.0
  %6974 = vmatpush2.xpose.msra.mxu0 0.0
  %6975 = vmatprep.mubr.f32.mxu0 0.0
  %6976 = vmatmul.mubr.f32.gmra.mxu0 %v6885
  %v6977 = vpop.f32.mrf.mxu0
  %v6978 = vadd.f32 %v6882, %v6977
  %v6979 = vpop.f32.mrf.mxu0
  %6980 = vdwg.mxu0
  %v6981 = vld [vmem:[%s17] sm:$0xff]
  %v6982 = vld [vmem:[%s17 + $0x8] sm:$0xff]
  %v6983 = vld [vmem:[%s17 + $0x10] sm:$0xff]
  %v6984 = vld [vmem:[%s17 + $0x18] sm:$0xff]
  %v6985 = vld [vmem:[%s17 + $0x20] sm:$0xff]
  %v6986 = vld [vmem:[%s17 + $0x28] sm:$0xff]
  %v6987 = vld [vmem:[%s17 + $0x30] sm:$0xff]
  %v6988 = vld [vmem:[%s17 + $0x38] sm:$0xff]
  %v6989 = vld [vmem:[%s18] sm:$0x1]
  %v6991 = vlaneseq
  %v6992 = vshrl.u32 %v6991, 7
  %v6993 = vsub.s32 0, %v6992
  %v6994 = vrot.slane %v6989, %v6993
  %v6997 = vsel %vm3685, %v6868, 0
  %v7000 = vsel %vm3685, %v6981, 0
  %v7003 = vsel %vm3685, %v6982, 0
  %v7006 = vsel %vm3685, %v6983, 0
  %v7009 = vsel %vm3685, %v6984, 0
  %v7012 = vsel %vm3685, %v6985, 0
  %v7015 = vsel %vm3685, %v6986, 0
  %v7018 = vsel %vm3685, %v6987, 0
  %v7021 = vsel %vm3685, %v6988, 0
  %7023 = vmatprep.subr.mxu0 0.0
  %7024 = vmatpush1.xpose.msra.mxu0 0.0
  %7025 = vmatprep.subr.mxu0 0.0
  %7026 = vmatpush1.xpose.msra.mxu0 0.0
  %7027 = vmatprep.subr.mxu0 0.0
  %7028 = vmatpush1.xpose.msra.mxu0 0.0
  %7029 = vmatprep.subr.mxu0 0.0
  %7030 = vmatpush1.xpose.msra.mxu0 0.0
  %7031 = vmatprep.subr.mxu0 0.0
  %7032 = vmatpush1.xpose.msra.mxu0 0.0
  %7033 = vmatprep.subr.mxu0 0.0
  %7034 = vmatpush1.xpose.msra.mxu0 0.0
  %7035 = vmatprep.subr.mxu0 0.0
  %7036 = vmatpush1.xpose.msra.mxu0 0.0
  %7037 = vmatprep.subr.mxu0 0.0
  %7038 = vmatpush1.xpose.msra.mxu0 0.0
  %7039 = vmatprep.subr.mxu0 0.0
  %7040 = vmatpush1.xpose.msra.mxu0 %v7021
  %7041 = vmatprep.subr.mxu0 0.0
  %7042 = vmatpush1.xpose.msra.mxu0 %v7018
  %7043 = vmatprep.subr.mxu0 0.0
  %7044 = vmatpush1.xpose.msra.mxu0 %v7015
  %7045 = vmatprep.subr.mxu0 0.0
  %7046 = vmatpush1.xpose.msra.mxu0 %v7012
  %7047 = vmatprep.subr.mxu0 0.0
  %7048 = vmatpush1.xpose.msra.mxu0 %v7009
  %7049 = vmatprep.subr.mxu0 0.0
  %7050 = vmatpush1.xpose.msra.mxu0 %v7006
  %7051 = vmatprep.subr.mxu0 0.0
  %7052 = vmatpush1.xpose.msra.mxu0 %v7003
  %7053 = vmatprep.subr.mxu0 0.0
  %7054 = vmatpush1.xpose.msra.mxu0 %v7000
  %7055 = vmatprep.subr.mxu0 0.0
  %7056 = vmatpush2.xpose.msra.mxu0 0.0
  %7057 = vmatprep.subr.mxu0 0.0
  %7058 = vmatpush2.xpose.msra.mxu0 0.0
  %7059 = vmatprep.subr.mxu0 0.0
  %7060 = vmatpush2.xpose.msra.mxu0 0.0
  %7061 = vmatprep.subr.mxu0 0.0
  %7062 = vmatpush2.xpose.msra.mxu0 0.0
  %7063 = vmatprep.subr.mxu0 0.0
  %7064 = vmatpush2.xpose.msra.mxu0 0.0
  %7065 = vmatprep.subr.mxu0 0.0
  %7066 = vmatpush2.xpose.msra.mxu0 0.0
  %7067 = vmatprep.subr.mxu0 0.0
  %7068 = vmatpush2.xpose.msra.mxu0 0.0
  %7069 = vmatprep.subr.mxu0 0.0
  %7070 = vmatpush2.xpose.msra.mxu0 0.0
  %7071 = vmatprep.subr.mxu0 0.0
  %7072 = vmatpush2.xpose.msra.mxu0 0.0
  %7073 = vmatprep.subr.mxu0 0.0
  %7074 = vmatpush2.xpose.msra.mxu0 0.0
  %7075 = vmatprep.subr.mxu0 0.0
  %7076 = vmatpush2.xpose.msra.mxu0 0.0
  %7077 = vmatprep.subr.mxu0 0.0
  %7078 = vmatpush2.xpose.msra.mxu0 0.0
  %7079 = vmatprep.subr.mxu0 0.0
  %7080 = vmatpush2.xpose.msra.mxu0 0.0
  %7081 = vmatprep.subr.mxu0 0.0
  %7082 = vmatpush2.xpose.msra.mxu0 0.0
  %7083 = vmatprep.subr.mxu0 0.0
  %7084 = vmatpush2.xpose.msra.mxu0 0.0
  %7085 = vmatprep.subr.mxu0 0.0
  %7086 = vmatpush2.xpose.msra.mxu0 0.0
  %7087 = vmatprep.mubr.f32.mxu0 0.0
  %7088 = vmatmul.mubr.f32.gmra.mxu0 %v6997
  %v7089 = vpop.f32.mrf.mxu0
  %v7090 = vadd.f32 %v6994, %v7089
  %v7091 = vpop.f32.mrf.mxu0
  %7092 = vdwg.mxu0
  %7094 = vrot.lane.b32.xlu0 %v7090, 64
  %v7095 = vpop.permute.xlu0 %7094
  %v7097 = vsel %vm3685, %v285, %v7095
  %7099 = vrot.lane.b32.xlu0 %v6978, 64
  %v7100 = vpop.permute.xlu0 %7099
  %v7102 = vsel %vm3685, %v3648, %v7100
  %v7103 = vld [vmem:[%s19] sm:$0xff]
  %v7104 = vld [vmem:[%s19 + $0x8] sm:$0xff]
  %v7105 = vld [vmem:[%s19 + $0x10] sm:$0xff]
  %v7106 = vld [vmem:[%s19 + $0x18] sm:$0xff]
  %v7107 = vld [vmem:[%s20] sm:$0x1]
  %v7108 = vld [vmem:[%s21] sm:$0x7]
  %v7109 = vld [vmem:[%s22] sm:$0x1]
  %v7111 = vlaneseq
  %v7112 = vshrl.u32 %v7111, 7
  %v7113 = vsub.s32 0, %v7112
  %v7114 = vrot.slane %v7107, %v7113
  %7116 = vmatprep.subr.mxu0 0.0
  %7117 = vmatpush1.xpose.msra.mxu0 0.0
  %7118 = vmatprep.subr.mxu0 0.0
  %7119 = vmatpush1.xpose.msra.mxu0 0.0
  %7120 = vmatprep.subr.mxu0 0.0
  %7121 = vmatpush1.xpose.msra.mxu0 0.0
  %7122 = vmatprep.subr.mxu0 0.0
  %7123 = vmatpush1.xpose.msra.mxu0 0.0
  %7124 = vmatprep.subr.mxu0 0.0
  %7125 = vmatpush1.xpose.msra.mxu0 0.0
  %7126 = vmatprep.subr.mxu0 0.0
  %7127 = vmatpush1.xpose.msra.mxu0 0.0
  %7128 = vmatprep.subr.mxu0 0.0
  %7129 = vmatpush1.xpose.msra.mxu0 0.0
  %7130 = vmatprep.subr.mxu0 0.0
  %7131 = vmatpush1.xpose.msra.mxu0 0.0
  %7132 = vmatprep.subr.mxu0 0.0
  %7133 = vmatpush1.xpose.msra.mxu0 0.0
  %7134 = vmatprep.subr.mxu0 0.0
  %7135 = vmatpush1.xpose.msra.mxu0 0.0
  %7136 = vmatprep.subr.mxu0 0.0
  %7137 = vmatpush1.xpose.msra.mxu0 0.0
  %7138 = vmatprep.subr.mxu0 0.0
  %7139 = vmatpush1.xpose.msra.mxu0 0.0
  %7140 = vmatprep.subr.mxu0 0.0
  %7141 = vmatpush1.xpose.msra.mxu0 %v7106
  %7142 = vmatprep.subr.mxu0 0.0
  %7143 = vmatpush1.xpose.msra.mxu0 %v7105
  %7144 = vmatprep.subr.mxu0 0.0
  %7145 = vmatpush1.xpose.msra.mxu0 %v7104
  %7146 = vmatprep.subr.mxu0 0.0
  %7147 = vmatpush1.xpose.msra.mxu0 %v7103
  %7148 = vmatprep.subr.mxu0 0.0
  %7149 = vmatpush2.xpose.msra.mxu0 0.0
  %7150 = vmatprep.subr.mxu0 0.0
  %7151 = vmatpush2.xpose.msra.mxu0 0.0
  %7152 = vmatprep.subr.mxu0 0.0
  %7153 = vmatpush2.xpose.msra.mxu0 0.0
  %7154 = vmatprep.subr.mxu0 0.0
  %7155 = vmatpush2.xpose.msra.mxu0 0.0
  %7156 = vmatprep.subr.mxu0 0.0
  %7157 = vmatpush2.xpose.msra.mxu0 0.0
  %7158 = vmatprep.subr.mxu0 0.0
  %7159 = vmatpush2.xpose.msra.mxu0 0.0
  %7160 = vmatprep.subr.mxu0 0.0
  %7161 = vmatpush2.xpose.msra.mxu0 0.0
  %7162 = vmatprep.subr.mxu0 0.0
  %7163 = vmatpush2.xpose.msra.mxu0 0.0
  %7164 = vmatprep.subr.mxu0 0.0
  %7165 = vmatpush2.xpose.msra.mxu0 0.0
  %7166 = vmatprep.subr.mxu0 0.0
  %7167 = vmatpush2.xpose.msra.mxu0 0.0
  %7168 = vmatprep.subr.mxu0 0.0
  %7169 = vmatpush2.xpose.msra.mxu0 0.0
  %7170 = vmatprep.subr.mxu0 0.0
  %7171 = vmatpush2.xpose.msra.mxu0 0.0
  %7172 = vmatprep.subr.mxu0 0.0
  %7173 = vmatpush2.xpose.msra.mxu0 0.0
  %7174 = vmatprep.subr.mxu0 0.0
  %7175 = vmatpush2.xpose.msra.mxu0 0.0
  %7176 = vmatprep.subr.mxu0 0.0
  %7177 = vmatpush2.xpose.msra.mxu0 0.0
  %7178 = vmatprep.subr.mxu0 0.0
  %7179 = vmatpush2.xpose.msra.mxu0 0.0
  %7180 = vmatprep.mubr.f32.mxu0 0.0
  %7181 = vmatmul.mubr.f32.gmra.mxu0 %v7097
  %v7182 = vpop.f32.mrf.mxu0
  %v7183 = vadd.f32 %v7114, %v7182
  %v7184 = vpop.f32.mrf.mxu0
  %7185 = vdwg.mxu0
  %v7186 = vmax.f32 %v7183, 0.0
  %v7188 = vlaneseq
  %v7189 = vshrl.u32 %v7188, 7
  %v7190 = vsub.s32 0, %v7189
  %v7191 = vrot.slane %v7109, %v7190
  %v7194 = vsel %vm103, %v7186, 0
  %v7197 = vsel %vm103, %v7108, 0
  %7199 = vmatprep.subr.mxu0 0.0
  %7200 = vmatpush1.xpose.msra.mxu0 0.0
  %7201 = vmatprep.subr.mxu0 0.0
  %7202 = vmatpush1.xpose.msra.mxu0 0.0
  %7203 = vmatprep.subr.mxu0 0.0
  %7204 = vmatpush1.xpose.msra.mxu0 0.0
  %7205 = vmatprep.subr.mxu0 0.0
  %7206 = vmatpush1.xpose.msra.mxu0 0.0
  %7207 = vmatprep.subr.mxu0 0.0
  %7208 = vmatpush1.xpose.msra.mxu0 0.0
  %7209 = vmatprep.subr.mxu0 0.0
  %7210 = vmatpush1.xpose.msra.mxu0 0.0
  %7211 = vmatprep.subr.mxu0 0.0
  %7212 = vmatpush1.xpose.msra.mxu0 0.0
  %7213 = vmatprep.subr.mxu0 0.0
  %7214 = vmatpush1.xpose.msra.mxu0 0.0
  %7215 = vmatprep.subr.mxu0 0.0
  %7216 = vmatpush1.xpose.msra.mxu0 0.0
  %7217 = vmatprep.subr.mxu0 0.0
  %7218 = vmatpush1.xpose.msra.mxu0 0.0
  %7219 = vmatprep.subr.mxu0 0.0
  %7220 = vmatpush1.xpose.msra.mxu0 0.0
  %7221 = vmatprep.subr.mxu0 0.0
  %7222 = vmatpush1.xpose.msra.mxu0 0.0
  %7223 = vmatprep.subr.mxu0 0.0
  %7224 = vmatpush1.xpose.msra.mxu0 0.0
  %7225 = vmatprep.subr.mxu0 0.0
  %7226 = vmatpush1.xpose.msra.mxu0 0.0
  %7227 = vmatprep.subr.mxu0 0.0
  %7228 = vmatpush1.xpose.msra.mxu0 0.0
  %7229 = vmatprep.subr.mxu0 0.0
  %7230 = vmatpush1.xpose.msra.mxu0 %v7197
  %7231 = vmatprep.subr.mxu0 0.0
  %7232 = vmatpush2.xpose.msra.mxu0 0.0
  %7233 = vmatprep.subr.mxu0 0.0
  %7234 = vmatpush2.xpose.msra.mxu0 0.0
  %7235 = vmatprep.subr.mxu0 0.0
  %7236 = vmatpush2.xpose.msra.mxu0 0.0
  %7237 = vmatprep.subr.mxu0 0.0
  %7238 = vmatpush2.xpose.msra.mxu0 0.0
  %7239 = vmatprep.subr.mxu0 0.0
  %7240 = vmatpush2.xpose.msra.mxu0 0.0
  %7241 = vmatprep.subr.mxu0 0.0
  %7242 = vmatpush2.xpose.msra.mxu0 0.0
  %7243 = vmatprep.subr.mxu0 0.0
  %7244 = vmatpush2.xpose.msra.mxu0 0.0
  %7245 = vmatprep.subr.mxu0 0.0
  %7246 = vmatpush2.xpose.msra.mxu0 0.0
  %7247 = vmatprep.subr.mxu0 0.0
  %7248 = vmatpush2.xpose.msra.mxu0 0.0
  %7249 = vmatprep.subr.mxu0 0.0
  %7250 = vmatpush2.xpose.msra.mxu0 0.0
  %7251 = vmatprep.subr.mxu0 0.0
  %7252 = vmatpush2.xpose.msra.mxu0 0.0
  %7253 = vmatprep.subr.mxu0 0.0
  %7254 = vmatpush2.xpose.msra.mxu0 0.0
  %7255 = vmatprep.subr.mxu0 0.0
  %7256 = vmatpush2.xpose.msra.mxu0 0.0
  %7257 = vmatprep.subr.mxu0 0.0
  %7258 = vmatpush2.xpose.msra.mxu0 0.0
  %7259 = vmatprep.subr.mxu0 0.0
  %7260 = vmatpush2.xpose.msra.mxu0 0.0
  %7261 = vmatprep.subr.mxu0 0.0
  %7262 = vmatpush2.xpose.msra.mxu0 0.0
  %7263 = vmatprep.mubr.f32.mxu0 0.0
  %7264 = vmatmul.mubr.f32.gmra.mxu0 %v7194
  %v7265 = vpop.f32.mrf.mxu0
  %v7266 = vadd.f32 %v7191, %v7265
  %v7267 = vpop.f32.mrf.mxu0
  %7268 = vdwg.mxu0
  %vm7269 = vcmask 17408
  %v7270 = vsel %vm7269, %v7266, -inf
  %7271 = vmax.xlane.f32.xlu0 %v7270
  %v7272 = vpop.xlane.xlu0 %7271
  %v7273 = vsub.f32 %v7266, %v7272
  %v7274 = vmul.f32 %v7273, 1.442695
  %v7275 = vpow.pop %v7274
  %v7276 = vsel %vm7269, %v7275, 0.0
  %7277 = vadd.xlane.f32.xlu0 %v7276
  %v7278 = vpop.xlane.xlu0 %7277
  %v7279 = vrcp.pop %v7278
  %v7280 = vmul.f32 %v7275, %v7279
  %v7281 = vld [vmem:[%s23] sm:$0xff]
  %v7282 = vld [vmem:[%s23 + $0x8] sm:$0xff]
  %v7283 = vld [vmem:[%s23 + $0x10] sm:$0xff]
  %v7284 = vld [vmem:[%s23 + $0x18] sm:$0xff]
  %v7285 = vld [vmem:[%s24] sm:$0x1]
  %v7286 = vld [vmem:[%s25] sm:$0x7]
  %v7287 = vld [vmem:[%s26] sm:$0x1]
  %v7289 = vlaneseq
  %v7290 = vshrl.u32 %v7289, 7
  %v7291 = vsub.s32 0, %v7290
  %v7292 = vrot.slane %v7285, %v7291
  %7294 = vmatprep.subr.mxu0 0.0
  %7295 = vmatpush1.xpose.msra.mxu0 0.0
  %7296 = vmatprep.subr.mxu0 0.0
  %7297 = vmatpush1.xpose.msra.mxu0 0.0
  %7298 = vmatprep.subr.mxu0 0.0
  %7299 = vmatpush1.xpose.msra.mxu0 0.0
  %7300 = vmatprep.subr.mxu0 0.0
  %7301 = vmatpush1.xpose.msra.mxu0 0.0
  %7302 = vmatprep.subr.mxu0 0.0
  %7303 = vmatpush1.xpose.msra.mxu0 0.0
  %7304 = vmatprep.subr.mxu0 0.0
  %7305 = vmatpush1.xpose.msra.mxu0 0.0
  %7306 = vmatprep.subr.mxu0 0.0
  %7307 = vmatpush1.xpose.msra.mxu0 0.0
  %7308 = vmatprep.subr.mxu0 0.0
  %7309 = vmatpush1.xpose.msra.mxu0 0.0
  %7310 = vmatprep.subr.mxu0 0.0
  %7311 = vmatpush1.xpose.msra.mxu0 0.0
  %7312 = vmatprep.subr.mxu0 0.0
  %7313 = vmatpush1.xpose.msra.mxu0 0.0
  %7314 = vmatprep.subr.mxu0 0.0
  %7315 = vmatpush1.xpose.msra.mxu0 0.0
  %7316 = vmatprep.subr.mxu0 0.0
  %7317 = vmatpush1.xpose.msra.mxu0 0.0
  %7318 = vmatprep.subr.mxu0 0.0
  %7319 = vmatpush1.xpose.msra.mxu0 %v7284
  %7320 = vmatprep.subr.mxu0 0.0
  %7321 = vmatpush1.xpose.msra.mxu0 %v7283
  %7322 = vmatprep.subr.mxu0 0.0
  %7323 = vmatpush1.xpose.msra.mxu0 %v7282
  %7324 = vmatprep.subr.mxu0 0.0
  %7325 = vmatpush1.xpose.msra.mxu0 %v7281
  %7326 = vmatprep.subr.mxu0 0.0
  %7327 = vmatpush2.xpose.msra.mxu0 0.0
  %7328 = vmatprep.subr.mxu0 0.0
  %7329 = vmatpush2.xpose.msra.mxu0 0.0
  %7330 = vmatprep.subr.mxu0 0.0
  %7331 = vmatpush2.xpose.msra.mxu0 0.0
  %7332 = vmatprep.subr.mxu0 0.0
  %7333 = vmatpush2.xpose.msra.mxu0 0.0
  %7334 = vmatprep.subr.mxu0 0.0
  %7335 = vmatpush2.xpose.msra.mxu0 0.0
  %7336 = vmatprep.subr.mxu0 0.0
  %7337 = vmatpush2.xpose.msra.mxu0 0.0
  %7338 = vmatprep.subr.mxu0 0.0
  %7339 = vmatpush2.xpose.msra.mxu0 0.0
  %7340 = vmatprep.subr.mxu0 0.0
  %7341 = vmatpush2.xpose.msra.mxu0 0.0
  %7342 = vmatprep.subr.mxu0 0.0
  %7343 = vmatpush2.xpose.msra.mxu0 0.0
  %7344 = vmatprep.subr.mxu0 0.0
  %7345 = vmatpush2.xpose.msra.mxu0 0.0
  %7346 = vmatprep.subr.mxu0 0.0
  %7347 = vmatpush2.xpose.msra.mxu0 0.0
  %7348 = vmatprep.subr.mxu0 0.0
  %7349 = vmatpush2.xpose.msra.mxu0 0.0
  %7350 = vmatprep.subr.mxu0 0.0
  %7351 = vmatpush2.xpose.msra.mxu0 0.0
  %7352 = vmatprep.subr.mxu0 0.0
  %7353 = vmatpush2.xpose.msra.mxu0 0.0
  %7354 = vmatprep.subr.mxu0 0.0
  %7355 = vmatpush2.xpose.msra.mxu0 0.0
  %7356 = vmatprep.subr.mxu0 0.0
  %7357 = vmatpush2.xpose.msra.mxu0 0.0
  %7358 = vmatprep.mubr.f32.mxu0 0.0
  %7359 = vmatmul.mubr.f32.gmra.mxu0 %v7102
  %v7360 = vpop.f32.mrf.mxu0
  %v7361 = vadd.f32 %v7292, %v7360
  %v7362 = vpop.f32.mrf.mxu0
  %7363 = vdwg.mxu0
  %v7364 = vmax.f32 %v7361, 0.0
  %v7366 = vlaneseq
  %v7367 = vshrl.u32 %v7366, 7
  %v7368 = vsub.s32 0, %v7367
  %v7369 = vrot.slane %v7287, %v7368
  %v7372 = vsel %vm103, %v7364, 0
  %v7375 = vsel %vm103, %v7286, 0
  %7377 = vmatprep.subr.mxu0 0.0
  %7378 = vmatpush1.xpose.msra.mxu0 0.0
  %7379 = vmatprep.subr.mxu0 0.0
  %7380 = vmatpush1.xpose.msra.mxu0 0.0
  %7381 = vmatprep.subr.mxu0 0.0
  %7382 = vmatpush1.xpose.msra.mxu0 0.0
  %7383 = vmatprep.subr.mxu0 0.0
  %7384 = vmatpush1.xpose.msra.mxu0 0.0
  %7385 = vmatprep.subr.mxu0 0.0
  %7386 = vmatpush1.xpose.msra.mxu0 0.0
  %7387 = vmatprep.subr.mxu0 0.0
  %7388 = vmatpush1.xpose.msra.mxu0 0.0
  %7389 = vmatprep.subr.mxu0 0.0
  %7390 = vmatpush1.xpose.msra.mxu0 0.0
  %7391 = vmatprep.subr.mxu0 0.0
  %7392 = vmatpush1.xpose.msra.mxu0 0.0
  %7393 = vmatprep.subr.mxu0 0.0
  %7394 = vmatpush1.xpose.msra.mxu0 0.0
  %7395 = vmatprep.subr.mxu0 0.0
  %7396 = vmatpush1.xpose.msra.mxu0 0.0
  %7397 = vmatprep.subr.mxu0 0.0
  %7398 = vmatpush1.xpose.msra.mxu0 0.0
  %7399 = vmatprep.subr.mxu0 0.0
  %7400 = vmatpush1.xpose.msra.mxu0 0.0
  %7401 = vmatprep.subr.mxu0 0.0
  %7402 = vmatpush1.xpose.msra.mxu0 0.0
  %7403 = vmatprep.subr.mxu0 0.0
  %7404 = vmatpush1.xpose.msra.mxu0 0.0
  %7405 = vmatprep.subr.mxu0 0.0
  %7406 = vmatpush1.xpose.msra.mxu0 0.0
  %7407 = vmatprep.subr.mxu0 0.0
  %7408 = vmatpush1.xpose.msra.mxu0 %v7375
  %7409 = vmatprep.subr.mxu0 0.0
  %7410 = vmatpush2.xpose.msra.mxu0 0.0
  %7411 = vmatprep.subr.mxu0 0.0
  %7412 = vmatpush2.xpose.msra.mxu0 0.0
  %7413 = vmatprep.subr.mxu0 0.0
  %7414 = vmatpush2.xpose.msra.mxu0 0.0
  %7415 = vmatprep.subr.mxu0 0.0
  %7416 = vmatpush2.xpose.msra.mxu0 0.0
  %7417 = vmatprep.subr.mxu0 0.0
  %7418 = vmatpush2.xpose.msra.mxu0 0.0
  %7419 = vmatprep.subr.mxu0 0.0
  %7420 = vmatpush2.xpose.msra.mxu0 0.0
  %7421 = vmatprep.subr.mxu0 0.0
  %7422 = vmatpush2.xpose.msra.mxu0 0.0
  %7423 = vmatprep.subr.mxu0 0.0
  %7424 = vmatpush2.xpose.msra.mxu0 0.0
  %7425 = vmatprep.subr.mxu0 0.0
  %7426 = vmatpush2.xpose.msra.mxu0 0.0
  %7427 = vmatprep.subr.mxu0 0.0
  %7428 = vmatpush2.xpose.msra.mxu0 0.0
  %7429 = vmatprep.subr.mxu0 0.0
  %7430 = vmatpush2.xpose.msra.mxu0 0.0
  %7431 = vmatprep.subr.mxu0 0.0
  %7432 = vmatpush2.xpose.msra.mxu0 0.0
  %7433 = vmatprep.subr.mxu0 0.0
  %7434 = vmatpush2.xpose.msra.mxu0 0.0
  %7435 = vmatprep.subr.mxu0 0.0
  %7436 = vmatpush2.xpose.msra.mxu0 0.0
  %7437 = vmatprep.subr.mxu0 0.0
  %7438 = vmatpush2.xpose.msra.mxu0 0.0
  %7439 = vmatprep.subr.mxu0 0.0
  %7440 = vmatpush2.xpose.msra.mxu0 0.0
  %7441 = vmatprep.mubr.f32.mxu0 0.0
  %7442 = vmatmul.mubr.f32.gmra.mxu0 %v7372
  %v7443 = vpop.f32.mrf.mxu0
  %v7444 = vadd.f32 %v7369, %v7443
  %v7445 = vpop.f32.mrf.mxu0
  %7446 = vdwg.mxu0
  %v7447 = vsel %vm7269, %v7444, -inf
  %7448 = vmax.xlane.f32.xlu0 %v7447
  %v7449 = vpop.xlane.xlu0 %7448
  %v7450 = vsub.f32 %v7444, %v7449
  %v7451 = vmul.f32 %v7450, 1.442695
  %v7452 = vpow.pop %v7451
  %v7453 = vsel %vm7269, %v7452, 0.0
  %7454 = vadd.xlane.f32.xlu0 %v7453
  %v7455 = vpop.xlane.xlu0 %7454
  %v7456 = vrcp.pop %v7455
  %v7457 = vmul.f32 %v7452, %v7456
  %v7458 = vadd.f32 %v7280, %v7457
  %v7459 = vsel %vm7269, %v7458, -inf
  %7460 = vmax.xlane.f32.xlu0 %v7459
  %v7461 = vpop.xlane.xlu0 %7460
  %vm7462 = vcmp.eq.f32.partialorder %v7458, %v7461
  %v7463 = vsel %vm7462, %v3386, 3
  %v7464 = vsel %vm7269, %v7463, 2147483647
  %v7465 = vand.u32 %v7464, 65535
  %v7466 = vshra.s32 %v7464, 16
  %v7467 = vcvt.s32.f32 %v7465
  %v7468 = vcvt.s32.f32 %v7466
  %7469 = vmin.xlane.f32.xlu0 %v7468
  %v7470 = vpop.xlane.xlu0 %7469
  %vm7471 = vcmp.eq.f32.partialorder %v7468, %v7470
  %v7472 = vsel %vm7471, %v7467, inf
  %7473 = vmin.xlane.f32.xlu0 %v7472
  %v7474 = vpop.xlane.xlu0 %7473
  %v7475 = vcvt.f32.s32 %v7474
  %v7476 = vcvt.f32.s32 %v7470
  %v7477 = vshll.u32 %v7476, 16
  %v7478 = vadd.s32 %v7477, %v7475
  %vm7479 = vcmask 1024
  %7480 = vst.msk [vmem:[%s27] sm:$0x3] %vm7479, %v7478
  // Predicated region
  $region110: #{model_forward.1} parent=0 // pred_check
    _
  $region111: #{model_forward.1} parent=0 // pred_check_branch
    %7482 = sbr.rel (0) target = $region113
  $region112: #{model_forward.1} parent=0 // pred_region
    _
  $region113: #{model_forward.1} parent=0 // pred_fallthru
    _
  // Predicated region
  $region114: #{model_forward.1} parent=0 // pred_check
    _
  $region115: #{model_forward.1} parent=0 // pred_check_branch
    %7484 = sbr.rel (0) target = $region117
  $region116: #{model_forward.1} parent=0 // pred_region
    _
  $region117: #{model_forward.1} parent=0 // pred_fallthru
    _

</llo_original>
